<compile_context>
chip_gen: v5e
topology: v5e:2x2
jax: 0.10.0
libtpu: 0.0.40
codegen_flags: <defaults>
</compile_context>

<pallas_src>
import functools
import numpy as np
import jax
import jax.numpy as jnp
from jax.experimental import pallas as pl
from jax.experimental.pallas import tpu as pltpu

# ----------------------------- model configuration ---------------------------------
INPUT_IMAGE_SIZE = (64, 64)     # real ESR-9: (96, 96)
BASE_CH = (8, 16, 16, 16)       # real ESR-9: (64, 128, 128, 128)
BRANCH_CH = (16, 32, 32, 64)    # real ESR-9: (128, 256, 256, 512)
NUM_BRANCHES = 3                # real ESR-9: 9
NUM_EMOTIONS = 8
BN_EPS = 1e-5

TM_MAX = 512                    # M tile (rows of the im2col GEMM)


def _round_up(x, m):
    return (x + m - 1) // m * m


# ----------------------------- Pallas kernel ---------------------------------------
def _gemm_bias_act_kernel(relu, a_ref, w_ref, b_ref, o_ref):
    """out = maybe_relu(a @ w + bias); full-K block, bf16 inputs, f32 accumulation."""
    y = jnp.dot(a_ref[...], w_ref[...], preferred_element_type=jnp.float32)
    y = y + b_ref[...]
    if relu:
        y = jnp.maximum(y, 0.0)
    o_ref[...] = y.astype(o_ref.dtype)


def gemm_bias_act(a, w, bias, relu, out_dtype):
    """Batched GEMM: a (G, M, Kp) bf16, w (G, Kp, Np) bf16, bias (G, 1, Np) f32.

    Grid = (G, M tiles, N tiles); K is taken in one block (no reduction axis).
    M is not padded: edge blocks read undefined rows whose outputs are masked.
    """
    G, M, Kp = a.shape
    Gw, Kw, Np = w.shape
    assert G == Gw and Kp == Kw and Kp % 128 == 0 and Np % 128 == 0

    tm = min(TM_MAX, _round_up(M, 8))
    tn = 256 if Np % 256 == 0 else 128
    grid = (G, pl.cdiv(M, tm), Np // tn)

    return pl.pallas_call(
        functools.partial(_gemm_bias_act_kernel, relu),
        out_shape=jax.ShapeDtypeStruct((G, M, Np), out_dtype),
        grid_spec=pltpu.PrefetchScalarGridSpec(
            num_scalar_prefetch=0,
            grid=grid,
            in_specs=[
                pl.BlockSpec((None, tm, Kp), lambda g, i, j: (g, i, 0)),
                pl.BlockSpec((None, Kp, tn), lambda g, i, j: (g, 0, j)),
                pl.BlockSpec((None, 1, tn), lambda g, i, j: (g, 0, j)),
            ],
            out_specs=pl.BlockSpec((None, tm, tn), lambda g, i, j: (g, i, j)),
        ),
        compiler_params=pltpu.CompilerParams(
            dimension_semantics=("parallel", "parallel", "parallel")),
    )(a, w, bias)


# ----------------------------- JAX glue (layout / resize / pooling) -----------------
def center_crop_tensor(x, size):
    h, w = x.shape[-2:]
    top, left = (h - size) // 2, (w - size) // 2
    return x[..., top:top + size, left:left + size]


def resize_bilinear_align_corners(x, out_h, out_w):
    """PyTorch F.interpolate(mode='bilinear', align_corners=True) on NCHW."""
    _, _, H, W = x.shape

    def coords(inp, out):
        src = jnp.linspace(0.0, float(inp - 1), out)
        lo = jnp.clip(jnp.floor(src).astype(jnp.int32), 0, inp - 2)
        hi = lo + 1
        frac = src - lo.astype(jnp.float32)
        return lo, hi, frac

    y0, y1, wy = coords(H, out_h)
    x0, x1, wx = coords(W, out_w)
    top = (x[:, :, y0, :] * (1.0 - wy)[None, None, :, None]
           + x[:, :, y1, :] * wy[None, None, :, None])
    return top[:, :, :, x0] * (1.0 - wx) + top[:, :, :, x1] * wx


def maxpool2(x):
    """nn.MaxPool2d(2, 2) on (G, N, H, W, C) NHWC (floor division of spatial dims)."""
    G, N, H, W, C = x.shape
    H2, W2 = (H // 2) * 2, (W // 2) * 2
    x = x[:, :, :H2, :W2, :].reshape(G, N, H2 // 2, 2, W2 // 2, 2, C)
    return x.max(axis=(3, 5))


def pad_last(a, kp):
    k = a.shape[-1]
    if kp == k:
        return a
    return jnp.concatenate(
        [a, jnp.zeros(a.shape[:-1] + (kp - k,), a.dtype)], axis=-1)


def im2col(x, KH, KW, pad, Kp):
    """NHWC im2col, columns ordered (kh, kw, cin), zero-padded to Kp columns."""
    if pad:
        x = jnp.pad(x, ((0, 0), (0, 0), (pad, pad), (pad, pad), (0, 0)))
    G, N, H, W, C = x.shape
    OH, OW = H - KH + 1, W - KW + 1
    slabs = [x[:, :, i:i + OH, j:j + OW, :] for i in range(KH) for j in range(KW)]
    K = KH * KW * C
    if Kp > K:
        slabs.append(jnp.zeros((G, N, OH, OW, Kp - K), x.dtype))
    patches = jnp.concatenate(slabs, axis=-1)
    return patches.reshape(G, N * OH * OW, Kp), OH, OW


def conv_block(x, layer):
    """Conv2d(stride 1) + folded eval-BN + ReLU via the fused Pallas GEMM kernel."""
    patches, OH, OW = im2col(x, layer["kh"], layer["kw"], layer["pad"],
                             layer["w"].shape[1])
    out = gemm_bias_act(patches, layer["w"], layer["b"],
                        relu=True, out_dtype=jnp.bfloat16)
    G, N = x.shape[0], x.shape[1]
    return out[:, :, :layer["cout"]].reshape(G, N, OH, OW, layer["cout"])


# ----------------------------- one-time weight preparation --------------------------
def _fold_conv(p, in_scale=None, in_shift=None):
    """Fold (optional input affine) + eval BN into a (KH*KW*Cin, Cout) f32 matrix."""
    w = p["w"].astype(jnp.float32)            # (Cout, Cin, KH, KW)
    b = p["b"].astype(jnp.float32)
    if in_scale is not None:                   # conv(a*x + c) = (a*w)*x + c*sum(w) + b
        b = b + in_shift * jnp.sum(w, axis=(1, 2, 3))
        w = w * in_scale
    scale = p["gamma"] / jnp.sqrt(p["var"] + BN_EPS)
    bias = p["beta"] + (b - p["mean"]) * scale
    w = w * scale[:, None, None, None]         # BN scale folded into weights
    Cout, Cin, KH, KW = w.shape
    w2d = jnp.transpose(w, (2, 3, 1, 0)).reshape(KH * KW * Cin, Cout)
    return w2d, bias


def _pad_wb(w2d, bias, Kp, Np):
    K, Nc = w2d.shape
    w_p = jnp.zeros((Kp, Np), jnp.float32).at[:K, :Nc].set(w2d).astype(jnp.bfloat16)
    b_p = jnp.zeros((1, Np), jnp.float32).at[0, :Nc].set(bias)
    return w_p, b_p


def _prep_single(p, kh, pad, in_scale=None, in_shift=None):
    w2d, bias = _fold_conv(p, in_scale, in_shift)
    K, Cout = w2d.shape
    w_p, b_p = _pad_wb(w2d, bias, _round_up(K, 128), _round_up(Cout, 128))
    return dict(w=w_p[None], b=b_p[None], kh=kh, kw=kh, pad=pad, cout=Cout)


def _prep_packed(ps, kh, pad):
    """Pack several convs that share the SAME input: concat weights along Cout."""
    parts = [_fold_conv(p) for p in ps]
    w2d = jnp.concatenate([w for w, _ in parts], axis=1)
    bias = jnp.concatenate([bb for _, bb in parts], axis=0)
    K, Cout = w2d.shape
    w_p, b_p = _pad_wb(w2d, bias, _round_up(K, 128), _round_up(Cout, 128))
    return dict(w=w_p[None], b=b_p[None], kh=kh, kw=kh, pad=pad, cout=Cout)


def _prep_stacked(ps, kh, pad):
    """Stack per-branch convs along a leading G axis (batched GEMM)."""
    parts = [_fold_conv(p) for p in ps]
    K, Cout = parts[0][0].shape
    Kp, Np = _round_up(K, 128), _round_up(Cout, 128)
    ws, bs = zip(*[_pad_wb(w, bb, Kp, Np) for w, bb in parts])
    return dict(w=jnp.stack(ws), b=jnp.stack(bs), kh=kh, kw=kh, pad=pad, cout=Cout)


def _prep_fc_stacked(ps):
    Cout, Cin = ps[0]["w"].shape
    Kp, Np = _round_up(Cin, 128), _round_up(Cout, 128)
    ws, bs = zip(*[_pad_wb(p["w"].astype(jnp.float32).T,
                           p["b"].astype(jnp.float32), Kp, Np) for p in ps])
    return dict(w=jnp.stack(ws), b=jnp.stack(bs), cout=Cout, kin=Cin)


def prepare_params(raw):
    b = raw["base"]
    base = dict(
        conv1=_prep_single(b["conv1"], kh=5, pad=0, in_scale=0.5, in_shift=0.5),
        conv2=_prep_single(b["conv2"], kh=3, pad=0),
        conv3=_prep_single(b["conv3"], kh=3, pad=0),
        conv4=_prep_single(b["conv4"], kh=3, pad=0),
    )
    brs = raw["branches"]
    return dict(
        base=base,
        branch_conv1=_prep_packed([br["conv1"] for br in brs], kh=3, pad=0),
        branch_conv2=_prep_stacked([br["conv2"] for br in brs], kh=3, pad=0),
        branch_conv3=_prep_stacked([br["conv3"] for br in brs], kh=3, pad=0),
        branch_conv4=_prep_stacked([br["conv4"] for br in brs], kh=3, pad=1),
        fc=_prep_fc_stacked([br["fc"] for br in brs]),
        fc_dim=_prep_fc_stacked([br["fc_dim"] for br in brs]),
    )


# ----------------------------- parameter init (deterministic, synthetic) ------------
def init_conv_bn(key, cin, cout, k):
    ks = jax.random.split(key, 6)
    fan_in = cin * k * k
    return dict(
        w=jax.random.normal(ks[0], (cout, cin, k, k), jnp.float32) / np.sqrt(fan_in),
        b=0.01 * jax.random.normal(ks[1], (cout,), jnp.float32),
        gamma=1.0 + 0.1 * jax.random.normal(ks[2], (cout,), jnp.float32),
        beta=0.1 * jax.random.normal(ks[3], (cout,), jnp.float32),
        mean=0.1 * jax.random.normal(ks[4], (cout,), jnp.float32),
        var=0.9 + 0.2 * jax.random.uniform(ks[5], (cout,), jnp.float32),
    )


def init_linear(key, cin, cout):
    k1, k2 = jax.random.split(key)
    return dict(
        w=jax.random.normal(k1, (cout, cin), jnp.float32) / np.sqrt(cin),
        b=0.01 * jax.random.normal(k2, (cout,), jnp.float32),
    )


def init_params(key):
    kb, kbr = jax.random.split(key)
    kb1, kb2, kb3, kb4 = jax.random.split(kb, 4)
    base = dict(
        conv1=init_conv_bn(kb1, 3, BASE_CH[0], 5),
        conv2=init_conv_bn(kb2, BASE_CH[0], BASE_CH[1], 3),
        conv3=init_conv_bn(kb3, BASE_CH[1], BASE_CH[2], 3),
        conv4=init_conv_bn(kb4, BASE_CH[2], BASE_CH[3], 3),
    )
    branches = []
    for bk in jax.random.split(kbr, NUM_BRANCHES):
        k1, k2, k3, k4, k5, k6 = jax.random.split(bk, 6)
        branches.append(dict(
            conv1=init_conv_bn(k1, BASE_CH[3], BRANCH_CH[0], 3),
            conv2=init_conv_bn(k2, BRANCH_CH[0], BRANCH_CH[1], 3),
            conv3=init_conv_bn(k3, BRANCH_CH[1], BRANCH_CH[2], 3),
            conv4=init_conv_bn(k4, BRANCH_CH[2], BRANCH_CH[3], 3),
            fc=init_linear(k5, BRANCH_CH[3], NUM_EMOTIONS),
            fc_dim=init_linear(k6, NUM_EMOTIONS, 2),
        ))
    return dict(base=base, branches=branches)


# ----------------------------- ESR9Skeleton.forward ---------------------------------
def esr9_forward(prep, x, center_crop=None):
    # 1) optional center crop
    if center_crop is not None:
        x = center_crop_tensor(x, center_crop)
    # 2) resize to ESR.INPUT_IMAGE_SIZE (bilinear, align_corners=True)
    if x.shape[-1] != INPUT_IMAGE_SIZE[0]:
        x = resize_bilinear_align_corners(x, *INPUT_IMAGE_SIZE)
    # 3) x.mul(0.5).add(0.5) is folded (exactly) into base.conv1 weights/bias.
    x = jnp.transpose(x, (0, 2, 3, 1)).astype(jnp.bfloat16)[None]  # (1, N, H, W, C)

    # 4) shared representations: Base = conv/bn/relu x4 with two 2x2 max-pools
    b = prep["base"]
    x = conv_block(x, b["conv1"])                 # 5x5
    x = maxpool2(conv_block(x, b["conv2"]))       # 3x3 + pool
    x = conv_block(x, b["conv3"])                 # 3x3
    shared = maxpool2(conv_block(x, b["conv4"]))  # 3x3 + pool -> (1, N, 12, 12, 16)

    # 5) ensemble of convolutional branches
    #    conv1: all branches packed along Cout (single GEMM on the shared activation)
    y = conv_block(shared, prep["branch_conv1"])  # (1, N, 10, 10, NB*C1)
    _, N, OH, OW, CC = y.shape
    c1 = CC // NUM_BRANCHES
    y = y.reshape(N, OH, OW, NUM_BRANCHES, c1)
    y = jnp.transpose(y, (3, 0, 1, 2, 4))         # (NB, N, 10, 10, C1)

    #    conv2..4: one batched GEMM per layer (branch = leading grid axis)
    y = maxpool2(conv_block(y, prep["branch_conv2"]))
    y = conv_block(y, prep["branch_conv3"])
    y = conv_block(y, prep["branch_conv4"])       # (NB, N, 2, 2, C4)
    pooled = jnp.mean(y.astype(jnp.float32), axis=(2, 3))   # GlobalAvgPool -> (NB, N, C4)

    fc = prep["fc"]
    a_fc = pad_last(pooled.astype(jnp.bfloat16), fc["w"].shape[1])
    emo = gemm_bias_act(a_fc, fc["w"], fc["b"], relu=False,
                        out_dtype=jnp.float32)[:, :, :fc["cout"]]      # (NB, N, 8)

    # affect head (computed as in the torch branch forward, not part of the output)
    fd = prep["fc_dim"]
    a_fd = pad_last(jnp.maximum(emo, 0.0).astype(jnp.bfloat16), fd["w"].shape[1])
    _affect = gemm_bias_act(a_fd, fd["w"], fd["b"], relu=False,
                            out_dtype=jnp.float32)[:, :, :fd["cout"]]

    # 6) out = [shared_representations (NCHW), cat(emotions, dim=1)]
    shared_out = jnp.transpose(shared[0], (0, 3, 1, 2)).astype(jnp.float32)
    emotions = jnp.transpose(emo, (1, 0, 2))      # (N, NB, NUM_EMOTIONS)
    return shared_out, emotions


if __name__ == "__main__":
    key = jax.random.PRNGKey(0)
    kx, kp = jax.random.split(key)
    # small NCHW input (will be bilinearly resized to INPUT_IMAGE_SIZE)
    x = jax.random.uniform(kx, (2, 3, 16, 16), jnp.float32, minval=-1.0, maxval=1.0)
    raw_params = init_params(kp)
    prep = prepare_params(raw_params)     # one-time: BN fold, pack, pad, bf16 cast

    fwd = jax.jit(lambda inp: esr9_forward(prep, inp, center_crop=None))
    shared, emotions = fwd(x)
    jax.block_until_ready((shared, emotions))

    assert shared.shape == (2, BASE_CH[3], 12, 12), shared.shape
    assert emotions.shape == (2, NUM_BRANCHES, NUM_EMOTIONS), emotions.shape
    assert jnp.all(jnp.isfinite(shared)) and jnp.all(jnp.isfinite(emotions))
    print("KERNEL_OK")
</pallas_src>

<mosaic_0001>
module attributes {stable_mosaic.version = 11 : i64} {
  func.func @_gemm_bias_act_kernel(%arg0: i32, %arg1: i32, %arg2: i32, %arg3: memref<1x512x128xbf16, #tpu.memory_space<vmem>>, %arg4: memref<1x128x128xbf16, #tpu.memory_space<vmem>>, %arg5: memref<1x1x128xf32, #tpu.memory_space<vmem>>, %arg6: memref<1x512x128xbf16, #tpu.memory_space<vmem>>) attributes {dimension_semantics = [#tpu.dimension_semantics<parallel>, #tpu.dimension_semantics<parallel>, #tpu.dimension_semantics<parallel>], iteration_bounds = array<i64: 1, 15, 1>, scalar_prefetch = 0 : i64, scratch_operands = 0 : i64, tpu.core_type = #tpu.core_type<tc>, window_params = [{transform_indices = @transform_0, window_bounds = array<i64: 1, 512, 128>}, {transform_indices = @transform_1, window_bounds = array<i64: 1, 128, 128>}, {transform_indices = @transform_2, window_bounds = array<i64: 1, 1, 128>}, {transform_indices = @transform_3, window_bounds = array<i64: 1, 512, 128>}]} {
    %c0 = arith.constant 0 : index
    %c0_0 = arith.constant 0 : index
    %c0_1 = arith.constant 0 : index
    %0 = vector.load %arg3[%c0, %c0_0, %c0_1] : memref<1x512x128xbf16, #tpu.memory_space<vmem>>, vector<1x512x128xbf16>
    %1 = vector.shape_cast %0 : vector<1x512x128xbf16> to vector<512x128xbf16>
    %c0_2 = arith.constant 0 : index
    %c0_3 = arith.constant 0 : index
    %c0_4 = arith.constant 0 : index
    %2 = vector.load %arg4[%c0_2, %c0_3, %c0_4] : memref<1x128x128xbf16, #tpu.memory_space<vmem>>, vector<1x128x128xbf16>
    %3 = vector.shape_cast %2 : vector<1x128x128xbf16> to vector<128x128xbf16>
    %cst = arith.constant dense<0.000000e+00> : vector<512x128xf32>
    %4 = tpu.matmul %1, %3, %cst {dimension_numbers = #tpu.dot_dimension_numbers<[1], [0], [0], [1], [0, 0, 1, 1], [], []>} : vector<512x128xbf16>, vector<128x128xbf16>, vector<512x128xf32> -> vector<512x128xf32>
    %c0_5 = arith.constant 0 : index
    %c0_6 = arith.constant 0 : index
    %c0_7 = arith.constant 0 : index
    %5 = vector.load %arg5[%c0_5, %c0_6, %c0_7] : memref<1x1x128xf32, #tpu.memory_space<vmem>>, vector<1x1x128xf32>
    %6 = vector.shape_cast %5 : vector<1x1x128xf32> to vector<1x128xf32>
    %7 = vector.broadcast %6 : vector<1x128xf32> to vector<512x128xf32>
    %8 = arith.addf %4, %7 : vector<512x128xf32>
    %cst_8 = arith.constant 0.000000e+00 : f32
    %9 = vector.broadcast %cst_8 : f32 to vector<512x128xf32>
    %10 = arith.maximumf %8, %9 : vector<512x128xf32>
    %11 = arith.truncf %10 : vector<512x128xf32> to vector<512x128xbf16>
    %c0_9 = arith.constant 0 : index
    %c0_10 = arith.constant 0 : index
    %c0_11 = arith.constant 0 : index
    %12 = vector.load %arg6[%c0_9, %c0_10, %c0_11] : memref<1x512x128xbf16, #tpu.memory_space<vmem>>, vector<1x512x128xbf16>
    %13 = vector.shape_cast %12 : vector<1x512x128xbf16> to vector<512x128xbf16>
    %14 = vector.shape_cast %11 : vector<512x128xbf16> to vector<1x512x128xbf16>
    tpu.vector_store %arg6[%c0_9, %c0_10, %c0_11], %14 {strides = array<i32>} : memref<1x512x128xbf16, #tpu.memory_space<vmem>>, vector<1x512x128xbf16>,
    return
  }
  func.func @transform_0(%arg0: i32, %arg1: i32, %arg2: i32) -> (i32, i32, i32) {
    %c0_i32 = arith.constant 0 : i32
    %c0_i32_0 = arith.constant 0 : i32
    return %arg0, %arg1, %c0_i32 : i32, i32, i32
  }
  func.func @transform_1(%arg0: i32, %arg1: i32, %arg2: i32) -> (i32, i32, i32) {
    %c0_i32 = arith.constant 0 : i32
    %c0_i32_0 = arith.constant 0 : i32
    return %arg0, %c0_i32, %arg2 : i32, i32, i32
  }
  func.func @transform_2(%arg0: i32, %arg1: i32, %arg2: i32) -> (i32, i32, i32) {
    %c0_i32 = arith.constant 0 : i32
    %c0_i32_0 = arith.constant 0 : i32
    return %arg0, %c0_i32, %arg2 : i32, i32, i32
  }
  func.func @transform_3(%arg0: i32, %arg1: i32, %arg2: i32) -> (i32, i32, i32) {
    %c0_i32 = arith.constant 0 : i32
    return %arg0, %arg1, %arg2 : i32, i32, i32
  }
}

module attributes {stable_mosaic.version = 11 : i64} {
  func.func @_gemm_bias_act_kernel(%arg0: i32, %arg1: i32, %arg2: i32, %arg3: memref<1x512x128xbf16, #tpu.memory_space<vmem>>, %arg4: memref<1x128x128xbf16, #tpu.memory_space<vmem>>, %arg5: memref<1x1x128xf32, #tpu.memory_space<vmem>>, %arg6: memref<1x512x128xbf16, #tpu.memory_space<vmem>>) attributes {dimension_semantics = [#tpu.dimension_semantics<parallel>, #tpu.dimension_semantics<parallel>, #tpu.dimension_semantics<parallel>], iteration_bounds = array<i64: 1, 14, 1>, scalar_prefetch = 0 : i64, scratch_operands = 0 : i64, tpu.core_type = #tpu.core_type<tc>, window_params = [{transform_indices = @transform_0, window_bounds = array<i64: 1, 512, 128>}, {transform_indices = @transform_1, window_bounds = array<i64: 1, 128, 128>}, {transform_indices = @transform_2, window_bounds = array<i64: 1, 1, 128>}, {transform_indices = @transform_3, window_bounds = array<i64: 1, 512, 128>}]} {
    %c0 = arith.constant 0 : index
    %c0_0 = arith.constant 0 : index
    %c0_1 = arith.constant 0 : index
    %0 = vector.load %arg3[%c0, %c0_0, %c0_1] : memref<1x512x128xbf16, #tpu.memory_space<vmem>>, vector<1x512x128xbf16>
    %1 = vector.shape_cast %0 : vector<1x512x128xbf16> to vector<512x128xbf16>
    %c0_2 = arith.constant 0 : index
    %c0_3 = arith.constant 0 : index
    %c0_4 = arith.constant 0 : index
    %2 = vector.load %arg4[%c0_2, %c0_3, %c0_4] : memref<1x128x128xbf16, #tpu.memory_space<vmem>>, vector<1x128x128xbf16>
    %3 = vector.shape_cast %2 : vector<1x128x128xbf16> to vector<128x128xbf16>
    %cst = arith.constant dense<0.000000e+00> : vector<512x128xf32>
    %4 = tpu.matmul %1, %3, %cst {dimension_numbers = #tpu.dot_dimension_numbers<[1], [0], [0], [1], [0, 0, 1, 1], [], []>} : vector<512x128xbf16>, vector<128x128xbf16>, vector<512x128xf32> -> vector<512x128xf32>
    %c0_5 = arith.constant 0 : index
    %c0_6 = arith.constant 0 : index
    %c0_7 = arith.constant 0 : index
    %5 = vector.load %arg5[%c0_5, %c0_6, %c0_7] : memref<1x1x128xf32, #tpu.memory_space<vmem>>, vector<1x1x128xf32>
    %6 = vector.shape_cast %5 : vector<1x1x128xf32> to vector<1x128xf32>
    %7 = vector.broadcast %6 : vector<1x128xf32> to vector<512x128xf32>
    %8 = arith.addf %4, %7 : vector<512x128xf32>
    %cst_8 = arith.constant 0.000000e+00 : f32
    %9 = vector.broadcast %cst_8 : f32 to vector<512x128xf32>
    %10 = arith.maximumf %8, %9 : vector<512x128xf32>
    %11 = arith.truncf %10 : vector<512x128xf32> to vector<512x128xbf16>
    %c0_9 = arith.constant 0 : index
    %c0_10 = arith.constant 0 : index
    %c0_11 = arith.constant 0 : index
    %12 = vector.load %arg6[%c0_9, %c0_10, %c0_11] : memref<1x512x128xbf16, #tpu.memory_space<vmem>>, vector<1x512x128xbf16>
    %13 = vector.shape_cast %12 : vector<1x512x128xbf16> to vector<512x128xbf16>
    %14 = vector.shape_cast %11 : vector<512x128xbf16> to vector<1x512x128xbf16>
    tpu.vector_store %arg6[%c0_9, %c0_10, %c0_11], %14 {strides = array<i32>} : memref<1x512x128xbf16, #tpu.memory_space<vmem>>, vector<1x512x128xbf16>,
    return
  }
  func.func @transform_0(%arg0: i32, %arg1: i32, %arg2: i32) -> (i32, i32, i32) {
    %c0_i32 = arith.constant 0 : i32
    %c0_i32_0 = arith.constant 0 : i32
    return %arg0, %arg1, %c0_i32 : i32, i32, i32
  }
  func.func @transform_1(%arg0: i32, %arg1: i32, %arg2: i32) -> (i32, i32, i32) {
    %c0_i32 = arith.constant 0 : i32
    %c0_i32_0 = arith.constant 0 : i32
    return %arg0, %c0_i32, %arg2 : i32, i32, i32
  }
  func.func @transform_2(%arg0: i32, %arg1: i32, %arg2: i32) -> (i32, i32, i32) {
    %c0_i32 = arith.constant 0 : i32
    %c0_i32_0 = arith.constant 0 : i32
    return %arg0, %c0_i32, %arg2 : i32, i32, i32
  }
  func.func @transform_3(%arg0: i32, %arg1: i32, %arg2: i32) -> (i32, i32, i32) {
    %c0_i32 = arith.constant 0 : i32
    return %arg0, %arg1, %arg2 : i32, i32, i32
  }
}

module attributes {stable_mosaic.version = 11 : i64} {
  func.func @_gemm_bias_act_kernel(%arg0: i32, %arg1: i32, %arg2: i32, %arg3: memref<1x512x256xbf16, #tpu.memory_space<vmem>>, %arg4: memref<1x256x128xbf16, #tpu.memory_space<vmem>>, %arg5: memref<1x1x128xf32, #tpu.memory_space<vmem>>, %arg6: memref<1x512x128xbf16, #tpu.memory_space<vmem>>) attributes {dimension_semantics = [#tpu.dimension_semantics<parallel>, #tpu.dimension_semantics<parallel>, #tpu.dimension_semantics<parallel>], iteration_bounds = array<i64: 1, 3, 1>, scalar_prefetch = 0 : i64, scratch_operands = 0 : i64, tpu.core_type = #tpu.core_type<tc>, window_params = [{transform_indices = @transform_0, window_bounds = array<i64: 1, 512, 256>}, {transform_indices = @transform_1, window_bounds = array<i64: 1, 256, 128>}, {transform_indices = @transform_2, window_bounds = array<i64: 1, 1, 128>}, {transform_indices = @transform_3, window_bounds = array<i64: 1, 512, 128>}]} {
    %c0 = arith.constant 0 : index
    %c0_0 = arith.constant 0 : index
    %c0_1 = arith.constant 0 : index
    %0 = vector.load %arg3[%c0, %c0_0, %c0_1] : memref<1x512x256xbf16, #tpu.memory_space<vmem>>, vector<1x512x256xbf16>
    %1 = vector.shape_cast %0 : vector<1x512x256xbf16> to vector<512x256xbf16>
    %c0_2 = arith.constant 0 : index
    %c0_3 = arith.constant 0 : index
    %c0_4 = arith.constant 0 : index
    %2 = vector.load %arg4[%c0_2, %c0_3, %c0_4] : memref<1x256x128xbf16, #tpu.memory_space<vmem>>, vector<1x256x128xbf16>
    %3 = vector.shape_cast %2 : vector<1x256x128xbf16> to vector<256x128xbf16>
    %cst = arith.constant dense<0.000000e+00> : vector<512x128xf32>
    %4 = tpu.matmul %1, %3, %cst {dimension_numbers = #tpu.dot_dimension_numbers<[1], [0], [0], [1], [0, 0, 1, 1], [], []>} : vector<512x256xbf16>, vector<256x128xbf16>, vector<512x128xf32> -> vector<512x128xf32>
    %c0_5 = arith.constant 0 : index
    %c0_6 = arith.constant 0 : index
    %c0_7 = arith.constant 0 : index
    %5 = vector.load %arg5[%c0_5, %c0_6, %c0_7] : memref<1x1x128xf32, #tpu.memory_space<vmem>>, vector<1x1x128xf32>
    %6 = vector.shape_cast %5 : vector<1x1x128xf32> to vector<1x128xf32>
    %7 = vector.broadcast %6 : vector<1x128xf32> to vector<512x128xf32>
    %8 = arith.addf %4, %7 : vector<512x128xf32>
    %cst_8 = arith.constant 0.000000e+00 : f32
    %9 = vector.broadcast %cst_8 : f32 to vector<512x128xf32>
    %10 = arith.maximumf %8, %9 : vector<512x128xf32>
    %11 = arith.truncf %10 : vector<512x128xf32> to vector<512x128xbf16>
    %c0_9 = arith.constant 0 : index
    %c0_10 = arith.constant 0 : index
    %c0_11 = arith.constant 0 : index
    %12 = vector.load %arg6[%c0_9, %c0_10, %c0_11] : memref<1x512x128xbf16, #tpu.memory_space<vmem>>, vector<1x512x128xbf16>
    %13 = vector.shape_cast %12 : vector<1x512x128xbf16> to vector<512x128xbf16>
    %14 = vector.shape_cast %11 : vector<512x128xbf16> to vector<1x512x128xbf16>
    tpu.vector_store %arg6[%c0_9, %c0_10, %c0_11], %14 {strides = array<i32>} : memref<1x512x128xbf16, #tpu.memory_space<vmem>>, vector<1x512x128xbf16>,
    return
  }
  func.func @transform_0(%arg0: i32, %arg1: i32, %arg2: i32) -> (i32, i32, i32) {
    %c0_i32 = arith.constant 0 : i32
    %c0_i32_0 = arith.constant 0 : i32
    return %arg0, %arg1, %c0_i32 : i32, i32, i32
  }
  func.func @transform_1(%arg0: i32, %arg1: i32, %arg2: i32) -> (i32, i32, i32) {
    %c0_i32 = arith.constant 0 : i32
    %c0_i32_0 = arith.constant 0 : i32
    return %arg0, %c0_i32, %arg2 : i32, i32, i32
  }
  func.func @transform_2(%arg0: i32, %arg1: i32, %arg2: i32) -> (i32, i32, i32) {
    %c0_i32 = arith.constant 0 : i32
    %c0_i32_0 = arith.constant 0 : i32
    return %arg0, %c0_i32, %arg2 : i32, i32, i32
  }
  func.func @transform_3(%arg0: i32, %arg1: i32, %arg2: i32) -> (i32, i32, i32) {
    %c0_i32 = arith.constant 0 : i32
    return %arg0, %arg1, %arg2 : i32, i32, i32
  }
}

module attributes {stable_mosaic.version = 11 : i64} {
  func.func @_gemm_bias_act_kernel(%arg0: i32, %arg1: i32, %arg2: i32, %arg3: memref<1x512x256xbf16, #tpu.memory_space<vmem>>, %arg4: memref<1x256x128xbf16, #tpu.memory_space<vmem>>, %arg5: memref<1x1x128xf32, #tpu.memory_space<vmem>>, %arg6: memref<1x512x128xbf16, #tpu.memory_space<vmem>>) attributes {dimension_semantics = [#tpu.dimension_semantics<parallel>, #tpu.dimension_semantics<parallel>, #tpu.dimension_semantics<parallel>], iteration_bounds = array<i64: 1, 3, 1>, scalar_prefetch = 0 : i64, scratch_operands = 0 : i64, tpu.core_type = #tpu.core_type<tc>, window_params = [{transform_indices = @transform_0, window_bounds = array<i64: 1, 512, 256>}, {transform_indices = @transform_1, window_bounds = array<i64: 1, 256, 128>}, {transform_indices = @transform_2, window_bounds = array<i64: 1, 1, 128>}, {transform_indices = @transform_3, window_bounds = array<i64: 1, 512, 128>}]} {
    %c0 = arith.constant 0 : index
    %c0_0 = arith.constant 0 : index
    %c0_1 = arith.constant 0 : index
    %0 = vector.load %arg3[%c0, %c0_0, %c0_1] : memref<1x512x256xbf16, #tpu.memory_space<vmem>>, vector<1x512x256xbf16>
    %1 = vector.shape_cast %0 : vector<1x512x256xbf16> to vector<512x256xbf16>
    %c0_2 = arith.constant 0 : index
    %c0_3 = arith.constant 0 : index
    %c0_4 = arith.constant 0 : index
    %2 = vector.load %arg4[%c0_2, %c0_3, %c0_4] : memref<1x256x128xbf16, #tpu.memory_space<vmem>>, vector<1x256x128xbf16>
    %3 = vector.shape_cast %2 : vector<1x256x128xbf16> to vector<256x128xbf16>
    %cst = arith.constant dense<0.000000e+00> : vector<512x128xf32>
    %4 = tpu.matmul %1, %3, %cst {dimension_numbers = #tpu.dot_dimension_numbers<[1], [0], [0], [1], [0, 0, 1, 1], [], []>} : vector<512x256xbf16>, vector<256x128xbf16>, vector<512x128xf32> -> vector<512x128xf32>
    %c0_5 = arith.constant 0 : index
    %c0_6 = arith.constant 0 : index
    %c0_7 = arith.constant 0 : index
    %5 = vector.load %arg5[%c0_5, %c0_6, %c0_7] : memref<1x1x128xf32, #tpu.memory_space<vmem>>, vector<1x1x128xf32>
    %6 = vector.shape_cast %5 : vector<1x1x128xf32> to vector<1x128xf32>
    %7 = vector.broadcast %6 : vector<1x128xf32> to vector<512x128xf32>
    %8 = arith.addf %4, %7 : vector<512x128xf32>
    %cst_8 = arith.constant 0.000000e+00 : f32
    %9 = vector.broadcast %cst_8 : f32 to vector<512x128xf32>
    %10 = arith.maximumf %8, %9 : vector<512x128xf32>
    %11 = arith.truncf %10 : vector<512x128xf32> to vector<512x128xbf16>
    %c0_9 = arith.constant 0 : index
    %c0_10 = arith.constant 0 : index
    %c0_11 = arith.constant 0 : index
    %12 = vector.load %arg6[%c0_9, %c0_10, %c0_11] : memref<1x512x128xbf16, #tpu.memory_space<vmem>>, vector<1x512x128xbf16>
    %13 = vector.shape_cast %12 : vector<1x512x128xbf16> to vector<512x128xbf16>
    %14 = vector.shape_cast %11 : vector<512x128xbf16> to vector<1x512x128xbf16>
    tpu.vector_store %arg6[%c0_9, %c0_10, %c0_11], %14 {strides = array<i32>} : memref<1x512x128xbf16, #tpu.memory_space<vmem>>, vector<1x512x128xbf16>,
    return
  }
  func.func @transform_0(%arg0: i32, %arg1: i32, %arg2: i32) -> (i32, i32, i32) {
    %c0_i32 = arith.constant 0 : i32
    %c0_i32_0 = arith.constant 0 : i32
    return %arg0, %arg1, %c0_i32 : i32, i32, i32
  }
  func.func @transform_1(%arg0: i32, %arg1: i32, %arg2: i32) -> (i32, i32, i32) {
    %c0_i32 = arith.constant 0 : i32
    %c0_i32_0 = arith.constant 0 : i32
    return %arg0, %c0_i32, %arg2 : i32, i32, i32
  }
  func.func @transform_2(%arg0: i32, %arg1: i32, %arg2: i32) -> (i32, i32, i32) {
    %c0_i32 = arith.constant 0 : i32
    %c0_i32_0 = arith.constant 0 : i32
    return %arg0, %c0_i32, %arg2 : i32, i32, i32
  }
  func.func @transform_3(%arg0: i32, %arg1: i32, %arg2: i32) -> (i32, i32, i32) {
    %c0_i32 = arith.constant 0 : i32
    return %arg0, %arg1, %arg2 : i32, i32, i32
  }
}

module attributes {stable_mosaic.version = 11 : i64} {
  func.func @_gemm_bias_act_kernel(%arg0: i32, %arg1: i32, %arg2: i32, %arg3: memref<1x200x256xbf16, #tpu.memory_space<vmem>>, %arg4: memref<1x256x128xbf16, #tpu.memory_space<vmem>>, %arg5: memref<1x1x128xf32, #tpu.memory_space<vmem>>, %arg6: memref<1x200x128xbf16, #tpu.memory_space<vmem>>) attributes {dimension_semantics = [#tpu.dimension_semantics<parallel>, #tpu.dimension_semantics<parallel>, #tpu.dimension_semantics<parallel>], iteration_bounds = array<i64: 1, 1, 1>, scalar_prefetch = 0 : i64, scratch_operands = 0 : i64, tpu.core_type = #tpu.core_type<tc>, window_params = [{transform_indices = @transform_0, window_bounds = array<i64: 1, 200, 256>}, {transform_indices = @transform_1, window_bounds = array<i64: 1, 256, 128>}, {transform_indices = @transform_2, window_bounds = array<i64: 1, 1, 128>}, {transform_indices = @transform_3, window_bounds = array<i64: 1, 200, 128>}]} {
    %c0 = arith.constant 0 : index
    %c0_0 = arith.constant 0 : index
    %c0_1 = arith.constant 0 : index
    %0 = vector.load %arg3[%c0, %c0_0, %c0_1] : memref<1x200x256xbf16, #tpu.memory_space<vmem>>, vector<1x200x256xbf16>
    %1 = vector.shape_cast %0 : vector<1x200x256xbf16> to vector<200x256xbf16>
    %c0_2 = arith.constant 0 : index
    %c0_3 = arith.constant 0 : index
    %c0_4 = arith.constant 0 : index
    %2 = vector.load %arg4[%c0_2, %c0_3, %c0_4] : memref<1x256x128xbf16, #tpu.memory_space<vmem>>, vector<1x256x128xbf16>
    %3 = vector.shape_cast %2 : vector<1x256x128xbf16> to vector<256x128xbf16>
    %cst = arith.constant dense<0.000000e+00> : vector<200x128xf32>
    %4 = tpu.matmul %1, %3, %cst {dimension_numbers = #tpu.dot_dimension_numbers<[1], [0], [0], [1], [0, 0, 1, 1], [], []>} : vector<200x256xbf16>, vector<256x128xbf16>, vector<200x128xf32> -> vector<200x128xf32>
    %c0_5 = arith.constant 0 : index
    %c0_6 = arith.constant 0 : index
    %c0_7 = arith.constant 0 : index
    %5 = vector.load %arg5[%c0_5, %c0_6, %c0_7] : memref<1x1x128xf32, #tpu.memory_space<vmem>>, vector<1x1x128xf32>
    %6 = vector.shape_cast %5 : vector<1x1x128xf32> to vector<1x128xf32>
    %7 = vector.broadcast %6 : vector<1x128xf32> to vector<200x128xf32>
    %8 = arith.addf %4, %7 : vector<200x128xf32>
    %cst_8 = arith.constant 0.000000e+00 : f32
    %9 = vector.broadcast %cst_8 : f32 to vector<200x128xf32>
    %10 = arith.maximumf %8, %9 : vector<200x128xf32>
    %11 = arith.truncf %10 : vector<200x128xf32> to vector<200x128xbf16>
    %c0_9 = arith.constant 0 : index
    %c0_10 = arith.constant 0 : index
    %c0_11 = arith.constant 0 : index
    %12 = vector.load %arg6[%c0_9, %c0_10, %c0_11] : memref<1x200x128xbf16, #tpu.memory_space<vmem>>, vector<1x200x128xbf16>
    %13 = vector.shape_cast %12 : vector<1x200x128xbf16> to vector<200x128xbf16>
    %14 = vector.shape_cast %11 : vector<200x128xbf16> to vector<1x200x128xbf16>
    tpu.vector_store %arg6[%c0_9, %c0_10, %c0_11], %14 {strides = array<i32>} : memref<1x200x128xbf16, #tpu.memory_space<vmem>>, vector<1x200x128xbf16>,
    return
  }
  func.func @transform_0(%arg0: i32, %arg1: i32, %arg2: i32) -> (i32, i32, i32) {
    %c0_i32 = arith.constant 0 : i32
    %c0_i32_0 = arith.constant 0 : i32
    return %arg0, %arg1, %c0_i32 : i32, i32, i32
  }
  func.func @transform_1(%arg0: i32, %arg1: i32, %arg2: i32) -> (i32, i32, i32) {
    %c0_i32 = arith.constant 0 : i32
    %c0_i32_0 = arith.constant 0 : i32
    return %arg0, %c0_i32, %arg2 : i32, i32, i32
  }
  func.func @transform_2(%arg0: i32, %arg1: i32, %arg2: i32) -> (i32, i32, i32) {
    %c0_i32 = arith.constant 0 : i32
    %c0_i32_0 = arith.constant 0 : i32
    return %arg0, %c0_i32, %arg2 : i32, i32, i32
  }
  func.func @transform_3(%arg0: i32, %arg1: i32, %arg2: i32) -> (i32, i32, i32) {
    %c0_i32 = arith.constant 0 : i32
    return %arg0, %arg1, %arg2 : i32, i32, i32
  }
}

module attributes {stable_mosaic.version = 11 : i64} {
  func.func @_gemm_bias_act_kernel(%arg0: i32, %arg1: i32, %arg2: i32, %arg3: memref<1x128x256xbf16, #tpu.memory_space<vmem>>, %arg4: memref<1x256x128xbf16, #tpu.memory_space<vmem>>, %arg5: memref<1x1x128xf32, #tpu.memory_space<vmem>>, %arg6: memref<1x128x128xbf16, #tpu.memory_space<vmem>>) attributes {dimension_semantics = [#tpu.dimension_semantics<parallel>, #tpu.dimension_semantics<parallel>, #tpu.dimension_semantics<parallel>], iteration_bounds = array<i64: 3, 1, 1>, scalar_prefetch = 0 : i64, scratch_operands = 0 : i64, tpu.core_type = #tpu.core_type<tc>, window_params = [{transform_indices = @transform_0, window_bounds = array<i64: 1, 128, 256>}, {transform_indices = @transform_1, window_bounds = array<i64: 1, 256, 128>}, {transform_indices = @transform_2, window_bounds = array<i64: 1, 1, 128>}, {transform_indices = @transform_3, window_bounds = array<i64: 1, 128, 128>}]} {
    %c0 = arith.constant 0 : index
    %c0_0 = arith.constant 0 : index
    %c0_1 = arith.constant 0 : index
    %0 = vector.load %arg3[%c0, %c0_0, %c0_1] : memref<1x128x256xbf16, #tpu.memory_space<vmem>>, vector<1x128x256xbf16>
    %1 = vector.shape_cast %0 : vector<1x128x256xbf16> to vector<128x256xbf16>
    %c0_2 = arith.constant 0 : index
    %c0_3 = arith.constant 0 : index
    %c0_4 = arith.constant 0 : index
    %2 = vector.load %arg4[%c0_2, %c0_3, %c0_4] : memref<1x256x128xbf16, #tpu.memory_space<vmem>>, vector<1x256x128xbf16>
    %3 = vector.shape_cast %2 : vector<1x256x128xbf16> to vector<256x128xbf16>
    %cst = arith.constant dense<0.000000e+00> : vector<128x128xf32>
    %4 = tpu.matmul %1, %3, %cst {dimension_numbers = #tpu.dot_dimension_numbers<[1], [0], [0], [1], [0, 0, 1, 1], [], []>} : vector<128x256xbf16>, vector<256x128xbf16>, vector<128x128xf32> -> vector<128x128xf32>
    %c0_5 = arith.constant 0 : index
    %c0_6 = arith.constant 0 : index
    %c0_7 = arith.constant 0 : index
    %5 = vector.load %arg5[%c0_5, %c0_6, %c0_7] : memref<1x1x128xf32, #tpu.memory_space<vmem>>, vector<1x1x128xf32>
    %6 = vector.shape_cast %5 : vector<1x1x128xf32> to vector<1x128xf32>
    %7 = vector.broadcast %6 : vector<1x128xf32> to vector<128x128xf32>
    %8 = arith.addf %4, %7 : vector<128x128xf32>
    %cst_8 = arith.constant 0.000000e+00 : f32
    %9 = vector.broadcast %cst_8 : f32 to vector<128x128xf32>
    %10 = arith.maximumf %8, %9 : vector<128x128xf32>
    %11 = arith.truncf %10 : vector<128x128xf32> to vector<128x128xbf16>
    %c0_9 = arith.constant 0 : index
    %c0_10 = arith.constant 0 : index
    %c0_11 = arith.constant 0 : index
    %12 = vector.load %arg6[%c0_9, %c0_10, %c0_11] : memref<1x128x128xbf16, #tpu.memory_space<vmem>>, vector<1x128x128xbf16>
    %13 = vector.shape_cast %12 : vector<1x128x128xbf16> to vector<128x128xbf16>
    %14 = vector.shape_cast %11 : vector<128x128xbf16> to vector<1x128x128xbf16>
    tpu.vector_store %arg6[%c0_9, %c0_10, %c0_11], %14 {strides = array<i32>} : memref<1x128x128xbf16, #tpu.memory_space<vmem>>, vector<1x128x128xbf16>,
    return
  }
  func.func @transform_0(%arg0: i32, %arg1: i32, %arg2: i32) -> (i32, i32, i32) {
    %c0_i32 = arith.constant 0 : i32
    %c0_i32_0 = arith.constant 0 : i32
    return %arg0, %arg1, %c0_i32 : i32, i32, i32
  }
  func.func @transform_1(%arg0: i32, %arg1: i32, %arg2: i32) -> (i32, i32, i32) {
    %c0_i32 = arith.constant 0 : i32
    %c0_i32_0 = arith.constant 0 : i32
    return %arg0, %c0_i32, %arg2 : i32, i32, i32
  }
  func.func @transform_2(%arg0: i32, %arg1: i32, %arg2: i32) -> (i32, i32, i32) {
    %c0_i32 = arith.constant 0 : i32
    %c0_i32_0 = arith.constant 0 : i32
    return %arg0, %c0_i32, %arg2 : i32, i32, i32
  }
  func.func @transform_3(%arg0: i32, %arg1: i32, %arg2: i32) -> (i32, i32, i32) {
    %c0_i32 = arith.constant 0 : i32
    return %arg0, %arg1, %arg2 : i32, i32, i32
  }
}

module attributes {stable_mosaic.version = 11 : i64} {
  func.func @_gemm_bias_act_kernel(%arg0: i32, %arg1: i32, %arg2: i32, %arg3: memref<1x8x384xbf16, #tpu.memory_space<vmem>>, %arg4: memref<1x384x128xbf16, #tpu.memory_space<vmem>>, %arg5: memref<1x1x128xf32, #tpu.memory_space<vmem>>, %arg6: memref<1x8x128xbf16, #tpu.memory_space<vmem>>) attributes {dimension_semantics = [#tpu.dimension_semantics<parallel>, #tpu.dimension_semantics<parallel>, #tpu.dimension_semantics<parallel>], iteration_bounds = array<i64: 3, 1, 1>, scalar_prefetch = 0 : i64, scratch_operands = 0 : i64, tpu.core_type = #tpu.core_type<tc>, window_params = [{transform_indices = @transform_0, window_bounds = array<i64: 1, 8, 384>}, {transform_indices = @transform_1, window_bounds = array<i64: 1, 384, 128>}, {transform_indices = @transform_2, window_bounds = array<i64: 1, 1, 128>}, {transform_indices = @transform_3, window_bounds = array<i64: 1, 8, 128>}]} {
    %c0 = arith.constant 0 : index
    %c0_0 = arith.constant 0 : index
    %c0_1 = arith.constant 0 : index
    %0 = vector.load %arg3[%c0, %c0_0, %c0_1] : memref<1x8x384xbf16, #tpu.memory_space<vmem>>, vector<1x8x384xbf16>
    %1 = vector.shape_cast %0 : vector<1x8x384xbf16> to vector<8x384xbf16>
    %c0_2 = arith.constant 0 : index
    %c0_3 = arith.constant 0 : index
    %c0_4 = arith.constant 0 : index
    %2 = vector.load %arg4[%c0_2, %c0_3, %c0_4] : memref<1x384x128xbf16, #tpu.memory_space<vmem>>, vector<1x384x128xbf16>
    %3 = vector.shape_cast %2 : vector<1x384x128xbf16> to vector<384x128xbf16>
    %cst = arith.constant dense<0.000000e+00> : vector<8x128xf32>
    %4 = tpu.matmul %1, %3, %cst {dimension_numbers = #tpu.dot_dimension_numbers<[1], [0], [0], [1], [0, 0, 1, 1], [], []>} : vector<8x384xbf16>, vector<384x128xbf16>, vector<8x128xf32> -> vector<8x128xf32>
    %c0_5 = arith.constant 0 : index
    %c0_6 = arith.constant 0 : index
    %c0_7 = arith.constant 0 : index
    %5 = vector.load %arg5[%c0_5, %c0_6, %c0_7] : memref<1x1x128xf32, #tpu.memory_space<vmem>>, vector<1x1x128xf32>
    %6 = vector.shape_cast %5 : vector<1x1x128xf32> to vector<1x128xf32>
    %7 = vector.broadcast %6 : vector<1x128xf32> to vector<8x128xf32>
    %8 = arith.addf %4, %7 : vector<8x128xf32>
    %cst_8 = arith.constant 0.000000e+00 : f32
    %9 = vector.broadcast %cst_8 : f32 to vector<8x128xf32>
    %10 = arith.maximumf %8, %9 : vector<8x128xf32>
    %11 = arith.truncf %10 : vector<8x128xf32> to vector<8x128xbf16>
    %c0_9 = arith.constant 0 : index
    %c0_10 = arith.constant 0 : index
    %c0_11 = arith.constant 0 : index
    %12 = vector.load %arg6[%c0_9, %c0_10, %c0_11] : memref<1x8x128xbf16, #tpu.memory_space<vmem>>, vector<1x8x128xbf16>
    %13 = vector.shape_cast %12 : vector<1x8x128xbf16> to vector<8x128xbf16>
    %14 = vector.shape_cast %11 : vector<8x128xbf16> to vector<1x8x128xbf16>
    tpu.vector_store %arg6[%c0_9, %c0_10, %c0_11], %14 {strides = array<i32>} : memref<1x8x128xbf16, #tpu.memory_space<vmem>>, vector<1x8x128xbf16>,
    return
  }
  func.func @transform_0(%arg0: i32, %arg1: i32, %arg2: i32) -> (i32, i32, i32) {
    %c0_i32 = arith.constant 0 : i32
    %c0_i32_0 = arith.constant 0 : i32
    return %arg0, %arg1, %c0_i32 : i32, i32, i32
  }
  func.func @transform_1(%arg0: i32, %arg1: i32, %arg2: i32) -> (i32, i32, i32) {
    %c0_i32 = arith.constant 0 : i32
    %c0_i32_0 = arith.constant 0 : i32
    return %arg0, %c0_i32, %arg2 : i32, i32, i32
  }
  func.func @transform_2(%arg0: i32, %arg1: i32, %arg2: i32) -> (i32, i32, i32) {
    %c0_i32 = arith.constant 0 : i32
    %c0_i32_0 = arith.constant 0 : i32
    return %arg0, %c0_i32, %arg2 : i32, i32, i32
  }
  func.func @transform_3(%arg0: i32, %arg1: i32, %arg2: i32) -> (i32, i32, i32) {
    %c0_i32 = arith.constant 0 : i32
    return %arg0, %arg1, %arg2 : i32, i32, i32
  }
}

module attributes {stable_mosaic.version = 11 : i64} {
  func.func @_gemm_bias_act_kernel(%arg0: i32, %arg1: i32, %arg2: i32, %arg3: memref<1x8x128xbf16, #tpu.memory_space<vmem>>, %arg4: memref<1x128x128xbf16, #tpu.memory_space<vmem>>, %arg5: memref<1x1x128xf32, #tpu.memory_space<vmem>>, %arg6: memref<1x8x128xf32, #tpu.memory_space<vmem>>) attributes {dimension_semantics = [#tpu.dimension_semantics<parallel>, #tpu.dimension_semantics<parallel>, #tpu.dimension_semantics<parallel>], iteration_bounds = array<i64: 3, 1, 1>, scalar_prefetch = 0 : i64, scratch_operands = 0 : i64, tpu.core_type = #tpu.core_type<tc>, window_params = [{transform_indices = @transform_0, window_bounds = array<i64: 1, 8, 128>}, {transform_indices = @transform_1, window_bounds = array<i64: 1, 128, 128>}, {transform_indices = @transform_2, window_bounds = array<i64: 1, 1, 128>}, {transform_indices = @transform_3, window_bounds = array<i64: 1, 8, 128>}]} {
    %c0 = arith.constant 0 : index
    %c0_0 = arith.constant 0 : index
    %c0_1 = arith.constant 0 : index
    %0 = vector.load %arg3[%c0, %c0_0, %c0_1] : memref<1x8x128xbf16, #tpu.memory_space<vmem>>, vector<1x8x128xbf16>
    %1 = vector.shape_cast %0 : vector<1x8x128xbf16> to vector<8x128xbf16>
    %c0_2 = arith.constant 0 : index
    %c0_3 = arith.constant 0 : index
    %c0_4 = arith.constant 0 : index
    %2 = vector.load %arg4[%c0_2, %c0_3, %c0_4] : memref<1x128x128xbf16, #tpu.memory_space<vmem>>, vector<1x128x128xbf16>
    %3 = vector.shape_cast %2 : vector<1x128x128xbf16> to vector<128x128xbf16>
    %cst = arith.constant dense<0.000000e+00> : vector<8x128xf32>
    %4 = tpu.matmul %1, %3, %cst {dimension_numbers = #tpu.dot_dimension_numbers<[1], [0], [0], [1], [0, 0, 1, 1], [], []>} : vector<8x128xbf16>, vector<128x128xbf16>, vector<8x128xf32> -> vector<8x128xf32>
    %c0_5 = arith.constant 0 : index
    %c0_6 = arith.constant 0 : index
    %c0_7 = arith.constant 0 : index
    %5 = vector.load %arg5[%c0_5, %c0_6, %c0_7] : memref<1x1x128xf32, #tpu.memory_space<vmem>>, vector<1x1x128xf32>
    %6 = vector.shape_cast %5 : vector<1x1x128xf32> to vector<1x128xf32>
    %7 = vector.broadcast %6 : vector<1x128xf32> to vector<8x128xf32>
    %8 = arith.addf %4, %7 : vector<8x128xf32>
    %c0_8 = arith.constant 0 : index
    %c0_9 = arith.constant 0 : index
    %c0_10 = arith.constant 0 : index
    %9 = vector.load %arg6[%c0_8, %c0_9, %c0_10] : memref<1x8x128xf32, #tpu.memory_space<vmem>>, vector<1x8x128xf32>
    %10 = vector.shape_cast %9 : vector<1x8x128xf32> to vector<8x128xf32>
    %11 = vector.shape_cast %8 : vector<8x128xf32> to vector<1x8x128xf32>
    tpu.vector_store %arg6[%c0_8, %c0_9, %c0_10], %11 {strides = array<i32>} : memref<1x8x128xf32, #tpu.memory_space<vmem>>, vector<1x8x128xf32>,
    return
  }
  func.func @transform_0(%arg0: i32, %arg1: i32, %arg2: i32) -> (i32, i32, i32) {
    %c0_i32 = arith.constant 0 : i32
    %c0_i32_0 = arith.constant 0 : i32
    return %arg0, %arg1, %c0_i32 : i32, i32, i32
  }
  func.func @transform_1(%arg0: i32, %arg1: i32, %arg2: i32) -> (i32, i32, i32) {
    %c0_i32 = arith.constant 0 : i32
    %c0_i32_0 = arith.constant 0 : i32
    return %arg0, %c0_i32, %arg2 : i32, i32, i32
  }
  func.func @transform_2(%arg0: i32, %arg1: i32, %arg2: i32) -> (i32, i32, i32) {
    %c0_i32 = arith.constant 0 : i32
    %c0_i32_0 = arith.constant 0 : i32
    return %arg0, %c0_i32, %arg2 : i32, i32, i32
  }
  func.func @transform_3(%arg0: i32, %arg1: i32, %arg2: i32) -> (i32, i32, i32) {
    %c0_i32 = arith.constant 0 : i32
    return %arg0, %arg1, %arg2 : i32, i32, i32
  }
}

</mosaic_0001>

<llo_original>
// kernel: _lambda_.9
$region0: #{_lambda_.9}
  #allocation0 [shape = 'u32[]', space=smem, size = 0x4, offset = 0x4, fixed_abs, tag = 'smem constant byte address 0x4 - core index']
  #allocation1 [shape = 'u32[72,128]{1,0:T(1,128)}', space=vmem, size = 0x9000, scoped, tag = 'internal scratch']
  %s0 = inlined_call_operand.vmem [shape: bf16[1,7200,128], index: 0, kind: input, shape index: {}]
  %s1 = inlined_call_operand.vmem [shape: bf16[1,128,128], index: 1, kind: input, shape index: {}]
  %s2 = inlined_call_operand.vmem [shape: f32[1,1,128], index: 2, kind: input, shape index: {}]
  %s3 = inlined_call_operand.vmem [shape: bf16[1,7200,128], index: 3, kind: output, shape index: {}]
  %s4 = sld [smem:[#allocation0]]
  $region89: #{_lambda_.9} parent=0
    _
  %s6 = ssub.s32 1, %s4
  %s7 = scalar_select 0, %s6, %s4
  $region1: #{_lambda_.9} parent=0
    #allocation2 [shape = 'u8[262144]{0}', space=vmem, size = 0x40000, scoped, tag = 'output window, operand 0']
    loop: start=0, step=1, limit=17
    $region2: #{_lambda_.9} parent=1 // loop_pre_header
      _
    $region3: #{_lambda_.9} parent=1 // loop_header
      %s9 = sphi 0, %s13
      %p10 = scmp.ge.s32.totalorder %s9, 17
      %s16 = sphi 0, %s35
      %s17 = sphi 0, %s31
      %s18 = sphi 0, %s27
      %s19 = sphi 0, %s16
      %s20 = sphi 0, %s17
      %s21 = sphi 0, %s18
      %s22 = sphi 0, %s19
      %s23 = sphi 0, %s20
      %s24 = sphi 0, %s21
      %s40 = sphi 0, %s42
      %s43 = sphi 0, %s40
      %s44 = sphi 0, %s43
      %s60 = sphi 0, %s44
      %s68 = sphi 0, %s70
      %s71 = sphi 0, %s68
      %s72 = sphi 0, %s71
      %s88 = sphi 0, %s72
      %s96 = sphi 0, %s98
      %s99 = sphi 0, %s96
      %s100 = sphi 0, %s99
      %s116 = sphi 0, %s100
      %s126 = sphi 0, %s128
      %s129 = sphi 0, %s126
      %s130 = sphi 0, %s129
      %s146 = sphi 0, %s130
    $region4: #{_lambda_.9} parent=1 // loop_header_branch
      %12 = sbr.rel (%p10) target = $region8
    $region5: #{_lambda_.9} parent=1 // loop_body
      %s14 = ssub.s32 %s9, 1
      %s15 = ssub.s32 %s9, 2
      %s25 = sadd.s32 1, %s18
      %p26 = scmp.ge.s32.totalorder %s25, 1
      %s27 = scalar_select %p26, 0, %s25
      %s28 = sadd.s32 1, %s17
      %s29 = scalar_select %p26, %s28, %s17
      %p30 = scmp.ge.s32.totalorder %s29, 15
      %s31 = scalar_select %p30, 0, %s29
      %s32 = sadd.s32 1, %s16
      %s33 = scalar_select %p30, %s32, %s16
      %p34 = scmp.ge.s32.totalorder %s33, 1
      %s35 = scalar_select %p34, 0, %s33
      %s36 = ssub.s32 %s16, %s35
      %s37 = ssub.s32 %s17, %s31
      %s38 = sor.u32 %s36, %s37
      %p39 = scmp.eq.s32.totalorder %s38, 0
      %s41 = sadd.s32 %s40, 1
      %s42 = scalar_select %p39, %s40, %s41
      %p45 = pneg %p39
      %p46 = scmp.eq.s32.totalorder %s9, 14
      %p47 = por %p45, %p46
      %p48 = scmp.ne.s32.totalorder %s40, %s43
      %p49 = scmp.eq.s32.totalorder %s9, 0
      %p50 = por %p48, %p49
      %p51 = scmp.ne.s32.totalorder %s40, %s43
      %p52 = scmp.eq.s32.totalorder %s14, 14
      %p53 = por %p51, %p52
      %p54 = scmp.ne.s32.totalorder %s43, %s44
      %p55 = scmp.eq.s32.totalorder %s14, 0
      %p56 = por %p54, %p55
      %p57 = scmp.ne.s32.totalorder %s43, %s44
      %p58 = scmp.eq.s32.totalorder %s15, 14
      %p59 = por %p57, %p58
      %p61 = scmp.ne.s32.totalorder %s44, %s60
      %p62 = scmp.eq.s32.totalorder %s15, 0
      %p63 = por %p61, %p62
      %s64 = ssub.s32 %s16, %s35
      %s65 = ssub.s32 %s18, %s27
      %s66 = sor.u32 %s64, %s65
      %p67 = scmp.eq.s32.totalorder %s66, 0
      %s69 = sadd.s32 %s68, 1
      %s70 = scalar_select %p67, %s68, %s69
      %p73 = pneg %p67
      %p74 = scmp.eq.s32.totalorder %s9, 14
      %p75 = por %p73, %p74
      %p76 = scmp.ne.s32.totalorder %s68, %s71
      %p77 = scmp.eq.s32.totalorder %s9, 0
      %p78 = por %p76, %p77
      %p79 = scmp.ne.s32.totalorder %s68, %s71
      %p80 = scmp.eq.s32.totalorder %s14, 14
      %p81 = por %p79, %p80
      %p82 = scmp.ne.s32.totalorder %s71, %s72
      %p83 = scmp.eq.s32.totalorder %s14, 0
      %p84 = por %p82, %p83
      %p85 = scmp.ne.s32.totalorder %s71, %s72
      %p86 = scmp.eq.s32.totalorder %s15, 14
      %p87 = por %p85, %p86
      %p89 = scmp.ne.s32.totalorder %s72, %s88
      %p90 = scmp.eq.s32.totalorder %s15, 0
      %p91 = por %p89, %p90
      %s92 = ssub.s32 %s16, %s35
      %s93 = ssub.s32 %s18, %s27
      %s94 = sor.u32 %s92, %s93
      %p95 = scmp.eq.s32.totalorder %s94, 0
      %s97 = sadd.s32 %s96, 1
      %s98 = scalar_select %p95, %s96, %s97
      %p101 = pneg %p95
      %p102 = scmp.eq.s32.totalorder %s9, 14
      %p103 = por %p101, %p102
      %p104 = scmp.ne.s32.totalorder %s96, %s99
      %p105 = scmp.eq.s32.totalorder %s9, 0
      %p106 = por %p104, %p105
      %p107 = scmp.ne.s32.totalorder %s96, %s99
      %p108 = scmp.eq.s32.totalorder %s14, 14
      %p109 = por %p107, %p108
      %p110 = scmp.ne.s32.totalorder %s99, %s100
      %p111 = scmp.eq.s32.totalorder %s14, 0
      %p112 = por %p110, %p111
      %p113 = scmp.ne.s32.totalorder %s99, %s100
      %p114 = scmp.eq.s32.totalorder %s15, 14
      %p115 = por %p113, %p114
      %p117 = scmp.ne.s32.totalorder %s100, %s116
      %p118 = scmp.eq.s32.totalorder %s15, 0
      %p119 = por %p117, %p118
      %s120 = ssub.s32 %s16, %s35
      %s121 = ssub.s32 %s17, %s31
      %s122 = sor.u32 %s120, %s121
      %s123 = ssub.s32 %s18, %s27
      %s124 = sor.u32 %s122, %s123
      %p125 = scmp.eq.s32.totalorder %s124, 0
      %s127 = sadd.s32 %s126, 1
      %s128 = scalar_select %p125, %s126, %s127
      %p131 = pneg %p125
      %p132 = scmp.eq.s32.totalorder %s9, 14
      %p133 = por %p131, %p132
      %p134 = scmp.ne.s32.totalorder %s126, %s129
      %p135 = scmp.eq.s32.totalorder %s9, 0
      %p136 = por %p134, %p135
      %p137 = scmp.ne.s32.totalorder %s126, %s129
      %p138 = scmp.eq.s32.totalorder %s14, 14
      %p139 = por %p137, %p138
      %p140 = scmp.ne.s32.totalorder %s129, %s130
      %p141 = scmp.eq.s32.totalorder %s14, 0
      %p142 = por %p140, %p141
      %p143 = scmp.ne.s32.totalorder %s129, %s130
      %p144 = scmp.eq.s32.totalorder %s15, 14
      %p145 = por %p143, %p144
      %p147 = scmp.ne.s32.totalorder %s130, %s146
      %p148 = scmp.eq.s32.totalorder %s15, 0
      %p149 = por %p147, %p148
      %p150 = scmp.le.s32.totalorder 1, %s9
      %p151 = scmp.lt.s32.totalorder %s9, 16
      %p152 = pnand %p150, %p151
      %p153 = pneg %p152
      // Predicated region
      $region9: #{_lambda_.9} parent=5 // pred_check
        _
      $region10: #{_lambda_.9} parent=5 // pred_check_branch
        %155 = sbr.rel (%p152) target = $region12
      $region11: #{_lambda_.9} parent=5 // pred_region
        %s156 = ssub.s32 %s9, 1
        // Predicated region
        $region13: #{_lambda_.9} parent=11 // pred_check
          %p157 = pneg %p84
        $region14: #{_lambda_.9} parent=11 // pred_check_branch
          %159 = sbr.rel (%p157) target = $region16
        $region15: #{_lambda_.9} parent=11 // pred_region
          %p160 = scmp.lt.s32.totalorder %s19, 0
          %s161 = scalar_select %p160, %s19, 0
          %p162 = scmp.lt.s32.totalorder %s21, 0
          %s163 = scalar_select %p162, %s21, 0
          %s164 = smul.addr %s161, 16
          %s165 = sadd.s32 %s163, %s164
          %s166 = smul.addr %s165, 4
          %s167 = scalar_lea.vmem %s1, %s166
        $region16: #{_lambda_.9} parent=11 // pred_fallthru
          _
        // Predicated region
        $region17: #{_lambda_.9} parent=11 // pred_check
          %p168 = pneg %p112
        $region18: #{_lambda_.9} parent=11 // pred_check_branch
          %170 = sbr.rel (%p168) target = $region20
        $region19: #{_lambda_.9} parent=11 // pred_region
          %p171 = scmp.lt.s32.totalorder %s19, 0
          %s172 = scalar_select %p171, %s19, 0
          %p173 = scmp.lt.s32.totalorder %s21, 0
          %s174 = scalar_select %p173, %s21, 0
          %s175 = sadd.s32 %s174, %s172
          %s176 = scalar_lea.vmem %s2, %s175
        $region20: #{_lambda_.9} parent=11 // pred_fallthru
          _
      $region12: #{_lambda_.9} parent=5 // pred_fallthru
        _
      %p177 = scmp.lt.s32.totalorder %s9, 15
      // Predicated region
      $region21: #{_lambda_.9} parent=5 // pred_check
        %p178 = pneg %p177
      $region22: #{_lambda_.9} parent=5 // pred_check_branch
        %180 = sbr.rel (%p178) target = $region24
      $region23: #{_lambda_.9} parent=5 // pred_region
        // Predicated region
        $region25: #{_lambda_.9} parent=23 // pred_check
          %p181 = pneg %p50
        $region26: #{_lambda_.9} parent=23 // pred_check_branch
          %183 = sbr.rel (%p181) target = $region28
        $region27: #{_lambda_.9} parent=23 // pred_region
          %s184 = smul.u32 64, %s17
          %s185 = ssub.s32 900, %s184
          %p186 = scmp.lt.s32.totalorder %s185, 64
          %s187 = scalar_select %p186, %s185, 64
          %s188 = smul.u32 4, %s187
          %p189 = scmp.lt.s32.totalorder %s16, 0
          %s190 = scalar_select %p189, %s16, 0
          %p191 = scmp.lt.s32.totalorder %s184, 899
          %s192 = scalar_select %p191, %s184, 899
          %s193 = smul.addr %s190, 900
          %s194 = sadd.s32 %s192, %s193
          %s195 = smul.addr %s194, 4
          %s196 = scalar_lea.vmem %s0, %s195
          %s197 = smul.u32 64, %s17
          %s198 = ssub.s32 900, %s197
          %p199 = scmp.lt.s32.totalorder %s198, 64
          %s200 = scalar_select %p199, %s198, 64
          %s201 = smul.u32 4, %s200
        $region28: #{_lambda_.9} parent=23 // pred_fallthru
          _
      $region24: #{_lambda_.9} parent=5 // pred_fallthru
        _
      %p202 = scmp.le.s32.totalorder 1, %s9
      %p203 = scmp.lt.s32.totalorder %s9, 16
      %p204 = pnand %p202, %p203
      %p205 = pneg %p204
      // Predicated region
      $region29: #{_lambda_.9} parent=5 // pred_check
        _
      $region30: #{_lambda_.9} parent=5 // pred_check_branch
        %207 = sbr.rel (%p204) target = $region32
      $region31: #{_lambda_.9} parent=5 // pred_region
        %s208 = ssub.s32 %s9, 1
        %s209 = smul.u32 64, %s20
        %s210 = ssub.s32 900, %s209
        %p211 = scmp.lt.s32.totalorder %s210, 64
        %s212 = scalar_select %p211, %s210, 64
        %s213 = smul.u32 4, %s212
        %p214 = scmp.lt.s32.totalorder %s19, 0
        %s215 = scalar_select %p214, %s19, 0
        %p216 = scmp.lt.s32.totalorder %s209, 899
        %s217 = scalar_select %p216, %s209, 899
        %s218 = smul.addr %s215, 900
        %s219 = sadd.s32 %s217, %s218
        %s220 = smul.addr %s219, 4
        %s221 = scalar_lea.vmem %s0, %s220
        %p222 = pneg %p56
        %p223 = pneg %p53
        %p224 = scmp.lt.s32.totalorder %s19, 0
        %s225 = scalar_select %p224, %s19, 0
        %p226 = scmp.lt.s32.totalorder %s21, 0
        %s227 = scalar_select %p226, %s21, 0
        %s228 = smul.addr %s225, 16
        %s229 = sadd.s32 %s227, %s228
        %s230 = smul.addr %s229, 4
        %s231 = scalar_lea.vmem %s1, %s230
        %p232 = pneg %p84
        %p233 = pneg %p81
        %p234 = scmp.lt.s32.totalorder %s19, 0
        %s235 = scalar_select %p234, %s19, 0
        %p236 = scmp.lt.s32.totalorder %s21, 0
        %s237 = scalar_select %p236, %s21, 0
        %s238 = sadd.s32 %s237, %s235
        %s239 = scalar_lea.vmem %s2, %s238
        %p240 = pneg %p112
        %p241 = pneg %p109
        %p242 = pneg %p142
        %p243 = pneg %p139
        %s244 = sand.u32 %s129, 1
        %s245 = sand.u32 %s129, 1
        %s246 = smul.addr %s245, 256
        %s247 = scalar_lea.vmem [#allocation2], %s246
        %s248 = smul.u32 64, %s20
        %s249 = ssub.s32 900, %s248
        %p250 = scmp.lt.s32.totalorder %s249, 64
        %s251 = scalar_select %p250, %s249, 64
        %s252 = smul.u32 4, %s251
        %p253 = scmp.lt.s32.totalorder %s19, 0
        %s254 = scalar_select %p253, %s19, 0
        %p255 = scmp.lt.s32.totalorder %s248, 899
        %s256 = scalar_select %p255, %s248, 899
        %s257 = smul.addr %s254, 900
        %s258 = sadd.s32 %s256, %s257
        %s259 = smul.addr %s258, 4
        %s260 = scalar_lea.vmem %s0, %s259
        %s261 = smul.u32 64, %s20
        %s262 = ssub.s32 900, %s261
        %p263 = scmp.lt.s32.totalorder %s262, 64
        %s264 = scalar_select %p263, %s262, 64
        %s265 = smul.u32 4, %s264
        %p266 = scmp.lt.s32.totalorder %s19, 0
        %s267 = scalar_select %p266, %s19, 0
        %p268 = scmp.lt.s32.totalorder %s21, 0
        %s269 = scalar_select %p268, %s21, 0
        %s270 = smul.addr %s267, 16
        %s271 = sadd.s32 %s269, %s270
        %s272 = smul.addr %s271, 4
        %s273 = scalar_lea.vmem %s1, %s272
        %p274 = scmp.lt.s32.totalorder %s19, 0
        %s275 = scalar_select %p274, %s19, 0
        %p276 = scmp.lt.s32.totalorder %s21, 0
        %s277 = scalar_select %p276, %s21, 0
        %s278 = sadd.s32 %s277, %s275
        %s279 = scalar_lea.vmem %s2, %s278
        %s280 = smul.u32 64, %s20
        %s281 = ssub.s32 900, %s280
        %p282 = scmp.lt.s32.totalorder %s281, 64
        %s283 = scalar_select %p282, %s281, 64
        %s284 = smul.u32 4, %s283
        %v285 = vld [vmem:[%s260] sm:$0xf]
        %v286 = vld [vmem:[%s260 + $0x4] sm:$0xf]
        %v287 = vld [vmem:[%s260 + $0x8] sm:$0xf]
        %v288 = vld [vmem:[%s260 + $0xc] sm:$0xf]
        %v289 = vld [vmem:[%s260 + $0x10] sm:$0xf]
        %v290 = vld [vmem:[%s260 + $0x14] sm:$0xf]
        %v291 = vld [vmem:[%s260 + $0x18] sm:$0xf]
        %v292 = vld [vmem:[%s260 + $0x1c] sm:$0xf]
        %v293 = vld [vmem:[%s260 + $0x20] sm:$0xf]
        %v294 = vld [vmem:[%s260 + $0x24] sm:$0xf]
        %v295 = vld [vmem:[%s260 + $0x28] sm:$0xf]
        %v296 = vld [vmem:[%s260 + $0x2c] sm:$0xf]
        %v297 = vld [vmem:[%s260 + $0x30] sm:$0xf]
        %v298 = vld [vmem:[%s260 + $0x34] sm:$0xf]
        %v299 = vld [vmem:[%s260 + $0x38] sm:$0xf]
        %v300 = vld [vmem:[%s260 + $0x3c] sm:$0xf]
        %v301 = vld [vmem:[%s260 + $0x40] sm:$0xf]
        %v302 = vld [vmem:[%s260 + $0x44] sm:$0xf]
        %v303 = vld [vmem:[%s260 + $0x48] sm:$0xf]
        %v304 = vld [vmem:[%s260 + $0x4c] sm:$0xf]
        %v305 = vld [vmem:[%s260 + $0x50] sm:$0xf]
        %v306 = vld [vmem:[%s260 + $0x54] sm:$0xf]
        %v307 = vld [vmem:[%s260 + $0x58] sm:$0xf]
        %v308 = vld [vmem:[%s260 + $0x5c] sm:$0xf]
        %v309 = vld [vmem:[%s260 + $0x60] sm:$0xf]
        %v310 = vld [vmem:[%s260 + $0x64] sm:$0xf]
        %v311 = vld [vmem:[%s260 + $0x68] sm:$0xf]
        %v312 = vld [vmem:[%s260 + $0x6c] sm:$0xf]
        %v313 = vld [vmem:[%s260 + $0x70] sm:$0xf]
        %v314 = vld [vmem:[%s260 + $0x74] sm:$0xf]
        %v315 = vld [vmem:[%s260 + $0x78] sm:$0xf]
        %v316 = vld [vmem:[%s260 + $0x7c] sm:$0xf]
        %v317 = vld [vmem:[%s260 + $0x80] sm:$0xf]
        %v318 = vld [vmem:[%s260 + $0x84] sm:$0xf]
        %v319 = vld [vmem:[%s260 + $0x88] sm:$0xf]
        %v320 = vld [vmem:[%s260 + $0x8c] sm:$0xf]
        %v321 = vld [vmem:[%s260 + $0x90] sm:$0xf]
        %v322 = vld [vmem:[%s260 + $0x94] sm:$0xf]
        %v323 = vld [vmem:[%s260 + $0x98] sm:$0xf]
        %v324 = vld [vmem:[%s260 + $0x9c] sm:$0xf]
        %v325 = vld [vmem:[%s260 + $0xa0] sm:$0xf]
        %v326 = vld [vmem:[%s260 + $0xa4] sm:$0xf]
        %v327 = vld [vmem:[%s260 + $0xa8] sm:$0xf]
        %v328 = vld [vmem:[%s260 + $0xac] sm:$0xf]
        %v329 = vld [vmem:[%s260 + $0xb0] sm:$0xf]
        %v330 = vld [vmem:[%s260 + $0xb4] sm:$0xf]
        %v331 = vld [vmem:[%s260 + $0xb8] sm:$0xf]
        %v332 = vld [vmem:[%s260 + $0xbc] sm:$0xf]
        %v333 = vld [vmem:[%s260 + $0xc0] sm:$0xf]
        %v334 = vld [vmem:[%s260 + $0xc4] sm:$0xf]
        %v335 = vld [vmem:[%s260 + $0xc8] sm:$0xf]
        %v336 = vld [vmem:[%s260 + $0xcc] sm:$0xf]
        %v337 = vld [vmem:[%s260 + $0xd0] sm:$0xf]
        %v338 = vld [vmem:[%s260 + $0xd4] sm:$0xf]
        %v339 = vld [vmem:[%s260 + $0xd8] sm:$0xf]
        %v340 = vld [vmem:[%s260 + $0xdc] sm:$0xf]
        %v341 = vld [vmem:[%s260 + $0xe0] sm:$0xf]
        %v342 = vld [vmem:[%s260 + $0xe4] sm:$0xf]
        %v343 = vld [vmem:[%s260 + $0xe8] sm:$0xf]
        %v344 = vld [vmem:[%s260 + $0xec] sm:$0xf]
        %v345 = vld [vmem:[%s260 + $0xf0] sm:$0xf]
        %v346 = vld [vmem:[%s260 + $0xf4] sm:$0xf]
        %v347 = vld [vmem:[%s260 + $0xf8] sm:$0xf]
        %v348 = vld [vmem:[%s260 + $0xfc] sm:$0xf]
        %v349 = vld [vmem:[%s273] sm:$0xf]
        %v350 = vld [vmem:[%s273 + $0x4] sm:$0xf]
        %v351 = vld [vmem:[%s273 + $0x8] sm:$0xf]
        %v352 = vld [vmem:[%s273 + $0xc] sm:$0xf]
        %v353 = vld [vmem:[%s273 + $0x10] sm:$0xf]
        %v354 = vld [vmem:[%s273 + $0x14] sm:$0xf]
        %v355 = vld [vmem:[%s273 + $0x18] sm:$0xf]
        %v356 = vld [vmem:[%s273 + $0x1c] sm:$0xf]
        %v357 = vld [vmem:[%s273 + $0x20] sm:$0xf]
        %v358 = vld [vmem:[%s273 + $0x24] sm:$0xf]
        %v359 = vld [vmem:[%s273 + $0x28] sm:$0xf]
        %v360 = vld [vmem:[%s273 + $0x2c] sm:$0xf]
        %v361 = vld [vmem:[%s273 + $0x30] sm:$0xf]
        %v362 = vld [vmem:[%s273 + $0x34] sm:$0xf]
        %v363 = vld [vmem:[%s273 + $0x38] sm:$0xf]
        %v364 = vld [vmem:[%s273 + $0x3c] sm:$0xf]
        %v365 = vld [vmem:[%s279] sm:$0x1]
        %v367 = vperm.slane %v365, 0
        %v433 = vunpack.c.l.b16 %v285
        %v434 = vunpack.c.l.b16 %v286
        %v435 = vunpack.c.l.b16 %v287
        %v436 = vunpack.c.l.b16 %v288
        %v437 = vunpack.c.l.b16 %v289
        %v438 = vunpack.c.l.b16 %v290
        %v439 = vunpack.c.l.b16 %v291
        %v440 = vunpack.c.l.b16 %v292
        %v441 = vunpack.c.l.b16 %v293
        %v442 = vunpack.c.l.b16 %v294
        %v443 = vunpack.c.l.b16 %v295
        %v444 = vunpack.c.l.b16 %v296
        %v445 = vunpack.c.l.b16 %v297
        %v446 = vunpack.c.l.b16 %v298
        %v447 = vunpack.c.l.b16 %v299
        %v448 = vunpack.c.l.b16 %v300
        %v449 = vunpack.c.l.b16 %v301
        %v450 = vunpack.c.l.b16 %v302
        %v451 = vunpack.c.l.b16 %v303
        %v452 = vunpack.c.l.b16 %v304
        %v453 = vunpack.c.l.b16 %v305
        %v454 = vunpack.c.l.b16 %v306
        %v455 = vunpack.c.l.b16 %v307
        %v456 = vunpack.c.l.b16 %v308
        %v457 = vunpack.c.l.b16 %v309
        %v458 = vunpack.c.l.b16 %v310
        %v459 = vunpack.c.l.b16 %v311
        %v460 = vunpack.c.l.b16 %v312
        %v461 = vunpack.c.l.b16 %v313
        %v462 = vunpack.c.l.b16 %v314
        %v463 = vunpack.c.l.b16 %v315
        %v464 = vunpack.c.l.b16 %v316
        %v465 = vunpack.c.l.b16 %v317
        %v466 = vunpack.c.l.b16 %v318
        %v467 = vunpack.c.l.b16 %v319
        %v468 = vunpack.c.l.b16 %v320
        %v469 = vunpack.c.l.b16 %v321
        %v470 = vunpack.c.l.b16 %v322
        %v471 = vunpack.c.l.b16 %v323
        %v472 = vunpack.c.l.b16 %v324
        %v473 = vunpack.c.l.b16 %v325
        %v474 = vunpack.c.l.b16 %v326
        %v475 = vunpack.c.l.b16 %v327
        %v476 = vunpack.c.l.b16 %v328
        %v477 = vunpack.c.l.b16 %v329
        %v478 = vunpack.c.l.b16 %v330
        %v479 = vunpack.c.l.b16 %v331
        %v480 = vunpack.c.l.b16 %v332
        %v481 = vunpack.c.l.b16 %v333
        %v482 = vunpack.c.l.b16 %v334
        %v483 = vunpack.c.l.b16 %v335
        %v484 = vunpack.c.l.b16 %v336
        %v485 = vunpack.c.l.b16 %v337
        %v486 = vunpack.c.l.b16 %v338
        %v487 = vunpack.c.l.b16 %v339
        %v488 = vunpack.c.l.b16 %v340
        %v489 = vunpack.c.l.b16 %v341
        %v490 = vunpack.c.l.b16 %v342
        %v491 = vunpack.c.l.b16 %v343
        %v492 = vunpack.c.l.b16 %v344
        %v493 = vunpack.c.l.b16 %v345
        %v494 = vunpack.c.l.b16 %v346
        %v495 = vunpack.c.l.b16 %v347
        %v496 = vunpack.c.l.b16 %v348
        %v497 = vpack.c.b16 %v434, %v433
        %v498 = vpack.c.b16 %v436, %v435
        %v499 = vpack.c.b16 %v438, %v437
        %v500 = vpack.c.b16 %v440, %v439
        %v501 = vpack.c.b16 %v442, %v441
        %v502 = vpack.c.b16 %v444, %v443
        %v503 = vpack.c.b16 %v446, %v445
        %v504 = vpack.c.b16 %v448, %v447
        %v505 = vpack.c.b16 %v450, %v449
        %v506 = vpack.c.b16 %v452, %v451
        %v507 = vpack.c.b16 %v454, %v453
        %v508 = vpack.c.b16 %v456, %v455
        %v509 = vpack.c.b16 %v458, %v457
        %v510 = vpack.c.b16 %v460, %v459
        %v511 = vpack.c.b16 %v462, %v461
        %v512 = vpack.c.b16 %v464, %v463
        %v513 = vpack.c.b16 %v466, %v465
        %v514 = vpack.c.b16 %v468, %v467
        %v515 = vpack.c.b16 %v470, %v469
        %v516 = vpack.c.b16 %v472, %v471
        %v517 = vpack.c.b16 %v474, %v473
        %v518 = vpack.c.b16 %v476, %v475
        %v519 = vpack.c.b16 %v478, %v477
        %v520 = vpack.c.b16 %v480, %v479
        %v521 = vpack.c.b16 %v482, %v481
        %v522 = vpack.c.b16 %v484, %v483
        %v523 = vpack.c.b16 %v486, %v485
        %v524 = vpack.c.b16 %v488, %v487
        %v525 = vpack.c.b16 %v490, %v489
        %v526 = vpack.c.b16 %v492, %v491
        %v527 = vpack.c.b16 %v494, %v493
        %v528 = vpack.c.b16 %v496, %v495
        %v577 = vunpack.c.l.b16 %v349
        %v578 = vunpack.c.l.b16 %v350
        %v579 = vunpack.c.l.b16 %v351
        %v580 = vunpack.c.l.b16 %v352
        %v581 = vunpack.c.l.b16 %v353
        %v582 = vunpack.c.l.b16 %v354
        %v583 = vunpack.c.l.b16 %v355
        %v584 = vunpack.c.l.b16 %v356
        %v585 = vunpack.c.l.b16 %v357
        %v586 = vunpack.c.l.b16 %v358
        %v587 = vunpack.c.l.b16 %v359
        %v588 = vunpack.c.l.b16 %v360
        %v589 = vunpack.c.l.b16 %v361
        %v590 = vunpack.c.l.b16 %v362
        %v591 = vunpack.c.l.b16 %v363
        %v592 = vunpack.c.l.b16 %v364
        %v593 = vpack.c.b16 %v578, %v577
        %v594 = vpack.c.b16 %v580, %v579
        %v595 = vpack.c.b16 %v582, %v581
        %v596 = vpack.c.b16 %v584, %v583
        %v597 = vpack.c.b16 %v586, %v585
        %v598 = vpack.c.b16 %v588, %v587
        %v599 = vpack.c.b16 %v590, %v589
        %v600 = vpack.c.b16 %v592, %v591
        %609 = vmatpush.bf16.msra.mxu0 %v600
        %610 = vmatpush.bf16.msra.mxu0 %v599
        %611 = vmatpush.bf16.msra.mxu0 %v598
        %612 = vmatpush.bf16.msra.mxu0 %v597
        %613 = vmatpush.bf16.msra.mxu0 %v596
        %614 = vmatpush.bf16.msra.mxu0 %v595
        %615 = vmatpush.bf16.msra.mxu0 %v594
        %616 = vmatpush.bf16.msra.mxu0 %v593
        %617 = vmatmul.bf16.gmra.mxu0 %v497
        %v618 = vpop.f32.mrf.mxu0
        %v619 = vadd.f32 %v367, %v618
        %v620 = vpop.f32.mrf.mxu0
        %v621 = vadd.f32 %v367, %v620
        %622 = vmatmul.bf16.gmra.mxu0 %v498
        %v623 = vpop.f32.mrf.mxu0
        %v624 = vadd.f32 %v367, %v623
        %v625 = vpop.f32.mrf.mxu0
        %v626 = vadd.f32 %v367, %v625
        %627 = vmatmul.bf16.gmra.mxu0 %v499
        %v628 = vpop.f32.mrf.mxu0
        %v629 = vadd.f32 %v367, %v628
        %v630 = vpop.f32.mrf.mxu0
        %v631 = vadd.f32 %v367, %v630
        %632 = vmatmul.bf16.gmra.mxu0 %v500
        %v633 = vpop.f32.mrf.mxu0
        %v634 = vadd.f32 %v367, %v633
        %v635 = vpop.f32.mrf.mxu0
        %v636 = vadd.f32 %v367, %v635
        %637 = vmatmul.bf16.gmra.mxu0 %v501
        %v638 = vpop.f32.mrf.mxu0
        %v639 = vadd.f32 %v367, %v638
        %v640 = vpop.f32.mrf.mxu0
        %v641 = vadd.f32 %v367, %v640
        %642 = vmatmul.bf16.gmra.mxu0 %v502
        %v643 = vpop.f32.mrf.mxu0
        %v644 = vadd.f32 %v367, %v643
        %v645 = vpop.f32.mrf.mxu0
        %v646 = vadd.f32 %v367, %v645
        %647 = vmatmul.bf16.gmra.mxu0 %v503
        %v648 = vpop.f32.mrf.mxu0
        %v649 = vadd.f32 %v367, %v648
        %v650 = vpop.f32.mrf.mxu0
        %v651 = vadd.f32 %v367, %v650
        %652 = vmatmul.bf16.gmra.mxu0 %v504
        %v653 = vpop.f32.mrf.mxu0
        %v654 = vadd.f32 %v367, %v653
        %v655 = vpop.f32.mrf.mxu0
        %v656 = vadd.f32 %v367, %v655
        %657 = vmatmul.bf16.gmra.mxu0 %v505
        %v658 = vpop.f32.mrf.mxu0
        %v659 = vadd.f32 %v367, %v658
        %v660 = vpop.f32.mrf.mxu0
        %v661 = vadd.f32 %v367, %v660
        %662 = vmatmul.bf16.gmra.mxu0 %v506
        %v663 = vpop.f32.mrf.mxu0
        %v664 = vadd.f32 %v367, %v663
        %v665 = vpop.f32.mrf.mxu0
        %v666 = vadd.f32 %v367, %v665
        %667 = vmatmul.bf16.gmra.mxu0 %v507
        %v668 = vpop.f32.mrf.mxu0
        %v669 = vadd.f32 %v367, %v668
        %v670 = vpop.f32.mrf.mxu0
        %v671 = vadd.f32 %v367, %v670
        %672 = vmatmul.bf16.gmra.mxu0 %v508
        %v673 = vpop.f32.mrf.mxu0
        %v674 = vadd.f32 %v367, %v673
        %v675 = vpop.f32.mrf.mxu0
        %v676 = vadd.f32 %v367, %v675
        %677 = vmatmul.bf16.gmra.mxu0 %v509
        %v678 = vpop.f32.mrf.mxu0
        %v679 = vadd.f32 %v367, %v678
        %v680 = vpop.f32.mrf.mxu0
        %v681 = vadd.f32 %v367, %v680
        %682 = vmatmul.bf16.gmra.mxu0 %v510
        %v683 = vpop.f32.mrf.mxu0
        %v684 = vadd.f32 %v367, %v683
        %v685 = vpop.f32.mrf.mxu0
        %v686 = vadd.f32 %v367, %v685
        %687 = vmatmul.bf16.gmra.mxu0 %v511
        %v688 = vpop.f32.mrf.mxu0
        %v689 = vadd.f32 %v367, %v688
        %v690 = vpop.f32.mrf.mxu0
        %v691 = vadd.f32 %v367, %v690
        %692 = vmatmul.bf16.gmra.mxu0 %v512
        %v693 = vpop.f32.mrf.mxu0
        %v694 = vadd.f32 %v367, %v693
        %v695 = vpop.f32.mrf.mxu0
        %v696 = vadd.f32 %v367, %v695
        %697 = vmatmul.bf16.gmra.mxu0 %v513
        %v698 = vpop.f32.mrf.mxu0
        %v699 = vadd.f32 %v367, %v698
        %v700 = vpop.f32.mrf.mxu0
        %v701 = vadd.f32 %v367, %v700
        %702 = vmatmul.bf16.gmra.mxu0 %v514
        %v703 = vpop.f32.mrf.mxu0
        %v704 = vadd.f32 %v367, %v703
        %v705 = vpop.f32.mrf.mxu0
        %v706 = vadd.f32 %v367, %v705
        %707 = vmatmul.bf16.gmra.mxu0 %v515
        %v708 = vpop.f32.mrf.mxu0
        %v709 = vadd.f32 %v367, %v708
        %v710 = vpop.f32.mrf.mxu0
        %v711 = vadd.f32 %v367, %v710
        %712 = vmatmul.bf16.gmra.mxu0 %v516
        %v713 = vpop.f32.mrf.mxu0
        %v714 = vadd.f32 %v367, %v713
        %v715 = vpop.f32.mrf.mxu0
        %v716 = vadd.f32 %v367, %v715
        %717 = vmatmul.bf16.gmra.mxu0 %v517
        %v718 = vpop.f32.mrf.mxu0
        %v719 = vadd.f32 %v367, %v718
        %v720 = vpop.f32.mrf.mxu0
        %v721 = vadd.f32 %v367, %v720
        %722 = vmatmul.bf16.gmra.mxu0 %v518
        %v723 = vpop.f32.mrf.mxu0
        %v724 = vadd.f32 %v367, %v723
        %v725 = vpop.f32.mrf.mxu0
        %v726 = vadd.f32 %v367, %v725
        %727 = vmatmul.bf16.gmra.mxu0 %v519
        %v728 = vpop.f32.mrf.mxu0
        %v729 = vadd.f32 %v367, %v728
        %v730 = vpop.f32.mrf.mxu0
        %v731 = vadd.f32 %v367, %v730
        %732 = vmatmul.bf16.gmra.mxu0 %v520
        %v733 = vpop.f32.mrf.mxu0
        %v734 = vadd.f32 %v367, %v733
        %v735 = vpop.f32.mrf.mxu0
        %v736 = vadd.f32 %v367, %v735
        %737 = vmatmul.bf16.gmra.mxu0 %v521
        %v738 = vpop.f32.mrf.mxu0
        %v739 = vadd.f32 %v367, %v738
        %v740 = vpop.f32.mrf.mxu0
        %v741 = vadd.f32 %v367, %v740
        %742 = vmatmul.bf16.gmra.mxu0 %v522
        %v743 = vpop.f32.mrf.mxu0
        %v744 = vadd.f32 %v367, %v743
        %v745 = vpop.f32.mrf.mxu0
        %v746 = vadd.f32 %v367, %v745
        %747 = vmatmul.bf16.gmra.mxu0 %v523
        %v748 = vpop.f32.mrf.mxu0
        %v749 = vadd.f32 %v367, %v748
        %v750 = vpop.f32.mrf.mxu0
        %v751 = vadd.f32 %v367, %v750
        %752 = vmatmul.bf16.gmra.mxu0 %v524
        %v753 = vpop.f32.mrf.mxu0
        %v754 = vadd.f32 %v367, %v753
        %v755 = vpop.f32.mrf.mxu0
        %v756 = vadd.f32 %v367, %v755
        %757 = vmatmul.bf16.gmra.mxu0 %v525
        %v758 = vpop.f32.mrf.mxu0
        %v759 = vadd.f32 %v367, %v758
        %v760 = vpop.f32.mrf.mxu0
        %v761 = vadd.f32 %v367, %v760
        %762 = vmatmul.bf16.gmra.mxu0 %v526
        %v763 = vpop.f32.mrf.mxu0
        %v764 = vadd.f32 %v367, %v763
        %v765 = vpop.f32.mrf.mxu0
        %v766 = vadd.f32 %v367, %v765
        %767 = vmatmul.bf16.gmra.mxu0 %v527
        %v768 = vpop.f32.mrf.mxu0
        %v769 = vadd.f32 %v367, %v768
        %v770 = vpop.f32.mrf.mxu0
        %v771 = vadd.f32 %v367, %v770
        %772 = vmatmul.bf16.gmra.mxu0 %v528
        %v773 = vpop.f32.mrf.mxu0
        %v774 = vadd.f32 %v367, %v773
        %v775 = vpop.f32.mrf.mxu0
        %v776 = vadd.f32 %v367, %v775
        %777 = vdwg.mxu0
        %v778 = vmax.f32 %v619, 0.0
        %v779 = vmax.f32 %v621, 0.0
        %v780 = vmax.f32 %v624, 0.0
        %v781 = vmax.f32 %v626, 0.0
        %v782 = vmax.f32 %v629, 0.0
        %v783 = vmax.f32 %v631, 0.0
        %v784 = vmax.f32 %v634, 0.0
        %v785 = vmax.f32 %v636, 0.0
        %v786 = vmax.f32 %v639, 0.0
        %v787 = vmax.f32 %v641, 0.0
        %v788 = vmax.f32 %v644, 0.0
        %v789 = vmax.f32 %v646, 0.0
        %v790 = vmax.f32 %v649, 0.0
        %v791 = vmax.f32 %v651, 0.0
        %v792 = vmax.f32 %v654, 0.0
        %v793 = vmax.f32 %v656, 0.0
        %v794 = vmax.f32 %v659, 0.0
        %v795 = vmax.f32 %v661, 0.0
        %v796 = vmax.f32 %v664, 0.0
        %v797 = vmax.f32 %v666, 0.0
        %v798 = vmax.f32 %v669, 0.0
        %v799 = vmax.f32 %v671, 0.0
        %v800 = vmax.f32 %v674, 0.0
        %v801 = vmax.f32 %v676, 0.0
        %v802 = vmax.f32 %v679, 0.0
        %v803 = vmax.f32 %v681, 0.0
        %v804 = vmax.f32 %v684, 0.0
        %v805 = vmax.f32 %v686, 0.0
        %v806 = vmax.f32 %v689, 0.0
        %v807 = vmax.f32 %v691, 0.0
        %v808 = vmax.f32 %v694, 0.0
        %v809 = vmax.f32 %v696, 0.0
        %v810 = vmax.f32 %v699, 0.0
        %v811 = vmax.f32 %v701, 0.0
        %v812 = vmax.f32 %v704, 0.0
        %v813 = vmax.f32 %v706, 0.0
        %v814 = vmax.f32 %v709, 0.0
        %v815 = vmax.f32 %v711, 0.0
        %v816 = vmax.f32 %v714, 0.0
        %v817 = vmax.f32 %v716, 0.0
        %v818 = vmax.f32 %v719, 0.0
        %v819 = vmax.f32 %v721, 0.0
        %v820 = vmax.f32 %v724, 0.0
        %v821 = vmax.f32 %v726, 0.0
        %v822 = vmax.f32 %v729, 0.0
        %v823 = vmax.f32 %v731, 0.0
        %v824 = vmax.f32 %v734, 0.0
        %v825 = vmax.f32 %v736, 0.0
        %v826 = vmax.f32 %v739, 0.0
        %v827 = vmax.f32 %v741, 0.0
        %v828 = vmax.f32 %v744, 0.0
        %v829 = vmax.f32 %v746, 0.0
        %v830 = vmax.f32 %v749, 0.0
        %v831 = vmax.f32 %v751, 0.0
        %v832 = vmax.f32 %v754, 0.0
        %v833 = vmax.f32 %v756, 0.0
        %v834 = vmax.f32 %v759, 0.0
        %v835 = vmax.f32 %v761, 0.0
        %v836 = vmax.f32 %v764, 0.0
        %v837 = vmax.f32 %v766, 0.0
        %v838 = vmax.f32 %v769, 0.0
        %v839 = vmax.f32 %v771, 0.0
        %v840 = vmax.f32 %v774, 0.0
        %v841 = vmax.f32 %v776, 0.0
        %v842 = vpack.c.bf16 %v778, %v778
        %v843 = vpack.c.bf16 %v779, %v779
        %v844 = vpack.c.bf16 %v780, %v780
        %v845 = vpack.c.bf16 %v781, %v781
        %v846 = vpack.c.bf16 %v782, %v782
        %v847 = vpack.c.bf16 %v783, %v783
        %v848 = vpack.c.bf16 %v784, %v784
        %v849 = vpack.c.bf16 %v785, %v785
        %v850 = vpack.c.bf16 %v786, %v786
        %v851 = vpack.c.bf16 %v787, %v787
        %v852 = vpack.c.bf16 %v788, %v788
        %v853 = vpack.c.bf16 %v789, %v789
        %v854 = vpack.c.bf16 %v790, %v790
        %v855 = vpack.c.bf16 %v791, %v791
        %v856 = vpack.c.bf16 %v792, %v792
        %v857 = vpack.c.bf16 %v793, %v793
        %v858 = vpack.c.bf16 %v794, %v794
        %v859 = vpack.c.bf16 %v795, %v795
        %v860 = vpack.c.bf16 %v796, %v796
        %v861 = vpack.c.bf16 %v797, %v797
        %v862 = vpack.c.bf16 %v798, %v798
        %v863 = vpack.c.bf16 %v799, %v799
        %v864 = vpack.c.bf16 %v800, %v800
        %v865 = vpack.c.bf16 %v801, %v801
        %v866 = vpack.c.bf16 %v802, %v802
        %v867 = vpack.c.bf16 %v803, %v803
        %v868 = vpack.c.bf16 %v804, %v804
        %v869 = vpack.c.bf16 %v805, %v805
        %v870 = vpack.c.bf16 %v806, %v806
        %v871 = vpack.c.bf16 %v807, %v807
        %v872 = vpack.c.bf16 %v808, %v808
        %v873 = vpack.c.bf16 %v809, %v809
        %v874 = vpack.c.bf16 %v810, %v810
        %v875 = vpack.c.bf16 %v811, %v811
        %v876 = vpack.c.bf16 %v812, %v812
        %v877 = vpack.c.bf16 %v813, %v813
        %v878 = vpack.c.bf16 %v814, %v814
        %v879 = vpack.c.bf16 %v815, %v815
        %v880 = vpack.c.bf16 %v816, %v816
        %v881 = vpack.c.bf16 %v817, %v817
        %v882 = vpack.c.bf16 %v818, %v818
        %v883 = vpack.c.bf16 %v819, %v819
        %v884 = vpack.c.bf16 %v820, %v820
        %v885 = vpack.c.bf16 %v821, %v821
        %v886 = vpack.c.bf16 %v822, %v822
        %v887 = vpack.c.bf16 %v823, %v823
        %v888 = vpack.c.bf16 %v824, %v824
        %v889 = vpack.c.bf16 %v825, %v825
        %v890 = vpack.c.bf16 %v826, %v826
        %v891 = vpack.c.bf16 %v827, %v827
        %v892 = vpack.c.bf16 %v828, %v828
        %v893 = vpack.c.bf16 %v829, %v829
        %v894 = vpack.c.bf16 %v830, %v830
        %v895 = vpack.c.bf16 %v831, %v831
        %v896 = vpack.c.bf16 %v832, %v832
        %v897 = vpack.c.bf16 %v833, %v833
        %v898 = vpack.c.bf16 %v834, %v834
        %v899 = vpack.c.bf16 %v835, %v835
        %v900 = vpack.c.bf16 %v836, %v836
        %v901 = vpack.c.bf16 %v837, %v837
        %v902 = vpack.c.bf16 %v838, %v838
        %v903 = vpack.c.bf16 %v839, %v839
        %v904 = vpack.c.bf16 %v840, %v840
        %v905 = vpack.c.bf16 %v841, %v841
        %906 = vst [vmem:[%s247] sm:$0xf] %v842
        %907 = vst [vmem:[%s247 + $0x4] sm:$0xf] %v843
        %908 = vst [vmem:[%s247 + $0x8] sm:$0xf] %v844
        %909 = vst [vmem:[%s247 + $0xc] sm:$0xf] %v845
        %910 = vst [vmem:[%s247 + $0x10] sm:$0xf] %v846
        %911 = vst [vmem:[%s247 + $0x14] sm:$0xf] %v847
        %912 = vst [vmem:[%s247 + $0x18] sm:$0xf] %v848
        %913 = vst [vmem:[%s247 + $0x1c] sm:$0xf] %v849
        %914 = vst [vmem:[%s247 + $0x20] sm:$0xf] %v850
        %915 = vst [vmem:[%s247 + $0x24] sm:$0xf] %v851
        %916 = vst [vmem:[%s247 + $0x28] sm:$0xf] %v852
        %917 = vst [vmem:[%s247 + $0x2c] sm:$0xf] %v853
        %918 = vst [vmem:[%s247 + $0x30] sm:$0xf] %v854
        %919 = vst [vmem:[%s247 + $0x34] sm:$0xf] %v855
        %920 = vst [vmem:[%s247 + $0x38] sm:$0xf] %v856
        %921 = vst [vmem:[%s247 + $0x3c] sm:$0xf] %v857
        %922 = vst [vmem:[%s247 + $0x40] sm:$0xf] %v858
        %923 = vst [vmem:[%s247 + $0x44] sm:$0xf] %v859
        %924 = vst [vmem:[%s247 + $0x48] sm:$0xf] %v860
        %925 = vst [vmem:[%s247 + $0x4c] sm:$0xf] %v861
        %926 = vst [vmem:[%s247 + $0x50] sm:$0xf] %v862
        %927 = vst [vmem:[%s247 + $0x54] sm:$0xf] %v863
        %928 = vst [vmem:[%s247 + $0x58] sm:$0xf] %v864
        %929 = vst [vmem:[%s247 + $0x5c] sm:$0xf] %v865
        %930 = vst [vmem:[%s247 + $0x60] sm:$0xf] %v866
        %931 = vst [vmem:[%s247 + $0x64] sm:$0xf] %v867
        %932 = vst [vmem:[%s247 + $0x68] sm:$0xf] %v868
        %933 = vst [vmem:[%s247 + $0x6c] sm:$0xf] %v869
        %934 = vst [vmem:[%s247 + $0x70] sm:$0xf] %v870
        %935 = vst [vmem:[%s247 + $0x74] sm:$0xf] %v871
        %936 = vst [vmem:[%s247 + $0x78] sm:$0xf] %v872
        %937 = vst [vmem:[%s247 + $0x7c] sm:$0xf] %v873
        %938 = vst [vmem:[%s247 + $0x80] sm:$0xf] %v874
        %939 = vst [vmem:[%s247 + $0x84] sm:$0xf] %v875
        %940 = vst [vmem:[%s247 + $0x88] sm:$0xf] %v876
        %941 = vst [vmem:[%s247 + $0x8c] sm:$0xf] %v877
        %942 = vst [vmem:[%s247 + $0x90] sm:$0xf] %v878
        %943 = vst [vmem:[%s247 + $0x94] sm:$0xf] %v879
        %944 = vst [vmem:[%s247 + $0x98] sm:$0xf] %v880
        %945 = vst [vmem:[%s247 + $0x9c] sm:$0xf] %v881
        %946 = vst [vmem:[%s247 + $0xa0] sm:$0xf] %v882
        %947 = vst [vmem:[%s247 + $0xa4] sm:$0xf] %v883
        %948 = vst [vmem:[%s247 + $0xa8] sm:$0xf] %v884
        %949 = vst [vmem:[%s247 + $0xac] sm:$0xf] %v885
        %950 = vst [vmem:[%s247 + $0xb0] sm:$0xf] %v886
        %951 = vst [vmem:[%s247 + $0xb4] sm:$0xf] %v887
        %952 = vst [vmem:[%s247 + $0xb8] sm:$0xf] %v888
        %953 = vst [vmem:[%s247 + $0xbc] sm:$0xf] %v889
        %954 = vst [vmem:[%s247 + $0xc0] sm:$0xf] %v890
        %955 = vst [vmem:[%s247 + $0xc4] sm:$0xf] %v891
        %956 = vst [vmem:[%s247 + $0xc8] sm:$0xf] %v892
        %957 = vst [vmem:[%s247 + $0xcc] sm:$0xf] %v893
        %958 = vst [vmem:[%s247 + $0xd0] sm:$0xf] %v894
        %959 = vst [vmem:[%s247 + $0xd4] sm:$0xf] %v895
        %960 = vst [vmem:[%s247 + $0xd8] sm:$0xf] %v896
        %961 = vst [vmem:[%s247 + $0xdc] sm:$0xf] %v897
        %962 = vst [vmem:[%s247 + $0xe0] sm:$0xf] %v898
        %963 = vst [vmem:[%s247 + $0xe4] sm:$0xf] %v899
        %964 = vst [vmem:[%s247 + $0xe8] sm:$0xf] %v900
        %965 = vst [vmem:[%s247 + $0xec] sm:$0xf] %v901
        %966 = vst [vmem:[%s247 + $0xf0] sm:$0xf] %v902
        %967 = vst [vmem:[%s247 + $0xf4] sm:$0xf] %v903
        %968 = vst [vmem:[%s247 + $0xf8] sm:$0xf] %v904
        %969 = vst [vmem:[%s247 + $0xfc] sm:$0xf] %v905
        %s970 = sand.u32 %s129, 1
        %s971 = sand.u32 %s129, 1
        %s972 = smul.addr %s971, 256
        %s973 = scalar_lea.vmem [#allocation2], %s972
        // Predicated region
        $region33: #{_lambda_.9} parent=31 // pred_check
          %p974 = pneg %p139
        $region34: #{_lambda_.9} parent=31 // pred_check_branch
          %976 = sbr.rel (%p974) target = $region36
        $region35: #{_lambda_.9} parent=31 // pred_region
          %s977 = smul.u32 64, %s20
          %s978 = ssub.s32 900, %s977
          %p979 = scmp.lt.s32.totalorder %s978, 64
          %s980 = scalar_select %p979, %s978, 64
          %s981 = smul.u32 4, %s980
          %p982 = scmp.ne.s32.totalorder 0, %s981
          %s983 = sadd.s32 %s21, %s977
          %s984 = smul.addr %s19, 900
          %s985 = sadd.s32 %s983, %s984
          %s986 = smul.addr %s985, 4
          %s987 = scalar_lea.vmem %s3, %s986
          // Predicated region
          $region37: #{_lambda_.9} parent=35 // pred_check
            %p988 = pneg %p982
          $region38: #{_lambda_.9} parent=35 // pred_check_branch
            %990 = sbr.rel (%p988) target = $region40
          $region39: #{_lambda_.9} parent=35 // pred_region
            // Predicated region
            $region41: #{_lambda_.9} parent=39 // pred_check
              _
            $region42: #{_lambda_.9} parent=39 // pred_check_branch
              %992 = sbr.rel target = $region44
            $region43: #{_lambda_.9} parent=39 // pred_region
              // Predicated region
              $region63: #{_lambda_.9} parent=43 // pred_check
                _
              $region64: #{_lambda_.9} parent=43 // pred_check_branch
                %1104 = sbr.rel (0) target = $region66
              $region65: #{_lambda_.9} parent=43 // pred_region
                %s1106 = ssub.s32 16, 1
                %s1107 = sshrl.u32 %s980, 5
                // While loop
                $region67: #{_lambda_.9} parent=65 // loop_pre_header
                  _
                $region68: #{_lambda_.9} parent=65 // loop_header
                  %s1109 = sphi 0, %s1111
                  %p1110 = scmp.ge.s32.totalorder %s1109, %s1107
                  %s1114 = sphi 0, %s1183
                  %s1115 = sphi %s973, %s1186
                  %s1116 = sphi %s987, %s1187
                $region69: #{_lambda_.9} parent=65 // loop_header_branch
                  %1113 = sbr.rel (%p1110) target = $region73
                $region70: #{_lambda_.9} parent=65 // loop_body
                  %v1117 = vld [vmem:[%s1115] sm:%s1106]
                  %1118 = vst [vmem:[%s1116] sm:%s1106] %v1117
                  %v1119 = vld [vmem:[%s1115 + $0x4] sm:%s1106]
                  %1120 = vst [vmem:[%s1116 + $0x4] sm:%s1106] %v1119
                  %v1121 = vld [vmem:[%s1115 + $0x8] sm:%s1106]
                  %1122 = vst [vmem:[%s1116 + $0x8] sm:%s1106] %v1121
                  %v1123 = vld [vmem:[%s1115 + $0xc] sm:%s1106]
                  %1124 = vst [vmem:[%s1116 + $0xc] sm:%s1106] %v1123
                  %v1125 = vld [vmem:[%s1115 + $0x10] sm:%s1106]
                  %1126 = vst [vmem:[%s1116 + $0x10] sm:%s1106] %v1125
                  %v1127 = vld [vmem:[%s1115 + $0x14] sm:%s1106]
                  %1128 = vst [vmem:[%s1116 + $0x14] sm:%s1106] %v1127
                  %v1129 = vld [vmem:[%s1115 + $0x18] sm:%s1106]
                  %1130 = vst [vmem:[%s1116 + $0x18] sm:%s1106] %v1129
                  %v1131 = vld [vmem:[%s1115 + $0x1c] sm:%s1106]
                  %1132 = vst [vmem:[%s1116 + $0x1c] sm:%s1106] %v1131
                  %v1133 = vld [vmem:[%s1115 + $0x20] sm:%s1106]
                  %1134 = vst [vmem:[%s1116 + $0x20] sm:%s1106] %v1133
                  %v1135 = vld [vmem:[%s1115 + $0x24] sm:%s1106]
                  %1136 = vst [vmem:[%s1116 + $0x24] sm:%s1106] %v1135
                  %v1137 = vld [vmem:[%s1115 + $0x28] sm:%s1106]
                  %1138 = vst [vmem:[%s1116 + $0x28] sm:%s1106] %v1137
                  %v1139 = vld [vmem:[%s1115 + $0x2c] sm:%s1106]
                  %1140 = vst [vmem:[%s1116 + $0x2c] sm:%s1106] %v1139
                  %v1141 = vld [vmem:[%s1115 + $0x30] sm:%s1106]
                  %1142 = vst [vmem:[%s1116 + $0x30] sm:%s1106] %v1141
                  %v1143 = vld [vmem:[%s1115 + $0x34] sm:%s1106]
                  %1144 = vst [vmem:[%s1116 + $0x34] sm:%s1106] %v1143
                  %v1145 = vld [vmem:[%s1115 + $0x38] sm:%s1106]
                  %1146 = vst [vmem:[%s1116 + $0x38] sm:%s1106] %v1145
                  %v1147 = vld [vmem:[%s1115 + $0x3c] sm:%s1106]
                  %1148 = vst [vmem:[%s1116 + $0x3c] sm:%s1106] %v1147
                  %v1149 = vld [vmem:[%s1115 + $0x40] sm:%s1106]
                  %1150 = vst [vmem:[%s1116 + $0x40] sm:%s1106] %v1149
                  %v1151 = vld [vmem:[%s1115 + $0x44] sm:%s1106]
                  %1152 = vst [vmem:[%s1116 + $0x44] sm:%s1106] %v1151
                  %v1153 = vld [vmem:[%s1115 + $0x48] sm:%s1106]
                  %1154 = vst [vmem:[%s1116 + $0x48] sm:%s1106] %v1153
                  %v1155 = vld [vmem:[%s1115 + $0x4c] sm:%s1106]
                  %1156 = vst [vmem:[%s1116 + $0x4c] sm:%s1106] %v1155
                  %v1157 = vld [vmem:[%s1115 + $0x50] sm:%s1106]
                  %1158 = vst [vmem:[%s1116 + $0x50] sm:%s1106] %v1157
                  %v1159 = vld [vmem:[%s1115 + $0x54] sm:%s1106]
                  %1160 = vst [vmem:[%s1116 + $0x54] sm:%s1106] %v1159
                  %v1161 = vld [vmem:[%s1115 + $0x58] sm:%s1106]
                  %1162 = vst [vmem:[%s1116 + $0x58] sm:%s1106] %v1161
                  %v1163 = vld [vmem:[%s1115 + $0x5c] sm:%s1106]
                  %1164 = vst [vmem:[%s1116 + $0x5c] sm:%s1106] %v1163
                  %v1165 = vld [vmem:[%s1115 + $0x60] sm:%s1106]
                  %1166 = vst [vmem:[%s1116 + $0x60] sm:%s1106] %v1165
                  %v1167 = vld [vmem:[%s1115 + $0x64] sm:%s1106]
                  %1168 = vst [vmem:[%s1116 + $0x64] sm:%s1106] %v1167
                  %v1169 = vld [vmem:[%s1115 + $0x68] sm:%s1106]
                  %1170 = vst [vmem:[%s1116 + $0x68] sm:%s1106] %v1169
                  %v1171 = vld [vmem:[%s1115 + $0x6c] sm:%s1106]
                  %1172 = vst [vmem:[%s1116 + $0x6c] sm:%s1106] %v1171
                  %v1173 = vld [vmem:[%s1115 + $0x70] sm:%s1106]
                  %1174 = vst [vmem:[%s1116 + $0x70] sm:%s1106] %v1173
                  %v1175 = vld [vmem:[%s1115 + $0x74] sm:%s1106]
                  %1176 = vst [vmem:[%s1116 + $0x74] sm:%s1106] %v1175
                  %v1177 = vld [vmem:[%s1115 + $0x78] sm:%s1106]
                  %1178 = vst [vmem:[%s1116 + $0x78] sm:%s1106] %v1177
                  %v1179 = vld [vmem:[%s1115 + $0x7c] sm:%s1106]
                  %1180 = vst [vmem:[%s1116 + $0x7c] sm:%s1106] %v1179
                  %s1181 = sadd.s32 1, %s1114
                  %p1182 = scmp.ge.s32.totalorder %s1181, %s1107
                  %s1183 = scalar_select %p1182, 0, %s1181
                  %s1184 = smul.u32 %s1183, 128
                  %s1185 = smul.u32 %s1183, 128
                  %s1186 = scalar_lea.vmem %s973, %s1184 [#allocation2]
                  %s1187 = scalar_lea.vmem %s987, %s1185
                $region71: #{_lambda_.9} parent=65 // loop_footer
                  %s1111 = sadd.s32 %s1109, 1
                $region72: #{_lambda_.9} parent=65 // loop_footer_branch
                  %1108 = sbr.rel target = $region68
                $region73: #{_lambda_.9} parent=65 // loop_exit
                  _
                %s1188 = sshrl.u32 %s980, 5
                %s1189 = sand.u32 %s980, 31
                %s1190 = smul.u32 %s1188, 32
                %s1191 = smul.u32 4, %s1190
                %s1192 = scalar_lea.vmem %s973, %s1191 [#allocation2]
                %s1193 = smul.u32 4, %s1190
                %s1194 = scalar_lea.vmem %s987, %s1193
                // While loop
                $region74: #{_lambda_.9} parent=65 // loop_pre_header
                  _
                $region75: #{_lambda_.9} parent=65 // loop_header
                  %s1196 = sphi 0, %s1198
                  %p1197 = scmp.ge.s32.totalorder %s1196, %s1189
                  %s1201 = sphi 0, %s1208
                  %s1202 = sphi %s1192, %s1211
                  %s1203 = sphi %s1194, %s1212
                $region76: #{_lambda_.9} parent=65 // loop_header_branch
                  %1200 = sbr.rel (%p1197) target = $region80
                $region77: #{_lambda_.9} parent=65 // loop_body
                  %v1204 = vld [vmem:[%s1202] sm:%s1106]
                  %1205 = vst [vmem:[%s1203] sm:%s1106] %v1204
                  %s1206 = sadd.s32 1, %s1201
                  %p1207 = scmp.ge.s32.totalorder %s1206, %s1189
                  %s1208 = scalar_select %p1207, 0, %s1206
                  %s1209 = smul.u32 %s1208, 4
                  %s1210 = smul.u32 %s1208, 4
                  %s1211 = scalar_lea.vmem %s1192, %s1209 [#allocation2]
                  %s1212 = scalar_lea.vmem %s1194, %s1210
                $region78: #{_lambda_.9} parent=65 // loop_footer
                  %s1198 = sadd.s32 %s1196, 1
                $region79: #{_lambda_.9} parent=65 // loop_footer_branch
                  %1195 = sbr.rel target = $region75
                $region80: #{_lambda_.9} parent=65 // loop_exit
                  _
              $region66: #{_lambda_.9} parent=43 // pred_fallthru
                _
            $region44: #{_lambda_.9} parent=39 // pred_fallthru
              _
            // Predicated region
            $region45: #{_lambda_.9} parent=39 // pred_check
              _
            $region46: #{_lambda_.9} parent=39 // pred_check_branch
              %994 = sbr.rel (0) target = $region48
            $region47: #{_lambda_.9} parent=39 // pred_region
              %s996 = ssub.s32 16, 1
              %s997 = sshrl.u32 %s980, 5
              // While loop
              $region49: #{_lambda_.9} parent=47 // loop_pre_header
                _
              $region50: #{_lambda_.9} parent=47 // loop_header
                %s999 = sphi 0, %s1001
                %p1000 = scmp.ge.s32.totalorder %s999, %s997
                %s1004 = sphi 0, %s1073
                %s1005 = sphi %s973, %s1076
                %s1006 = sphi %s987, %s1077
              $region51: #{_lambda_.9} parent=47 // loop_header_branch
                %1003 = sbr.rel (%p1000) target = $region55
              $region52: #{_lambda_.9} parent=47 // loop_body
                %v1007 = vld [vmem:[%s1005] sm:%s996]
                %1008 = vst [vmem:[%s1006] sm:%s996] %v1007
                %v1009 = vld [vmem:[%s1005 + $0x4] sm:%s996]
                %1010 = vst [vmem:[%s1006 + $0x4] sm:%s996] %v1009
                %v1011 = vld [vmem:[%s1005 + $0x8] sm:%s996]
                %1012 = vst [vmem:[%s1006 + $0x8] sm:%s996] %v1011
                %v1013 = vld [vmem:[%s1005 + $0xc] sm:%s996]
                %1014 = vst [vmem:[%s1006 + $0xc] sm:%s996] %v1013
                %v1015 = vld [vmem:[%s1005 + $0x10] sm:%s996]
                %1016 = vst [vmem:[%s1006 + $0x10] sm:%s996] %v1015
                %v1017 = vld [vmem:[%s1005 + $0x14] sm:%s996]
                %1018 = vst [vmem:[%s1006 + $0x14] sm:%s996] %v1017
                %v1019 = vld [vmem:[%s1005 + $0x18] sm:%s996]
                %1020 = vst [vmem:[%s1006 + $0x18] sm:%s996] %v1019
                %v1021 = vld [vmem:[%s1005 + $0x1c] sm:%s996]
                %1022 = vst [vmem:[%s1006 + $0x1c] sm:%s996] %v1021
                %v1023 = vld [vmem:[%s1005 + $0x20] sm:%s996]
                %1024 = vst [vmem:[%s1006 + $0x20] sm:%s996] %v1023
                %v1025 = vld [vmem:[%s1005 + $0x24] sm:%s996]
                %1026 = vst [vmem:[%s1006 + $0x24] sm:%s996] %v1025
                %v1027 = vld [vmem:[%s1005 + $0x28] sm:%s996]
                %1028 = vst [vmem:[%s1006 + $0x28] sm:%s996] %v1027
                %v1029 = vld [vmem:[%s1005 + $0x2c] sm:%s996]
                %1030 = vst [vmem:[%s1006 + $0x2c] sm:%s996] %v1029
                %v1031 = vld [vmem:[%s1005 + $0x30] sm:%s996]
                %1032 = vst [vmem:[%s1006 + $0x30] sm:%s996] %v1031
                %v1033 = vld [vmem:[%s1005 + $0x34] sm:%s996]
                %1034 = vst [vmem:[%s1006 + $0x34] sm:%s996] %v1033
                %v1035 = vld [vmem:[%s1005 + $0x38] sm:%s996]
                %1036 = vst [vmem:[%s1006 + $0x38] sm:%s996] %v1035
                %v1037 = vld [vmem:[%s1005 + $0x3c] sm:%s996]
                %1038 = vst [vmem:[%s1006 + $0x3c] sm:%s996] %v1037
                %v1039 = vld [vmem:[%s1005 + $0x40] sm:%s996]
                %1040 = vst [vmem:[%s1006 + $0x40] sm:%s996] %v1039
                %v1041 = vld [vmem:[%s1005 + $0x44] sm:%s996]
                %1042 = vst [vmem:[%s1006 + $0x44] sm:%s996] %v1041
                %v1043 = vld [vmem:[%s1005 + $0x48] sm:%s996]
                %1044 = vst [vmem:[%s1006 + $0x48] sm:%s996] %v1043
                %v1045 = vld [vmem:[%s1005 + $0x4c] sm:%s996]
                %1046 = vst [vmem:[%s1006 + $0x4c] sm:%s996] %v1045
                %v1047 = vld [vmem:[%s1005 + $0x50] sm:%s996]
                %1048 = vst [vmem:[%s1006 + $0x50] sm:%s996] %v1047
                %v1049 = vld [vmem:[%s1005 + $0x54] sm:%s996]
                %1050 = vst [vmem:[%s1006 + $0x54] sm:%s996] %v1049
                %v1051 = vld [vmem:[%s1005 + $0x58] sm:%s996]
                %1052 = vst [vmem:[%s1006 + $0x58] sm:%s996] %v1051
                %v1053 = vld [vmem:[%s1005 + $0x5c] sm:%s996]
                %1054 = vst [vmem:[%s1006 + $0x5c] sm:%s996] %v1053
                %v1055 = vld [vmem:[%s1005 + $0x60] sm:%s996]
                %1056 = vst [vmem:[%s1006 + $0x60] sm:%s996] %v1055
                %v1057 = vld [vmem:[%s1005 + $0x64] sm:%s996]
                %1058 = vst [vmem:[%s1006 + $0x64] sm:%s996] %v1057
                %v1059 = vld [vmem:[%s1005 + $0x68] sm:%s996]
                %1060 = vst [vmem:[%s1006 + $0x68] sm:%s996] %v1059
                %v1061 = vld [vmem:[%s1005 + $0x6c] sm:%s996]
                %1062 = vst [vmem:[%s1006 + $0x6c] sm:%s996] %v1061
                %v1063 = vld [vmem:[%s1005 + $0x70] sm:%s996]
                %1064 = vst [vmem:[%s1006 + $0x70] sm:%s996] %v1063
                %v1065 = vld [vmem:[%s1005 + $0x74] sm:%s996]
                %1066 = vst [vmem:[%s1006 + $0x74] sm:%s996] %v1065
                %v1067 = vld [vmem:[%s1005 + $0x78] sm:%s996]
                %1068 = vst [vmem:[%s1006 + $0x78] sm:%s996] %v1067
                %v1069 = vld [vmem:[%s1005 + $0x7c] sm:%s996]
                %1070 = vst [vmem:[%s1006 + $0x7c] sm:%s996] %v1069
                %s1071 = sadd.s32 1, %s1004
                %p1072 = scmp.ge.s32.totalorder %s1071, %s997
                %s1073 = scalar_select %p1072, 0, %s1071
                %s1074 = smul.u32 %s1073, 128
                %s1075 = smul.u32 %s1073, 128
                %s1076 = scalar_lea.vmem %s973, %s1074 [#allocation2]
                %s1077 = scalar_lea.vmem %s987, %s1075
              $region53: #{_lambda_.9} parent=47 // loop_footer
                %s1001 = sadd.s32 %s999, 1
              $region54: #{_lambda_.9} parent=47 // loop_footer_branch
                %998 = sbr.rel target = $region50
              $region55: #{_lambda_.9} parent=47 // loop_exit
                _
              %s1078 = sshrl.u32 %s980, 5
              %s1079 = sand.u32 %s980, 31
              %s1080 = smul.u32 %s1078, 32
              %s1081 = smul.u32 4, %s1080
              %s1082 = scalar_lea.vmem %s973, %s1081 [#allocation2]
              %s1083 = smul.u32 4, %s1080
              %s1084 = scalar_lea.vmem %s987, %s1083
              // While loop
              $region56: #{_lambda_.9} parent=47 // loop_pre_header
                _
              $region57: #{_lambda_.9} parent=47 // loop_header
                %s1086 = sphi 0, %s1088
                %p1087 = scmp.ge.s32.totalorder %s1086, %s1079
                %s1091 = sphi 0, %s1098
                %s1092 = sphi %s1082, %s1101
                %s1093 = sphi %s1084, %s1102
              $region58: #{_lambda_.9} parent=47 // loop_header_branch
                %1090 = sbr.rel (%p1087) target = $region62
              $region59: #{_lambda_.9} parent=47 // loop_body
                %v1094 = vld [vmem:[%s1092] sm:%s996]
                %1095 = vst [vmem:[%s1093] sm:%s996] %v1094
                %s1096 = sadd.s32 1, %s1091
                %p1097 = scmp.ge.s32.totalorder %s1096, %s1079
                %s1098 = scalar_select %p1097, 0, %s1096
                %s1099 = smul.u32 %s1098, 4
                %s1100 = smul.u32 %s1098, 4
                %s1101 = scalar_lea.vmem %s1082, %s1099 [#allocation2]
                %s1102 = scalar_lea.vmem %s1084, %s1100
              $region60: #{_lambda_.9} parent=47 // loop_footer
                %s1088 = sadd.s32 %s1086, 1
              $region61: #{_lambda_.9} parent=47 // loop_footer_branch
                %1085 = sbr.rel target = $region57
              $region62: #{_lambda_.9} parent=47 // loop_exit
                _
            $region48: #{_lambda_.9} parent=39 // pred_fallthru
              _
          $region40: #{_lambda_.9} parent=35 // pred_fallthru
            _
          %1213 = vnop
        $region36: #{_lambda_.9} parent=31 // pred_fallthru
          _
      $region32: #{_lambda_.9} parent=5 // pred_fallthru
        _
      %p1214 = scmp.le.s32.totalorder 2, %s9
      // Predicated region
      $region81: #{_lambda_.9} parent=5 // pred_check
        %p1215 = pneg %p1214
      $region82: #{_lambda_.9} parent=5 // pred_check_branch
        %1217 = sbr.rel (%p1215) target = $region84
      $region83: #{_lambda_.9} parent=5 // pred_region
        %s1218 = ssub.s32 %s9, 2
        // Predicated region
        $region85: #{_lambda_.9} parent=83 // pred_check
          %p1219 = pneg %p145
        $region86: #{_lambda_.9} parent=83 // pred_check_branch
          %1221 = sbr.rel (%p1219) target = $region88
        $region87: #{_lambda_.9} parent=83 // pred_region
          %s1222 = sand.u32 %s130, 1
          %s1223 = sand.u32 %s130, 1
          %s1224 = smul.addr %s1223, 256
          %s1225 = scalar_lea.vmem [#allocation2], %s1224
        $region88: #{_lambda_.9} parent=83 // pred_fallthru
          _
      $region84: #{_lambda_.9} parent=5 // pred_fallthru
        _
    $region6: #{_lambda_.9} parent=1 // loop_footer
      %s13 = sadd.s32 1, %s9
    $region7: #{_lambda_.9} parent=1 // loop_footer_branch
      %8 = sbr.rel target = $region3
    $region8: #{_lambda_.9} parent=1 // loop_exit
      _

// kernel: _lambda_.10
$region0: #{_lambda_.10}
  #allocation0 [shape = 'u32[]', space=smem, size = 0x4, offset = 0x4, fixed_abs, tag = 'smem constant byte address 0x4 - core index']
  #allocation1 [shape = 'u32[72,128]{1,0:T(1,128)}', space=vmem, size = 0x9000, scoped, tag = 'internal scratch']
  %s0 = inlined_call_operand.vmem [shape: bf16[1,6728,128], index: 0, kind: input, shape index: {}]
  %s1 = inlined_call_operand.vmem [shape: bf16[1,128,128], index: 1, kind: input, shape index: {}]
  %s2 = inlined_call_operand.vmem [shape: f32[1,1,128], index: 2, kind: input, shape index: {}]
  %s3 = inlined_call_operand.vmem [shape: bf16[1,6728,128], index: 3, kind: output, shape index: {}]
  %s4 = sld [smem:[#allocation0]]
  $region89: #{_lambda_.10} parent=0
    _
  %s6 = ssub.s32 1, %s4
  %s7 = scalar_select 0, %s6, %s4
  $region1: #{_lambda_.10} parent=0
    #allocation2 [shape = 'u8[262144]{0}', space=vmem, size = 0x40000, scoped, tag = 'output window, operand 0']
    loop: start=0, step=1, limit=16
    $region2: #{_lambda_.10} parent=1 // loop_pre_header
      _
    $region3: #{_lambda_.10} parent=1 // loop_header
      %s9 = sphi 0, %s13
      %p10 = scmp.ge.s32.totalorder %s9, 16
      %s16 = sphi 0, %s35
      %s17 = sphi 0, %s31
      %s18 = sphi 0, %s27
      %s19 = sphi 0, %s16
      %s20 = sphi 0, %s17
      %s21 = sphi 0, %s18
      %s22 = sphi 0, %s19
      %s23 = sphi 0, %s20
      %s24 = sphi 0, %s21
      %s40 = sphi 0, %s42
      %s43 = sphi 0, %s40
      %s44 = sphi 0, %s43
      %s60 = sphi 0, %s44
      %s68 = sphi 0, %s70
      %s71 = sphi 0, %s68
      %s72 = sphi 0, %s71
      %s88 = sphi 0, %s72
      %s96 = sphi 0, %s98
      %s99 = sphi 0, %s96
      %s100 = sphi 0, %s99
      %s116 = sphi 0, %s100
      %s126 = sphi 0, %s128
      %s129 = sphi 0, %s126
      %s130 = sphi 0, %s129
      %s146 = sphi 0, %s130
    $region4: #{_lambda_.10} parent=1 // loop_header_branch
      %12 = sbr.rel (%p10) target = $region8
    $region5: #{_lambda_.10} parent=1 // loop_body
      %s14 = ssub.s32 %s9, 1
      %s15 = ssub.s32 %s9, 2
      %s25 = sadd.s32 1, %s18
      %p26 = scmp.ge.s32.totalorder %s25, 1
      %s27 = scalar_select %p26, 0, %s25
      %s28 = sadd.s32 1, %s17
      %s29 = scalar_select %p26, %s28, %s17
      %p30 = scmp.ge.s32.totalorder %s29, 14
      %s31 = scalar_select %p30, 0, %s29
      %s32 = sadd.s32 1, %s16
      %s33 = scalar_select %p30, %s32, %s16
      %p34 = scmp.ge.s32.totalorder %s33, 1
      %s35 = scalar_select %p34, 0, %s33
      %s36 = ssub.s32 %s16, %s35
      %s37 = ssub.s32 %s17, %s31
      %s38 = sor.u32 %s36, %s37
      %p39 = scmp.eq.s32.totalorder %s38, 0
      %s41 = sadd.s32 %s40, 1
      %s42 = scalar_select %p39, %s40, %s41
      %p45 = pneg %p39
      %p46 = scmp.eq.s32.totalorder %s9, 13
      %p47 = por %p45, %p46
      %p48 = scmp.ne.s32.totalorder %s40, %s43
      %p49 = scmp.eq.s32.totalorder %s9, 0
      %p50 = por %p48, %p49
      %p51 = scmp.ne.s32.totalorder %s40, %s43
      %p52 = scmp.eq.s32.totalorder %s14, 13
      %p53 = por %p51, %p52
      %p54 = scmp.ne.s32.totalorder %s43, %s44
      %p55 = scmp.eq.s32.totalorder %s14, 0
      %p56 = por %p54, %p55
      %p57 = scmp.ne.s32.totalorder %s43, %s44
      %p58 = scmp.eq.s32.totalorder %s15, 13
      %p59 = por %p57, %p58
      %p61 = scmp.ne.s32.totalorder %s44, %s60
      %p62 = scmp.eq.s32.totalorder %s15, 0
      %p63 = por %p61, %p62
      %s64 = ssub.s32 %s16, %s35
      %s65 = ssub.s32 %s18, %s27
      %s66 = sor.u32 %s64, %s65
      %p67 = scmp.eq.s32.totalorder %s66, 0
      %s69 = sadd.s32 %s68, 1
      %s70 = scalar_select %p67, %s68, %s69
      %p73 = pneg %p67
      %p74 = scmp.eq.s32.totalorder %s9, 13
      %p75 = por %p73, %p74
      %p76 = scmp.ne.s32.totalorder %s68, %s71
      %p77 = scmp.eq.s32.totalorder %s9, 0
      %p78 = por %p76, %p77
      %p79 = scmp.ne.s32.totalorder %s68, %s71
      %p80 = scmp.eq.s32.totalorder %s14, 13
      %p81 = por %p79, %p80
      %p82 = scmp.ne.s32.totalorder %s71, %s72
      %p83 = scmp.eq.s32.totalorder %s14, 0
      %p84 = por %p82, %p83
      %p85 = scmp.ne.s32.totalorder %s71, %s72
      %p86 = scmp.eq.s32.totalorder %s15, 13
      %p87 = por %p85, %p86
      %p89 = scmp.ne.s32.totalorder %s72, %s88
      %p90 = scmp.eq.s32.totalorder %s15, 0
      %p91 = por %p89, %p90
      %s92 = ssub.s32 %s16, %s35
      %s93 = ssub.s32 %s18, %s27
      %s94 = sor.u32 %s92, %s93
      %p95 = scmp.eq.s32.totalorder %s94, 0
      %s97 = sadd.s32 %s96, 1
      %s98 = scalar_select %p95, %s96, %s97
      %p101 = pneg %p95
      %p102 = scmp.eq.s32.totalorder %s9, 13
      %p103 = por %p101, %p102
      %p104 = scmp.ne.s32.totalorder %s96, %s99
      %p105 = scmp.eq.s32.totalorder %s9, 0
      %p106 = por %p104, %p105
      %p107 = scmp.ne.s32.totalorder %s96, %s99
      %p108 = scmp.eq.s32.totalorder %s14, 13
      %p109 = por %p107, %p108
      %p110 = scmp.ne.s32.totalorder %s99, %s100
      %p111 = scmp.eq.s32.totalorder %s14, 0
      %p112 = por %p110, %p111
      %p113 = scmp.ne.s32.totalorder %s99, %s100
      %p114 = scmp.eq.s32.totalorder %s15, 13
      %p115 = por %p113, %p114
      %p117 = scmp.ne.s32.totalorder %s100, %s116
      %p118 = scmp.eq.s32.totalorder %s15, 0
      %p119 = por %p117, %p118
      %s120 = ssub.s32 %s16, %s35
      %s121 = ssub.s32 %s17, %s31
      %s122 = sor.u32 %s120, %s121
      %s123 = ssub.s32 %s18, %s27
      %s124 = sor.u32 %s122, %s123
      %p125 = scmp.eq.s32.totalorder %s124, 0
      %s127 = sadd.s32 %s126, 1
      %s128 = scalar_select %p125, %s126, %s127
      %p131 = pneg %p125
      %p132 = scmp.eq.s32.totalorder %s9, 13
      %p133 = por %p131, %p132
      %p134 = scmp.ne.s32.totalorder %s126, %s129
      %p135 = scmp.eq.s32.totalorder %s9, 0
      %p136 = por %p134, %p135
      %p137 = scmp.ne.s32.totalorder %s126, %s129
      %p138 = scmp.eq.s32.totalorder %s14, 13
      %p139 = por %p137, %p138
      %p140 = scmp.ne.s32.totalorder %s129, %s130
      %p141 = scmp.eq.s32.totalorder %s14, 0
      %p142 = por %p140, %p141
      %p143 = scmp.ne.s32.totalorder %s129, %s130
      %p144 = scmp.eq.s32.totalorder %s15, 13
      %p145 = por %p143, %p144
      %p147 = scmp.ne.s32.totalorder %s130, %s146
      %p148 = scmp.eq.s32.totalorder %s15, 0
      %p149 = por %p147, %p148
      %p150 = scmp.le.s32.totalorder 1, %s9
      %p151 = scmp.lt.s32.totalorder %s9, 15
      %p152 = pnand %p150, %p151
      %p153 = pneg %p152
      // Predicated region
      $region9: #{_lambda_.10} parent=5 // pred_check
        _
      $region10: #{_lambda_.10} parent=5 // pred_check_branch
        %155 = sbr.rel (%p152) target = $region12
      $region11: #{_lambda_.10} parent=5 // pred_region
        %s156 = ssub.s32 %s9, 1
        // Predicated region
        $region13: #{_lambda_.10} parent=11 // pred_check
          %p157 = pneg %p84
        $region14: #{_lambda_.10} parent=11 // pred_check_branch
          %159 = sbr.rel (%p157) target = $region16
        $region15: #{_lambda_.10} parent=11 // pred_region
          %p160 = scmp.lt.s32.totalorder %s19, 0
          %s161 = scalar_select %p160, %s19, 0
          %p162 = scmp.lt.s32.totalorder %s21, 0
          %s163 = scalar_select %p162, %s21, 0
          %s164 = smul.addr %s161, 16
          %s165 = sadd.s32 %s163, %s164
          %s166 = smul.addr %s165, 4
          %s167 = scalar_lea.vmem %s1, %s166
        $region16: #{_lambda_.10} parent=11 // pred_fallthru
          _
        // Predicated region
        $region17: #{_lambda_.10} parent=11 // pred_check
          %p168 = pneg %p112
        $region18: #{_lambda_.10} parent=11 // pred_check_branch
          %170 = sbr.rel (%p168) target = $region20
        $region19: #{_lambda_.10} parent=11 // pred_region
          %p171 = scmp.lt.s32.totalorder %s19, 0
          %s172 = scalar_select %p171, %s19, 0
          %p173 = scmp.lt.s32.totalorder %s21, 0
          %s174 = scalar_select %p173, %s21, 0
          %s175 = sadd.s32 %s174, %s172
          %s176 = scalar_lea.vmem %s2, %s175
        $region20: #{_lambda_.10} parent=11 // pred_fallthru
          _
      $region12: #{_lambda_.10} parent=5 // pred_fallthru
        _
      %p177 = scmp.lt.s32.totalorder %s9, 14
      // Predicated region
      $region21: #{_lambda_.10} parent=5 // pred_check
        %p178 = pneg %p177
      $region22: #{_lambda_.10} parent=5 // pred_check_branch
        %180 = sbr.rel (%p178) target = $region24
      $region23: #{_lambda_.10} parent=5 // pred_region
        // Predicated region
        $region25: #{_lambda_.10} parent=23 // pred_check
          %p181 = pneg %p50
        $region26: #{_lambda_.10} parent=23 // pred_check_branch
          %183 = sbr.rel (%p181) target = $region28
        $region27: #{_lambda_.10} parent=23 // pred_region
          %s184 = smul.u32 64, %s17
          %s185 = ssub.s32 841, %s184
          %p186 = scmp.lt.s32.totalorder %s185, 64
          %s187 = scalar_select %p186, %s185, 64
          %s188 = smul.u32 4, %s187
          %p189 = scmp.lt.s32.totalorder %s16, 0
          %s190 = scalar_select %p189, %s16, 0
          %p191 = scmp.lt.s32.totalorder %s184, 840
          %s192 = scalar_select %p191, %s184, 840
          %s193 = smul.addr %s190, 841
          %s194 = sadd.s32 %s192, %s193
          %s195 = smul.addr %s194, 4
          %s196 = scalar_lea.vmem %s0, %s195
          %s197 = smul.u32 64, %s17
          %s198 = ssub.s32 841, %s197
          %p199 = scmp.lt.s32.totalorder %s198, 64
          %s200 = scalar_select %p199, %s198, 64
          %s201 = smul.u32 4, %s200
        $region28: #{_lambda_.10} parent=23 // pred_fallthru
          _
      $region24: #{_lambda_.10} parent=5 // pred_fallthru
        _
      %p202 = scmp.le.s32.totalorder 1, %s9
      %p203 = scmp.lt.s32.totalorder %s9, 15
      %p204 = pnand %p202, %p203
      %p205 = pneg %p204
      // Predicated region
      $region29: #{_lambda_.10} parent=5 // pred_check
        _
      $region30: #{_lambda_.10} parent=5 // pred_check_branch
        %207 = sbr.rel (%p204) target = $region32
      $region31: #{_lambda_.10} parent=5 // pred_region
        %s208 = ssub.s32 %s9, 1
        %s209 = smul.u32 64, %s20
        %s210 = ssub.s32 841, %s209
        %p211 = scmp.lt.s32.totalorder %s210, 64
        %s212 = scalar_select %p211, %s210, 64
        %s213 = smul.u32 4, %s212
        %p214 = scmp.lt.s32.totalorder %s19, 0
        %s215 = scalar_select %p214, %s19, 0
        %p216 = scmp.lt.s32.totalorder %s209, 840
        %s217 = scalar_select %p216, %s209, 840
        %s218 = smul.addr %s215, 841
        %s219 = sadd.s32 %s217, %s218
        %s220 = smul.addr %s219, 4
        %s221 = scalar_lea.vmem %s0, %s220
        %p222 = pneg %p56
        %p223 = pneg %p53
        %p224 = scmp.lt.s32.totalorder %s19, 0
        %s225 = scalar_select %p224, %s19, 0
        %p226 = scmp.lt.s32.totalorder %s21, 0
        %s227 = scalar_select %p226, %s21, 0
        %s228 = smul.addr %s225, 16
        %s229 = sadd.s32 %s227, %s228
        %s230 = smul.addr %s229, 4
        %s231 = scalar_lea.vmem %s1, %s230
        %p232 = pneg %p84
        %p233 = pneg %p81
        %p234 = scmp.lt.s32.totalorder %s19, 0
        %s235 = scalar_select %p234, %s19, 0
        %p236 = scmp.lt.s32.totalorder %s21, 0
        %s237 = scalar_select %p236, %s21, 0
        %s238 = sadd.s32 %s237, %s235
        %s239 = scalar_lea.vmem %s2, %s238
        %p240 = pneg %p112
        %p241 = pneg %p109
        %p242 = pneg %p142
        %p243 = pneg %p139
        %s244 = sand.u32 %s129, 1
        %s245 = sand.u32 %s129, 1
        %s246 = smul.addr %s245, 256
        %s247 = scalar_lea.vmem [#allocation2], %s246
        %s248 = smul.u32 64, %s20
        %s249 = ssub.s32 841, %s248
        %p250 = scmp.lt.s32.totalorder %s249, 64
        %s251 = scalar_select %p250, %s249, 64
        %s252 = smul.u32 4, %s251
        %p253 = scmp.lt.s32.totalorder %s19, 0
        %s254 = scalar_select %p253, %s19, 0
        %p255 = scmp.lt.s32.totalorder %s248, 840
        %s256 = scalar_select %p255, %s248, 840
        %s257 = smul.addr %s254, 841
        %s258 = sadd.s32 %s256, %s257
        %s259 = smul.addr %s258, 4
        %s260 = scalar_lea.vmem %s0, %s259
        %s261 = smul.u32 64, %s20
        %s262 = ssub.s32 841, %s261
        %p263 = scmp.lt.s32.totalorder %s262, 64
        %s264 = scalar_select %p263, %s262, 64
        %s265 = smul.u32 4, %s264
        %p266 = scmp.lt.s32.totalorder %s19, 0
        %s267 = scalar_select %p266, %s19, 0
        %p268 = scmp.lt.s32.totalorder %s21, 0
        %s269 = scalar_select %p268, %s21, 0
        %s270 = smul.addr %s267, 16
        %s271 = sadd.s32 %s269, %s270
        %s272 = smul.addr %s271, 4
        %s273 = scalar_lea.vmem %s1, %s272
        %p274 = scmp.lt.s32.totalorder %s19, 0
        %s275 = scalar_select %p274, %s19, 0
        %p276 = scmp.lt.s32.totalorder %s21, 0
        %s277 = scalar_select %p276, %s21, 0
        %s278 = sadd.s32 %s277, %s275
        %s279 = scalar_lea.vmem %s2, %s278
        %s280 = smul.u32 64, %s20
        %s281 = ssub.s32 841, %s280
        %p282 = scmp.lt.s32.totalorder %s281, 64
        %s283 = scalar_select %p282, %s281, 64
        %s284 = smul.u32 4, %s283
        %v285 = vld [vmem:[%s260] sm:$0xf]
        %v286 = vld [vmem:[%s260 + $0x4] sm:$0xf]
        %v287 = vld [vmem:[%s260 + $0x8] sm:$0xf]
        %v288 = vld [vmem:[%s260 + $0xc] sm:$0xf]
        %v289 = vld [vmem:[%s260 + $0x10] sm:$0xf]
        %v290 = vld [vmem:[%s260 + $0x14] sm:$0xf]
        %v291 = vld [vmem:[%s260 + $0x18] sm:$0xf]
        %v292 = vld [vmem:[%s260 + $0x1c] sm:$0xf]
        %v293 = vld [vmem:[%s260 + $0x20] sm:$0xf]
        %v294 = vld [vmem:[%s260 + $0x24] sm:$0xf]
        %v295 = vld [vmem:[%s260 + $0x28] sm:$0xf]
        %v296 = vld [vmem:[%s260 + $0x2c] sm:$0xf]
        %v297 = vld [vmem:[%s260 + $0x30] sm:$0xf]
        %v298 = vld [vmem:[%s260 + $0x34] sm:$0xf]
        %v299 = vld [vmem:[%s260 + $0x38] sm:$0xf]
        %v300 = vld [vmem:[%s260 + $0x3c] sm:$0xf]
        %v301 = vld [vmem:[%s260 + $0x40] sm:$0xf]
        %v302 = vld [vmem:[%s260 + $0x44] sm:$0xf]
        %v303 = vld [vmem:[%s260 + $0x48] sm:$0xf]
        %v304 = vld [vmem:[%s260 + $0x4c] sm:$0xf]
        %v305 = vld [vmem:[%s260 + $0x50] sm:$0xf]
        %v306 = vld [vmem:[%s260 + $0x54] sm:$0xf]
        %v307 = vld [vmem:[%s260 + $0x58] sm:$0xf]
        %v308 = vld [vmem:[%s260 + $0x5c] sm:$0xf]
        %v309 = vld [vmem:[%s260 + $0x60] sm:$0xf]
        %v310 = vld [vmem:[%s260 + $0x64] sm:$0xf]
        %v311 = vld [vmem:[%s260 + $0x68] sm:$0xf]
        %v312 = vld [vmem:[%s260 + $0x6c] sm:$0xf]
        %v313 = vld [vmem:[%s260 + $0x70] sm:$0xf]
        %v314 = vld [vmem:[%s260 + $0x74] sm:$0xf]
        %v315 = vld [vmem:[%s260 + $0x78] sm:$0xf]
        %v316 = vld [vmem:[%s260 + $0x7c] sm:$0xf]
        %v317 = vld [vmem:[%s260 + $0x80] sm:$0xf]
        %v318 = vld [vmem:[%s260 + $0x84] sm:$0xf]
        %v319 = vld [vmem:[%s260 + $0x88] sm:$0xf]
        %v320 = vld [vmem:[%s260 + $0x8c] sm:$0xf]
        %v321 = vld [vmem:[%s260 + $0x90] sm:$0xf]
        %v322 = vld [vmem:[%s260 + $0x94] sm:$0xf]
        %v323 = vld [vmem:[%s260 + $0x98] sm:$0xf]
        %v324 = vld [vmem:[%s260 + $0x9c] sm:$0xf]
        %v325 = vld [vmem:[%s260 + $0xa0] sm:$0xf]
        %v326 = vld [vmem:[%s260 + $0xa4] sm:$0xf]
        %v327 = vld [vmem:[%s260 + $0xa8] sm:$0xf]
        %v328 = vld [vmem:[%s260 + $0xac] sm:$0xf]
        %v329 = vld [vmem:[%s260 + $0xb0] sm:$0xf]
        %v330 = vld [vmem:[%s260 + $0xb4] sm:$0xf]
        %v331 = vld [vmem:[%s260 + $0xb8] sm:$0xf]
        %v332 = vld [vmem:[%s260 + $0xbc] sm:$0xf]
        %v333 = vld [vmem:[%s260 + $0xc0] sm:$0xf]
        %v334 = vld [vmem:[%s260 + $0xc4] sm:$0xf]
        %v335 = vld [vmem:[%s260 + $0xc8] sm:$0xf]
        %v336 = vld [vmem:[%s260 + $0xcc] sm:$0xf]
        %v337 = vld [vmem:[%s260 + $0xd0] sm:$0xf]
        %v338 = vld [vmem:[%s260 + $0xd4] sm:$0xf]
        %v339 = vld [vmem:[%s260 + $0xd8] sm:$0xf]
        %v340 = vld [vmem:[%s260 + $0xdc] sm:$0xf]
        %v341 = vld [vmem:[%s260 + $0xe0] sm:$0xf]
        %v342 = vld [vmem:[%s260 + $0xe4] sm:$0xf]
        %v343 = vld [vmem:[%s260 + $0xe8] sm:$0xf]
        %v344 = vld [vmem:[%s260 + $0xec] sm:$0xf]
        %v345 = vld [vmem:[%s260 + $0xf0] sm:$0xf]
        %v346 = vld [vmem:[%s260 + $0xf4] sm:$0xf]
        %v347 = vld [vmem:[%s260 + $0xf8] sm:$0xf]
        %v348 = vld [vmem:[%s260 + $0xfc] sm:$0xf]
        %v349 = vld [vmem:[%s273] sm:$0xf]
        %v350 = vld [vmem:[%s273 + $0x4] sm:$0xf]
        %v351 = vld [vmem:[%s273 + $0x8] sm:$0xf]
        %v352 = vld [vmem:[%s273 + $0xc] sm:$0xf]
        %v353 = vld [vmem:[%s273 + $0x10] sm:$0xf]
        %v354 = vld [vmem:[%s273 + $0x14] sm:$0xf]
        %v355 = vld [vmem:[%s273 + $0x18] sm:$0xf]
        %v356 = vld [vmem:[%s273 + $0x1c] sm:$0xf]
        %v357 = vld [vmem:[%s273 + $0x20] sm:$0xf]
        %v358 = vld [vmem:[%s273 + $0x24] sm:$0xf]
        %v359 = vld [vmem:[%s273 + $0x28] sm:$0xf]
        %v360 = vld [vmem:[%s273 + $0x2c] sm:$0xf]
        %v361 = vld [vmem:[%s273 + $0x30] sm:$0xf]
        %v362 = vld [vmem:[%s273 + $0x34] sm:$0xf]
        %v363 = vld [vmem:[%s273 + $0x38] sm:$0xf]
        %v364 = vld [vmem:[%s273 + $0x3c] sm:$0xf]
        %v365 = vld [vmem:[%s279] sm:$0x1]
        %v367 = vperm.slane %v365, 0
        %v433 = vunpack.c.l.b16 %v285
        %v434 = vunpack.c.l.b16 %v286
        %v435 = vunpack.c.l.b16 %v287
        %v436 = vunpack.c.l.b16 %v288
        %v437 = vunpack.c.l.b16 %v289
        %v438 = vunpack.c.l.b16 %v290
        %v439 = vunpack.c.l.b16 %v291
        %v440 = vunpack.c.l.b16 %v292
        %v441 = vunpack.c.l.b16 %v293
        %v442 = vunpack.c.l.b16 %v294
        %v443 = vunpack.c.l.b16 %v295
        %v444 = vunpack.c.l.b16 %v296
        %v445 = vunpack.c.l.b16 %v297
        %v446 = vunpack.c.l.b16 %v298
        %v447 = vunpack.c.l.b16 %v299
        %v448 = vunpack.c.l.b16 %v300
        %v449 = vunpack.c.l.b16 %v301
        %v450 = vunpack.c.l.b16 %v302
        %v451 = vunpack.c.l.b16 %v303
        %v452 = vunpack.c.l.b16 %v304
        %v453 = vunpack.c.l.b16 %v305
        %v454 = vunpack.c.l.b16 %v306
        %v455 = vunpack.c.l.b16 %v307
        %v456 = vunpack.c.l.b16 %v308
        %v457 = vunpack.c.l.b16 %v309
        %v458 = vunpack.c.l.b16 %v310
        %v459 = vunpack.c.l.b16 %v311
        %v460 = vunpack.c.l.b16 %v312
        %v461 = vunpack.c.l.b16 %v313
        %v462 = vunpack.c.l.b16 %v314
        %v463 = vunpack.c.l.b16 %v315
        %v464 = vunpack.c.l.b16 %v316
        %v465 = vunpack.c.l.b16 %v317
        %v466 = vunpack.c.l.b16 %v318
        %v467 = vunpack.c.l.b16 %v319
        %v468 = vunpack.c.l.b16 %v320
        %v469 = vunpack.c.l.b16 %v321
        %v470 = vunpack.c.l.b16 %v322
        %v471 = vunpack.c.l.b16 %v323
        %v472 = vunpack.c.l.b16 %v324
        %v473 = vunpack.c.l.b16 %v325
        %v474 = vunpack.c.l.b16 %v326
        %v475 = vunpack.c.l.b16 %v327
        %v476 = vunpack.c.l.b16 %v328
        %v477 = vunpack.c.l.b16 %v329
        %v478 = vunpack.c.l.b16 %v330
        %v479 = vunpack.c.l.b16 %v331
        %v480 = vunpack.c.l.b16 %v332
        %v481 = vunpack.c.l.b16 %v333
        %v482 = vunpack.c.l.b16 %v334
        %v483 = vunpack.c.l.b16 %v335
        %v484 = vunpack.c.l.b16 %v336
        %v485 = vunpack.c.l.b16 %v337
        %v486 = vunpack.c.l.b16 %v338
        %v487 = vunpack.c.l.b16 %v339
        %v488 = vunpack.c.l.b16 %v340
        %v489 = vunpack.c.l.b16 %v341
        %v490 = vunpack.c.l.b16 %v342
        %v491 = vunpack.c.l.b16 %v343
        %v492 = vunpack.c.l.b16 %v344
        %v493 = vunpack.c.l.b16 %v345
        %v494 = vunpack.c.l.b16 %v346
        %v495 = vunpack.c.l.b16 %v347
        %v496 = vunpack.c.l.b16 %v348
        %v497 = vpack.c.b16 %v434, %v433
        %v498 = vpack.c.b16 %v436, %v435
        %v499 = vpack.c.b16 %v438, %v437
        %v500 = vpack.c.b16 %v440, %v439
        %v501 = vpack.c.b16 %v442, %v441
        %v502 = vpack.c.b16 %v444, %v443
        %v503 = vpack.c.b16 %v446, %v445
        %v504 = vpack.c.b16 %v448, %v447
        %v505 = vpack.c.b16 %v450, %v449
        %v506 = vpack.c.b16 %v452, %v451
        %v507 = vpack.c.b16 %v454, %v453
        %v508 = vpack.c.b16 %v456, %v455
        %v509 = vpack.c.b16 %v458, %v457
        %v510 = vpack.c.b16 %v460, %v459
        %v511 = vpack.c.b16 %v462, %v461
        %v512 = vpack.c.b16 %v464, %v463
        %v513 = vpack.c.b16 %v466, %v465
        %v514 = vpack.c.b16 %v468, %v467
        %v515 = vpack.c.b16 %v470, %v469
        %v516 = vpack.c.b16 %v472, %v471
        %v517 = vpack.c.b16 %v474, %v473
        %v518 = vpack.c.b16 %v476, %v475
        %v519 = vpack.c.b16 %v478, %v477
        %v520 = vpack.c.b16 %v480, %v479
        %v521 = vpack.c.b16 %v482, %v481
        %v522 = vpack.c.b16 %v484, %v483
        %v523 = vpack.c.b16 %v486, %v485
        %v524 = vpack.c.b16 %v488, %v487
        %v525 = vpack.c.b16 %v490, %v489
        %v526 = vpack.c.b16 %v492, %v491
        %v527 = vpack.c.b16 %v494, %v493
        %v528 = vpack.c.b16 %v496, %v495
        %v577 = vunpack.c.l.b16 %v349
        %v578 = vunpack.c.l.b16 %v350
        %v579 = vunpack.c.l.b16 %v351
        %v580 = vunpack.c.l.b16 %v352
        %v581 = vunpack.c.l.b16 %v353
        %v582 = vunpack.c.l.b16 %v354
        %v583 = vunpack.c.l.b16 %v355
        %v584 = vunpack.c.l.b16 %v356
        %v585 = vunpack.c.l.b16 %v357
        %v586 = vunpack.c.l.b16 %v358
        %v587 = vunpack.c.l.b16 %v359
        %v588 = vunpack.c.l.b16 %v360
        %v589 = vunpack.c.l.b16 %v361
        %v590 = vunpack.c.l.b16 %v362
        %v591 = vunpack.c.l.b16 %v363
        %v592 = vunpack.c.l.b16 %v364
        %v593 = vpack.c.b16 %v578, %v577
        %v594 = vpack.c.b16 %v580, %v579
        %v595 = vpack.c.b16 %v582, %v581
        %v596 = vpack.c.b16 %v584, %v583
        %v597 = vpack.c.b16 %v586, %v585
        %v598 = vpack.c.b16 %v588, %v587
        %v599 = vpack.c.b16 %v590, %v589
        %v600 = vpack.c.b16 %v592, %v591
        %609 = vmatpush.bf16.msra.mxu0 %v600
        %610 = vmatpush.bf16.msra.mxu0 %v599
        %611 = vmatpush.bf16.msra.mxu0 %v598
        %612 = vmatpush.bf16.msra.mxu0 %v597
        %613 = vmatpush.bf16.msra.mxu0 %v596
        %614 = vmatpush.bf16.msra.mxu0 %v595
        %615 = vmatpush.bf16.msra.mxu0 %v594
        %616 = vmatpush.bf16.msra.mxu0 %v593
        %617 = vmatmul.bf16.gmra.mxu0 %v497
        %v618 = vpop.f32.mrf.mxu0
        %v619 = vadd.f32 %v367, %v618
        %v620 = vpop.f32.mrf.mxu0
        %v621 = vadd.f32 %v367, %v620
        %622 = vmatmul.bf16.gmra.mxu0 %v498
        %v623 = vpop.f32.mrf.mxu0
        %v624 = vadd.f32 %v367, %v623
        %v625 = vpop.f32.mrf.mxu0
        %v626 = vadd.f32 %v367, %v625
        %627 = vmatmul.bf16.gmra.mxu0 %v499
        %v628 = vpop.f32.mrf.mxu0
        %v629 = vadd.f32 %v367, %v628
        %v630 = vpop.f32.mrf.mxu0
        %v631 = vadd.f32 %v367, %v630
        %632 = vmatmul.bf16.gmra.mxu0 %v500
        %v633 = vpop.f32.mrf.mxu0
        %v634 = vadd.f32 %v367, %v633
        %v635 = vpop.f32.mrf.mxu0
        %v636 = vadd.f32 %v367, %v635
        %637 = vmatmul.bf16.gmra.mxu0 %v501
        %v638 = vpop.f32.mrf.mxu0
        %v639 = vadd.f32 %v367, %v638
        %v640 = vpop.f32.mrf.mxu0
        %v641 = vadd.f32 %v367, %v640
        %642 = vmatmul.bf16.gmra.mxu0 %v502
        %v643 = vpop.f32.mrf.mxu0
        %v644 = vadd.f32 %v367, %v643
        %v645 = vpop.f32.mrf.mxu0
        %v646 = vadd.f32 %v367, %v645
        %647 = vmatmul.bf16.gmra.mxu0 %v503
        %v648 = vpop.f32.mrf.mxu0
        %v649 = vadd.f32 %v367, %v648
        %v650 = vpop.f32.mrf.mxu0
        %v651 = vadd.f32 %v367, %v650
        %652 = vmatmul.bf16.gmra.mxu0 %v504
        %v653 = vpop.f32.mrf.mxu0
        %v654 = vadd.f32 %v367, %v653
        %v655 = vpop.f32.mrf.mxu0
        %v656 = vadd.f32 %v367, %v655
        %657 = vmatmul.bf16.gmra.mxu0 %v505
        %v658 = vpop.f32.mrf.mxu0
        %v659 = vadd.f32 %v367, %v658
        %v660 = vpop.f32.mrf.mxu0
        %v661 = vadd.f32 %v367, %v660
        %662 = vmatmul.bf16.gmra.mxu0 %v506
        %v663 = vpop.f32.mrf.mxu0
        %v664 = vadd.f32 %v367, %v663
        %v665 = vpop.f32.mrf.mxu0
        %v666 = vadd.f32 %v367, %v665
        %667 = vmatmul.bf16.gmra.mxu0 %v507
        %v668 = vpop.f32.mrf.mxu0
        %v669 = vadd.f32 %v367, %v668
        %v670 = vpop.f32.mrf.mxu0
        %v671 = vadd.f32 %v367, %v670
        %672 = vmatmul.bf16.gmra.mxu0 %v508
        %v673 = vpop.f32.mrf.mxu0
        %v674 = vadd.f32 %v367, %v673
        %v675 = vpop.f32.mrf.mxu0
        %v676 = vadd.f32 %v367, %v675
        %677 = vmatmul.bf16.gmra.mxu0 %v509
        %v678 = vpop.f32.mrf.mxu0
        %v679 = vadd.f32 %v367, %v678
        %v680 = vpop.f32.mrf.mxu0
        %v681 = vadd.f32 %v367, %v680
        %682 = vmatmul.bf16.gmra.mxu0 %v510
        %v683 = vpop.f32.mrf.mxu0
        %v684 = vadd.f32 %v367, %v683
        %v685 = vpop.f32.mrf.mxu0
        %v686 = vadd.f32 %v367, %v685
        %687 = vmatmul.bf16.gmra.mxu0 %v511
        %v688 = vpop.f32.mrf.mxu0
        %v689 = vadd.f32 %v367, %v688
        %v690 = vpop.f32.mrf.mxu0
        %v691 = vadd.f32 %v367, %v690
        %692 = vmatmul.bf16.gmra.mxu0 %v512
        %v693 = vpop.f32.mrf.mxu0
        %v694 = vadd.f32 %v367, %v693
        %v695 = vpop.f32.mrf.mxu0
        %v696 = vadd.f32 %v367, %v695
        %697 = vmatmul.bf16.gmra.mxu0 %v513
        %v698 = vpop.f32.mrf.mxu0
        %v699 = vadd.f32 %v367, %v698
        %v700 = vpop.f32.mrf.mxu0
        %v701 = vadd.f32 %v367, %v700
        %702 = vmatmul.bf16.gmra.mxu0 %v514
        %v703 = vpop.f32.mrf.mxu0
        %v704 = vadd.f32 %v367, %v703
        %v705 = vpop.f32.mrf.mxu0
        %v706 = vadd.f32 %v367, %v705
        %707 = vmatmul.bf16.gmra.mxu0 %v515
        %v708 = vpop.f32.mrf.mxu0
        %v709 = vadd.f32 %v367, %v708
        %v710 = vpop.f32.mrf.mxu0
        %v711 = vadd.f32 %v367, %v710
        %712 = vmatmul.bf16.gmra.mxu0 %v516
        %v713 = vpop.f32.mrf.mxu0
        %v714 = vadd.f32 %v367, %v713
        %v715 = vpop.f32.mrf.mxu0
        %v716 = vadd.f32 %v367, %v715
        %717 = vmatmul.bf16.gmra.mxu0 %v517
        %v718 = vpop.f32.mrf.mxu0
        %v719 = vadd.f32 %v367, %v718
        %v720 = vpop.f32.mrf.mxu0
        %v721 = vadd.f32 %v367, %v720
        %722 = vmatmul.bf16.gmra.mxu0 %v518
        %v723 = vpop.f32.mrf.mxu0
        %v724 = vadd.f32 %v367, %v723
        %v725 = vpop.f32.mrf.mxu0
        %v726 = vadd.f32 %v367, %v725
        %727 = vmatmul.bf16.gmra.mxu0 %v519
        %v728 = vpop.f32.mrf.mxu0
        %v729 = vadd.f32 %v367, %v728
        %v730 = vpop.f32.mrf.mxu0
        %v731 = vadd.f32 %v367, %v730
        %732 = vmatmul.bf16.gmra.mxu0 %v520
        %v733 = vpop.f32.mrf.mxu0
        %v734 = vadd.f32 %v367, %v733
        %v735 = vpop.f32.mrf.mxu0
        %v736 = vadd.f32 %v367, %v735
        %737 = vmatmul.bf16.gmra.mxu0 %v521
        %v738 = vpop.f32.mrf.mxu0
        %v739 = vadd.f32 %v367, %v738
        %v740 = vpop.f32.mrf.mxu0
        %v741 = vadd.f32 %v367, %v740
        %742 = vmatmul.bf16.gmra.mxu0 %v522
        %v743 = vpop.f32.mrf.mxu0
        %v744 = vadd.f32 %v367, %v743
        %v745 = vpop.f32.mrf.mxu0
        %v746 = vadd.f32 %v367, %v745
        %747 = vmatmul.bf16.gmra.mxu0 %v523
        %v748 = vpop.f32.mrf.mxu0
        %v749 = vadd.f32 %v367, %v748
        %v750 = vpop.f32.mrf.mxu0
        %v751 = vadd.f32 %v367, %v750
        %752 = vmatmul.bf16.gmra.mxu0 %v524
        %v753 = vpop.f32.mrf.mxu0
        %v754 = vadd.f32 %v367, %v753
        %v755 = vpop.f32.mrf.mxu0
        %v756 = vadd.f32 %v367, %v755
        %757 = vmatmul.bf16.gmra.mxu0 %v525
        %v758 = vpop.f32.mrf.mxu0
        %v759 = vadd.f32 %v367, %v758
        %v760 = vpop.f32.mrf.mxu0
        %v761 = vadd.f32 %v367, %v760
        %762 = vmatmul.bf16.gmra.mxu0 %v526
        %v763 = vpop.f32.mrf.mxu0
        %v764 = vadd.f32 %v367, %v763
        %v765 = vpop.f32.mrf.mxu0
        %v766 = vadd.f32 %v367, %v765
        %767 = vmatmul.bf16.gmra.mxu0 %v527
        %v768 = vpop.f32.mrf.mxu0
        %v769 = vadd.f32 %v367, %v768
        %v770 = vpop.f32.mrf.mxu0
        %v771 = vadd.f32 %v367, %v770
        %772 = vmatmul.bf16.gmra.mxu0 %v528
        %v773 = vpop.f32.mrf.mxu0
        %v774 = vadd.f32 %v367, %v773
        %v775 = vpop.f32.mrf.mxu0
        %v776 = vadd.f32 %v367, %v775
        %777 = vdwg.mxu0
        %v778 = vmax.f32 %v619, 0.0
        %v779 = vmax.f32 %v621, 0.0
        %v780 = vmax.f32 %v624, 0.0
        %v781 = vmax.f32 %v626, 0.0
        %v782 = vmax.f32 %v629, 0.0
        %v783 = vmax.f32 %v631, 0.0
        %v784 = vmax.f32 %v634, 0.0
        %v785 = vmax.f32 %v636, 0.0
        %v786 = vmax.f32 %v639, 0.0
        %v787 = vmax.f32 %v641, 0.0
        %v788 = vmax.f32 %v644, 0.0
        %v789 = vmax.f32 %v646, 0.0
        %v790 = vmax.f32 %v649, 0.0
        %v791 = vmax.f32 %v651, 0.0
        %v792 = vmax.f32 %v654, 0.0
        %v793 = vmax.f32 %v656, 0.0
        %v794 = vmax.f32 %v659, 0.0
        %v795 = vmax.f32 %v661, 0.0
        %v796 = vmax.f32 %v664, 0.0
        %v797 = vmax.f32 %v666, 0.0
        %v798 = vmax.f32 %v669, 0.0
        %v799 = vmax.f32 %v671, 0.0
        %v800 = vmax.f32 %v674, 0.0
        %v801 = vmax.f32 %v676, 0.0
        %v802 = vmax.f32 %v679, 0.0
        %v803 = vmax.f32 %v681, 0.0
        %v804 = vmax.f32 %v684, 0.0
        %v805 = vmax.f32 %v686, 0.0
        %v806 = vmax.f32 %v689, 0.0
        %v807 = vmax.f32 %v691, 0.0
        %v808 = vmax.f32 %v694, 0.0
        %v809 = vmax.f32 %v696, 0.0
        %v810 = vmax.f32 %v699, 0.0
        %v811 = vmax.f32 %v701, 0.0
        %v812 = vmax.f32 %v704, 0.0
        %v813 = vmax.f32 %v706, 0.0
        %v814 = vmax.f32 %v709, 0.0
        %v815 = vmax.f32 %v711, 0.0
        %v816 = vmax.f32 %v714, 0.0
        %v817 = vmax.f32 %v716, 0.0
        %v818 = vmax.f32 %v719, 0.0
        %v819 = vmax.f32 %v721, 0.0
        %v820 = vmax.f32 %v724, 0.0
        %v821 = vmax.f32 %v726, 0.0
        %v822 = vmax.f32 %v729, 0.0
        %v823 = vmax.f32 %v731, 0.0
        %v824 = vmax.f32 %v734, 0.0
        %v825 = vmax.f32 %v736, 0.0
        %v826 = vmax.f32 %v739, 0.0
        %v827 = vmax.f32 %v741, 0.0
        %v828 = vmax.f32 %v744, 0.0
        %v829 = vmax.f32 %v746, 0.0
        %v830 = vmax.f32 %v749, 0.0
        %v831 = vmax.f32 %v751, 0.0
        %v832 = vmax.f32 %v754, 0.0
        %v833 = vmax.f32 %v756, 0.0
        %v834 = vmax.f32 %v759, 0.0
        %v835 = vmax.f32 %v761, 0.0
        %v836 = vmax.f32 %v764, 0.0
        %v837 = vmax.f32 %v766, 0.0
        %v838 = vmax.f32 %v769, 0.0
        %v839 = vmax.f32 %v771, 0.0
        %v840 = vmax.f32 %v774, 0.0
        %v841 = vmax.f32 %v776, 0.0
        %v842 = vpack.c.bf16 %v778, %v778
        %v843 = vpack.c.bf16 %v779, %v779
        %v844 = vpack.c.bf16 %v780, %v780
        %v845 = vpack.c.bf16 %v781, %v781
        %v846 = vpack.c.bf16 %v782, %v782
        %v847 = vpack.c.bf16 %v783, %v783
        %v848 = vpack.c.bf16 %v784, %v784
        %v849 = vpack.c.bf16 %v785, %v785
        %v850 = vpack.c.bf16 %v786, %v786
        %v851 = vpack.c.bf16 %v787, %v787
        %v852 = vpack.c.bf16 %v788, %v788
        %v853 = vpack.c.bf16 %v789, %v789
        %v854 = vpack.c.bf16 %v790, %v790
        %v855 = vpack.c.bf16 %v791, %v791
        %v856 = vpack.c.bf16 %v792, %v792
        %v857 = vpack.c.bf16 %v793, %v793
        %v858 = vpack.c.bf16 %v794, %v794
        %v859 = vpack.c.bf16 %v795, %v795
        %v860 = vpack.c.bf16 %v796, %v796
        %v861 = vpack.c.bf16 %v797, %v797
        %v862 = vpack.c.bf16 %v798, %v798
        %v863 = vpack.c.bf16 %v799, %v799
        %v864 = vpack.c.bf16 %v800, %v800
        %v865 = vpack.c.bf16 %v801, %v801
        %v866 = vpack.c.bf16 %v802, %v802
        %v867 = vpack.c.bf16 %v803, %v803
        %v868 = vpack.c.bf16 %v804, %v804
        %v869 = vpack.c.bf16 %v805, %v805
        %v870 = vpack.c.bf16 %v806, %v806
        %v871 = vpack.c.bf16 %v807, %v807
        %v872 = vpack.c.bf16 %v808, %v808
        %v873 = vpack.c.bf16 %v809, %v809
        %v874 = vpack.c.bf16 %v810, %v810
        %v875 = vpack.c.bf16 %v811, %v811
        %v876 = vpack.c.bf16 %v812, %v812
        %v877 = vpack.c.bf16 %v813, %v813
        %v878 = vpack.c.bf16 %v814, %v814
        %v879 = vpack.c.bf16 %v815, %v815
        %v880 = vpack.c.bf16 %v816, %v816
        %v881 = vpack.c.bf16 %v817, %v817
        %v882 = vpack.c.bf16 %v818, %v818
        %v883 = vpack.c.bf16 %v819, %v819
        %v884 = vpack.c.bf16 %v820, %v820
        %v885 = vpack.c.bf16 %v821, %v821
        %v886 = vpack.c.bf16 %v822, %v822
        %v887 = vpack.c.bf16 %v823, %v823
        %v888 = vpack.c.bf16 %v824, %v824
        %v889 = vpack.c.bf16 %v825, %v825
        %v890 = vpack.c.bf16 %v826, %v826
        %v891 = vpack.c.bf16 %v827, %v827
        %v892 = vpack.c.bf16 %v828, %v828
        %v893 = vpack.c.bf16 %v829, %v829
        %v894 = vpack.c.bf16 %v830, %v830
        %v895 = vpack.c.bf16 %v831, %v831
        %v896 = vpack.c.bf16 %v832, %v832
        %v897 = vpack.c.bf16 %v833, %v833
        %v898 = vpack.c.bf16 %v834, %v834
        %v899 = vpack.c.bf16 %v835, %v835
        %v900 = vpack.c.bf16 %v836, %v836
        %v901 = vpack.c.bf16 %v837, %v837
        %v902 = vpack.c.bf16 %v838, %v838
        %v903 = vpack.c.bf16 %v839, %v839
        %v904 = vpack.c.bf16 %v840, %v840
        %v905 = vpack.c.bf16 %v841, %v841
        %906 = vst [vmem:[%s247] sm:$0xf] %v842
        %907 = vst [vmem:[%s247 + $0x4] sm:$0xf] %v843
        %908 = vst [vmem:[%s247 + $0x8] sm:$0xf] %v844
        %909 = vst [vmem:[%s247 + $0xc] sm:$0xf] %v845
        %910 = vst [vmem:[%s247 + $0x10] sm:$0xf] %v846
        %911 = vst [vmem:[%s247 + $0x14] sm:$0xf] %v847
        %912 = vst [vmem:[%s247 + $0x18] sm:$0xf] %v848
        %913 = vst [vmem:[%s247 + $0x1c] sm:$0xf] %v849
        %914 = vst [vmem:[%s247 + $0x20] sm:$0xf] %v850
        %915 = vst [vmem:[%s247 + $0x24] sm:$0xf] %v851
        %916 = vst [vmem:[%s247 + $0x28] sm:$0xf] %v852
        %917 = vst [vmem:[%s247 + $0x2c] sm:$0xf] %v853
        %918 = vst [vmem:[%s247 + $0x30] sm:$0xf] %v854
        %919 = vst [vmem:[%s247 + $0x34] sm:$0xf] %v855
        %920 = vst [vmem:[%s247 + $0x38] sm:$0xf] %v856
        %921 = vst [vmem:[%s247 + $0x3c] sm:$0xf] %v857
        %922 = vst [vmem:[%s247 + $0x40] sm:$0xf] %v858
        %923 = vst [vmem:[%s247 + $0x44] sm:$0xf] %v859
        %924 = vst [vmem:[%s247 + $0x48] sm:$0xf] %v860
        %925 = vst [vmem:[%s247 + $0x4c] sm:$0xf] %v861
        %926 = vst [vmem:[%s247 + $0x50] sm:$0xf] %v862
        %927 = vst [vmem:[%s247 + $0x54] sm:$0xf] %v863
        %928 = vst [vmem:[%s247 + $0x58] sm:$0xf] %v864
        %929 = vst [vmem:[%s247 + $0x5c] sm:$0xf] %v865
        %930 = vst [vmem:[%s247 + $0x60] sm:$0xf] %v866
        %931 = vst [vmem:[%s247 + $0x64] sm:$0xf] %v867
        %932 = vst [vmem:[%s247 + $0x68] sm:$0xf] %v868
        %933 = vst [vmem:[%s247 + $0x6c] sm:$0xf] %v869
        %934 = vst [vmem:[%s247 + $0x70] sm:$0xf] %v870
        %935 = vst [vmem:[%s247 + $0x74] sm:$0xf] %v871
        %936 = vst [vmem:[%s247 + $0x78] sm:$0xf] %v872
        %937 = vst [vmem:[%s247 + $0x7c] sm:$0xf] %v873
        %938 = vst [vmem:[%s247 + $0x80] sm:$0xf] %v874
        %939 = vst [vmem:[%s247 + $0x84] sm:$0xf] %v875
        %940 = vst [vmem:[%s247 + $0x88] sm:$0xf] %v876
        %941 = vst [vmem:[%s247 + $0x8c] sm:$0xf] %v877
        %942 = vst [vmem:[%s247 + $0x90] sm:$0xf] %v878
        %943 = vst [vmem:[%s247 + $0x94] sm:$0xf] %v879
        %944 = vst [vmem:[%s247 + $0x98] sm:$0xf] %v880
        %945 = vst [vmem:[%s247 + $0x9c] sm:$0xf] %v881
        %946 = vst [vmem:[%s247 + $0xa0] sm:$0xf] %v882
        %947 = vst [vmem:[%s247 + $0xa4] sm:$0xf] %v883
        %948 = vst [vmem:[%s247 + $0xa8] sm:$0xf] %v884
        %949 = vst [vmem:[%s247 + $0xac] sm:$0xf] %v885
        %950 = vst [vmem:[%s247 + $0xb0] sm:$0xf] %v886
        %951 = vst [vmem:[%s247 + $0xb4] sm:$0xf] %v887
        %952 = vst [vmem:[%s247 + $0xb8] sm:$0xf] %v888
        %953 = vst [vmem:[%s247 + $0xbc] sm:$0xf] %v889
        %954 = vst [vmem:[%s247 + $0xc0] sm:$0xf] %v890
        %955 = vst [vmem:[%s247 + $0xc4] sm:$0xf] %v891
        %956 = vst [vmem:[%s247 + $0xc8] sm:$0xf] %v892
        %957 = vst [vmem:[%s247 + $0xcc] sm:$0xf] %v893
        %958 = vst [vmem:[%s247 + $0xd0] sm:$0xf] %v894
        %959 = vst [vmem:[%s247 + $0xd4] sm:$0xf] %v895
        %960 = vst [vmem:[%s247 + $0xd8] sm:$0xf] %v896
        %961 = vst [vmem:[%s247 + $0xdc] sm:$0xf] %v897
        %962 = vst [vmem:[%s247 + $0xe0] sm:$0xf] %v898
        %963 = vst [vmem:[%s247 + $0xe4] sm:$0xf] %v899
        %964 = vst [vmem:[%s247 + $0xe8] sm:$0xf] %v900
        %965 = vst [vmem:[%s247 + $0xec] sm:$0xf] %v901
        %966 = vst [vmem:[%s247 + $0xf0] sm:$0xf] %v902
        %967 = vst [vmem:[%s247 + $0xf4] sm:$0xf] %v903
        %968 = vst [vmem:[%s247 + $0xf8] sm:$0xf] %v904
        %969 = vst [vmem:[%s247 + $0xfc] sm:$0xf] %v905
        %s970 = sand.u32 %s129, 1
        %s971 = sand.u32 %s129, 1
        %s972 = smul.addr %s971, 256
        %s973 = scalar_lea.vmem [#allocation2], %s972
        // Predicated region
        $region33: #{_lambda_.10} parent=31 // pred_check
          %p974 = pneg %p139
        $region34: #{_lambda_.10} parent=31 // pred_check_branch
          %976 = sbr.rel (%p974) target = $region36
        $region35: #{_lambda_.10} parent=31 // pred_region
          %s977 = smul.u32 64, %s20
          %s978 = ssub.s32 841, %s977
          %p979 = scmp.lt.s32.totalorder %s978, 64
          %s980 = scalar_select %p979, %s978, 64
          %s981 = smul.u32 4, %s980
          %p982 = scmp.ne.s32.totalorder 0, %s981
          %s983 = sadd.s32 %s21, %s977
          %s984 = smul.addr %s19, 841
          %s985 = sadd.s32 %s983, %s984
          %s986 = smul.addr %s985, 4
          %s987 = scalar_lea.vmem %s3, %s986
          // Predicated region
          $region37: #{_lambda_.10} parent=35 // pred_check
            %p988 = pneg %p982
          $region38: #{_lambda_.10} parent=35 // pred_check_branch
            %990 = sbr.rel (%p988) target = $region40
          $region39: #{_lambda_.10} parent=35 // pred_region
            // Predicated region
            $region41: #{_lambda_.10} parent=39 // pred_check
              _
            $region42: #{_lambda_.10} parent=39 // pred_check_branch
              %992 = sbr.rel target = $region44
            $region43: #{_lambda_.10} parent=39 // pred_region
              // Predicated region
              $region63: #{_lambda_.10} parent=43 // pred_check
                _
              $region64: #{_lambda_.10} parent=43 // pred_check_branch
                %1104 = sbr.rel (0) target = $region66
              $region65: #{_lambda_.10} parent=43 // pred_region
                %s1106 = ssub.s32 16, 1
                %s1107 = sshrl.u32 %s980, 5
                // While loop
                $region67: #{_lambda_.10} parent=65 // loop_pre_header
                  _
                $region68: #{_lambda_.10} parent=65 // loop_header
                  %s1109 = sphi 0, %s1111
                  %p1110 = scmp.ge.s32.totalorder %s1109, %s1107
                  %s1114 = sphi 0, %s1183
                  %s1115 = sphi %s973, %s1186
                  %s1116 = sphi %s987, %s1187
                $region69: #{_lambda_.10} parent=65 // loop_header_branch
                  %1113 = sbr.rel (%p1110) target = $region73
                $region70: #{_lambda_.10} parent=65 // loop_body
                  %v1117 = vld [vmem:[%s1115] sm:%s1106]
                  %1118 = vst [vmem:[%s1116] sm:%s1106] %v1117
                  %v1119 = vld [vmem:[%s1115 + $0x4] sm:%s1106]
                  %1120 = vst [vmem:[%s1116 + $0x4] sm:%s1106] %v1119
                  %v1121 = vld [vmem:[%s1115 + $0x8] sm:%s1106]
                  %1122 = vst [vmem:[%s1116 + $0x8] sm:%s1106] %v1121
                  %v1123 = vld [vmem:[%s1115 + $0xc] sm:%s1106]
                  %1124 = vst [vmem:[%s1116 + $0xc] sm:%s1106] %v1123
                  %v1125 = vld [vmem:[%s1115 + $0x10] sm:%s1106]
                  %1126 = vst [vmem:[%s1116 + $0x10] sm:%s1106] %v1125
                  %v1127 = vld [vmem:[%s1115 + $0x14] sm:%s1106]
                  %1128 = vst [vmem:[%s1116 + $0x14] sm:%s1106] %v1127
                  %v1129 = vld [vmem:[%s1115 + $0x18] sm:%s1106]
                  %1130 = vst [vmem:[%s1116 + $0x18] sm:%s1106] %v1129
                  %v1131 = vld [vmem:[%s1115 + $0x1c] sm:%s1106]
                  %1132 = vst [vmem:[%s1116 + $0x1c] sm:%s1106] %v1131
                  %v1133 = vld [vmem:[%s1115 + $0x20] sm:%s1106]
                  %1134 = vst [vmem:[%s1116 + $0x20] sm:%s1106] %v1133
                  %v1135 = vld [vmem:[%s1115 + $0x24] sm:%s1106]
                  %1136 = vst [vmem:[%s1116 + $0x24] sm:%s1106] %v1135
                  %v1137 = vld [vmem:[%s1115 + $0x28] sm:%s1106]
                  %1138 = vst [vmem:[%s1116 + $0x28] sm:%s1106] %v1137
                  %v1139 = vld [vmem:[%s1115 + $0x2c] sm:%s1106]
                  %1140 = vst [vmem:[%s1116 + $0x2c] sm:%s1106] %v1139
                  %v1141 = vld [vmem:[%s1115 + $0x30] sm:%s1106]
                  %1142 = vst [vmem:[%s1116 + $0x30] sm:%s1106] %v1141
                  %v1143 = vld [vmem:[%s1115 + $0x34] sm:%s1106]
                  %1144 = vst [vmem:[%s1116 + $0x34] sm:%s1106] %v1143
                  %v1145 = vld [vmem:[%s1115 + $0x38] sm:%s1106]
                  %1146 = vst [vmem:[%s1116 + $0x38] sm:%s1106] %v1145
                  %v1147 = vld [vmem:[%s1115 + $0x3c] sm:%s1106]
                  %1148 = vst [vmem:[%s1116 + $0x3c] sm:%s1106] %v1147
                  %v1149 = vld [vmem:[%s1115 + $0x40] sm:%s1106]
                  %1150 = vst [vmem:[%s1116 + $0x40] sm:%s1106] %v1149
                  %v1151 = vld [vmem:[%s1115 + $0x44] sm:%s1106]
                  %1152 = vst [vmem:[%s1116 + $0x44] sm:%s1106] %v1151
                  %v1153 = vld [vmem:[%s1115 + $0x48] sm:%s1106]
                  %1154 = vst [vmem:[%s1116 + $0x48] sm:%s1106] %v1153
                  %v1155 = vld [vmem:[%s1115 + $0x4c] sm:%s1106]
                  %1156 = vst [vmem:[%s1116 + $0x4c] sm:%s1106] %v1155
                  %v1157 = vld [vmem:[%s1115 + $0x50] sm:%s1106]
                  %1158 = vst [vmem:[%s1116 + $0x50] sm:%s1106] %v1157
                  %v1159 = vld [vmem:[%s1115 + $0x54] sm:%s1106]
                  %1160 = vst [vmem:[%s1116 + $0x54] sm:%s1106] %v1159
                  %v1161 = vld [vmem:[%s1115 + $0x58] sm:%s1106]
                  %1162 = vst [vmem:[%s1116 + $0x58] sm:%s1106] %v1161
                  %v1163 = vld [vmem:[%s1115 + $0x5c] sm:%s1106]
                  %1164 = vst [vmem:[%s1116 + $0x5c] sm:%s1106] %v1163
                  %v1165 = vld [vmem:[%s1115 + $0x60] sm:%s1106]
                  %1166 = vst [vmem:[%s1116 + $0x60] sm:%s1106] %v1165
                  %v1167 = vld [vmem:[%s1115 + $0x64] sm:%s1106]
                  %1168 = vst [vmem:[%s1116 + $0x64] sm:%s1106] %v1167
                  %v1169 = vld [vmem:[%s1115 + $0x68] sm:%s1106]
                  %1170 = vst [vmem:[%s1116 + $0x68] sm:%s1106] %v1169
                  %v1171 = vld [vmem:[%s1115 + $0x6c] sm:%s1106]
                  %1172 = vst [vmem:[%s1116 + $0x6c] sm:%s1106] %v1171
                  %v1173 = vld [vmem:[%s1115 + $0x70] sm:%s1106]
                  %1174 = vst [vmem:[%s1116 + $0x70] sm:%s1106] %v1173
                  %v1175 = vld [vmem:[%s1115 + $0x74] sm:%s1106]
                  %1176 = vst [vmem:[%s1116 + $0x74] sm:%s1106] %v1175
                  %v1177 = vld [vmem:[%s1115 + $0x78] sm:%s1106]
                  %1178 = vst [vmem:[%s1116 + $0x78] sm:%s1106] %v1177
                  %v1179 = vld [vmem:[%s1115 + $0x7c] sm:%s1106]
                  %1180 = vst [vmem:[%s1116 + $0x7c] sm:%s1106] %v1179
                  %s1181 = sadd.s32 1, %s1114
                  %p1182 = scmp.ge.s32.totalorder %s1181, %s1107
                  %s1183 = scalar_select %p1182, 0, %s1181
                  %s1184 = smul.u32 %s1183, 128
                  %s1185 = smul.u32 %s1183, 128
                  %s1186 = scalar_lea.vmem %s973, %s1184 [#allocation2]
                  %s1187 = scalar_lea.vmem %s987, %s1185
                $region71: #{_lambda_.10} parent=65 // loop_footer
                  %s1111 = sadd.s32 %s1109, 1
                $region72: #{_lambda_.10} parent=65 // loop_footer_branch
                  %1108 = sbr.rel target = $region68
                $region73: #{_lambda_.10} parent=65 // loop_exit
                  _
                %s1188 = sshrl.u32 %s980, 5
                %s1189 = sand.u32 %s980, 31
                %s1190 = smul.u32 %s1188, 32
                %s1191 = smul.u32 4, %s1190
                %s1192 = scalar_lea.vmem %s973, %s1191 [#allocation2]
                %s1193 = smul.u32 4, %s1190
                %s1194 = scalar_lea.vmem %s987, %s1193
                // While loop
                $region74: #{_lambda_.10} parent=65 // loop_pre_header
                  _
                $region75: #{_lambda_.10} parent=65 // loop_header
                  %s1196 = sphi 0, %s1198
                  %p1197 = scmp.ge.s32.totalorder %s1196, %s1189
                  %s1201 = sphi 0, %s1208
                  %s1202 = sphi %s1192, %s1211
                  %s1203 = sphi %s1194, %s1212
                $region76: #{_lambda_.10} parent=65 // loop_header_branch
                  %1200 = sbr.rel (%p1197) target = $region80
                $region77: #{_lambda_.10} parent=65 // loop_body
                  %v1204 = vld [vmem:[%s1202] sm:%s1106]
                  %1205 = vst [vmem:[%s1203] sm:%s1106] %v1204
                  %s1206 = sadd.s32 1, %s1201
                  %p1207 = scmp.ge.s32.totalorder %s1206, %s1189
                  %s1208 = scalar_select %p1207, 0, %s1206
                  %s1209 = smul.u32 %s1208, 4
                  %s1210 = smul.u32 %s1208, 4
                  %s1211 = scalar_lea.vmem %s1192, %s1209 [#allocation2]
                  %s1212 = scalar_lea.vmem %s1194, %s1210
                $region78: #{_lambda_.10} parent=65 // loop_footer
                  %s1198 = sadd.s32 %s1196, 1
                $region79: #{_lambda_.10} parent=65 // loop_footer_branch
                  %1195 = sbr.rel target = $region75
                $region80: #{_lambda_.10} parent=65 // loop_exit
                  _
              $region66: #{_lambda_.10} parent=43 // pred_fallthru
                _
            $region44: #{_lambda_.10} parent=39 // pred_fallthru
              _
            // Predicated region
            $region45: #{_lambda_.10} parent=39 // pred_check
              _
            $region46: #{_lambda_.10} parent=39 // pred_check_branch
              %994 = sbr.rel (0) target = $region48
            $region47: #{_lambda_.10} parent=39 // pred_region
              %s996 = ssub.s32 16, 1
              %s997 = sshrl.u32 %s980, 5
              // While loop
              $region49: #{_lambda_.10} parent=47 // loop_pre_header
                _
              $region50: #{_lambda_.10} parent=47 // loop_header
                %s999 = sphi 0, %s1001
                %p1000 = scmp.ge.s32.totalorder %s999, %s997
                %s1004 = sphi 0, %s1073
                %s1005 = sphi %s973, %s1076
                %s1006 = sphi %s987, %s1077
              $region51: #{_lambda_.10} parent=47 // loop_header_branch
                %1003 = sbr.rel (%p1000) target = $region55
              $region52: #{_lambda_.10} parent=47 // loop_body
                %v1007 = vld [vmem:[%s1005] sm:%s996]
                %1008 = vst [vmem:[%s1006] sm:%s996] %v1007
                %v1009 = vld [vmem:[%s1005 + $0x4] sm:%s996]
                %1010 = vst [vmem:[%s1006 + $0x4] sm:%s996] %v1009
                %v1011 = vld [vmem:[%s1005 + $0x8] sm:%s996]
                %1012 = vst [vmem:[%s1006 + $0x8] sm:%s996] %v1011
                %v1013 = vld [vmem:[%s1005 + $0xc] sm:%s996]
                %1014 = vst [vmem:[%s1006 + $0xc] sm:%s996] %v1013
                %v1015 = vld [vmem:[%s1005 + $0x10] sm:%s996]
                %1016 = vst [vmem:[%s1006 + $0x10] sm:%s996] %v1015
                %v1017 = vld [vmem:[%s1005 + $0x14] sm:%s996]
                %1018 = vst [vmem:[%s1006 + $0x14] sm:%s996] %v1017
                %v1019 = vld [vmem:[%s1005 + $0x18] sm:%s996]
                %1020 = vst [vmem:[%s1006 + $0x18] sm:%s996] %v1019
                %v1021 = vld [vmem:[%s1005 + $0x1c] sm:%s996]
                %1022 = vst [vmem:[%s1006 + $0x1c] sm:%s996] %v1021
                %v1023 = vld [vmem:[%s1005 + $0x20] sm:%s996]
                %1024 = vst [vmem:[%s1006 + $0x20] sm:%s996] %v1023
                %v1025 = vld [vmem:[%s1005 + $0x24] sm:%s996]
                %1026 = vst [vmem:[%s1006 + $0x24] sm:%s996] %v1025
                %v1027 = vld [vmem:[%s1005 + $0x28] sm:%s996]
                %1028 = vst [vmem:[%s1006 + $0x28] sm:%s996] %v1027
                %v1029 = vld [vmem:[%s1005 + $0x2c] sm:%s996]
                %1030 = vst [vmem:[%s1006 + $0x2c] sm:%s996] %v1029
                %v1031 = vld [vmem:[%s1005 + $0x30] sm:%s996]
                %1032 = vst [vmem:[%s1006 + $0x30] sm:%s996] %v1031
                %v1033 = vld [vmem:[%s1005 + $0x34] sm:%s996]
                %1034 = vst [vmem:[%s1006 + $0x34] sm:%s996] %v1033
                %v1035 = vld [vmem:[%s1005 + $0x38] sm:%s996]
                %1036 = vst [vmem:[%s1006 + $0x38] sm:%s996] %v1035
                %v1037 = vld [vmem:[%s1005 + $0x3c] sm:%s996]
                %1038 = vst [vmem:[%s1006 + $0x3c] sm:%s996] %v1037
                %v1039 = vld [vmem:[%s1005 + $0x40] sm:%s996]
                %1040 = vst [vmem:[%s1006 + $0x40] sm:%s996] %v1039
                %v1041 = vld [vmem:[%s1005 + $0x44] sm:%s996]
                %1042 = vst [vmem:[%s1006 + $0x44] sm:%s996] %v1041
                %v1043 = vld [vmem:[%s1005 + $0x48] sm:%s996]
                %1044 = vst [vmem:[%s1006 + $0x48] sm:%s996] %v1043
                %v1045 = vld [vmem:[%s1005 + $0x4c] sm:%s996]
                %1046 = vst [vmem:[%s1006 + $0x4c] sm:%s996] %v1045
                %v1047 = vld [vmem:[%s1005 + $0x50] sm:%s996]
                %1048 = vst [vmem:[%s1006 + $0x50] sm:%s996] %v1047
                %v1049 = vld [vmem:[%s1005 + $0x54] sm:%s996]
                %1050 = vst [vmem:[%s1006 + $0x54] sm:%s996] %v1049
                %v1051 = vld [vmem:[%s1005 + $0x58] sm:%s996]
                %1052 = vst [vmem:[%s1006 + $0x58] sm:%s996] %v1051
                %v1053 = vld [vmem:[%s1005 + $0x5c] sm:%s996]
                %1054 = vst [vmem:[%s1006 + $0x5c] sm:%s996] %v1053
                %v1055 = vld [vmem:[%s1005 + $0x60] sm:%s996]
                %1056 = vst [vmem:[%s1006 + $0x60] sm:%s996] %v1055
                %v1057 = vld [vmem:[%s1005 + $0x64] sm:%s996]
                %1058 = vst [vmem:[%s1006 + $0x64] sm:%s996] %v1057
                %v1059 = vld [vmem:[%s1005 + $0x68] sm:%s996]
                %1060 = vst [vmem:[%s1006 + $0x68] sm:%s996] %v1059
                %v1061 = vld [vmem:[%s1005 + $0x6c] sm:%s996]
                %1062 = vst [vmem:[%s1006 + $0x6c] sm:%s996] %v1061
                %v1063 = vld [vmem:[%s1005 + $0x70] sm:%s996]
                %1064 = vst [vmem:[%s1006 + $0x70] sm:%s996] %v1063
                %v1065 = vld [vmem:[%s1005 + $0x74] sm:%s996]
                %1066 = vst [vmem:[%s1006 + $0x74] sm:%s996] %v1065
                %v1067 = vld [vmem:[%s1005 + $0x78] sm:%s996]
                %1068 = vst [vmem:[%s1006 + $0x78] sm:%s996] %v1067
                %v1069 = vld [vmem:[%s1005 + $0x7c] sm:%s996]
                %1070 = vst [vmem:[%s1006 + $0x7c] sm:%s996] %v1069
                %s1071 = sadd.s32 1, %s1004
                %p1072 = scmp.ge.s32.totalorder %s1071, %s997
                %s1073 = scalar_select %p1072, 0, %s1071
                %s1074 = smul.u32 %s1073, 128
                %s1075 = smul.u32 %s1073, 128
                %s1076 = scalar_lea.vmem %s973, %s1074 [#allocation2]
                %s1077 = scalar_lea.vmem %s987, %s1075
              $region53: #{_lambda_.10} parent=47 // loop_footer
                %s1001 = sadd.s32 %s999, 1
              $region54: #{_lambda_.10} parent=47 // loop_footer_branch
                %998 = sbr.rel target = $region50
              $region55: #{_lambda_.10} parent=47 // loop_exit
                _
              %s1078 = sshrl.u32 %s980, 5
              %s1079 = sand.u32 %s980, 31
              %s1080 = smul.u32 %s1078, 32
              %s1081 = smul.u32 4, %s1080
              %s1082 = scalar_lea.vmem %s973, %s1081 [#allocation2]
              %s1083 = smul.u32 4, %s1080
              %s1084 = scalar_lea.vmem %s987, %s1083
              // While loop
              $region56: #{_lambda_.10} parent=47 // loop_pre_header
                _
              $region57: #{_lambda_.10} parent=47 // loop_header
                %s1086 = sphi 0, %s1088
                %p1087 = scmp.ge.s32.totalorder %s1086, %s1079
                %s1091 = sphi 0, %s1098
                %s1092 = sphi %s1082, %s1101
                %s1093 = sphi %s1084, %s1102
              $region58: #{_lambda_.10} parent=47 // loop_header_branch
                %1090 = sbr.rel (%p1087) target = $region62
              $region59: #{_lambda_.10} parent=47 // loop_body
                %v1094 = vld [vmem:[%s1092] sm:%s996]
                %1095 = vst [vmem:[%s1093] sm:%s996] %v1094
                %s1096 = sadd.s32 1, %s1091
                %p1097 = scmp.ge.s32.totalorder %s1096, %s1079
                %s1098 = scalar_select %p1097, 0, %s1096
                %s1099 = smul.u32 %s1098, 4
                %s1100 = smul.u32 %s1098, 4
                %s1101 = scalar_lea.vmem %s1082, %s1099 [#allocation2]
                %s1102 = scalar_lea.vmem %s1084, %s1100
              $region60: #{_lambda_.10} parent=47 // loop_footer
                %s1088 = sadd.s32 %s1086, 1
              $region61: #{_lambda_.10} parent=47 // loop_footer_branch
                %1085 = sbr.rel target = $region57
              $region62: #{_lambda_.10} parent=47 // loop_exit
                _
            $region48: #{_lambda_.10} parent=39 // pred_fallthru
              _
          $region40: #{_lambda_.10} parent=35 // pred_fallthru
            _
          %1213 = vnop
        $region36: #{_lambda_.10} parent=31 // pred_fallthru
          _
      $region32: #{_lambda_.10} parent=5 // pred_fallthru
        _
      %p1214 = scmp.le.s32.totalorder 2, %s9
      // Predicated region
      $region81: #{_lambda_.10} parent=5 // pred_check
        %p1215 = pneg %p1214
      $region82: #{_lambda_.10} parent=5 // pred_check_branch
        %1217 = sbr.rel (%p1215) target = $region84
      $region83: #{_lambda_.10} parent=5 // pred_region
        %s1218 = ssub.s32 %s9, 2
        // Predicated region
        $region85: #{_lambda_.10} parent=83 // pred_check
          %p1219 = pneg %p145
        $region86: #{_lambda_.10} parent=83 // pred_check_branch
          %1221 = sbr.rel (%p1219) target = $region88
        $region87: #{_lambda_.10} parent=83 // pred_region
          %s1222 = sand.u32 %s130, 1
          %s1223 = sand.u32 %s130, 1
          %s1224 = smul.addr %s1223, 256
          %s1225 = scalar_lea.vmem [#allocation2], %s1224
        $region88: #{_lambda_.10} parent=83 // pred_fallthru
          _
      $region84: #{_lambda_.10} parent=5 // pred_fallthru
        _
    $region6: #{_lambda_.10} parent=1 // loop_footer
      %s13 = sadd.s32 1, %s9
    $region7: #{_lambda_.10} parent=1 // loop_footer_branch
      %8 = sbr.rel target = $region3
    $region8: #{_lambda_.10} parent=1 // loop_exit
      _

// kernel: _lambda_.11
$region0: #{_lambda_.11}
  #allocation0 [shape = 'u32[]', space=smem, size = 0x4, offset = 0x4, fixed_abs, tag = 'smem constant byte address 0x4 - core index']
  #allocation1 [shape = 'u32[72,128]{1,0:T(1,128)}', space=vmem, size = 0x9000, scoped, tag = 'internal scratch']
  %s0 = inlined_call_operand.vmem [shape: bf16[1,1458,256], index: 0, kind: input, shape index: {}]
  %s1 = inlined_call_operand.vmem [shape: bf16[1,256,128], index: 1, kind: input, shape index: {}]
  %s2 = inlined_call_operand.vmem [shape: f32[1,1,128], index: 2, kind: input, shape index: {}]
  %s3 = inlined_call_operand.vmem [shape: bf16[1,1458,128], index: 3, kind: output, shape index: {}]
  %s4 = sld [smem:[#allocation0]]
  $region89: #{_lambda_.11} parent=0
    _
  %s6 = ssub.s32 1, %s4
  %s7 = scalar_select 0, %s6, %s4
  $region1: #{_lambda_.11} parent=0
    #allocation2 [shape = 'u8[262144]{0}', space=vmem, size = 0x40000, scoped, tag = 'output window, operand 0']
    loop: start=0, step=1, limit=5
    $region2: #{_lambda_.11} parent=1 // loop_pre_header
      _
    $region3: #{_lambda_.11} parent=1 // loop_header
      %s9 = sphi 0, %s13
      %p10 = scmp.ge.s32.totalorder %s9, 5
      %s16 = sphi 0, %s35
      %s17 = sphi 0, %s31
      %s18 = sphi 0, %s27
      %s19 = sphi 0, %s16
      %s20 = sphi 0, %s17
      %s21 = sphi 0, %s18
      %s22 = sphi 0, %s19
      %s23 = sphi 0, %s20
      %s24 = sphi 0, %s21
      %s40 = sphi 0, %s42
      %s43 = sphi 0, %s40
      %s44 = sphi 0, %s43
      %s60 = sphi 0, %s44
      %s68 = sphi 0, %s70
      %s71 = sphi 0, %s68
      %s72 = sphi 0, %s71
      %s88 = sphi 0, %s72
      %s96 = sphi 0, %s98
      %s99 = sphi 0, %s96
      %s100 = sphi 0, %s99
      %s116 = sphi 0, %s100
      %s126 = sphi 0, %s128
      %s129 = sphi 0, %s126
      %s130 = sphi 0, %s129
      %s146 = sphi 0, %s130
    $region4: #{_lambda_.11} parent=1 // loop_header_branch
      %12 = sbr.rel (%p10) target = $region8
    $region5: #{_lambda_.11} parent=1 // loop_body
      %s14 = ssub.s32 %s9, 1
      %s15 = ssub.s32 %s9, 2
      %s25 = sadd.s32 1, %s18
      %p26 = scmp.ge.s32.totalorder %s25, 1
      %s27 = scalar_select %p26, 0, %s25
      %s28 = sadd.s32 1, %s17
      %s29 = scalar_select %p26, %s28, %s17
      %p30 = scmp.ge.s32.totalorder %s29, 3
      %s31 = scalar_select %p30, 0, %s29
      %s32 = sadd.s32 1, %s16
      %s33 = scalar_select %p30, %s32, %s16
      %p34 = scmp.ge.s32.totalorder %s33, 1
      %s35 = scalar_select %p34, 0, %s33
      %s36 = ssub.s32 %s16, %s35
      %s37 = ssub.s32 %s17, %s31
      %s38 = sor.u32 %s36, %s37
      %p39 = scmp.eq.s32.totalorder %s38, 0
      %s41 = sadd.s32 %s40, 1
      %s42 = scalar_select %p39, %s40, %s41
      %p45 = pneg %p39
      %p46 = scmp.eq.s32.totalorder %s9, 2
      %p47 = por %p45, %p46
      %p48 = scmp.ne.s32.totalorder %s40, %s43
      %p49 = scmp.eq.s32.totalorder %s9, 0
      %p50 = por %p48, %p49
      %p51 = scmp.ne.s32.totalorder %s40, %s43
      %p52 = scmp.eq.s32.totalorder %s14, 2
      %p53 = por %p51, %p52
      %p54 = scmp.ne.s32.totalorder %s43, %s44
      %p55 = scmp.eq.s32.totalorder %s14, 0
      %p56 = por %p54, %p55
      %p57 = scmp.ne.s32.totalorder %s43, %s44
      %p58 = scmp.eq.s32.totalorder %s15, 2
      %p59 = por %p57, %p58
      %p61 = scmp.ne.s32.totalorder %s44, %s60
      %p62 = scmp.eq.s32.totalorder %s15, 0
      %p63 = por %p61, %p62
      %s64 = ssub.s32 %s16, %s35
      %s65 = ssub.s32 %s18, %s27
      %s66 = sor.u32 %s64, %s65
      %p67 = scmp.eq.s32.totalorder %s66, 0
      %s69 = sadd.s32 %s68, 1
      %s70 = scalar_select %p67, %s68, %s69
      %p73 = pneg %p67
      %p74 = scmp.eq.s32.totalorder %s9, 2
      %p75 = por %p73, %p74
      %p76 = scmp.ne.s32.totalorder %s68, %s71
      %p77 = scmp.eq.s32.totalorder %s9, 0
      %p78 = por %p76, %p77
      %p79 = scmp.ne.s32.totalorder %s68, %s71
      %p80 = scmp.eq.s32.totalorder %s14, 2
      %p81 = por %p79, %p80
      %p82 = scmp.ne.s32.totalorder %s71, %s72
      %p83 = scmp.eq.s32.totalorder %s14, 0
      %p84 = por %p82, %p83
      %p85 = scmp.ne.s32.totalorder %s71, %s72
      %p86 = scmp.eq.s32.totalorder %s15, 2
      %p87 = por %p85, %p86
      %p89 = scmp.ne.s32.totalorder %s72, %s88
      %p90 = scmp.eq.s32.totalorder %s15, 0
      %p91 = por %p89, %p90
      %s92 = ssub.s32 %s16, %s35
      %s93 = ssub.s32 %s18, %s27
      %s94 = sor.u32 %s92, %s93
      %p95 = scmp.eq.s32.totalorder %s94, 0
      %s97 = sadd.s32 %s96, 1
      %s98 = scalar_select %p95, %s96, %s97
      %p101 = pneg %p95
      %p102 = scmp.eq.s32.totalorder %s9, 2
      %p103 = por %p101, %p102
      %p104 = scmp.ne.s32.totalorder %s96, %s99
      %p105 = scmp.eq.s32.totalorder %s9, 0
      %p106 = por %p104, %p105
      %p107 = scmp.ne.s32.totalorder %s96, %s99
      %p108 = scmp.eq.s32.totalorder %s14, 2
      %p109 = por %p107, %p108
      %p110 = scmp.ne.s32.totalorder %s99, %s100
      %p111 = scmp.eq.s32.totalorder %s14, 0
      %p112 = por %p110, %p111
      %p113 = scmp.ne.s32.totalorder %s99, %s100
      %p114 = scmp.eq.s32.totalorder %s15, 2
      %p115 = por %p113, %p114
      %p117 = scmp.ne.s32.totalorder %s100, %s116
      %p118 = scmp.eq.s32.totalorder %s15, 0
      %p119 = por %p117, %p118
      %s120 = ssub.s32 %s16, %s35
      %s121 = ssub.s32 %s17, %s31
      %s122 = sor.u32 %s120, %s121
      %s123 = ssub.s32 %s18, %s27
      %s124 = sor.u32 %s122, %s123
      %p125 = scmp.eq.s32.totalorder %s124, 0
      %s127 = sadd.s32 %s126, 1
      %s128 = scalar_select %p125, %s126, %s127
      %p131 = pneg %p125
      %p132 = scmp.eq.s32.totalorder %s9, 2
      %p133 = por %p131, %p132
      %p134 = scmp.ne.s32.totalorder %s126, %s129
      %p135 = scmp.eq.s32.totalorder %s9, 0
      %p136 = por %p134, %p135
      %p137 = scmp.ne.s32.totalorder %s126, %s129
      %p138 = scmp.eq.s32.totalorder %s14, 2
      %p139 = por %p137, %p138
      %p140 = scmp.ne.s32.totalorder %s129, %s130
      %p141 = scmp.eq.s32.totalorder %s14, 0
      %p142 = por %p140, %p141
      %p143 = scmp.ne.s32.totalorder %s129, %s130
      %p144 = scmp.eq.s32.totalorder %s15, 2
      %p145 = por %p143, %p144
      %p147 = scmp.ne.s32.totalorder %s130, %s146
      %p148 = scmp.eq.s32.totalorder %s15, 0
      %p149 = por %p147, %p148
      %p150 = scmp.le.s32.totalorder 1, %s9
      %p151 = scmp.lt.s32.totalorder %s9, 4
      %p152 = pnand %p150, %p151
      %p153 = pneg %p152
      // Predicated region
      $region9: #{_lambda_.11} parent=5 // pred_check
        _
      $region10: #{_lambda_.11} parent=5 // pred_check_branch
        %155 = sbr.rel (%p152) target = $region12
      $region11: #{_lambda_.11} parent=5 // pred_region
        %s156 = ssub.s32 %s9, 1
        // Predicated region
        $region13: #{_lambda_.11} parent=11 // pred_check
          %p157 = pneg %p84
        $region14: #{_lambda_.11} parent=11 // pred_check_branch
          %159 = sbr.rel (%p157) target = $region16
        $region15: #{_lambda_.11} parent=11 // pred_region
          %p160 = scmp.lt.s32.totalorder %s19, 0
          %s161 = scalar_select %p160, %s19, 0
          %p162 = scmp.lt.s32.totalorder %s21, 0
          %s163 = scalar_select %p162, %s21, 0
          %s164 = smul.addr %s161, 32
          %s165 = sadd.s32 %s163, %s164
          %s166 = smul.addr %s165, 4
          %s167 = scalar_lea.vmem %s1, %s166
        $region16: #{_lambda_.11} parent=11 // pred_fallthru
          _
        // Predicated region
        $region17: #{_lambda_.11} parent=11 // pred_check
          %p168 = pneg %p112
        $region18: #{_lambda_.11} parent=11 // pred_check_branch
          %170 = sbr.rel (%p168) target = $region20
        $region19: #{_lambda_.11} parent=11 // pred_region
          %p171 = scmp.lt.s32.totalorder %s19, 0
          %s172 = scalar_select %p171, %s19, 0
          %p173 = scmp.lt.s32.totalorder %s21, 0
          %s174 = scalar_select %p173, %s21, 0
          %s175 = sadd.s32 %s174, %s172
          %s176 = scalar_lea.vmem %s2, %s175
        $region20: #{_lambda_.11} parent=11 // pred_fallthru
          _
      $region12: #{_lambda_.11} parent=5 // pred_fallthru
        _
      %p177 = scmp.lt.s32.totalorder %s9, 3
      // Predicated region
      $region21: #{_lambda_.11} parent=5 // pred_check
        %p178 = pneg %p177
      $region22: #{_lambda_.11} parent=5 // pred_check_branch
        %180 = sbr.rel (%p178) target = $region24
      $region23: #{_lambda_.11} parent=5 // pred_region
        // Predicated region
        $region25: #{_lambda_.11} parent=23 // pred_check
          %p181 = pneg %p50
        $region26: #{_lambda_.11} parent=23 // pred_check_branch
          %183 = sbr.rel (%p181) target = $region28
        $region27: #{_lambda_.11} parent=23 // pred_region
          %s184 = smul.u32 64, %s17
          %s185 = ssub.s32 183, %s184
          %p186 = scmp.lt.s32.totalorder %s185, 64
          %s187 = scalar_select %p186, %s185, 64
          %s188 = smul.u32 4, %s187
          %s189 = smul.u32 %s188, 2
          %p190 = scmp.lt.s32.totalorder %s16, 0
          %s191 = scalar_select %p190, %s16, 0
          %p192 = scmp.lt.s32.totalorder %s184, 182
          %s193 = scalar_select %p192, %s184, 182
          %s194 = smul.addr %s193, 2
          %s195 = smul.addr %s191, 366
          %s196 = sadd.s32 %s194, %s195
          %s197 = smul.addr %s196, 4
          %s198 = scalar_lea.vmem %s0, %s197
          %s199 = smul.u32 64, %s17
          %s200 = ssub.s32 183, %s199
          %p201 = scmp.lt.s32.totalorder %s200, 64
          %s202 = scalar_select %p201, %s200, 64
          %s203 = smul.u32 4, %s202
          %s204 = smul.u32 %s203, 2
        $region28: #{_lambda_.11} parent=23 // pred_fallthru
          _
      $region24: #{_lambda_.11} parent=5 // pred_fallthru
        _
      %p205 = scmp.le.s32.totalorder 1, %s9
      %p206 = scmp.lt.s32.totalorder %s9, 4
      %p207 = pnand %p205, %p206
      %p208 = pneg %p207
      // Predicated region
      $region29: #{_lambda_.11} parent=5 // pred_check
        _
      $region30: #{_lambda_.11} parent=5 // pred_check_branch
        %210 = sbr.rel (%p207) target = $region32
      $region31: #{_lambda_.11} parent=5 // pred_region
        %s211 = ssub.s32 %s9, 1
        %s212 = smul.u32 64, %s20
        %s213 = ssub.s32 183, %s212
        %p214 = scmp.lt.s32.totalorder %s213, 64
        %s215 = scalar_select %p214, %s213, 64
        %s216 = smul.u32 4, %s215
        %s217 = smul.u32 %s216, 2
        %p218 = scmp.lt.s32.totalorder %s19, 0
        %s219 = scalar_select %p218, %s19, 0
        %p220 = scmp.lt.s32.totalorder %s212, 182
        %s221 = scalar_select %p220, %s212, 182
        %s222 = smul.addr %s221, 2
        %s223 = smul.addr %s219, 366
        %s224 = sadd.s32 %s222, %s223
        %s225 = smul.addr %s224, 4
        %s226 = scalar_lea.vmem %s0, %s225
        %p227 = pneg %p56
        %p228 = pneg %p53
        %p229 = scmp.lt.s32.totalorder %s19, 0
        %s230 = scalar_select %p229, %s19, 0
        %p231 = scmp.lt.s32.totalorder %s21, 0
        %s232 = scalar_select %p231, %s21, 0
        %s233 = smul.addr %s230, 32
        %s234 = sadd.s32 %s232, %s233
        %s235 = smul.addr %s234, 4
        %s236 = scalar_lea.vmem %s1, %s235
        %p237 = pneg %p84
        %p238 = pneg %p81
        %p239 = scmp.lt.s32.totalorder %s19, 0
        %s240 = scalar_select %p239, %s19, 0
        %p241 = scmp.lt.s32.totalorder %s21, 0
        %s242 = scalar_select %p241, %s21, 0
        %s243 = sadd.s32 %s242, %s240
        %s244 = scalar_lea.vmem %s2, %s243
        %p245 = pneg %p112
        %p246 = pneg %p109
        %p247 = pneg %p142
        %p248 = pneg %p139
        %s249 = sand.u32 %s129, 1
        %s250 = sand.u32 %s129, 1
        %s251 = smul.addr %s250, 256
        %s252 = scalar_lea.vmem [#allocation2], %s251
        %s253 = smul.u32 64, %s20
        %s254 = ssub.s32 183, %s253
        %p255 = scmp.lt.s32.totalorder %s254, 64
        %s256 = scalar_select %p255, %s254, 64
        %s257 = smul.u32 4, %s256
        %s258 = smul.u32 %s257, 2
        %p259 = scmp.lt.s32.totalorder %s19, 0
        %s260 = scalar_select %p259, %s19, 0
        %p261 = scmp.lt.s32.totalorder %s253, 182
        %s262 = scalar_select %p261, %s253, 182
        %s263 = smul.addr %s262, 2
        %s264 = smul.addr %s260, 366
        %s265 = sadd.s32 %s263, %s264
        %s266 = smul.addr %s265, 4
        %s267 = scalar_lea.vmem %s0, %s266
        %s268 = smul.u32 64, %s20
        %s269 = ssub.s32 183, %s268
        %p270 = scmp.lt.s32.totalorder %s269, 64
        %s271 = scalar_select %p270, %s269, 64
        %s272 = smul.u32 4, %s271
        %s273 = smul.u32 %s272, 2
        %p274 = scmp.lt.s32.totalorder %s19, 0
        %s275 = scalar_select %p274, %s19, 0
        %p276 = scmp.lt.s32.totalorder %s21, 0
        %s277 = scalar_select %p276, %s21, 0
        %s278 = smul.addr %s275, 32
        %s279 = sadd.s32 %s277, %s278
        %s280 = smul.addr %s279, 4
        %s281 = scalar_lea.vmem %s1, %s280
        %p282 = scmp.lt.s32.totalorder %s19, 0
        %s283 = scalar_select %p282, %s19, 0
        %p284 = scmp.lt.s32.totalorder %s21, 0
        %s285 = scalar_select %p284, %s21, 0
        %s286 = sadd.s32 %s285, %s283
        %s287 = scalar_lea.vmem %s2, %s286
        %s288 = smul.u32 64, %s20
        %s289 = ssub.s32 183, %s288
        %p290 = scmp.lt.s32.totalorder %s289, 64
        %s291 = scalar_select %p290, %s289, 64
        %s292 = smul.u32 4, %s291
        %v293 = vld [vmem:[%s267] sm:$0xff]
        %v294 = vld [vmem:[%s267 + $0x8] sm:$0xff]
        %v295 = vld [vmem:[%s267 + $0x10] sm:$0xff]
        %v296 = vld [vmem:[%s267 + $0x18] sm:$0xff]
        %v297 = vld [vmem:[%s267 + $0x20] sm:$0xff]
        %v298 = vld [vmem:[%s267 + $0x28] sm:$0xff]
        %v299 = vld [vmem:[%s267 + $0x30] sm:$0xff]
        %v300 = vld [vmem:[%s267 + $0x38] sm:$0xff]
        %v301 = vld [vmem:[%s267 + $0x40] sm:$0xff]
        %v302 = vld [vmem:[%s267 + $0x48] sm:$0xff]
        %v303 = vld [vmem:[%s267 + $0x50] sm:$0xff]
        %v304 = vld [vmem:[%s267 + $0x58] sm:$0xff]
        %v305 = vld [vmem:[%s267 + $0x60] sm:$0xff]
        %v306 = vld [vmem:[%s267 + $0x68] sm:$0xff]
        %v307 = vld [vmem:[%s267 + $0x70] sm:$0xff]
        %v308 = vld [vmem:[%s267 + $0x78] sm:$0xff]
        %v309 = vld [vmem:[%s267 + $0x80] sm:$0xff]
        %v310 = vld [vmem:[%s267 + $0x88] sm:$0xff]
        %v311 = vld [vmem:[%s267 + $0x90] sm:$0xff]
        %v312 = vld [vmem:[%s267 + $0x98] sm:$0xff]
        %v313 = vld [vmem:[%s267 + $0xa0] sm:$0xff]
        %v314 = vld [vmem:[%s267 + $0xa8] sm:$0xff]
        %v315 = vld [vmem:[%s267 + $0xb0] sm:$0xff]
        %v316 = vld [vmem:[%s267 + $0xb8] sm:$0xff]
        %v317 = vld [vmem:[%s267 + $0xc0] sm:$0xff]
        %v318 = vld [vmem:[%s267 + $0xc8] sm:$0xff]
        %v319 = vld [vmem:[%s267 + $0xd0] sm:$0xff]
        %v320 = vld [vmem:[%s267 + $0xd8] sm:$0xff]
        %v321 = vld [vmem:[%s267 + $0xe0] sm:$0xff]
        %v322 = vld [vmem:[%s267 + $0xe8] sm:$0xff]
        %v323 = vld [vmem:[%s267 + $0xf0] sm:$0xff]
        %v324 = vld [vmem:[%s267 + $0xf8] sm:$0xff]
        %v325 = vld [vmem:[%s267 + $0x100] sm:$0xff]
        %v326 = vld [vmem:[%s267 + $0x108] sm:$0xff]
        %v327 = vld [vmem:[%s267 + $0x110] sm:$0xff]
        %v328 = vld [vmem:[%s267 + $0x118] sm:$0xff]
        %v329 = vld [vmem:[%s267 + $0x120] sm:$0xff]
        %v330 = vld [vmem:[%s267 + $0x128] sm:$0xff]
        %v331 = vld [vmem:[%s267 + $0x130] sm:$0xff]
        %v332 = vld [vmem:[%s267 + $0x138] sm:$0xff]
        %v333 = vld [vmem:[%s267 + $0x140] sm:$0xff]
        %v334 = vld [vmem:[%s267 + $0x148] sm:$0xff]
        %v335 = vld [vmem:[%s267 + $0x150] sm:$0xff]
        %v336 = vld [vmem:[%s267 + $0x158] sm:$0xff]
        %v337 = vld [vmem:[%s267 + $0x160] sm:$0xff]
        %v338 = vld [vmem:[%s267 + $0x168] sm:$0xff]
        %v339 = vld [vmem:[%s267 + $0x170] sm:$0xff]
        %v340 = vld [vmem:[%s267 + $0x178] sm:$0xff]
        %v341 = vld [vmem:[%s267 + $0x180] sm:$0xff]
        %v342 = vld [vmem:[%s267 + $0x188] sm:$0xff]
        %v343 = vld [vmem:[%s267 + $0x190] sm:$0xff]
        %v344 = vld [vmem:[%s267 + $0x198] sm:$0xff]
        %v345 = vld [vmem:[%s267 + $0x1a0] sm:$0xff]
        %v346 = vld [vmem:[%s267 + $0x1a8] sm:$0xff]
        %v347 = vld [vmem:[%s267 + $0x1b0] sm:$0xff]
        %v348 = vld [vmem:[%s267 + $0x1b8] sm:$0xff]
        %v349 = vld [vmem:[%s267 + $0x1c0] sm:$0xff]
        %v350 = vld [vmem:[%s267 + $0x1c8] sm:$0xff]
        %v351 = vld [vmem:[%s267 + $0x1d0] sm:$0xff]
        %v352 = vld [vmem:[%s267 + $0x1d8] sm:$0xff]
        %v353 = vld [vmem:[%s267 + $0x1e0] sm:$0xff]
        %v354 = vld [vmem:[%s267 + $0x1e8] sm:$0xff]
        %v355 = vld [vmem:[%s267 + $0x1f0] sm:$0xff]
        %v356 = vld [vmem:[%s267 + $0x1f8] sm:$0xff]
        %v357 = vld [vmem:[%s281] sm:$0xf]
        %v358 = vld [vmem:[%s281 + $0x4] sm:$0xf]
        %v359 = vld [vmem:[%s281 + $0x8] sm:$0xf]
        %v360 = vld [vmem:[%s281 + $0xc] sm:$0xf]
        %v361 = vld [vmem:[%s281 + $0x10] sm:$0xf]
        %v362 = vld [vmem:[%s281 + $0x14] sm:$0xf]
        %v363 = vld [vmem:[%s281 + $0x18] sm:$0xf]
        %v364 = vld [vmem:[%s281 + $0x1c] sm:$0xf]
        %v365 = vld [vmem:[%s281 + $0x20] sm:$0xf]
        %v366 = vld [vmem:[%s281 + $0x24] sm:$0xf]
        %v367 = vld [vmem:[%s281 + $0x28] sm:$0xf]
        %v368 = vld [vmem:[%s281 + $0x2c] sm:$0xf]
        %v369 = vld [vmem:[%s281 + $0x30] sm:$0xf]
        %v370 = vld [vmem:[%s281 + $0x34] sm:$0xf]
        %v371 = vld [vmem:[%s281 + $0x38] sm:$0xf]
        %v372 = vld [vmem:[%s281 + $0x3c] sm:$0xf]
        %v373 = vld [vmem:[%s281 + $0x40] sm:$0xf]
        %v374 = vld [vmem:[%s281 + $0x44] sm:$0xf]
        %v375 = vld [vmem:[%s281 + $0x48] sm:$0xf]
        %v376 = vld [vmem:[%s281 + $0x4c] sm:$0xf]
        %v377 = vld [vmem:[%s281 + $0x50] sm:$0xf]
        %v378 = vld [vmem:[%s281 + $0x54] sm:$0xf]
        %v379 = vld [vmem:[%s281 + $0x58] sm:$0xf]
        %v380 = vld [vmem:[%s281 + $0x5c] sm:$0xf]
        %v381 = vld [vmem:[%s281 + $0x60] sm:$0xf]
        %v382 = vld [vmem:[%s281 + $0x64] sm:$0xf]
        %v383 = vld [vmem:[%s281 + $0x68] sm:$0xf]
        %v384 = vld [vmem:[%s281 + $0x6c] sm:$0xf]
        %v385 = vld [vmem:[%s281 + $0x70] sm:$0xf]
        %v386 = vld [vmem:[%s281 + $0x74] sm:$0xf]
        %v387 = vld [vmem:[%s281 + $0x78] sm:$0xf]
        %v388 = vld [vmem:[%s281 + $0x7c] sm:$0xf]
        %v389 = vld [vmem:[%s287] sm:$0x1]
        %v391 = vperm.slane %v389, 0
        %v457 = vunpack.c.l.b16 %v293
        %v458 = vunpack.c.h.b16 %v293
        %v459 = vunpack.c.l.b16 %v294
        %v460 = vunpack.c.h.b16 %v294
        %v461 = vunpack.c.l.b16 %v295
        %v462 = vunpack.c.h.b16 %v295
        %v463 = vunpack.c.l.b16 %v296
        %v464 = vunpack.c.h.b16 %v296
        %v465 = vunpack.c.l.b16 %v297
        %v466 = vunpack.c.h.b16 %v297
        %v467 = vunpack.c.l.b16 %v298
        %v468 = vunpack.c.h.b16 %v298
        %v469 = vunpack.c.l.b16 %v299
        %v470 = vunpack.c.h.b16 %v299
        %v471 = vunpack.c.l.b16 %v300
        %v472 = vunpack.c.h.b16 %v300
        %v473 = vunpack.c.l.b16 %v301
        %v474 = vunpack.c.h.b16 %v301
        %v475 = vunpack.c.l.b16 %v302
        %v476 = vunpack.c.h.b16 %v302
        %v477 = vunpack.c.l.b16 %v303
        %v478 = vunpack.c.h.b16 %v303
        %v479 = vunpack.c.l.b16 %v304
        %v480 = vunpack.c.h.b16 %v304
        %v481 = vunpack.c.l.b16 %v305
        %v482 = vunpack.c.h.b16 %v305
        %v483 = vunpack.c.l.b16 %v306
        %v484 = vunpack.c.h.b16 %v306
        %v485 = vunpack.c.l.b16 %v307
        %v486 = vunpack.c.h.b16 %v307
        %v487 = vunpack.c.l.b16 %v308
        %v488 = vunpack.c.h.b16 %v308
        %v489 = vunpack.c.l.b16 %v309
        %v490 = vunpack.c.h.b16 %v309
        %v491 = vunpack.c.l.b16 %v310
        %v492 = vunpack.c.h.b16 %v310
        %v493 = vunpack.c.l.b16 %v311
        %v494 = vunpack.c.h.b16 %v311
        %v495 = vunpack.c.l.b16 %v312
        %v496 = vunpack.c.h.b16 %v312
        %v497 = vunpack.c.l.b16 %v313
        %v498 = vunpack.c.h.b16 %v313
        %v499 = vunpack.c.l.b16 %v314
        %v500 = vunpack.c.h.b16 %v314
        %v501 = vunpack.c.l.b16 %v315
        %v502 = vunpack.c.h.b16 %v315
        %v503 = vunpack.c.l.b16 %v316
        %v504 = vunpack.c.h.b16 %v316
        %v505 = vunpack.c.l.b16 %v317
        %v506 = vunpack.c.h.b16 %v317
        %v507 = vunpack.c.l.b16 %v318
        %v508 = vunpack.c.h.b16 %v318
        %v509 = vunpack.c.l.b16 %v319
        %v510 = vunpack.c.h.b16 %v319
        %v511 = vunpack.c.l.b16 %v320
        %v512 = vunpack.c.h.b16 %v320
        %v513 = vunpack.c.l.b16 %v321
        %v514 = vunpack.c.h.b16 %v321
        %v515 = vunpack.c.l.b16 %v322
        %v516 = vunpack.c.h.b16 %v322
        %v517 = vunpack.c.l.b16 %v323
        %v518 = vunpack.c.h.b16 %v323
        %v519 = vunpack.c.l.b16 %v324
        %v520 = vunpack.c.h.b16 %v324
        %v521 = vunpack.c.l.b16 %v325
        %v522 = vunpack.c.h.b16 %v325
        %v523 = vunpack.c.l.b16 %v326
        %v524 = vunpack.c.h.b16 %v326
        %v525 = vunpack.c.l.b16 %v327
        %v526 = vunpack.c.h.b16 %v327
        %v527 = vunpack.c.l.b16 %v328
        %v528 = vunpack.c.h.b16 %v328
        %v529 = vunpack.c.l.b16 %v329
        %v530 = vunpack.c.h.b16 %v329
        %v531 = vunpack.c.l.b16 %v330
        %v532 = vunpack.c.h.b16 %v330
        %v533 = vunpack.c.l.b16 %v331
        %v534 = vunpack.c.h.b16 %v331
        %v535 = vunpack.c.l.b16 %v332
        %v536 = vunpack.c.h.b16 %v332
        %v537 = vunpack.c.l.b16 %v333
        %v538 = vunpack.c.h.b16 %v333
        %v539 = vunpack.c.l.b16 %v334
        %v540 = vunpack.c.h.b16 %v334
        %v541 = vunpack.c.l.b16 %v335
        %v542 = vunpack.c.h.b16 %v335
        %v543 = vunpack.c.l.b16 %v336
        %v544 = vunpack.c.h.b16 %v336
        %v545 = vunpack.c.l.b16 %v337
        %v546 = vunpack.c.h.b16 %v337
        %v547 = vunpack.c.l.b16 %v338
        %v548 = vunpack.c.h.b16 %v338
        %v549 = vunpack.c.l.b16 %v339
        %v550 = vunpack.c.h.b16 %v339
        %v551 = vunpack.c.l.b16 %v340
        %v552 = vunpack.c.h.b16 %v340
        %v553 = vunpack.c.l.b16 %v341
        %v554 = vunpack.c.h.b16 %v341
        %v555 = vunpack.c.l.b16 %v342
        %v556 = vunpack.c.h.b16 %v342
        %v557 = vunpack.c.l.b16 %v343
        %v558 = vunpack.c.h.b16 %v343
        %v559 = vunpack.c.l.b16 %v344
        %v560 = vunpack.c.h.b16 %v344
        %v561 = vunpack.c.l.b16 %v345
        %v562 = vunpack.c.h.b16 %v345
        %v563 = vunpack.c.l.b16 %v346
        %v564 = vunpack.c.h.b16 %v346
        %v565 = vunpack.c.l.b16 %v347
        %v566 = vunpack.c.h.b16 %v347
        %v567 = vunpack.c.l.b16 %v348
        %v568 = vunpack.c.h.b16 %v348
        %v569 = vunpack.c.l.b16 %v349
        %v570 = vunpack.c.h.b16 %v349
        %v571 = vunpack.c.l.b16 %v350
        %v572 = vunpack.c.h.b16 %v350
        %v573 = vunpack.c.l.b16 %v351
        %v574 = vunpack.c.h.b16 %v351
        %v575 = vunpack.c.l.b16 %v352
        %v576 = vunpack.c.h.b16 %v352
        %v577 = vunpack.c.l.b16 %v353
        %v578 = vunpack.c.h.b16 %v353
        %v579 = vunpack.c.l.b16 %v354
        %v580 = vunpack.c.h.b16 %v354
        %v581 = vunpack.c.l.b16 %v355
        %v582 = vunpack.c.h.b16 %v355
        %v583 = vunpack.c.l.b16 %v356
        %v584 = vunpack.c.h.b16 %v356
        %v585 = vpack.c.b16 %v459, %v457
        %v586 = vpack.c.b16 %v460, %v458
        %v587 = vpack.c.b16 %v463, %v461
        %v588 = vpack.c.b16 %v464, %v462
        %v589 = vpack.c.b16 %v467, %v465
        %v590 = vpack.c.b16 %v468, %v466
        %v591 = vpack.c.b16 %v471, %v469
        %v592 = vpack.c.b16 %v472, %v470
        %v593 = vpack.c.b16 %v475, %v473
        %v594 = vpack.c.b16 %v476, %v474
        %v595 = vpack.c.b16 %v479, %v477
        %v596 = vpack.c.b16 %v480, %v478
        %v597 = vpack.c.b16 %v483, %v481
        %v598 = vpack.c.b16 %v484, %v482
        %v599 = vpack.c.b16 %v487, %v485
        %v600 = vpack.c.b16 %v488, %v486
        %v601 = vpack.c.b16 %v491, %v489
        %v602 = vpack.c.b16 %v492, %v490
        %v603 = vpack.c.b16 %v495, %v493
        %v604 = vpack.c.b16 %v496, %v494
        %v605 = vpack.c.b16 %v499, %v497
        %v606 = vpack.c.b16 %v500, %v498
        %v607 = vpack.c.b16 %v503, %v501
        %v608 = vpack.c.b16 %v504, %v502
        %v609 = vpack.c.b16 %v507, %v505
        %v610 = vpack.c.b16 %v508, %v506
        %v611 = vpack.c.b16 %v511, %v509
        %v612 = vpack.c.b16 %v512, %v510
        %v613 = vpack.c.b16 %v515, %v513
        %v614 = vpack.c.b16 %v516, %v514
        %v615 = vpack.c.b16 %v519, %v517
        %v616 = vpack.c.b16 %v520, %v518
        %v617 = vpack.c.b16 %v523, %v521
        %v618 = vpack.c.b16 %v524, %v522
        %v619 = vpack.c.b16 %v527, %v525
        %v620 = vpack.c.b16 %v528, %v526
        %v621 = vpack.c.b16 %v531, %v529
        %v622 = vpack.c.b16 %v532, %v530
        %v623 = vpack.c.b16 %v535, %v533
        %v624 = vpack.c.b16 %v536, %v534
        %v625 = vpack.c.b16 %v539, %v537
        %v626 = vpack.c.b16 %v540, %v538
        %v627 = vpack.c.b16 %v543, %v541
        %v628 = vpack.c.b16 %v544, %v542
        %v629 = vpack.c.b16 %v547, %v545
        %v630 = vpack.c.b16 %v548, %v546
        %v631 = vpack.c.b16 %v551, %v549
        %v632 = vpack.c.b16 %v552, %v550
        %v633 = vpack.c.b16 %v555, %v553
        %v634 = vpack.c.b16 %v556, %v554
        %v635 = vpack.c.b16 %v559, %v557
        %v636 = vpack.c.b16 %v560, %v558
        %v637 = vpack.c.b16 %v563, %v561
        %v638 = vpack.c.b16 %v564, %v562
        %v639 = vpack.c.b16 %v567, %v565
        %v640 = vpack.c.b16 %v568, %v566
        %v641 = vpack.c.b16 %v571, %v569
        %v642 = vpack.c.b16 %v572, %v570
        %v643 = vpack.c.b16 %v575, %v573
        %v644 = vpack.c.b16 %v576, %v574
        %v645 = vpack.c.b16 %v579, %v577
        %v646 = vpack.c.b16 %v580, %v578
        %v647 = vpack.c.b16 %v583, %v581
        %v648 = vpack.c.b16 %v584, %v582
        %v745 = vunpack.c.l.b16 %v357
        %v746 = vunpack.c.l.b16 %v358
        %v747 = vunpack.c.l.b16 %v359
        %v748 = vunpack.c.l.b16 %v360
        %v749 = vunpack.c.l.b16 %v361
        %v750 = vunpack.c.l.b16 %v362
        %v751 = vunpack.c.l.b16 %v363
        %v752 = vunpack.c.l.b16 %v364
        %v753 = vunpack.c.l.b16 %v365
        %v754 = vunpack.c.l.b16 %v366
        %v755 = vunpack.c.l.b16 %v367
        %v756 = vunpack.c.l.b16 %v368
        %v757 = vunpack.c.l.b16 %v369
        %v758 = vunpack.c.l.b16 %v370
        %v759 = vunpack.c.l.b16 %v371
        %v760 = vunpack.c.l.b16 %v372
        %v761 = vunpack.c.l.b16 %v373
        %v762 = vunpack.c.l.b16 %v374
        %v763 = vunpack.c.l.b16 %v375
        %v764 = vunpack.c.l.b16 %v376
        %v765 = vunpack.c.l.b16 %v377
        %v766 = vunpack.c.l.b16 %v378
        %v767 = vunpack.c.l.b16 %v379
        %v768 = vunpack.c.l.b16 %v380
        %v769 = vunpack.c.l.b16 %v381
        %v770 = vunpack.c.l.b16 %v382
        %v771 = vunpack.c.l.b16 %v383
        %v772 = vunpack.c.l.b16 %v384
        %v773 = vunpack.c.l.b16 %v385
        %v774 = vunpack.c.l.b16 %v386
        %v775 = vunpack.c.l.b16 %v387
        %v776 = vunpack.c.l.b16 %v388
        %v777 = vpack.c.b16 %v746, %v745
        %v778 = vpack.c.b16 %v748, %v747
        %v779 = vpack.c.b16 %v750, %v749
        %v780 = vpack.c.b16 %v752, %v751
        %v781 = vpack.c.b16 %v754, %v753
        %v782 = vpack.c.b16 %v756, %v755
        %v783 = vpack.c.b16 %v758, %v757
        %v784 = vpack.c.b16 %v760, %v759
        %v785 = vpack.c.b16 %v762, %v761
        %v786 = vpack.c.b16 %v764, %v763
        %v787 = vpack.c.b16 %v766, %v765
        %v788 = vpack.c.b16 %v768, %v767
        %v789 = vpack.c.b16 %v770, %v769
        %v790 = vpack.c.b16 %v772, %v771
        %v791 = vpack.c.b16 %v774, %v773
        %v792 = vpack.c.b16 %v776, %v775
        %809 = vmatpush.bf16.msra.mxu0 %v784
        %810 = vmatpush.bf16.msra.mxu0 %v783
        %811 = vmatpush.bf16.msra.mxu0 %v782
        %812 = vmatpush.bf16.msra.mxu0 %v781
        %813 = vmatpush.bf16.msra.mxu0 %v780
        %814 = vmatpush.bf16.msra.mxu0 %v779
        %815 = vmatpush.bf16.msra.mxu0 %v778
        %816 = vmatpush.bf16.msra.mxu0 %v777
        %817 = vmatmul.bf16.gmra.mxu0 %v585
        %v818 = vpop.f32.mrf.mxu0
        %v819 = vadd.f32 %v391, %v818
        %v820 = vpop.f32.mrf.mxu0
        %v821 = vadd.f32 %v391, %v820
        %822 = vmatmul.bf16.gmra.mxu0 %v587
        %v823 = vpop.f32.mrf.mxu0
        %v824 = vadd.f32 %v391, %v823
        %v825 = vpop.f32.mrf.mxu0
        %v826 = vadd.f32 %v391, %v825
        %827 = vmatmul.bf16.gmra.mxu0 %v589
        %v828 = vpop.f32.mrf.mxu0
        %v829 = vadd.f32 %v391, %v828
        %v830 = vpop.f32.mrf.mxu0
        %v831 = vadd.f32 %v391, %v830
        %832 = vmatmul.bf16.gmra.mxu0 %v591
        %v833 = vpop.f32.mrf.mxu0
        %v834 = vadd.f32 %v391, %v833
        %v835 = vpop.f32.mrf.mxu0
        %v836 = vadd.f32 %v391, %v835
        %837 = vmatmul.bf16.gmra.mxu0 %v593
        %v838 = vpop.f32.mrf.mxu0
        %v839 = vadd.f32 %v391, %v838
        %v840 = vpop.f32.mrf.mxu0
        %v841 = vadd.f32 %v391, %v840
        %842 = vmatmul.bf16.gmra.mxu0 %v595
        %v843 = vpop.f32.mrf.mxu0
        %v844 = vadd.f32 %v391, %v843
        %v845 = vpop.f32.mrf.mxu0
        %v846 = vadd.f32 %v391, %v845
        %847 = vmatmul.bf16.gmra.mxu0 %v597
        %v848 = vpop.f32.mrf.mxu0
        %v849 = vadd.f32 %v391, %v848
        %v850 = vpop.f32.mrf.mxu0
        %v851 = vadd.f32 %v391, %v850
        %852 = vmatmul.bf16.gmra.mxu0 %v599
        %v853 = vpop.f32.mrf.mxu0
        %v854 = vadd.f32 %v391, %v853
        %v855 = vpop.f32.mrf.mxu0
        %v856 = vadd.f32 %v391, %v855
        %857 = vmatmul.bf16.gmra.mxu0 %v601
        %v858 = vpop.f32.mrf.mxu0
        %v859 = vadd.f32 %v391, %v858
        %v860 = vpop.f32.mrf.mxu0
        %v861 = vadd.f32 %v391, %v860
        %862 = vmatmul.bf16.gmra.mxu0 %v603
        %v863 = vpop.f32.mrf.mxu0
        %v864 = vadd.f32 %v391, %v863
        %v865 = vpop.f32.mrf.mxu0
        %v866 = vadd.f32 %v391, %v865
        %867 = vmatmul.bf16.gmra.mxu0 %v605
        %v868 = vpop.f32.mrf.mxu0
        %v869 = vadd.f32 %v391, %v868
        %v870 = vpop.f32.mrf.mxu0
        %v871 = vadd.f32 %v391, %v870
        %872 = vmatmul.bf16.gmra.mxu0 %v607
        %v873 = vpop.f32.mrf.mxu0
        %v874 = vadd.f32 %v391, %v873
        %v875 = vpop.f32.mrf.mxu0
        %v876 = vadd.f32 %v391, %v875
        %877 = vmatmul.bf16.gmra.mxu0 %v609
        %v878 = vpop.f32.mrf.mxu0
        %v879 = vadd.f32 %v391, %v878
        %v880 = vpop.f32.mrf.mxu0
        %v881 = vadd.f32 %v391, %v880
        %882 = vmatmul.bf16.gmra.mxu0 %v611
        %v883 = vpop.f32.mrf.mxu0
        %v884 = vadd.f32 %v391, %v883
        %v885 = vpop.f32.mrf.mxu0
        %v886 = vadd.f32 %v391, %v885
        %887 = vmatmul.bf16.gmra.mxu0 %v613
        %v888 = vpop.f32.mrf.mxu0
        %v889 = vadd.f32 %v391, %v888
        %v890 = vpop.f32.mrf.mxu0
        %v891 = vadd.f32 %v391, %v890
        %892 = vmatmul.bf16.gmra.mxu0 %v615
        %v893 = vpop.f32.mrf.mxu0
        %v894 = vadd.f32 %v391, %v893
        %v895 = vpop.f32.mrf.mxu0
        %v896 = vadd.f32 %v391, %v895
        %897 = vmatmul.bf16.gmra.mxu0 %v617
        %v898 = vpop.f32.mrf.mxu0
        %v899 = vadd.f32 %v391, %v898
        %v900 = vpop.f32.mrf.mxu0
        %v901 = vadd.f32 %v391, %v900
        %902 = vmatmul.bf16.gmra.mxu0 %v619
        %v903 = vpop.f32.mrf.mxu0
        %v904 = vadd.f32 %v391, %v903
        %v905 = vpop.f32.mrf.mxu0
        %v906 = vadd.f32 %v391, %v905
        %907 = vmatmul.bf16.gmra.mxu0 %v621
        %v908 = vpop.f32.mrf.mxu0
        %v909 = vadd.f32 %v391, %v908
        %v910 = vpop.f32.mrf.mxu0
        %v911 = vadd.f32 %v391, %v910
        %912 = vmatmul.bf16.gmra.mxu0 %v623
        %v913 = vpop.f32.mrf.mxu0
        %v914 = vadd.f32 %v391, %v913
        %v915 = vpop.f32.mrf.mxu0
        %v916 = vadd.f32 %v391, %v915
        %917 = vmatmul.bf16.gmra.mxu0 %v625
        %v918 = vpop.f32.mrf.mxu0
        %v919 = vadd.f32 %v391, %v918
        %v920 = vpop.f32.mrf.mxu0
        %v921 = vadd.f32 %v391, %v920
        %922 = vmatmul.bf16.gmra.mxu0 %v627
        %v923 = vpop.f32.mrf.mxu0
        %v924 = vadd.f32 %v391, %v923
        %v925 = vpop.f32.mrf.mxu0
        %v926 = vadd.f32 %v391, %v925
        %927 = vmatmul.bf16.gmra.mxu0 %v629
        %v928 = vpop.f32.mrf.mxu0
        %v929 = vadd.f32 %v391, %v928
        %v930 = vpop.f32.mrf.mxu0
        %v931 = vadd.f32 %v391, %v930
        %932 = vmatmul.bf16.gmra.mxu0 %v631
        %v933 = vpop.f32.mrf.mxu0
        %v934 = vadd.f32 %v391, %v933
        %v935 = vpop.f32.mrf.mxu0
        %v936 = vadd.f32 %v391, %v935
        %937 = vmatmul.bf16.gmra.mxu0 %v633
        %v938 = vpop.f32.mrf.mxu0
        %v939 = vadd.f32 %v391, %v938
        %v940 = vpop.f32.mrf.mxu0
        %v941 = vadd.f32 %v391, %v940
        %942 = vmatmul.bf16.gmra.mxu0 %v635
        %v943 = vpop.f32.mrf.mxu0
        %v944 = vadd.f32 %v391, %v943
        %v945 = vpop.f32.mrf.mxu0
        %v946 = vadd.f32 %v391, %v945
        %947 = vmatmul.bf16.gmra.mxu0 %v637
        %v948 = vpop.f32.mrf.mxu0
        %v949 = vadd.f32 %v391, %v948
        %v950 = vpop.f32.mrf.mxu0
        %v951 = vadd.f32 %v391, %v950
        %952 = vmatmul.bf16.gmra.mxu0 %v639
        %v953 = vpop.f32.mrf.mxu0
        %v954 = vadd.f32 %v391, %v953
        %v955 = vpop.f32.mrf.mxu0
        %v956 = vadd.f32 %v391, %v955
        %957 = vmatmul.bf16.gmra.mxu0 %v641
        %v958 = vpop.f32.mrf.mxu0
        %v959 = vadd.f32 %v391, %v958
        %v960 = vpop.f32.mrf.mxu0
        %v961 = vadd.f32 %v391, %v960
        %962 = vmatmul.bf16.gmra.mxu0 %v643
        %v963 = vpop.f32.mrf.mxu0
        %v964 = vadd.f32 %v391, %v963
        %v965 = vpop.f32.mrf.mxu0
        %v966 = vadd.f32 %v391, %v965
        %967 = vmatmul.bf16.gmra.mxu0 %v645
        %v968 = vpop.f32.mrf.mxu0
        %v969 = vadd.f32 %v391, %v968
        %v970 = vpop.f32.mrf.mxu0
        %v971 = vadd.f32 %v391, %v970
        %972 = vmatmul.bf16.gmra.mxu0 %v647
        %v973 = vpop.f32.mrf.mxu0
        %v974 = vadd.f32 %v391, %v973
        %v975 = vpop.f32.mrf.mxu0
        %v976 = vadd.f32 %v391, %v975
        %977 = vdwg.mxu0
        %978 = vmatpush.bf16.msra.mxu0 %v792
        %979 = vmatpush.bf16.msra.mxu0 %v791
        %980 = vmatpush.bf16.msra.mxu0 %v790
        %981 = vmatpush.bf16.msra.mxu0 %v789
        %982 = vmatpush.bf16.msra.mxu0 %v788
        %983 = vmatpush.bf16.msra.mxu0 %v787
        %984 = vmatpush.bf16.msra.mxu0 %v786
        %985 = vmatpush.bf16.msra.mxu0 %v785
        %986 = vmatmul.bf16.gmra.mxu0 %v586
        %v987 = vpop.f32.mrf.mxu0
        %v988 = vadd.f32 %v819, %v987
        %v989 = vpop.f32.mrf.mxu0
        %v990 = vadd.f32 %v821, %v989
        %991 = vmatmul.bf16.gmra.mxu0 %v588
        %v992 = vpop.f32.mrf.mxu0
        %v993 = vadd.f32 %v824, %v992
        %v994 = vpop.f32.mrf.mxu0
        %v995 = vadd.f32 %v826, %v994
        %996 = vmatmul.bf16.gmra.mxu0 %v590
        %v997 = vpop.f32.mrf.mxu0
        %v998 = vadd.f32 %v829, %v997
        %v999 = vpop.f32.mrf.mxu0
        %v1000 = vadd.f32 %v831, %v999
        %1001 = vmatmul.bf16.gmra.mxu0 %v592
        %v1002 = vpop.f32.mrf.mxu0
        %v1003 = vadd.f32 %v834, %v1002
        %v1004 = vpop.f32.mrf.mxu0
        %v1005 = vadd.f32 %v836, %v1004
        %1006 = vmatmul.bf16.gmra.mxu0 %v594
        %v1007 = vpop.f32.mrf.mxu0
        %v1008 = vadd.f32 %v839, %v1007
        %v1009 = vpop.f32.mrf.mxu0
        %v1010 = vadd.f32 %v841, %v1009
        %1011 = vmatmul.bf16.gmra.mxu0 %v596
        %v1012 = vpop.f32.mrf.mxu0
        %v1013 = vadd.f32 %v844, %v1012
        %v1014 = vpop.f32.mrf.mxu0
        %v1015 = vadd.f32 %v846, %v1014
        %1016 = vmatmul.bf16.gmra.mxu0 %v598
        %v1017 = vpop.f32.mrf.mxu0
        %v1018 = vadd.f32 %v849, %v1017
        %v1019 = vpop.f32.mrf.mxu0
        %v1020 = vadd.f32 %v851, %v1019
        %1021 = vmatmul.bf16.gmra.mxu0 %v600
        %v1022 = vpop.f32.mrf.mxu0
        %v1023 = vadd.f32 %v854, %v1022
        %v1024 = vpop.f32.mrf.mxu0
        %v1025 = vadd.f32 %v856, %v1024
        %1026 = vmatmul.bf16.gmra.mxu0 %v602
        %v1027 = vpop.f32.mrf.mxu0
        %v1028 = vadd.f32 %v859, %v1027
        %v1029 = vpop.f32.mrf.mxu0
        %v1030 = vadd.f32 %v861, %v1029
        %1031 = vmatmul.bf16.gmra.mxu0 %v604
        %v1032 = vpop.f32.mrf.mxu0
        %v1033 = vadd.f32 %v864, %v1032
        %v1034 = vpop.f32.mrf.mxu0
        %v1035 = vadd.f32 %v866, %v1034
        %1036 = vmatmul.bf16.gmra.mxu0 %v606
        %v1037 = vpop.f32.mrf.mxu0
        %v1038 = vadd.f32 %v869, %v1037
        %v1039 = vpop.f32.mrf.mxu0
        %v1040 = vadd.f32 %v871, %v1039
        %1041 = vmatmul.bf16.gmra.mxu0 %v608
        %v1042 = vpop.f32.mrf.mxu0
        %v1043 = vadd.f32 %v874, %v1042
        %v1044 = vpop.f32.mrf.mxu0
        %v1045 = vadd.f32 %v876, %v1044
        %1046 = vmatmul.bf16.gmra.mxu0 %v610
        %v1047 = vpop.f32.mrf.mxu0
        %v1048 = vadd.f32 %v879, %v1047
        %v1049 = vpop.f32.mrf.mxu0
        %v1050 = vadd.f32 %v881, %v1049
        %1051 = vmatmul.bf16.gmra.mxu0 %v612
        %v1052 = vpop.f32.mrf.mxu0
        %v1053 = vadd.f32 %v884, %v1052
        %v1054 = vpop.f32.mrf.mxu0
        %v1055 = vadd.f32 %v886, %v1054
        %1056 = vmatmul.bf16.gmra.mxu0 %v614
        %v1057 = vpop.f32.mrf.mxu0
        %v1058 = vadd.f32 %v889, %v1057
        %v1059 = vpop.f32.mrf.mxu0
        %v1060 = vadd.f32 %v891, %v1059
        %1061 = vmatmul.bf16.gmra.mxu0 %v616
        %v1062 = vpop.f32.mrf.mxu0
        %v1063 = vadd.f32 %v894, %v1062
        %v1064 = vpop.f32.mrf.mxu0
        %v1065 = vadd.f32 %v896, %v1064
        %1066 = vmatmul.bf16.gmra.mxu0 %v618
        %v1067 = vpop.f32.mrf.mxu0
        %v1068 = vadd.f32 %v899, %v1067
        %v1069 = vpop.f32.mrf.mxu0
        %v1070 = vadd.f32 %v901, %v1069
        %1071 = vmatmul.bf16.gmra.mxu0 %v620
        %v1072 = vpop.f32.mrf.mxu0
        %v1073 = vadd.f32 %v904, %v1072
        %v1074 = vpop.f32.mrf.mxu0
        %v1075 = vadd.f32 %v906, %v1074
        %1076 = vmatmul.bf16.gmra.mxu0 %v622
        %v1077 = vpop.f32.mrf.mxu0
        %v1078 = vadd.f32 %v909, %v1077
        %v1079 = vpop.f32.mrf.mxu0
        %v1080 = vadd.f32 %v911, %v1079
        %1081 = vmatmul.bf16.gmra.mxu0 %v624
        %v1082 = vpop.f32.mrf.mxu0
        %v1083 = vadd.f32 %v914, %v1082
        %v1084 = vpop.f32.mrf.mxu0
        %v1085 = vadd.f32 %v916, %v1084
        %1086 = vmatmul.bf16.gmra.mxu0 %v626
        %v1087 = vpop.f32.mrf.mxu0
        %v1088 = vadd.f32 %v919, %v1087
        %v1089 = vpop.f32.mrf.mxu0
        %v1090 = vadd.f32 %v921, %v1089
        %1091 = vmatmul.bf16.gmra.mxu0 %v628
        %v1092 = vpop.f32.mrf.mxu0
        %v1093 = vadd.f32 %v924, %v1092
        %v1094 = vpop.f32.mrf.mxu0
        %v1095 = vadd.f32 %v926, %v1094
        %1096 = vmatmul.bf16.gmra.mxu0 %v630
        %v1097 = vpop.f32.mrf.mxu0
        %v1098 = vadd.f32 %v929, %v1097
        %v1099 = vpop.f32.mrf.mxu0
        %v1100 = vadd.f32 %v931, %v1099
        %1101 = vmatmul.bf16.gmra.mxu0 %v632
        %v1102 = vpop.f32.mrf.mxu0
        %v1103 = vadd.f32 %v934, %v1102
        %v1104 = vpop.f32.mrf.mxu0
        %v1105 = vadd.f32 %v936, %v1104
        %1106 = vmatmul.bf16.gmra.mxu0 %v634
        %v1107 = vpop.f32.mrf.mxu0
        %v1108 = vadd.f32 %v939, %v1107
        %v1109 = vpop.f32.mrf.mxu0
        %v1110 = vadd.f32 %v941, %v1109
        %1111 = vmatmul.bf16.gmra.mxu0 %v636
        %v1112 = vpop.f32.mrf.mxu0
        %v1113 = vadd.f32 %v944, %v1112
        %v1114 = vpop.f32.mrf.mxu0
        %v1115 = vadd.f32 %v946, %v1114
        %1116 = vmatmul.bf16.gmra.mxu0 %v638
        %v1117 = vpop.f32.mrf.mxu0
        %v1118 = vadd.f32 %v949, %v1117
        %v1119 = vpop.f32.mrf.mxu0
        %v1120 = vadd.f32 %v951, %v1119
        %1121 = vmatmul.bf16.gmra.mxu0 %v640
        %v1122 = vpop.f32.mrf.mxu0
        %v1123 = vadd.f32 %v954, %v1122
        %v1124 = vpop.f32.mrf.mxu0
        %v1125 = vadd.f32 %v956, %v1124
        %1126 = vmatmul.bf16.gmra.mxu0 %v642
        %v1127 = vpop.f32.mrf.mxu0
        %v1128 = vadd.f32 %v959, %v1127
        %v1129 = vpop.f32.mrf.mxu0
        %v1130 = vadd.f32 %v961, %v1129
        %1131 = vmatmul.bf16.gmra.mxu0 %v644
        %v1132 = vpop.f32.mrf.mxu0
        %v1133 = vadd.f32 %v964, %v1132
        %v1134 = vpop.f32.mrf.mxu0
        %v1135 = vadd.f32 %v966, %v1134
        %1136 = vmatmul.bf16.gmra.mxu0 %v646
        %v1137 = vpop.f32.mrf.mxu0
        %v1138 = vadd.f32 %v969, %v1137
        %v1139 = vpop.f32.mrf.mxu0
        %v1140 = vadd.f32 %v971, %v1139
        %1141 = vmatmul.bf16.gmra.mxu0 %v648
        %v1142 = vpop.f32.mrf.mxu0
        %v1143 = vadd.f32 %v974, %v1142
        %v1144 = vpop.f32.mrf.mxu0
        %v1145 = vadd.f32 %v976, %v1144
        %1146 = vdwg.mxu0
        %v1147 = vmax.f32 %v988, 0.0
        %v1148 = vmax.f32 %v990, 0.0
        %v1149 = vmax.f32 %v993, 0.0
        %v1150 = vmax.f32 %v995, 0.0
        %v1151 = vmax.f32 %v998, 0.0
        %v1152 = vmax.f32 %v1000, 0.0
        %v1153 = vmax.f32 %v1003, 0.0
        %v1154 = vmax.f32 %v1005, 0.0
        %v1155 = vmax.f32 %v1008, 0.0
        %v1156 = vmax.f32 %v1010, 0.0
        %v1157 = vmax.f32 %v1013, 0.0
        %v1158 = vmax.f32 %v1015, 0.0
        %v1159 = vmax.f32 %v1018, 0.0
        %v1160 = vmax.f32 %v1020, 0.0
        %v1161 = vmax.f32 %v1023, 0.0
        %v1162 = vmax.f32 %v1025, 0.0
        %v1163 = vmax.f32 %v1028, 0.0
        %v1164 = vmax.f32 %v1030, 0.0
        %v1165 = vmax.f32 %v1033, 0.0
        %v1166 = vmax.f32 %v1035, 0.0
        %v1167 = vmax.f32 %v1038, 0.0
        %v1168 = vmax.f32 %v1040, 0.0
        %v1169 = vmax.f32 %v1043, 0.0
        %v1170 = vmax.f32 %v1045, 0.0
        %v1171 = vmax.f32 %v1048, 0.0
        %v1172 = vmax.f32 %v1050, 0.0
        %v1173 = vmax.f32 %v1053, 0.0
        %v1174 = vmax.f32 %v1055, 0.0
        %v1175 = vmax.f32 %v1058, 0.0
        %v1176 = vmax.f32 %v1060, 0.0
        %v1177 = vmax.f32 %v1063, 0.0
        %v1178 = vmax.f32 %v1065, 0.0
        %v1179 = vmax.f32 %v1068, 0.0
        %v1180 = vmax.f32 %v1070, 0.0
        %v1181 = vmax.f32 %v1073, 0.0
        %v1182 = vmax.f32 %v1075, 0.0
        %v1183 = vmax.f32 %v1078, 0.0
        %v1184 = vmax.f32 %v1080, 0.0
        %v1185 = vmax.f32 %v1083, 0.0
        %v1186 = vmax.f32 %v1085, 0.0
        %v1187 = vmax.f32 %v1088, 0.0
        %v1188 = vmax.f32 %v1090, 0.0
        %v1189 = vmax.f32 %v1093, 0.0
        %v1190 = vmax.f32 %v1095, 0.0
        %v1191 = vmax.f32 %v1098, 0.0
        %v1192 = vmax.f32 %v1100, 0.0
        %v1193 = vmax.f32 %v1103, 0.0
        %v1194 = vmax.f32 %v1105, 0.0
        %v1195 = vmax.f32 %v1108, 0.0
        %v1196 = vmax.f32 %v1110, 0.0
        %v1197 = vmax.f32 %v1113, 0.0
        %v1198 = vmax.f32 %v1115, 0.0
        %v1199 = vmax.f32 %v1118, 0.0
        %v1200 = vmax.f32 %v1120, 0.0
        %v1201 = vmax.f32 %v1123, 0.0
        %v1202 = vmax.f32 %v1125, 0.0
        %v1203 = vmax.f32 %v1128, 0.0
        %v1204 = vmax.f32 %v1130, 0.0
        %v1205 = vmax.f32 %v1133, 0.0
        %v1206 = vmax.f32 %v1135, 0.0
        %v1207 = vmax.f32 %v1138, 0.0
        %v1208 = vmax.f32 %v1140, 0.0
        %v1209 = vmax.f32 %v1143, 0.0
        %v1210 = vmax.f32 %v1145, 0.0
        %v1211 = vpack.c.bf16 %v1147, %v1147
        %v1212 = vpack.c.bf16 %v1148, %v1148
        %v1213 = vpack.c.bf16 %v1149, %v1149
        %v1214 = vpack.c.bf16 %v1150, %v1150
        %v1215 = vpack.c.bf16 %v1151, %v1151
        %v1216 = vpack.c.bf16 %v1152, %v1152
        %v1217 = vpack.c.bf16 %v1153, %v1153
        %v1218 = vpack.c.bf16 %v1154, %v1154
        %v1219 = vpack.c.bf16 %v1155, %v1155
        %v1220 = vpack.c.bf16 %v1156, %v1156
        %v1221 = vpack.c.bf16 %v1157, %v1157
        %v1222 = vpack.c.bf16 %v1158, %v1158
        %v1223 = vpack.c.bf16 %v1159, %v1159
        %v1224 = vpack.c.bf16 %v1160, %v1160
        %v1225 = vpack.c.bf16 %v1161, %v1161
        %v1226 = vpack.c.bf16 %v1162, %v1162
        %v1227 = vpack.c.bf16 %v1163, %v1163
        %v1228 = vpack.c.bf16 %v1164, %v1164
        %v1229 = vpack.c.bf16 %v1165, %v1165
        %v1230 = vpack.c.bf16 %v1166, %v1166
        %v1231 = vpack.c.bf16 %v1167, %v1167
        %v1232 = vpack.c.bf16 %v1168, %v1168
        %v1233 = vpack.c.bf16 %v1169, %v1169
        %v1234 = vpack.c.bf16 %v1170, %v1170
        %v1235 = vpack.c.bf16 %v1171, %v1171
        %v1236 = vpack.c.bf16 %v1172, %v1172
        %v1237 = vpack.c.bf16 %v1173, %v1173
        %v1238 = vpack.c.bf16 %v1174, %v1174
        %v1239 = vpack.c.bf16 %v1175, %v1175
        %v1240 = vpack.c.bf16 %v1176, %v1176
        %v1241 = vpack.c.bf16 %v1177, %v1177
        %v1242 = vpack.c.bf16 %v1178, %v1178
        %v1243 = vpack.c.bf16 %v1179, %v1179
        %v1244 = vpack.c.bf16 %v1180, %v1180
        %v1245 = vpack.c.bf16 %v1181, %v1181
        %v1246 = vpack.c.bf16 %v1182, %v1182
        %v1247 = vpack.c.bf16 %v1183, %v1183
        %v1248 = vpack.c.bf16 %v1184, %v1184
        %v1249 = vpack.c.bf16 %v1185, %v1185
        %v1250 = vpack.c.bf16 %v1186, %v1186
        %v1251 = vpack.c.bf16 %v1187, %v1187
        %v1252 = vpack.c.bf16 %v1188, %v1188
        %v1253 = vpack.c.bf16 %v1189, %v1189
        %v1254 = vpack.c.bf16 %v1190, %v1190
        %v1255 = vpack.c.bf16 %v1191, %v1191
        %v1256 = vpack.c.bf16 %v1192, %v1192
        %v1257 = vpack.c.bf16 %v1193, %v1193
        %v1258 = vpack.c.bf16 %v1194, %v1194
        %v1259 = vpack.c.bf16 %v1195, %v1195
        %v1260 = vpack.c.bf16 %v1196, %v1196
        %v1261 = vpack.c.bf16 %v1197, %v1197
        %v1262 = vpack.c.bf16 %v1198, %v1198
        %v1263 = vpack.c.bf16 %v1199, %v1199
        %v1264 = vpack.c.bf16 %v1200, %v1200
        %v1265 = vpack.c.bf16 %v1201, %v1201
        %v1266 = vpack.c.bf16 %v1202, %v1202
        %v1267 = vpack.c.bf16 %v1203, %v1203
        %v1268 = vpack.c.bf16 %v1204, %v1204
        %v1269 = vpack.c.bf16 %v1205, %v1205
        %v1270 = vpack.c.bf16 %v1206, %v1206
        %v1271 = vpack.c.bf16 %v1207, %v1207
        %v1272 = vpack.c.bf16 %v1208, %v1208
        %v1273 = vpack.c.bf16 %v1209, %v1209
        %v1274 = vpack.c.bf16 %v1210, %v1210
        %1275 = vst [vmem:[%s252] sm:$0xf] %v1211
        %1276 = vst [vmem:[%s252 + $0x4] sm:$0xf] %v1212
        %1277 = vst [vmem:[%s252 + $0x8] sm:$0xf] %v1213
        %1278 = vst [vmem:[%s252 + $0xc] sm:$0xf] %v1214
        %1279 = vst [vmem:[%s252 + $0x10] sm:$0xf] %v1215
        %1280 = vst [vmem:[%s252 + $0x14] sm:$0xf] %v1216
        %1281 = vst [vmem:[%s252 + $0x18] sm:$0xf] %v1217
        %1282 = vst [vmem:[%s252 + $0x1c] sm:$0xf] %v1218
        %1283 = vst [vmem:[%s252 + $0x20] sm:$0xf] %v1219
        %1284 = vst [vmem:[%s252 + $0x24] sm:$0xf] %v1220
        %1285 = vst [vmem:[%s252 + $0x28] sm:$0xf] %v1221
        %1286 = vst [vmem:[%s252 + $0x2c] sm:$0xf] %v1222
        %1287 = vst [vmem:[%s252 + $0x30] sm:$0xf] %v1223
        %1288 = vst [vmem:[%s252 + $0x34] sm:$0xf] %v1224
        %1289 = vst [vmem:[%s252 + $0x38] sm:$0xf] %v1225
        %1290 = vst [vmem:[%s252 + $0x3c] sm:$0xf] %v1226
        %1291 = vst [vmem:[%s252 + $0x40] sm:$0xf] %v1227
        %1292 = vst [vmem:[%s252 + $0x44] sm:$0xf] %v1228
        %1293 = vst [vmem:[%s252 + $0x48] sm:$0xf] %v1229
        %1294 = vst [vmem:[%s252 + $0x4c] sm:$0xf] %v1230
        %1295 = vst [vmem:[%s252 + $0x50] sm:$0xf] %v1231
        %1296 = vst [vmem:[%s252 + $0x54] sm:$0xf] %v1232
        %1297 = vst [vmem:[%s252 + $0x58] sm:$0xf] %v1233
        %1298 = vst [vmem:[%s252 + $0x5c] sm:$0xf] %v1234
        %1299 = vst [vmem:[%s252 + $0x60] sm:$0xf] %v1235
        %1300 = vst [vmem:[%s252 + $0x64] sm:$0xf] %v1236
        %1301 = vst [vmem:[%s252 + $0x68] sm:$0xf] %v1237
        %1302 = vst [vmem:[%s252 + $0x6c] sm:$0xf] %v1238
        %1303 = vst [vmem:[%s252 + $0x70] sm:$0xf] %v1239
        %1304 = vst [vmem:[%s252 + $0x74] sm:$0xf] %v1240
        %1305 = vst [vmem:[%s252 + $0x78] sm:$0xf] %v1241
        %1306 = vst [vmem:[%s252 + $0x7c] sm:$0xf] %v1242
        %1307 = vst [vmem:[%s252 + $0x80] sm:$0xf] %v1243
        %1308 = vst [vmem:[%s252 + $0x84] sm:$0xf] %v1244
        %1309 = vst [vmem:[%s252 + $0x88] sm:$0xf] %v1245
        %1310 = vst [vmem:[%s252 + $0x8c] sm:$0xf] %v1246
        %1311 = vst [vmem:[%s252 + $0x90] sm:$0xf] %v1247
        %1312 = vst [vmem:[%s252 + $0x94] sm:$0xf] %v1248
        %1313 = vst [vmem:[%s252 + $0x98] sm:$0xf] %v1249
        %1314 = vst [vmem:[%s252 + $0x9c] sm:$0xf] %v1250
        %1315 = vst [vmem:[%s252 + $0xa0] sm:$0xf] %v1251
        %1316 = vst [vmem:[%s252 + $0xa4] sm:$0xf] %v1252
        %1317 = vst [vmem:[%s252 + $0xa8] sm:$0xf] %v1253
        %1318 = vst [vmem:[%s252 + $0xac] sm:$0xf] %v1254
        %1319 = vst [vmem:[%s252 + $0xb0] sm:$0xf] %v1255
        %1320 = vst [vmem:[%s252 + $0xb4] sm:$0xf] %v1256
        %1321 = vst [vmem:[%s252 + $0xb8] sm:$0xf] %v1257
        %1322 = vst [vmem:[%s252 + $0xbc] sm:$0xf] %v1258
        %1323 = vst [vmem:[%s252 + $0xc0] sm:$0xf] %v1259
        %1324 = vst [vmem:[%s252 + $0xc4] sm:$0xf] %v1260
        %1325 = vst [vmem:[%s252 + $0xc8] sm:$0xf] %v1261
        %1326 = vst [vmem:[%s252 + $0xcc] sm:$0xf] %v1262
        %1327 = vst [vmem:[%s252 + $0xd0] sm:$0xf] %v1263
        %1328 = vst [vmem:[%s252 + $0xd4] sm:$0xf] %v1264
        %1329 = vst [vmem:[%s252 + $0xd8] sm:$0xf] %v1265
        %1330 = vst [vmem:[%s252 + $0xdc] sm:$0xf] %v1266
        %1331 = vst [vmem:[%s252 + $0xe0] sm:$0xf] %v1267
        %1332 = vst [vmem:[%s252 + $0xe4] sm:$0xf] %v1268
        %1333 = vst [vmem:[%s252 + $0xe8] sm:$0xf] %v1269
        %1334 = vst [vmem:[%s252 + $0xec] sm:$0xf] %v1270
        %1335 = vst [vmem:[%s252 + $0xf0] sm:$0xf] %v1271
        %1336 = vst [vmem:[%s252 + $0xf4] sm:$0xf] %v1272
        %1337 = vst [vmem:[%s252 + $0xf8] sm:$0xf] %v1273
        %1338 = vst [vmem:[%s252 + $0xfc] sm:$0xf] %v1274
        %s1339 = sand.u32 %s129, 1
        %s1340 = sand.u32 %s129, 1
        %s1341 = smul.addr %s1340, 256
        %s1342 = scalar_lea.vmem [#allocation2], %s1341
        // Predicated region
        $region33: #{_lambda_.11} parent=31 // pred_check
          %p1343 = pneg %p139
        $region34: #{_lambda_.11} parent=31 // pred_check_branch
          %1345 = sbr.rel (%p1343) target = $region36
        $region35: #{_lambda_.11} parent=31 // pred_region
          %s1346 = smul.u32 64, %s20
          %s1347 = ssub.s32 183, %s1346
          %p1348 = scmp.lt.s32.totalorder %s1347, 64
          %s1349 = scalar_select %p1348, %s1347, 64
          %s1350 = smul.u32 4, %s1349
          %p1351 = scmp.ne.s32.totalorder 0, %s1350
          %s1352 = sadd.s32 %s21, %s1346
          %s1353 = smul.addr %s19, 183
          %s1354 = sadd.s32 %s1352, %s1353
          %s1355 = smul.addr %s1354, 4
          %s1356 = scalar_lea.vmem %s3, %s1355
          // Predicated region
          $region37: #{_lambda_.11} parent=35 // pred_check
            %p1357 = pneg %p1351
          $region38: #{_lambda_.11} parent=35 // pred_check_branch
            %1359 = sbr.rel (%p1357) target = $region40
          $region39: #{_lambda_.11} parent=35 // pred_region
            // Predicated region
            $region41: #{_lambda_.11} parent=39 // pred_check
              _
            $region42: #{_lambda_.11} parent=39 // pred_check_branch
              %1361 = sbr.rel target = $region44
            $region43: #{_lambda_.11} parent=39 // pred_region
              // Predicated region
              $region63: #{_lambda_.11} parent=43 // pred_check
                _
              $region64: #{_lambda_.11} parent=43 // pred_check_branch
                %1473 = sbr.rel (0) target = $region66
              $region65: #{_lambda_.11} parent=43 // pred_region
                %s1475 = ssub.s32 16, 1
                %s1476 = sshrl.u32 %s1349, 5
                // While loop
                $region67: #{_lambda_.11} parent=65 // loop_pre_header
                  _
                $region68: #{_lambda_.11} parent=65 // loop_header
                  %s1478 = sphi 0, %s1480
                  %p1479 = scmp.ge.s32.totalorder %s1478, %s1476
                  %s1483 = sphi 0, %s1552
                  %s1484 = sphi %s1342, %s1555
                  %s1485 = sphi %s1356, %s1556
                $region69: #{_lambda_.11} parent=65 // loop_header_branch
                  %1482 = sbr.rel (%p1479) target = $region73
                $region70: #{_lambda_.11} parent=65 // loop_body
                  %v1486 = vld [vmem:[%s1484] sm:%s1475]
                  %1487 = vst [vmem:[%s1485] sm:%s1475] %v1486
                  %v1488 = vld [vmem:[%s1484 + $0x4] sm:%s1475]
                  %1489 = vst [vmem:[%s1485 + $0x4] sm:%s1475] %v1488
                  %v1490 = vld [vmem:[%s1484 + $0x8] sm:%s1475]
                  %1491 = vst [vmem:[%s1485 + $0x8] sm:%s1475] %v1490
                  %v1492 = vld [vmem:[%s1484 + $0xc] sm:%s1475]
                  %1493 = vst [vmem:[%s1485 + $0xc] sm:%s1475] %v1492
                  %v1494 = vld [vmem:[%s1484 + $0x10] sm:%s1475]
                  %1495 = vst [vmem:[%s1485 + $0x10] sm:%s1475] %v1494
                  %v1496 = vld [vmem:[%s1484 + $0x14] sm:%s1475]
                  %1497 = vst [vmem:[%s1485 + $0x14] sm:%s1475] %v1496
                  %v1498 = vld [vmem:[%s1484 + $0x18] sm:%s1475]
                  %1499 = vst [vmem:[%s1485 + $0x18] sm:%s1475] %v1498
                  %v1500 = vld [vmem:[%s1484 + $0x1c] sm:%s1475]
                  %1501 = vst [vmem:[%s1485 + $0x1c] sm:%s1475] %v1500
                  %v1502 = vld [vmem:[%s1484 + $0x20] sm:%s1475]
                  %1503 = vst [vmem:[%s1485 + $0x20] sm:%s1475] %v1502
                  %v1504 = vld [vmem:[%s1484 + $0x24] sm:%s1475]
                  %1505 = vst [vmem:[%s1485 + $0x24] sm:%s1475] %v1504
                  %v1506 = vld [vmem:[%s1484 + $0x28] sm:%s1475]
                  %1507 = vst [vmem:[%s1485 + $0x28] sm:%s1475] %v1506
                  %v1508 = vld [vmem:[%s1484 + $0x2c] sm:%s1475]
                  %1509 = vst [vmem:[%s1485 + $0x2c] sm:%s1475] %v1508
                  %v1510 = vld [vmem:[%s1484 + $0x30] sm:%s1475]
                  %1511 = vst [vmem:[%s1485 + $0x30] sm:%s1475] %v1510
                  %v1512 = vld [vmem:[%s1484 + $0x34] sm:%s1475]
                  %1513 = vst [vmem:[%s1485 + $0x34] sm:%s1475] %v1512
                  %v1514 = vld [vmem:[%s1484 + $0x38] sm:%s1475]
                  %1515 = vst [vmem:[%s1485 + $0x38] sm:%s1475] %v1514
                  %v1516 = vld [vmem:[%s1484 + $0x3c] sm:%s1475]
                  %1517 = vst [vmem:[%s1485 + $0x3c] sm:%s1475] %v1516
                  %v1518 = vld [vmem:[%s1484 + $0x40] sm:%s1475]
                  %1519 = vst [vmem:[%s1485 + $0x40] sm:%s1475] %v1518
                  %v1520 = vld [vmem:[%s1484 + $0x44] sm:%s1475]
                  %1521 = vst [vmem:[%s1485 + $0x44] sm:%s1475] %v1520
                  %v1522 = vld [vmem:[%s1484 + $0x48] sm:%s1475]
                  %1523 = vst [vmem:[%s1485 + $0x48] sm:%s1475] %v1522
                  %v1524 = vld [vmem:[%s1484 + $0x4c] sm:%s1475]
                  %1525 = vst [vmem:[%s1485 + $0x4c] sm:%s1475] %v1524
                  %v1526 = vld [vmem:[%s1484 + $0x50] sm:%s1475]
                  %1527 = vst [vmem:[%s1485 + $0x50] sm:%s1475] %v1526
                  %v1528 = vld [vmem:[%s1484 + $0x54] sm:%s1475]
                  %1529 = vst [vmem:[%s1485 + $0x54] sm:%s1475] %v1528
                  %v1530 = vld [vmem:[%s1484 + $0x58] sm:%s1475]
                  %1531 = vst [vmem:[%s1485 + $0x58] sm:%s1475] %v1530
                  %v1532 = vld [vmem:[%s1484 + $0x5c] sm:%s1475]
                  %1533 = vst [vmem:[%s1485 + $0x5c] sm:%s1475] %v1532
                  %v1534 = vld [vmem:[%s1484 + $0x60] sm:%s1475]
                  %1535 = vst [vmem:[%s1485 + $0x60] sm:%s1475] %v1534
                  %v1536 = vld [vmem:[%s1484 + $0x64] sm:%s1475]
                  %1537 = vst [vmem:[%s1485 + $0x64] sm:%s1475] %v1536
                  %v1538 = vld [vmem:[%s1484 + $0x68] sm:%s1475]
                  %1539 = vst [vmem:[%s1485 + $0x68] sm:%s1475] %v1538
                  %v1540 = vld [vmem:[%s1484 + $0x6c] sm:%s1475]
                  %1541 = vst [vmem:[%s1485 + $0x6c] sm:%s1475] %v1540
                  %v1542 = vld [vmem:[%s1484 + $0x70] sm:%s1475]
                  %1543 = vst [vmem:[%s1485 + $0x70] sm:%s1475] %v1542
                  %v1544 = vld [vmem:[%s1484 + $0x74] sm:%s1475]
                  %1545 = vst [vmem:[%s1485 + $0x74] sm:%s1475] %v1544
                  %v1546 = vld [vmem:[%s1484 + $0x78] sm:%s1475]
                  %1547 = vst [vmem:[%s1485 + $0x78] sm:%s1475] %v1546
                  %v1548 = vld [vmem:[%s1484 + $0x7c] sm:%s1475]
                  %1549 = vst [vmem:[%s1485 + $0x7c] sm:%s1475] %v1548
                  %s1550 = sadd.s32 1, %s1483
                  %p1551 = scmp.ge.s32.totalorder %s1550, %s1476
                  %s1552 = scalar_select %p1551, 0, %s1550
                  %s1553 = smul.u32 %s1552, 128
                  %s1554 = smul.u32 %s1552, 128
                  %s1555 = scalar_lea.vmem %s1342, %s1553 [#allocation2]
                  %s1556 = scalar_lea.vmem %s1356, %s1554
                $region71: #{_lambda_.11} parent=65 // loop_footer
                  %s1480 = sadd.s32 %s1478, 1
                $region72: #{_lambda_.11} parent=65 // loop_footer_branch
                  %1477 = sbr.rel target = $region68
                $region73: #{_lambda_.11} parent=65 // loop_exit
                  _
                %s1557 = sshrl.u32 %s1349, 5
                %s1558 = sand.u32 %s1349, 31
                %s1559 = smul.u32 %s1557, 32
                %s1560 = smul.u32 4, %s1559
                %s1561 = scalar_lea.vmem %s1342, %s1560 [#allocation2]
                %s1562 = smul.u32 4, %s1559
                %s1563 = scalar_lea.vmem %s1356, %s1562
                // While loop
                $region74: #{_lambda_.11} parent=65 // loop_pre_header
                  _
                $region75: #{_lambda_.11} parent=65 // loop_header
                  %s1565 = sphi 0, %s1567
                  %p1566 = scmp.ge.s32.totalorder %s1565, %s1558
                  %s1570 = sphi 0, %s1577
                  %s1571 = sphi %s1561, %s1580
                  %s1572 = sphi %s1563, %s1581
                $region76: #{_lambda_.11} parent=65 // loop_header_branch
                  %1569 = sbr.rel (%p1566) target = $region80
                $region77: #{_lambda_.11} parent=65 // loop_body
                  %v1573 = vld [vmem:[%s1571] sm:%s1475]
                  %1574 = vst [vmem:[%s1572] sm:%s1475] %v1573
                  %s1575 = sadd.s32 1, %s1570
                  %p1576 = scmp.ge.s32.totalorder %s1575, %s1558
                  %s1577 = scalar_select %p1576, 0, %s1575
                  %s1578 = smul.u32 %s1577, 4
                  %s1579 = smul.u32 %s1577, 4
                  %s1580 = scalar_lea.vmem %s1561, %s1578 [#allocation2]
                  %s1581 = scalar_lea.vmem %s1563, %s1579
                $region78: #{_lambda_.11} parent=65 // loop_footer
                  %s1567 = sadd.s32 %s1565, 1
                $region79: #{_lambda_.11} parent=65 // loop_footer_branch
                  %1564 = sbr.rel target = $region75
                $region80: #{_lambda_.11} parent=65 // loop_exit
                  _
              $region66: #{_lambda_.11} parent=43 // pred_fallthru
                _
            $region44: #{_lambda_.11} parent=39 // pred_fallthru
              _
            // Predicated region
            $region45: #{_lambda_.11} parent=39 // pred_check
              _
            $region46: #{_lambda_.11} parent=39 // pred_check_branch
              %1363 = sbr.rel (0) target = $region48
            $region47: #{_lambda_.11} parent=39 // pred_region
              %s1365 = ssub.s32 16, 1
              %s1366 = sshrl.u32 %s1349, 5
              // While loop
              $region49: #{_lambda_.11} parent=47 // loop_pre_header
                _
              $region50: #{_lambda_.11} parent=47 // loop_header
                %s1368 = sphi 0, %s1370
                %p1369 = scmp.ge.s32.totalorder %s1368, %s1366
                %s1373 = sphi 0, %s1442
                %s1374 = sphi %s1342, %s1445
                %s1375 = sphi %s1356, %s1446
              $region51: #{_lambda_.11} parent=47 // loop_header_branch
                %1372 = sbr.rel (%p1369) target = $region55
              $region52: #{_lambda_.11} parent=47 // loop_body
                %v1376 = vld [vmem:[%s1374] sm:%s1365]
                %1377 = vst [vmem:[%s1375] sm:%s1365] %v1376
                %v1378 = vld [vmem:[%s1374 + $0x4] sm:%s1365]
                %1379 = vst [vmem:[%s1375 + $0x4] sm:%s1365] %v1378
                %v1380 = vld [vmem:[%s1374 + $0x8] sm:%s1365]
                %1381 = vst [vmem:[%s1375 + $0x8] sm:%s1365] %v1380
                %v1382 = vld [vmem:[%s1374 + $0xc] sm:%s1365]
                %1383 = vst [vmem:[%s1375 + $0xc] sm:%s1365] %v1382
                %v1384 = vld [vmem:[%s1374 + $0x10] sm:%s1365]
                %1385 = vst [vmem:[%s1375 + $0x10] sm:%s1365] %v1384
                %v1386 = vld [vmem:[%s1374 + $0x14] sm:%s1365]
                %1387 = vst [vmem:[%s1375 + $0x14] sm:%s1365] %v1386
                %v1388 = vld [vmem:[%s1374 + $0x18] sm:%s1365]
                %1389 = vst [vmem:[%s1375 + $0x18] sm:%s1365] %v1388
                %v1390 = vld [vmem:[%s1374 + $0x1c] sm:%s1365]
                %1391 = vst [vmem:[%s1375 + $0x1c] sm:%s1365] %v1390
                %v1392 = vld [vmem:[%s1374 + $0x20] sm:%s1365]
                %1393 = vst [vmem:[%s1375 + $0x20] sm:%s1365] %v1392
                %v1394 = vld [vmem:[%s1374 + $0x24] sm:%s1365]
                %1395 = vst [vmem:[%s1375 + $0x24] sm:%s1365] %v1394
                %v1396 = vld [vmem:[%s1374 + $0x28] sm:%s1365]
                %1397 = vst [vmem:[%s1375 + $0x28] sm:%s1365] %v1396
                %v1398 = vld [vmem:[%s1374 + $0x2c] sm:%s1365]
                %1399 = vst [vmem:[%s1375 + $0x2c] sm:%s1365] %v1398
                %v1400 = vld [vmem:[%s1374 + $0x30] sm:%s1365]
                %1401 = vst [vmem:[%s1375 + $0x30] sm:%s1365] %v1400
                %v1402 = vld [vmem:[%s1374 + $0x34] sm:%s1365]
                %1403 = vst [vmem:[%s1375 + $0x34] sm:%s1365] %v1402
                %v1404 = vld [vmem:[%s1374 + $0x38] sm:%s1365]
                %1405 = vst [vmem:[%s1375 + $0x38] sm:%s1365] %v1404
                %v1406 = vld [vmem:[%s1374 + $0x3c] sm:%s1365]
                %1407 = vst [vmem:[%s1375 + $0x3c] sm:%s1365] %v1406
                %v1408 = vld [vmem:[%s1374 + $0x40] sm:%s1365]
                %1409 = vst [vmem:[%s1375 + $0x40] sm:%s1365] %v1408
                %v1410 = vld [vmem:[%s1374 + $0x44] sm:%s1365]
                %1411 = vst [vmem:[%s1375 + $0x44] sm:%s1365] %v1410
                %v1412 = vld [vmem:[%s1374 + $0x48] sm:%s1365]
                %1413 = vst [vmem:[%s1375 + $0x48] sm:%s1365] %v1412
                %v1414 = vld [vmem:[%s1374 + $0x4c] sm:%s1365]
                %1415 = vst [vmem:[%s1375 + $0x4c] sm:%s1365] %v1414
                %v1416 = vld [vmem:[%s1374 + $0x50] sm:%s1365]
                %1417 = vst [vmem:[%s1375 + $0x50] sm:%s1365] %v1416
                %v1418 = vld [vmem:[%s1374 + $0x54] sm:%s1365]
                %1419 = vst [vmem:[%s1375 + $0x54] sm:%s1365] %v1418
                %v1420 = vld [vmem:[%s1374 + $0x58] sm:%s1365]
                %1421 = vst [vmem:[%s1375 + $0x58] sm:%s1365] %v1420
                %v1422 = vld [vmem:[%s1374 + $0x5c] sm:%s1365]
                %1423 = vst [vmem:[%s1375 + $0x5c] sm:%s1365] %v1422
                %v1424 = vld [vmem:[%s1374 + $0x60] sm:%s1365]
                %1425 = vst [vmem:[%s1375 + $0x60] sm:%s1365] %v1424
                %v1426 = vld [vmem:[%s1374 + $0x64] sm:%s1365]
                %1427 = vst [vmem:[%s1375 + $0x64] sm:%s1365] %v1426
                %v1428 = vld [vmem:[%s1374 + $0x68] sm:%s1365]
                %1429 = vst [vmem:[%s1375 + $0x68] sm:%s1365] %v1428
                %v1430 = vld [vmem:[%s1374 + $0x6c] sm:%s1365]
                %1431 = vst [vmem:[%s1375 + $0x6c] sm:%s1365] %v1430
                %v1432 = vld [vmem:[%s1374 + $0x70] sm:%s1365]
                %1433 = vst [vmem:[%s1375 + $0x70] sm:%s1365] %v1432
                %v1434 = vld [vmem:[%s1374 + $0x74] sm:%s1365]
                %1435 = vst [vmem:[%s1375 + $0x74] sm:%s1365] %v1434
                %v1436 = vld [vmem:[%s1374 + $0x78] sm:%s1365]
                %1437 = vst [vmem:[%s1375 + $0x78] sm:%s1365] %v1436
                %v1438 = vld [vmem:[%s1374 + $0x7c] sm:%s1365]
                %1439 = vst [vmem:[%s1375 + $0x7c] sm:%s1365] %v1438
                %s1440 = sadd.s32 1, %s1373
                %p1441 = scmp.ge.s32.totalorder %s1440, %s1366
                %s1442 = scalar_select %p1441, 0, %s1440
                %s1443 = smul.u32 %s1442, 128
                %s1444 = smul.u32 %s1442, 128
                %s1445 = scalar_lea.vmem %s1342, %s1443 [#allocation2]
                %s1446 = scalar_lea.vmem %s1356, %s1444
              $region53: #{_lambda_.11} parent=47 // loop_footer
                %s1370 = sadd.s32 %s1368, 1
              $region54: #{_lambda_.11} parent=47 // loop_footer_branch
                %1367 = sbr.rel target = $region50
              $region55: #{_lambda_.11} parent=47 // loop_exit
                _
              %s1447 = sshrl.u32 %s1349, 5
              %s1448 = sand.u32 %s1349, 31
              %s1449 = smul.u32 %s1447, 32
              %s1450 = smul.u32 4, %s1449
              %s1451 = scalar_lea.vmem %s1342, %s1450 [#allocation2]
              %s1452 = smul.u32 4, %s1449
              %s1453 = scalar_lea.vmem %s1356, %s1452
              // While loop
              $region56: #{_lambda_.11} parent=47 // loop_pre_header
                _
              $region57: #{_lambda_.11} parent=47 // loop_header
                %s1455 = sphi 0, %s1457
                %p1456 = scmp.ge.s32.totalorder %s1455, %s1448
                %s1460 = sphi 0, %s1467
                %s1461 = sphi %s1451, %s1470
                %s1462 = sphi %s1453, %s1471
              $region58: #{_lambda_.11} parent=47 // loop_header_branch
                %1459 = sbr.rel (%p1456) target = $region62
              $region59: #{_lambda_.11} parent=47 // loop_body
                %v1463 = vld [vmem:[%s1461] sm:%s1365]
                %1464 = vst [vmem:[%s1462] sm:%s1365] %v1463
                %s1465 = sadd.s32 1, %s1460
                %p1466 = scmp.ge.s32.totalorder %s1465, %s1448
                %s1467 = scalar_select %p1466, 0, %s1465
                %s1468 = smul.u32 %s1467, 4
                %s1469 = smul.u32 %s1467, 4
                %s1470 = scalar_lea.vmem %s1451, %s1468 [#allocation2]
                %s1471 = scalar_lea.vmem %s1453, %s1469
              $region60: #{_lambda_.11} parent=47 // loop_footer
                %s1457 = sadd.s32 %s1455, 1
              $region61: #{_lambda_.11} parent=47 // loop_footer_branch
                %1454 = sbr.rel target = $region57
              $region62: #{_lambda_.11} parent=47 // loop_exit
                _
            $region48: #{_lambda_.11} parent=39 // pred_fallthru
              _
          $region40: #{_lambda_.11} parent=35 // pred_fallthru
            _
          %1582 = vnop
        $region36: #{_lambda_.11} parent=31 // pred_fallthru
          _
      $region32: #{_lambda_.11} parent=5 // pred_fallthru
        _
      %p1583 = scmp.le.s32.totalorder 2, %s9
      // Predicated region
      $region81: #{_lambda_.11} parent=5 // pred_check
        %p1584 = pneg %p1583
      $region82: #{_lambda_.11} parent=5 // pred_check_branch
        %1586 = sbr.rel (%p1584) target = $region84
      $region83: #{_lambda_.11} parent=5 // pred_region
        %s1587 = ssub.s32 %s9, 2
        // Predicated region
        $region85: #{_lambda_.11} parent=83 // pred_check
          %p1588 = pneg %p145
        $region86: #{_lambda_.11} parent=83 // pred_check_branch
          %1590 = sbr.rel (%p1588) target = $region88
        $region87: #{_lambda_.11} parent=83 // pred_region
          %s1591 = sand.u32 %s130, 1
          %s1592 = sand.u32 %s130, 1
          %s1593 = smul.addr %s1592, 256
          %s1594 = scalar_lea.vmem [#allocation2], %s1593
        $region88: #{_lambda_.11} parent=83 // pred_fallthru
          _
      $region84: #{_lambda_.11} parent=5 // pred_fallthru
        _
    $region6: #{_lambda_.11} parent=1 // loop_footer
      %s13 = sadd.s32 1, %s9
    $region7: #{_lambda_.11} parent=1 // loop_footer_branch
      %8 = sbr.rel target = $region3
    $region8: #{_lambda_.11} parent=1 // loop_exit
      _

// kernel: _lambda_.12
$region0: #{_lambda_.12}
  #allocation0 [shape = 'u32[]', space=smem, size = 0x4, offset = 0x4, fixed_abs, tag = 'smem constant byte address 0x4 - core index']
  #allocation1 [shape = 'u32[72,128]{1,0:T(1,128)}', space=vmem, size = 0x9000, scoped, tag = 'internal scratch']
  %s0 = inlined_call_operand.vmem [shape: bf16[1,1250,256], index: 0, kind: input, shape index: {}]
  %s1 = inlined_call_operand.vmem [shape: bf16[1,256,128], index: 1, kind: input, shape index: {}]
  %s2 = inlined_call_operand.vmem [shape: f32[1,1,128], index: 2, kind: input, shape index: {}]
  %s3 = inlined_call_operand.vmem [shape: bf16[1,1250,128], index: 3, kind: output, shape index: {}]
  %s4 = sld [smem:[#allocation0]]
  $region89: #{_lambda_.12} parent=0
    _
  %s6 = ssub.s32 1, %s4
  %s7 = scalar_select 0, %s6, %s4
  $region1: #{_lambda_.12} parent=0
    #allocation2 [shape = 'u8[262144]{0}', space=vmem, size = 0x40000, scoped, tag = 'output window, operand 0']
    loop: start=0, step=1, limit=5
    $region2: #{_lambda_.12} parent=1 // loop_pre_header
      _
    $region3: #{_lambda_.12} parent=1 // loop_header
      %s9 = sphi 0, %s13
      %p10 = scmp.ge.s32.totalorder %s9, 5
      %s16 = sphi 0, %s35
      %s17 = sphi 0, %s31
      %s18 = sphi 0, %s27
      %s19 = sphi 0, %s16
      %s20 = sphi 0, %s17
      %s21 = sphi 0, %s18
      %s22 = sphi 0, %s19
      %s23 = sphi 0, %s20
      %s24 = sphi 0, %s21
      %s40 = sphi 0, %s42
      %s43 = sphi 0, %s40
      %s44 = sphi 0, %s43
      %s60 = sphi 0, %s44
      %s68 = sphi 0, %s70
      %s71 = sphi 0, %s68
      %s72 = sphi 0, %s71
      %s88 = sphi 0, %s72
      %s96 = sphi 0, %s98
      %s99 = sphi 0, %s96
      %s100 = sphi 0, %s99
      %s116 = sphi 0, %s100
      %s126 = sphi 0, %s128
      %s129 = sphi 0, %s126
      %s130 = sphi 0, %s129
      %s146 = sphi 0, %s130
    $region4: #{_lambda_.12} parent=1 // loop_header_branch
      %12 = sbr.rel (%p10) target = $region8
    $region5: #{_lambda_.12} parent=1 // loop_body
      %s14 = ssub.s32 %s9, 1
      %s15 = ssub.s32 %s9, 2
      %s25 = sadd.s32 1, %s18
      %p26 = scmp.ge.s32.totalorder %s25, 1
      %s27 = scalar_select %p26, 0, %s25
      %s28 = sadd.s32 1, %s17
      %s29 = scalar_select %p26, %s28, %s17
      %p30 = scmp.ge.s32.totalorder %s29, 3
      %s31 = scalar_select %p30, 0, %s29
      %s32 = sadd.s32 1, %s16
      %s33 = scalar_select %p30, %s32, %s16
      %p34 = scmp.ge.s32.totalorder %s33, 1
      %s35 = scalar_select %p34, 0, %s33
      %s36 = ssub.s32 %s16, %s35
      %s37 = ssub.s32 %s17, %s31
      %s38 = sor.u32 %s36, %s37
      %p39 = scmp.eq.s32.totalorder %s38, 0
      %s41 = sadd.s32 %s40, 1
      %s42 = scalar_select %p39, %s40, %s41
      %p45 = pneg %p39
      %p46 = scmp.eq.s32.totalorder %s9, 2
      %p47 = por %p45, %p46
      %p48 = scmp.ne.s32.totalorder %s40, %s43
      %p49 = scmp.eq.s32.totalorder %s9, 0
      %p50 = por %p48, %p49
      %p51 = scmp.ne.s32.totalorder %s40, %s43
      %p52 = scmp.eq.s32.totalorder %s14, 2
      %p53 = por %p51, %p52
      %p54 = scmp.ne.s32.totalorder %s43, %s44
      %p55 = scmp.eq.s32.totalorder %s14, 0
      %p56 = por %p54, %p55
      %p57 = scmp.ne.s32.totalorder %s43, %s44
      %p58 = scmp.eq.s32.totalorder %s15, 2
      %p59 = por %p57, %p58
      %p61 = scmp.ne.s32.totalorder %s44, %s60
      %p62 = scmp.eq.s32.totalorder %s15, 0
      %p63 = por %p61, %p62
      %s64 = ssub.s32 %s16, %s35
      %s65 = ssub.s32 %s18, %s27
      %s66 = sor.u32 %s64, %s65
      %p67 = scmp.eq.s32.totalorder %s66, 0
      %s69 = sadd.s32 %s68, 1
      %s70 = scalar_select %p67, %s68, %s69
      %p73 = pneg %p67
      %p74 = scmp.eq.s32.totalorder %s9, 2
      %p75 = por %p73, %p74
      %p76 = scmp.ne.s32.totalorder %s68, %s71
      %p77 = scmp.eq.s32.totalorder %s9, 0
      %p78 = por %p76, %p77
      %p79 = scmp.ne.s32.totalorder %s68, %s71
      %p80 = scmp.eq.s32.totalorder %s14, 2
      %p81 = por %p79, %p80
      %p82 = scmp.ne.s32.totalorder %s71, %s72
      %p83 = scmp.eq.s32.totalorder %s14, 0
      %p84 = por %p82, %p83
      %p85 = scmp.ne.s32.totalorder %s71, %s72
      %p86 = scmp.eq.s32.totalorder %s15, 2
      %p87 = por %p85, %p86
      %p89 = scmp.ne.s32.totalorder %s72, %s88
      %p90 = scmp.eq.s32.totalorder %s15, 0
      %p91 = por %p89, %p90
      %s92 = ssub.s32 %s16, %s35
      %s93 = ssub.s32 %s18, %s27
      %s94 = sor.u32 %s92, %s93
      %p95 = scmp.eq.s32.totalorder %s94, 0
      %s97 = sadd.s32 %s96, 1
      %s98 = scalar_select %p95, %s96, %s97
      %p101 = pneg %p95
      %p102 = scmp.eq.s32.totalorder %s9, 2
      %p103 = por %p101, %p102
      %p104 = scmp.ne.s32.totalorder %s96, %s99
      %p105 = scmp.eq.s32.totalorder %s9, 0
      %p106 = por %p104, %p105
      %p107 = scmp.ne.s32.totalorder %s96, %s99
      %p108 = scmp.eq.s32.totalorder %s14, 2
      %p109 = por %p107, %p108
      %p110 = scmp.ne.s32.totalorder %s99, %s100
      %p111 = scmp.eq.s32.totalorder %s14, 0
      %p112 = por %p110, %p111
      %p113 = scmp.ne.s32.totalorder %s99, %s100
      %p114 = scmp.eq.s32.totalorder %s15, 2
      %p115 = por %p113, %p114
      %p117 = scmp.ne.s32.totalorder %s100, %s116
      %p118 = scmp.eq.s32.totalorder %s15, 0
      %p119 = por %p117, %p118
      %s120 = ssub.s32 %s16, %s35
      %s121 = ssub.s32 %s17, %s31
      %s122 = sor.u32 %s120, %s121
      %s123 = ssub.s32 %s18, %s27
      %s124 = sor.u32 %s122, %s123
      %p125 = scmp.eq.s32.totalorder %s124, 0
      %s127 = sadd.s32 %s126, 1
      %s128 = scalar_select %p125, %s126, %s127
      %p131 = pneg %p125
      %p132 = scmp.eq.s32.totalorder %s9, 2
      %p133 = por %p131, %p132
      %p134 = scmp.ne.s32.totalorder %s126, %s129
      %p135 = scmp.eq.s32.totalorder %s9, 0
      %p136 = por %p134, %p135
      %p137 = scmp.ne.s32.totalorder %s126, %s129
      %p138 = scmp.eq.s32.totalorder %s14, 2
      %p139 = por %p137, %p138
      %p140 = scmp.ne.s32.totalorder %s129, %s130
      %p141 = scmp.eq.s32.totalorder %s14, 0
      %p142 = por %p140, %p141
      %p143 = scmp.ne.s32.totalorder %s129, %s130
      %p144 = scmp.eq.s32.totalorder %s15, 2
      %p145 = por %p143, %p144
      %p147 = scmp.ne.s32.totalorder %s130, %s146
      %p148 = scmp.eq.s32.totalorder %s15, 0
      %p149 = por %p147, %p148
      %p150 = scmp.le.s32.totalorder 1, %s9
      %p151 = scmp.lt.s32.totalorder %s9, 4
      %p152 = pnand %p150, %p151
      %p153 = pneg %p152
      // Predicated region
      $region9: #{_lambda_.12} parent=5 // pred_check
        _
      $region10: #{_lambda_.12} parent=5 // pred_check_branch
        %155 = sbr.rel (%p152) target = $region12
      $region11: #{_lambda_.12} parent=5 // pred_region
        %s156 = ssub.s32 %s9, 1
        // Predicated region
        $region13: #{_lambda_.12} parent=11 // pred_check
          %p157 = pneg %p84
        $region14: #{_lambda_.12} parent=11 // pred_check_branch
          %159 = sbr.rel (%p157) target = $region16
        $region15: #{_lambda_.12} parent=11 // pred_region
          %p160 = scmp.lt.s32.totalorder %s19, 0
          %s161 = scalar_select %p160, %s19, 0
          %p162 = scmp.lt.s32.totalorder %s21, 0
          %s163 = scalar_select %p162, %s21, 0
          %s164 = smul.addr %s161, 32
          %s165 = sadd.s32 %s163, %s164
          %s166 = smul.addr %s165, 4
          %s167 = scalar_lea.vmem %s1, %s166
        $region16: #{_lambda_.12} parent=11 // pred_fallthru
          _
        // Predicated region
        $region17: #{_lambda_.12} parent=11 // pred_check
          %p168 = pneg %p112
        $region18: #{_lambda_.12} parent=11 // pred_check_branch
          %170 = sbr.rel (%p168) target = $region20
        $region19: #{_lambda_.12} parent=11 // pred_region
          %p171 = scmp.lt.s32.totalorder %s19, 0
          %s172 = scalar_select %p171, %s19, 0
          %p173 = scmp.lt.s32.totalorder %s21, 0
          %s174 = scalar_select %p173, %s21, 0
          %s175 = sadd.s32 %s174, %s172
          %s176 = scalar_lea.vmem %s2, %s175
        $region20: #{_lambda_.12} parent=11 // pred_fallthru
          _
      $region12: #{_lambda_.12} parent=5 // pred_fallthru
        _
      %p177 = scmp.lt.s32.totalorder %s9, 3
      // Predicated region
      $region21: #{_lambda_.12} parent=5 // pred_check
        %p178 = pneg %p177
      $region22: #{_lambda_.12} parent=5 // pred_check_branch
        %180 = sbr.rel (%p178) target = $region24
      $region23: #{_lambda_.12} parent=5 // pred_region
        // Predicated region
        $region25: #{_lambda_.12} parent=23 // pred_check
          %p181 = pneg %p50
        $region26: #{_lambda_.12} parent=23 // pred_check_branch
          %183 = sbr.rel (%p181) target = $region28
        $region27: #{_lambda_.12} parent=23 // pred_region
          %s184 = smul.u32 64, %s17
          %s185 = ssub.s32 157, %s184
          %p186 = scmp.lt.s32.totalorder %s185, 64
          %s187 = scalar_select %p186, %s185, 64
          %s188 = smul.u32 4, %s187
          %s189 = smul.u32 %s188, 2
          %p190 = scmp.lt.s32.totalorder %s16, 0
          %s191 = scalar_select %p190, %s16, 0
          %p192 = scmp.lt.s32.totalorder %s184, 156
          %s193 = scalar_select %p192, %s184, 156
          %s194 = smul.addr %s193, 2
          %s195 = smul.addr %s191, 314
          %s196 = sadd.s32 %s194, %s195
          %s197 = smul.addr %s196, 4
          %s198 = scalar_lea.vmem %s0, %s197
          %s199 = smul.u32 64, %s17
          %s200 = ssub.s32 157, %s199
          %p201 = scmp.lt.s32.totalorder %s200, 64
          %s202 = scalar_select %p201, %s200, 64
          %s203 = smul.u32 4, %s202
          %s204 = smul.u32 %s203, 2
        $region28: #{_lambda_.12} parent=23 // pred_fallthru
          _
      $region24: #{_lambda_.12} parent=5 // pred_fallthru
        _
      %p205 = scmp.le.s32.totalorder 1, %s9
      %p206 = scmp.lt.s32.totalorder %s9, 4
      %p207 = pnand %p205, %p206
      %p208 = pneg %p207
      // Predicated region
      $region29: #{_lambda_.12} parent=5 // pred_check
        _
      $region30: #{_lambda_.12} parent=5 // pred_check_branch
        %210 = sbr.rel (%p207) target = $region32
      $region31: #{_lambda_.12} parent=5 // pred_region
        %s211 = ssub.s32 %s9, 1
        %s212 = smul.u32 64, %s20
        %s213 = ssub.s32 157, %s212
        %p214 = scmp.lt.s32.totalorder %s213, 64
        %s215 = scalar_select %p214, %s213, 64
        %s216 = smul.u32 4, %s215
        %s217 = smul.u32 %s216, 2
        %p218 = scmp.lt.s32.totalorder %s19, 0
        %s219 = scalar_select %p218, %s19, 0
        %p220 = scmp.lt.s32.totalorder %s212, 156
        %s221 = scalar_select %p220, %s212, 156
        %s222 = smul.addr %s221, 2
        %s223 = smul.addr %s219, 314
        %s224 = sadd.s32 %s222, %s223
        %s225 = smul.addr %s224, 4
        %s226 = scalar_lea.vmem %s0, %s225
        %p227 = pneg %p56
        %p228 = pneg %p53
        %p229 = scmp.lt.s32.totalorder %s19, 0
        %s230 = scalar_select %p229, %s19, 0
        %p231 = scmp.lt.s32.totalorder %s21, 0
        %s232 = scalar_select %p231, %s21, 0
        %s233 = smul.addr %s230, 32
        %s234 = sadd.s32 %s232, %s233
        %s235 = smul.addr %s234, 4
        %s236 = scalar_lea.vmem %s1, %s235
        %p237 = pneg %p84
        %p238 = pneg %p81
        %p239 = scmp.lt.s32.totalorder %s19, 0
        %s240 = scalar_select %p239, %s19, 0
        %p241 = scmp.lt.s32.totalorder %s21, 0
        %s242 = scalar_select %p241, %s21, 0
        %s243 = sadd.s32 %s242, %s240
        %s244 = scalar_lea.vmem %s2, %s243
        %p245 = pneg %p112
        %p246 = pneg %p109
        %p247 = pneg %p142
        %p248 = pneg %p139
        %s249 = sand.u32 %s129, 1
        %s250 = sand.u32 %s129, 1
        %s251 = smul.addr %s250, 256
        %s252 = scalar_lea.vmem [#allocation2], %s251
        %s253 = smul.u32 64, %s20
        %s254 = ssub.s32 157, %s253
        %p255 = scmp.lt.s32.totalorder %s254, 64
        %s256 = scalar_select %p255, %s254, 64
        %s257 = smul.u32 4, %s256
        %s258 = smul.u32 %s257, 2
        %p259 = scmp.lt.s32.totalorder %s19, 0
        %s260 = scalar_select %p259, %s19, 0
        %p261 = scmp.lt.s32.totalorder %s253, 156
        %s262 = scalar_select %p261, %s253, 156
        %s263 = smul.addr %s262, 2
        %s264 = smul.addr %s260, 314
        %s265 = sadd.s32 %s263, %s264
        %s266 = smul.addr %s265, 4
        %s267 = scalar_lea.vmem %s0, %s266
        %s268 = smul.u32 64, %s20
        %s269 = ssub.s32 157, %s268
        %p270 = scmp.lt.s32.totalorder %s269, 64
        %s271 = scalar_select %p270, %s269, 64
        %s272 = smul.u32 4, %s271
        %s273 = smul.u32 %s272, 2
        %p274 = scmp.lt.s32.totalorder %s19, 0
        %s275 = scalar_select %p274, %s19, 0
        %p276 = scmp.lt.s32.totalorder %s21, 0
        %s277 = scalar_select %p276, %s21, 0
        %s278 = smul.addr %s275, 32
        %s279 = sadd.s32 %s277, %s278
        %s280 = smul.addr %s279, 4
        %s281 = scalar_lea.vmem %s1, %s280
        %p282 = scmp.lt.s32.totalorder %s19, 0
        %s283 = scalar_select %p282, %s19, 0
        %p284 = scmp.lt.s32.totalorder %s21, 0
        %s285 = scalar_select %p284, %s21, 0
        %s286 = sadd.s32 %s285, %s283
        %s287 = scalar_lea.vmem %s2, %s286
        %s288 = smul.u32 64, %s20
        %s289 = ssub.s32 157, %s288
        %p290 = scmp.lt.s32.totalorder %s289, 64
        %s291 = scalar_select %p290, %s289, 64
        %s292 = smul.u32 4, %s291
        %v293 = vld [vmem:[%s267] sm:$0xff]
        %v294 = vld [vmem:[%s267 + $0x8] sm:$0xff]
        %v295 = vld [vmem:[%s267 + $0x10] sm:$0xff]
        %v296 = vld [vmem:[%s267 + $0x18] sm:$0xff]
        %v297 = vld [vmem:[%s267 + $0x20] sm:$0xff]
        %v298 = vld [vmem:[%s267 + $0x28] sm:$0xff]
        %v299 = vld [vmem:[%s267 + $0x30] sm:$0xff]
        %v300 = vld [vmem:[%s267 + $0x38] sm:$0xff]
        %v301 = vld [vmem:[%s267 + $0x40] sm:$0xff]
        %v302 = vld [vmem:[%s267 + $0x48] sm:$0xff]
        %v303 = vld [vmem:[%s267 + $0x50] sm:$0xff]
        %v304 = vld [vmem:[%s267 + $0x58] sm:$0xff]
        %v305 = vld [vmem:[%s267 + $0x60] sm:$0xff]
        %v306 = vld [vmem:[%s267 + $0x68] sm:$0xff]
        %v307 = vld [vmem:[%s267 + $0x70] sm:$0xff]
        %v308 = vld [vmem:[%s267 + $0x78] sm:$0xff]
        %v309 = vld [vmem:[%s267 + $0x80] sm:$0xff]
        %v310 = vld [vmem:[%s267 + $0x88] sm:$0xff]
        %v311 = vld [vmem:[%s267 + $0x90] sm:$0xff]
        %v312 = vld [vmem:[%s267 + $0x98] sm:$0xff]
        %v313 = vld [vmem:[%s267 + $0xa0] sm:$0xff]
        %v314 = vld [vmem:[%s267 + $0xa8] sm:$0xff]
        %v315 = vld [vmem:[%s267 + $0xb0] sm:$0xff]
        %v316 = vld [vmem:[%s267 + $0xb8] sm:$0xff]
        %v317 = vld [vmem:[%s267 + $0xc0] sm:$0xff]
        %v318 = vld [vmem:[%s267 + $0xc8] sm:$0xff]
        %v319 = vld [vmem:[%s267 + $0xd0] sm:$0xff]
        %v320 = vld [vmem:[%s267 + $0xd8] sm:$0xff]
        %v321 = vld [vmem:[%s267 + $0xe0] sm:$0xff]
        %v322 = vld [vmem:[%s267 + $0xe8] sm:$0xff]
        %v323 = vld [vmem:[%s267 + $0xf0] sm:$0xff]
        %v324 = vld [vmem:[%s267 + $0xf8] sm:$0xff]
        %v325 = vld [vmem:[%s267 + $0x100] sm:$0xff]
        %v326 = vld [vmem:[%s267 + $0x108] sm:$0xff]
        %v327 = vld [vmem:[%s267 + $0x110] sm:$0xff]
        %v328 = vld [vmem:[%s267 + $0x118] sm:$0xff]
        %v329 = vld [vmem:[%s267 + $0x120] sm:$0xff]
        %v330 = vld [vmem:[%s267 + $0x128] sm:$0xff]
        %v331 = vld [vmem:[%s267 + $0x130] sm:$0xff]
        %v332 = vld [vmem:[%s267 + $0x138] sm:$0xff]
        %v333 = vld [vmem:[%s267 + $0x140] sm:$0xff]
        %v334 = vld [vmem:[%s267 + $0x148] sm:$0xff]
        %v335 = vld [vmem:[%s267 + $0x150] sm:$0xff]
        %v336 = vld [vmem:[%s267 + $0x158] sm:$0xff]
        %v337 = vld [vmem:[%s267 + $0x160] sm:$0xff]
        %v338 = vld [vmem:[%s267 + $0x168] sm:$0xff]
        %v339 = vld [vmem:[%s267 + $0x170] sm:$0xff]
        %v340 = vld [vmem:[%s267 + $0x178] sm:$0xff]
        %v341 = vld [vmem:[%s267 + $0x180] sm:$0xff]
        %v342 = vld [vmem:[%s267 + $0x188] sm:$0xff]
        %v343 = vld [vmem:[%s267 + $0x190] sm:$0xff]
        %v344 = vld [vmem:[%s267 + $0x198] sm:$0xff]
        %v345 = vld [vmem:[%s267 + $0x1a0] sm:$0xff]
        %v346 = vld [vmem:[%s267 + $0x1a8] sm:$0xff]
        %v347 = vld [vmem:[%s267 + $0x1b0] sm:$0xff]
        %v348 = vld [vmem:[%s267 + $0x1b8] sm:$0xff]
        %v349 = vld [vmem:[%s267 + $0x1c0] sm:$0xff]
        %v350 = vld [vmem:[%s267 + $0x1c8] sm:$0xff]
        %v351 = vld [vmem:[%s267 + $0x1d0] sm:$0xff]
        %v352 = vld [vmem:[%s267 + $0x1d8] sm:$0xff]
        %v353 = vld [vmem:[%s267 + $0x1e0] sm:$0xff]
        %v354 = vld [vmem:[%s267 + $0x1e8] sm:$0xff]
        %v355 = vld [vmem:[%s267 + $0x1f0] sm:$0xff]
        %v356 = vld [vmem:[%s267 + $0x1f8] sm:$0xff]
        %v357 = vld [vmem:[%s281] sm:$0xf]
        %v358 = vld [vmem:[%s281 + $0x4] sm:$0xf]
        %v359 = vld [vmem:[%s281 + $0x8] sm:$0xf]
        %v360 = vld [vmem:[%s281 + $0xc] sm:$0xf]
        %v361 = vld [vmem:[%s281 + $0x10] sm:$0xf]
        %v362 = vld [vmem:[%s281 + $0x14] sm:$0xf]
        %v363 = vld [vmem:[%s281 + $0x18] sm:$0xf]
        %v364 = vld [vmem:[%s281 + $0x1c] sm:$0xf]
        %v365 = vld [vmem:[%s281 + $0x20] sm:$0xf]
        %v366 = vld [vmem:[%s281 + $0x24] sm:$0xf]
        %v367 = vld [vmem:[%s281 + $0x28] sm:$0xf]
        %v368 = vld [vmem:[%s281 + $0x2c] sm:$0xf]
        %v369 = vld [vmem:[%s281 + $0x30] sm:$0xf]
        %v370 = vld [vmem:[%s281 + $0x34] sm:$0xf]
        %v371 = vld [vmem:[%s281 + $0x38] sm:$0xf]
        %v372 = vld [vmem:[%s281 + $0x3c] sm:$0xf]
        %v373 = vld [vmem:[%s281 + $0x40] sm:$0xf]
        %v374 = vld [vmem:[%s281 + $0x44] sm:$0xf]
        %v375 = vld [vmem:[%s281 + $0x48] sm:$0xf]
        %v376 = vld [vmem:[%s281 + $0x4c] sm:$0xf]
        %v377 = vld [vmem:[%s281 + $0x50] sm:$0xf]
        %v378 = vld [vmem:[%s281 + $0x54] sm:$0xf]
        %v379 = vld [vmem:[%s281 + $0x58] sm:$0xf]
        %v380 = vld [vmem:[%s281 + $0x5c] sm:$0xf]
        %v381 = vld [vmem:[%s281 + $0x60] sm:$0xf]
        %v382 = vld [vmem:[%s281 + $0x64] sm:$0xf]
        %v383 = vld [vmem:[%s281 + $0x68] sm:$0xf]
        %v384 = vld [vmem:[%s281 + $0x6c] sm:$0xf]
        %v385 = vld [vmem:[%s281 + $0x70] sm:$0xf]
        %v386 = vld [vmem:[%s281 + $0x74] sm:$0xf]
        %v387 = vld [vmem:[%s281 + $0x78] sm:$0xf]
        %v388 = vld [vmem:[%s281 + $0x7c] sm:$0xf]
        %v389 = vld [vmem:[%s287] sm:$0x1]
        %v391 = vperm.slane %v389, 0
        %v457 = vunpack.c.l.b16 %v293
        %v458 = vunpack.c.h.b16 %v293
        %v459 = vunpack.c.l.b16 %v294
        %v460 = vunpack.c.h.b16 %v294
        %v461 = vunpack.c.l.b16 %v295
        %v462 = vunpack.c.h.b16 %v295
        %v463 = vunpack.c.l.b16 %v296
        %v464 = vunpack.c.h.b16 %v296
        %v465 = vunpack.c.l.b16 %v297
        %v466 = vunpack.c.h.b16 %v297
        %v467 = vunpack.c.l.b16 %v298
        %v468 = vunpack.c.h.b16 %v298
        %v469 = vunpack.c.l.b16 %v299
        %v470 = vunpack.c.h.b16 %v299
        %v471 = vunpack.c.l.b16 %v300
        %v472 = vunpack.c.h.b16 %v300
        %v473 = vunpack.c.l.b16 %v301
        %v474 = vunpack.c.h.b16 %v301
        %v475 = vunpack.c.l.b16 %v302
        %v476 = vunpack.c.h.b16 %v302
        %v477 = vunpack.c.l.b16 %v303
        %v478 = vunpack.c.h.b16 %v303
        %v479 = vunpack.c.l.b16 %v304
        %v480 = vunpack.c.h.b16 %v304
        %v481 = vunpack.c.l.b16 %v305
        %v482 = vunpack.c.h.b16 %v305
        %v483 = vunpack.c.l.b16 %v306
        %v484 = vunpack.c.h.b16 %v306
        %v485 = vunpack.c.l.b16 %v307
        %v486 = vunpack.c.h.b16 %v307
        %v487 = vunpack.c.l.b16 %v308
        %v488 = vunpack.c.h.b16 %v308
        %v489 = vunpack.c.l.b16 %v309
        %v490 = vunpack.c.h.b16 %v309
        %v491 = vunpack.c.l.b16 %v310
        %v492 = vunpack.c.h.b16 %v310
        %v493 = vunpack.c.l.b16 %v311
        %v494 = vunpack.c.h.b16 %v311
        %v495 = vunpack.c.l.b16 %v312
        %v496 = vunpack.c.h.b16 %v312
        %v497 = vunpack.c.l.b16 %v313
        %v498 = vunpack.c.h.b16 %v313
        %v499 = vunpack.c.l.b16 %v314
        %v500 = vunpack.c.h.b16 %v314
        %v501 = vunpack.c.l.b16 %v315
        %v502 = vunpack.c.h.b16 %v315
        %v503 = vunpack.c.l.b16 %v316
        %v504 = vunpack.c.h.b16 %v316
        %v505 = vunpack.c.l.b16 %v317
        %v506 = vunpack.c.h.b16 %v317
        %v507 = vunpack.c.l.b16 %v318
        %v508 = vunpack.c.h.b16 %v318
        %v509 = vunpack.c.l.b16 %v319
        %v510 = vunpack.c.h.b16 %v319
        %v511 = vunpack.c.l.b16 %v320
        %v512 = vunpack.c.h.b16 %v320
        %v513 = vunpack.c.l.b16 %v321
        %v514 = vunpack.c.h.b16 %v321
        %v515 = vunpack.c.l.b16 %v322
        %v516 = vunpack.c.h.b16 %v322
        %v517 = vunpack.c.l.b16 %v323
        %v518 = vunpack.c.h.b16 %v323
        %v519 = vunpack.c.l.b16 %v324
        %v520 = vunpack.c.h.b16 %v324
        %v521 = vunpack.c.l.b16 %v325
        %v522 = vunpack.c.h.b16 %v325
        %v523 = vunpack.c.l.b16 %v326
        %v524 = vunpack.c.h.b16 %v326
        %v525 = vunpack.c.l.b16 %v327
        %v526 = vunpack.c.h.b16 %v327
        %v527 = vunpack.c.l.b16 %v328
        %v528 = vunpack.c.h.b16 %v328
        %v529 = vunpack.c.l.b16 %v329
        %v530 = vunpack.c.h.b16 %v329
        %v531 = vunpack.c.l.b16 %v330
        %v532 = vunpack.c.h.b16 %v330
        %v533 = vunpack.c.l.b16 %v331
        %v534 = vunpack.c.h.b16 %v331
        %v535 = vunpack.c.l.b16 %v332
        %v536 = vunpack.c.h.b16 %v332
        %v537 = vunpack.c.l.b16 %v333
        %v538 = vunpack.c.h.b16 %v333
        %v539 = vunpack.c.l.b16 %v334
        %v540 = vunpack.c.h.b16 %v334
        %v541 = vunpack.c.l.b16 %v335
        %v542 = vunpack.c.h.b16 %v335
        %v543 = vunpack.c.l.b16 %v336
        %v544 = vunpack.c.h.b16 %v336
        %v545 = vunpack.c.l.b16 %v337
        %v546 = vunpack.c.h.b16 %v337
        %v547 = vunpack.c.l.b16 %v338
        %v548 = vunpack.c.h.b16 %v338
        %v549 = vunpack.c.l.b16 %v339
        %v550 = vunpack.c.h.b16 %v339
        %v551 = vunpack.c.l.b16 %v340
        %v552 = vunpack.c.h.b16 %v340
        %v553 = vunpack.c.l.b16 %v341
        %v554 = vunpack.c.h.b16 %v341
        %v555 = vunpack.c.l.b16 %v342
        %v556 = vunpack.c.h.b16 %v342
        %v557 = vunpack.c.l.b16 %v343
        %v558 = vunpack.c.h.b16 %v343
        %v559 = vunpack.c.l.b16 %v344
        %v560 = vunpack.c.h.b16 %v344
        %v561 = vunpack.c.l.b16 %v345
        %v562 = vunpack.c.h.b16 %v345
        %v563 = vunpack.c.l.b16 %v346
        %v564 = vunpack.c.h.b16 %v346
        %v565 = vunpack.c.l.b16 %v347
        %v566 = vunpack.c.h.b16 %v347
        %v567 = vunpack.c.l.b16 %v348
        %v568 = vunpack.c.h.b16 %v348
        %v569 = vunpack.c.l.b16 %v349
        %v570 = vunpack.c.h.b16 %v349
        %v571 = vunpack.c.l.b16 %v350
        %v572 = vunpack.c.h.b16 %v350
        %v573 = vunpack.c.l.b16 %v351
        %v574 = vunpack.c.h.b16 %v351
        %v575 = vunpack.c.l.b16 %v352
        %v576 = vunpack.c.h.b16 %v352
        %v577 = vunpack.c.l.b16 %v353
        %v578 = vunpack.c.h.b16 %v353
        %v579 = vunpack.c.l.b16 %v354
        %v580 = vunpack.c.h.b16 %v354
        %v581 = vunpack.c.l.b16 %v355
        %v582 = vunpack.c.h.b16 %v355
        %v583 = vunpack.c.l.b16 %v356
        %v584 = vunpack.c.h.b16 %v356
        %v585 = vpack.c.b16 %v459, %v457
        %v586 = vpack.c.b16 %v460, %v458
        %v587 = vpack.c.b16 %v463, %v461
        %v588 = vpack.c.b16 %v464, %v462
        %v589 = vpack.c.b16 %v467, %v465
        %v590 = vpack.c.b16 %v468, %v466
        %v591 = vpack.c.b16 %v471, %v469
        %v592 = vpack.c.b16 %v472, %v470
        %v593 = vpack.c.b16 %v475, %v473
        %v594 = vpack.c.b16 %v476, %v474
        %v595 = vpack.c.b16 %v479, %v477
        %v596 = vpack.c.b16 %v480, %v478
        %v597 = vpack.c.b16 %v483, %v481
        %v598 = vpack.c.b16 %v484, %v482
        %v599 = vpack.c.b16 %v487, %v485
        %v600 = vpack.c.b16 %v488, %v486
        %v601 = vpack.c.b16 %v491, %v489
        %v602 = vpack.c.b16 %v492, %v490
        %v603 = vpack.c.b16 %v495, %v493
        %v604 = vpack.c.b16 %v496, %v494
        %v605 = vpack.c.b16 %v499, %v497
        %v606 = vpack.c.b16 %v500, %v498
        %v607 = vpack.c.b16 %v503, %v501
        %v608 = vpack.c.b16 %v504, %v502
        %v609 = vpack.c.b16 %v507, %v505
        %v610 = vpack.c.b16 %v508, %v506
        %v611 = vpack.c.b16 %v511, %v509
        %v612 = vpack.c.b16 %v512, %v510
        %v613 = vpack.c.b16 %v515, %v513
        %v614 = vpack.c.b16 %v516, %v514
        %v615 = vpack.c.b16 %v519, %v517
        %v616 = vpack.c.b16 %v520, %v518
        %v617 = vpack.c.b16 %v523, %v521
        %v618 = vpack.c.b16 %v524, %v522
        %v619 = vpack.c.b16 %v527, %v525
        %v620 = vpack.c.b16 %v528, %v526
        %v621 = vpack.c.b16 %v531, %v529
        %v622 = vpack.c.b16 %v532, %v530
        %v623 = vpack.c.b16 %v535, %v533
        %v624 = vpack.c.b16 %v536, %v534
        %v625 = vpack.c.b16 %v539, %v537
        %v626 = vpack.c.b16 %v540, %v538
        %v627 = vpack.c.b16 %v543, %v541
        %v628 = vpack.c.b16 %v544, %v542
        %v629 = vpack.c.b16 %v547, %v545
        %v630 = vpack.c.b16 %v548, %v546
        %v631 = vpack.c.b16 %v551, %v549
        %v632 = vpack.c.b16 %v552, %v550
        %v633 = vpack.c.b16 %v555, %v553
        %v634 = vpack.c.b16 %v556, %v554
        %v635 = vpack.c.b16 %v559, %v557
        %v636 = vpack.c.b16 %v560, %v558
        %v637 = vpack.c.b16 %v563, %v561
        %v638 = vpack.c.b16 %v564, %v562
        %v639 = vpack.c.b16 %v567, %v565
        %v640 = vpack.c.b16 %v568, %v566
        %v641 = vpack.c.b16 %v571, %v569
        %v642 = vpack.c.b16 %v572, %v570
        %v643 = vpack.c.b16 %v575, %v573
        %v644 = vpack.c.b16 %v576, %v574
        %v645 = vpack.c.b16 %v579, %v577
        %v646 = vpack.c.b16 %v580, %v578
        %v647 = vpack.c.b16 %v583, %v581
        %v648 = vpack.c.b16 %v584, %v582
        %v745 = vunpack.c.l.b16 %v357
        %v746 = vunpack.c.l.b16 %v358
        %v747 = vunpack.c.l.b16 %v359
        %v748 = vunpack.c.l.b16 %v360
        %v749 = vunpack.c.l.b16 %v361
        %v750 = vunpack.c.l.b16 %v362
        %v751 = vunpack.c.l.b16 %v363
        %v752 = vunpack.c.l.b16 %v364
        %v753 = vunpack.c.l.b16 %v365
        %v754 = vunpack.c.l.b16 %v366
        %v755 = vunpack.c.l.b16 %v367
        %v756 = vunpack.c.l.b16 %v368
        %v757 = vunpack.c.l.b16 %v369
        %v758 = vunpack.c.l.b16 %v370
        %v759 = vunpack.c.l.b16 %v371
        %v760 = vunpack.c.l.b16 %v372
        %v761 = vunpack.c.l.b16 %v373
        %v762 = vunpack.c.l.b16 %v374
        %v763 = vunpack.c.l.b16 %v375
        %v764 = vunpack.c.l.b16 %v376
        %v765 = vunpack.c.l.b16 %v377
        %v766 = vunpack.c.l.b16 %v378
        %v767 = vunpack.c.l.b16 %v379
        %v768 = vunpack.c.l.b16 %v380
        %v769 = vunpack.c.l.b16 %v381
        %v770 = vunpack.c.l.b16 %v382
        %v771 = vunpack.c.l.b16 %v383
        %v772 = vunpack.c.l.b16 %v384
        %v773 = vunpack.c.l.b16 %v385
        %v774 = vunpack.c.l.b16 %v386
        %v775 = vunpack.c.l.b16 %v387
        %v776 = vunpack.c.l.b16 %v388
        %v777 = vpack.c.b16 %v746, %v745
        %v778 = vpack.c.b16 %v748, %v747
        %v779 = vpack.c.b16 %v750, %v749
        %v780 = vpack.c.b16 %v752, %v751
        %v781 = vpack.c.b16 %v754, %v753
        %v782 = vpack.c.b16 %v756, %v755
        %v783 = vpack.c.b16 %v758, %v757
        %v784 = vpack.c.b16 %v760, %v759
        %v785 = vpack.c.b16 %v762, %v761
        %v786 = vpack.c.b16 %v764, %v763
        %v787 = vpack.c.b16 %v766, %v765
        %v788 = vpack.c.b16 %v768, %v767
        %v789 = vpack.c.b16 %v770, %v769
        %v790 = vpack.c.b16 %v772, %v771
        %v791 = vpack.c.b16 %v774, %v773
        %v792 = vpack.c.b16 %v776, %v775
        %809 = vmatpush.bf16.msra.mxu0 %v784
        %810 = vmatpush.bf16.msra.mxu0 %v783
        %811 = vmatpush.bf16.msra.mxu0 %v782
        %812 = vmatpush.bf16.msra.mxu0 %v781
        %813 = vmatpush.bf16.msra.mxu0 %v780
        %814 = vmatpush.bf16.msra.mxu0 %v779
        %815 = vmatpush.bf16.msra.mxu0 %v778
        %816 = vmatpush.bf16.msra.mxu0 %v777
        %817 = vmatmul.bf16.gmra.mxu0 %v585
        %v818 = vpop.f32.mrf.mxu0
        %v819 = vadd.f32 %v391, %v818
        %v820 = vpop.f32.mrf.mxu0
        %v821 = vadd.f32 %v391, %v820
        %822 = vmatmul.bf16.gmra.mxu0 %v587
        %v823 = vpop.f32.mrf.mxu0
        %v824 = vadd.f32 %v391, %v823
        %v825 = vpop.f32.mrf.mxu0
        %v826 = vadd.f32 %v391, %v825
        %827 = vmatmul.bf16.gmra.mxu0 %v589
        %v828 = vpop.f32.mrf.mxu0
        %v829 = vadd.f32 %v391, %v828
        %v830 = vpop.f32.mrf.mxu0
        %v831 = vadd.f32 %v391, %v830
        %832 = vmatmul.bf16.gmra.mxu0 %v591
        %v833 = vpop.f32.mrf.mxu0
        %v834 = vadd.f32 %v391, %v833
        %v835 = vpop.f32.mrf.mxu0
        %v836 = vadd.f32 %v391, %v835
        %837 = vmatmul.bf16.gmra.mxu0 %v593
        %v838 = vpop.f32.mrf.mxu0
        %v839 = vadd.f32 %v391, %v838
        %v840 = vpop.f32.mrf.mxu0
        %v841 = vadd.f32 %v391, %v840
        %842 = vmatmul.bf16.gmra.mxu0 %v595
        %v843 = vpop.f32.mrf.mxu0
        %v844 = vadd.f32 %v391, %v843
        %v845 = vpop.f32.mrf.mxu0
        %v846 = vadd.f32 %v391, %v845
        %847 = vmatmul.bf16.gmra.mxu0 %v597
        %v848 = vpop.f32.mrf.mxu0
        %v849 = vadd.f32 %v391, %v848
        %v850 = vpop.f32.mrf.mxu0
        %v851 = vadd.f32 %v391, %v850
        %852 = vmatmul.bf16.gmra.mxu0 %v599
        %v853 = vpop.f32.mrf.mxu0
        %v854 = vadd.f32 %v391, %v853
        %v855 = vpop.f32.mrf.mxu0
        %v856 = vadd.f32 %v391, %v855
        %857 = vmatmul.bf16.gmra.mxu0 %v601
        %v858 = vpop.f32.mrf.mxu0
        %v859 = vadd.f32 %v391, %v858
        %v860 = vpop.f32.mrf.mxu0
        %v861 = vadd.f32 %v391, %v860
        %862 = vmatmul.bf16.gmra.mxu0 %v603
        %v863 = vpop.f32.mrf.mxu0
        %v864 = vadd.f32 %v391, %v863
        %v865 = vpop.f32.mrf.mxu0
        %v866 = vadd.f32 %v391, %v865
        %867 = vmatmul.bf16.gmra.mxu0 %v605
        %v868 = vpop.f32.mrf.mxu0
        %v869 = vadd.f32 %v391, %v868
        %v870 = vpop.f32.mrf.mxu0
        %v871 = vadd.f32 %v391, %v870
        %872 = vmatmul.bf16.gmra.mxu0 %v607
        %v873 = vpop.f32.mrf.mxu0
        %v874 = vadd.f32 %v391, %v873
        %v875 = vpop.f32.mrf.mxu0
        %v876 = vadd.f32 %v391, %v875
        %877 = vmatmul.bf16.gmra.mxu0 %v609
        %v878 = vpop.f32.mrf.mxu0
        %v879 = vadd.f32 %v391, %v878
        %v880 = vpop.f32.mrf.mxu0
        %v881 = vadd.f32 %v391, %v880
        %882 = vmatmul.bf16.gmra.mxu0 %v611
        %v883 = vpop.f32.mrf.mxu0
        %v884 = vadd.f32 %v391, %v883
        %v885 = vpop.f32.mrf.mxu0
        %v886 = vadd.f32 %v391, %v885
        %887 = vmatmul.bf16.gmra.mxu0 %v613
        %v888 = vpop.f32.mrf.mxu0
        %v889 = vadd.f32 %v391, %v888
        %v890 = vpop.f32.mrf.mxu0
        %v891 = vadd.f32 %v391, %v890
        %892 = vmatmul.bf16.gmra.mxu0 %v615
        %v893 = vpop.f32.mrf.mxu0
        %v894 = vadd.f32 %v391, %v893
        %v895 = vpop.f32.mrf.mxu0
        %v896 = vadd.f32 %v391, %v895
        %897 = vmatmul.bf16.gmra.mxu0 %v617
        %v898 = vpop.f32.mrf.mxu0
        %v899 = vadd.f32 %v391, %v898
        %v900 = vpop.f32.mrf.mxu0
        %v901 = vadd.f32 %v391, %v900
        %902 = vmatmul.bf16.gmra.mxu0 %v619
        %v903 = vpop.f32.mrf.mxu0
        %v904 = vadd.f32 %v391, %v903
        %v905 = vpop.f32.mrf.mxu0
        %v906 = vadd.f32 %v391, %v905
        %907 = vmatmul.bf16.gmra.mxu0 %v621
        %v908 = vpop.f32.mrf.mxu0
        %v909 = vadd.f32 %v391, %v908
        %v910 = vpop.f32.mrf.mxu0
        %v911 = vadd.f32 %v391, %v910
        %912 = vmatmul.bf16.gmra.mxu0 %v623
        %v913 = vpop.f32.mrf.mxu0
        %v914 = vadd.f32 %v391, %v913
        %v915 = vpop.f32.mrf.mxu0
        %v916 = vadd.f32 %v391, %v915
        %917 = vmatmul.bf16.gmra.mxu0 %v625
        %v918 = vpop.f32.mrf.mxu0
        %v919 = vadd.f32 %v391, %v918
        %v920 = vpop.f32.mrf.mxu0
        %v921 = vadd.f32 %v391, %v920
        %922 = vmatmul.bf16.gmra.mxu0 %v627
        %v923 = vpop.f32.mrf.mxu0
        %v924 = vadd.f32 %v391, %v923
        %v925 = vpop.f32.mrf.mxu0
        %v926 = vadd.f32 %v391, %v925
        %927 = vmatmul.bf16.gmra.mxu0 %v629
        %v928 = vpop.f32.mrf.mxu0
        %v929 = vadd.f32 %v391, %v928
        %v930 = vpop.f32.mrf.mxu0
        %v931 = vadd.f32 %v391, %v930
        %932 = vmatmul.bf16.gmra.mxu0 %v631
        %v933 = vpop.f32.mrf.mxu0
        %v934 = vadd.f32 %v391, %v933
        %v935 = vpop.f32.mrf.mxu0
        %v936 = vadd.f32 %v391, %v935
        %937 = vmatmul.bf16.gmra.mxu0 %v633
        %v938 = vpop.f32.mrf.mxu0
        %v939 = vadd.f32 %v391, %v938
        %v940 = vpop.f32.mrf.mxu0
        %v941 = vadd.f32 %v391, %v940
        %942 = vmatmul.bf16.gmra.mxu0 %v635
        %v943 = vpop.f32.mrf.mxu0
        %v944 = vadd.f32 %v391, %v943
        %v945 = vpop.f32.mrf.mxu0
        %v946 = vadd.f32 %v391, %v945
        %947 = vmatmul.bf16.gmra.mxu0 %v637
        %v948 = vpop.f32.mrf.mxu0
        %v949 = vadd.f32 %v391, %v948
        %v950 = vpop.f32.mrf.mxu0
        %v951 = vadd.f32 %v391, %v950
        %952 = vmatmul.bf16.gmra.mxu0 %v639
        %v953 = vpop.f32.mrf.mxu0
        %v954 = vadd.f32 %v391, %v953
        %v955 = vpop.f32.mrf.mxu0
        %v956 = vadd.f32 %v391, %v955
        %957 = vmatmul.bf16.gmra.mxu0 %v641
        %v958 = vpop.f32.mrf.mxu0
        %v959 = vadd.f32 %v391, %v958
        %v960 = vpop.f32.mrf.mxu0
        %v961 = vadd.f32 %v391, %v960
        %962 = vmatmul.bf16.gmra.mxu0 %v643
        %v963 = vpop.f32.mrf.mxu0
        %v964 = vadd.f32 %v391, %v963
        %v965 = vpop.f32.mrf.mxu0
        %v966 = vadd.f32 %v391, %v965
        %967 = vmatmul.bf16.gmra.mxu0 %v645
        %v968 = vpop.f32.mrf.mxu0
        %v969 = vadd.f32 %v391, %v968
        %v970 = vpop.f32.mrf.mxu0
        %v971 = vadd.f32 %v391, %v970
        %972 = vmatmul.bf16.gmra.mxu0 %v647
        %v973 = vpop.f32.mrf.mxu0
        %v974 = vadd.f32 %v391, %v973
        %v975 = vpop.f32.mrf.mxu0
        %v976 = vadd.f32 %v391, %v975
        %977 = vdwg.mxu0
        %978 = vmatpush.bf16.msra.mxu0 %v792
        %979 = vmatpush.bf16.msra.mxu0 %v791
        %980 = vmatpush.bf16.msra.mxu0 %v790
        %981 = vmatpush.bf16.msra.mxu0 %v789
        %982 = vmatpush.bf16.msra.mxu0 %v788
        %983 = vmatpush.bf16.msra.mxu0 %v787
        %984 = vmatpush.bf16.msra.mxu0 %v786
        %985 = vmatpush.bf16.msra.mxu0 %v785
        %986 = vmatmul.bf16.gmra.mxu0 %v586
        %v987 = vpop.f32.mrf.mxu0
        %v988 = vadd.f32 %v819, %v987
        %v989 = vpop.f32.mrf.mxu0
        %v990 = vadd.f32 %v821, %v989
        %991 = vmatmul.bf16.gmra.mxu0 %v588
        %v992 = vpop.f32.mrf.mxu0
        %v993 = vadd.f32 %v824, %v992
        %v994 = vpop.f32.mrf.mxu0
        %v995 = vadd.f32 %v826, %v994
        %996 = vmatmul.bf16.gmra.mxu0 %v590
        %v997 = vpop.f32.mrf.mxu0
        %v998 = vadd.f32 %v829, %v997
        %v999 = vpop.f32.mrf.mxu0
        %v1000 = vadd.f32 %v831, %v999
        %1001 = vmatmul.bf16.gmra.mxu0 %v592
        %v1002 = vpop.f32.mrf.mxu0
        %v1003 = vadd.f32 %v834, %v1002
        %v1004 = vpop.f32.mrf.mxu0
        %v1005 = vadd.f32 %v836, %v1004
        %1006 = vmatmul.bf16.gmra.mxu0 %v594
        %v1007 = vpop.f32.mrf.mxu0
        %v1008 = vadd.f32 %v839, %v1007
        %v1009 = vpop.f32.mrf.mxu0
        %v1010 = vadd.f32 %v841, %v1009
        %1011 = vmatmul.bf16.gmra.mxu0 %v596
        %v1012 = vpop.f32.mrf.mxu0
        %v1013 = vadd.f32 %v844, %v1012
        %v1014 = vpop.f32.mrf.mxu0
        %v1015 = vadd.f32 %v846, %v1014
        %1016 = vmatmul.bf16.gmra.mxu0 %v598
        %v1017 = vpop.f32.mrf.mxu0
        %v1018 = vadd.f32 %v849, %v1017
        %v1019 = vpop.f32.mrf.mxu0
        %v1020 = vadd.f32 %v851, %v1019
        %1021 = vmatmul.bf16.gmra.mxu0 %v600
        %v1022 = vpop.f32.mrf.mxu0
        %v1023 = vadd.f32 %v854, %v1022
        %v1024 = vpop.f32.mrf.mxu0
        %v1025 = vadd.f32 %v856, %v1024
        %1026 = vmatmul.bf16.gmra.mxu0 %v602
        %v1027 = vpop.f32.mrf.mxu0
        %v1028 = vadd.f32 %v859, %v1027
        %v1029 = vpop.f32.mrf.mxu0
        %v1030 = vadd.f32 %v861, %v1029
        %1031 = vmatmul.bf16.gmra.mxu0 %v604
        %v1032 = vpop.f32.mrf.mxu0
        %v1033 = vadd.f32 %v864, %v1032
        %v1034 = vpop.f32.mrf.mxu0
        %v1035 = vadd.f32 %v866, %v1034
        %1036 = vmatmul.bf16.gmra.mxu0 %v606
        %v1037 = vpop.f32.mrf.mxu0
        %v1038 = vadd.f32 %v869, %v1037
        %v1039 = vpop.f32.mrf.mxu0
        %v1040 = vadd.f32 %v871, %v1039
        %1041 = vmatmul.bf16.gmra.mxu0 %v608
        %v1042 = vpop.f32.mrf.mxu0
        %v1043 = vadd.f32 %v874, %v1042
        %v1044 = vpop.f32.mrf.mxu0
        %v1045 = vadd.f32 %v876, %v1044
        %1046 = vmatmul.bf16.gmra.mxu0 %v610
        %v1047 = vpop.f32.mrf.mxu0
        %v1048 = vadd.f32 %v879, %v1047
        %v1049 = vpop.f32.mrf.mxu0
        %v1050 = vadd.f32 %v881, %v1049
        %1051 = vmatmul.bf16.gmra.mxu0 %v612
        %v1052 = vpop.f32.mrf.mxu0
        %v1053 = vadd.f32 %v884, %v1052
        %v1054 = vpop.f32.mrf.mxu0
        %v1055 = vadd.f32 %v886, %v1054
        %1056 = vmatmul.bf16.gmra.mxu0 %v614
        %v1057 = vpop.f32.mrf.mxu0
        %v1058 = vadd.f32 %v889, %v1057
        %v1059 = vpop.f32.mrf.mxu0
        %v1060 = vadd.f32 %v891, %v1059
        %1061 = vmatmul.bf16.gmra.mxu0 %v616
        %v1062 = vpop.f32.mrf.mxu0
        %v1063 = vadd.f32 %v894, %v1062
        %v1064 = vpop.f32.mrf.mxu0
        %v1065 = vadd.f32 %v896, %v1064
        %1066 = vmatmul.bf16.gmra.mxu0 %v618
        %v1067 = vpop.f32.mrf.mxu0
        %v1068 = vadd.f32 %v899, %v1067
        %v1069 = vpop.f32.mrf.mxu0
        %v1070 = vadd.f32 %v901, %v1069
        %1071 = vmatmul.bf16.gmra.mxu0 %v620
        %v1072 = vpop.f32.mrf.mxu0
        %v1073 = vadd.f32 %v904, %v1072
        %v1074 = vpop.f32.mrf.mxu0
        %v1075 = vadd.f32 %v906, %v1074
        %1076 = vmatmul.bf16.gmra.mxu0 %v622
        %v1077 = vpop.f32.mrf.mxu0
        %v1078 = vadd.f32 %v909, %v1077
        %v1079 = vpop.f32.mrf.mxu0
        %v1080 = vadd.f32 %v911, %v1079
        %1081 = vmatmul.bf16.gmra.mxu0 %v624
        %v1082 = vpop.f32.mrf.mxu0
        %v1083 = vadd.f32 %v914, %v1082
        %v1084 = vpop.f32.mrf.mxu0
        %v1085 = vadd.f32 %v916, %v1084
        %1086 = vmatmul.bf16.gmra.mxu0 %v626
        %v1087 = vpop.f32.mrf.mxu0
        %v1088 = vadd.f32 %v919, %v1087
        %v1089 = vpop.f32.mrf.mxu0
        %v1090 = vadd.f32 %v921, %v1089
        %1091 = vmatmul.bf16.gmra.mxu0 %v628
        %v1092 = vpop.f32.mrf.mxu0
        %v1093 = vadd.f32 %v924, %v1092
        %v1094 = vpop.f32.mrf.mxu0
        %v1095 = vadd.f32 %v926, %v1094
        %1096 = vmatmul.bf16.gmra.mxu0 %v630
        %v1097 = vpop.f32.mrf.mxu0
        %v1098 = vadd.f32 %v929, %v1097
        %v1099 = vpop.f32.mrf.mxu0
        %v1100 = vadd.f32 %v931, %v1099
        %1101 = vmatmul.bf16.gmra.mxu0 %v632
        %v1102 = vpop.f32.mrf.mxu0
        %v1103 = vadd.f32 %v934, %v1102
        %v1104 = vpop.f32.mrf.mxu0
        %v1105 = vadd.f32 %v936, %v1104
        %1106 = vmatmul.bf16.gmra.mxu0 %v634
        %v1107 = vpop.f32.mrf.mxu0
        %v1108 = vadd.f32 %v939, %v1107
        %v1109 = vpop.f32.mrf.mxu0
        %v1110 = vadd.f32 %v941, %v1109
        %1111 = vmatmul.bf16.gmra.mxu0 %v636
        %v1112 = vpop.f32.mrf.mxu0
        %v1113 = vadd.f32 %v944, %v1112
        %v1114 = vpop.f32.mrf.mxu0
        %v1115 = vadd.f32 %v946, %v1114
        %1116 = vmatmul.bf16.gmra.mxu0 %v638
        %v1117 = vpop.f32.mrf.mxu0
        %v1118 = vadd.f32 %v949, %v1117
        %v1119 = vpop.f32.mrf.mxu0
        %v1120 = vadd.f32 %v951, %v1119
        %1121 = vmatmul.bf16.gmra.mxu0 %v640
        %v1122 = vpop.f32.mrf.mxu0
        %v1123 = vadd.f32 %v954, %v1122
        %v1124 = vpop.f32.mrf.mxu0
        %v1125 = vadd.f32 %v956, %v1124
        %1126 = vmatmul.bf16.gmra.mxu0 %v642
        %v1127 = vpop.f32.mrf.mxu0
        %v1128 = vadd.f32 %v959, %v1127
        %v1129 = vpop.f32.mrf.mxu0
        %v1130 = vadd.f32 %v961, %v1129
        %1131 = vmatmul.bf16.gmra.mxu0 %v644
        %v1132 = vpop.f32.mrf.mxu0
        %v1133 = vadd.f32 %v964, %v1132
        %v1134 = vpop.f32.mrf.mxu0
        %v1135 = vadd.f32 %v966, %v1134
        %1136 = vmatmul.bf16.gmra.mxu0 %v646
        %v1137 = vpop.f32.mrf.mxu0
        %v1138 = vadd.f32 %v969, %v1137
        %v1139 = vpop.f32.mrf.mxu0
        %v1140 = vadd.f32 %v971, %v1139
        %1141 = vmatmul.bf16.gmra.mxu0 %v648
        %v1142 = vpop.f32.mrf.mxu0
        %v1143 = vadd.f32 %v974, %v1142
        %v1144 = vpop.f32.mrf.mxu0
        %v1145 = vadd.f32 %v976, %v1144
        %1146 = vdwg.mxu0
        %v1147 = vmax.f32 %v988, 0.0
        %v1148 = vmax.f32 %v990, 0.0
        %v1149 = vmax.f32 %v993, 0.0
        %v1150 = vmax.f32 %v995, 0.0
        %v1151 = vmax.f32 %v998, 0.0
        %v1152 = vmax.f32 %v1000, 0.0
        %v1153 = vmax.f32 %v1003, 0.0
        %v1154 = vmax.f32 %v1005, 0.0
        %v1155 = vmax.f32 %v1008, 0.0
        %v1156 = vmax.f32 %v1010, 0.0
        %v1157 = vmax.f32 %v1013, 0.0
        %v1158 = vmax.f32 %v1015, 0.0
        %v1159 = vmax.f32 %v1018, 0.0
        %v1160 = vmax.f32 %v1020, 0.0
        %v1161 = vmax.f32 %v1023, 0.0
        %v1162 = vmax.f32 %v1025, 0.0
        %v1163 = vmax.f32 %v1028, 0.0
        %v1164 = vmax.f32 %v1030, 0.0
        %v1165 = vmax.f32 %v1033, 0.0
        %v1166 = vmax.f32 %v1035, 0.0
        %v1167 = vmax.f32 %v1038, 0.0
        %v1168 = vmax.f32 %v1040, 0.0
        %v1169 = vmax.f32 %v1043, 0.0
        %v1170 = vmax.f32 %v1045, 0.0
        %v1171 = vmax.f32 %v1048, 0.0
        %v1172 = vmax.f32 %v1050, 0.0
        %v1173 = vmax.f32 %v1053, 0.0
        %v1174 = vmax.f32 %v1055, 0.0
        %v1175 = vmax.f32 %v1058, 0.0
        %v1176 = vmax.f32 %v1060, 0.0
        %v1177 = vmax.f32 %v1063, 0.0
        %v1178 = vmax.f32 %v1065, 0.0
        %v1179 = vmax.f32 %v1068, 0.0
        %v1180 = vmax.f32 %v1070, 0.0
        %v1181 = vmax.f32 %v1073, 0.0
        %v1182 = vmax.f32 %v1075, 0.0
        %v1183 = vmax.f32 %v1078, 0.0
        %v1184 = vmax.f32 %v1080, 0.0
        %v1185 = vmax.f32 %v1083, 0.0
        %v1186 = vmax.f32 %v1085, 0.0
        %v1187 = vmax.f32 %v1088, 0.0
        %v1188 = vmax.f32 %v1090, 0.0
        %v1189 = vmax.f32 %v1093, 0.0
        %v1190 = vmax.f32 %v1095, 0.0
        %v1191 = vmax.f32 %v1098, 0.0
        %v1192 = vmax.f32 %v1100, 0.0
        %v1193 = vmax.f32 %v1103, 0.0
        %v1194 = vmax.f32 %v1105, 0.0
        %v1195 = vmax.f32 %v1108, 0.0
        %v1196 = vmax.f32 %v1110, 0.0
        %v1197 = vmax.f32 %v1113, 0.0
        %v1198 = vmax.f32 %v1115, 0.0
        %v1199 = vmax.f32 %v1118, 0.0
        %v1200 = vmax.f32 %v1120, 0.0
        %v1201 = vmax.f32 %v1123, 0.0
        %v1202 = vmax.f32 %v1125, 0.0
        %v1203 = vmax.f32 %v1128, 0.0
        %v1204 = vmax.f32 %v1130, 0.0
        %v1205 = vmax.f32 %v1133, 0.0
        %v1206 = vmax.f32 %v1135, 0.0
        %v1207 = vmax.f32 %v1138, 0.0
        %v1208 = vmax.f32 %v1140, 0.0
        %v1209 = vmax.f32 %v1143, 0.0
        %v1210 = vmax.f32 %v1145, 0.0
        %v1211 = vpack.c.bf16 %v1147, %v1147
        %v1212 = vpack.c.bf16 %v1148, %v1148
        %v1213 = vpack.c.bf16 %v1149, %v1149
        %v1214 = vpack.c.bf16 %v1150, %v1150
        %v1215 = vpack.c.bf16 %v1151, %v1151
        %v1216 = vpack.c.bf16 %v1152, %v1152
        %v1217 = vpack.c.bf16 %v1153, %v1153
        %v1218 = vpack.c.bf16 %v1154, %v1154
        %v1219 = vpack.c.bf16 %v1155, %v1155
        %v1220 = vpack.c.bf16 %v1156, %v1156
        %v1221 = vpack.c.bf16 %v1157, %v1157
        %v1222 = vpack.c.bf16 %v1158, %v1158
        %v1223 = vpack.c.bf16 %v1159, %v1159
        %v1224 = vpack.c.bf16 %v1160, %v1160
        %v1225 = vpack.c.bf16 %v1161, %v1161
        %v1226 = vpack.c.bf16 %v1162, %v1162
        %v1227 = vpack.c.bf16 %v1163, %v1163
        %v1228 = vpack.c.bf16 %v1164, %v1164
        %v1229 = vpack.c.bf16 %v1165, %v1165
        %v1230 = vpack.c.bf16 %v1166, %v1166
        %v1231 = vpack.c.bf16 %v1167, %v1167
        %v1232 = vpack.c.bf16 %v1168, %v1168
        %v1233 = vpack.c.bf16 %v1169, %v1169
        %v1234 = vpack.c.bf16 %v1170, %v1170
        %v1235 = vpack.c.bf16 %v1171, %v1171
        %v1236 = vpack.c.bf16 %v1172, %v1172
        %v1237 = vpack.c.bf16 %v1173, %v1173
        %v1238 = vpack.c.bf16 %v1174, %v1174
        %v1239 = vpack.c.bf16 %v1175, %v1175
        %v1240 = vpack.c.bf16 %v1176, %v1176
        %v1241 = vpack.c.bf16 %v1177, %v1177
        %v1242 = vpack.c.bf16 %v1178, %v1178
        %v1243 = vpack.c.bf16 %v1179, %v1179
        %v1244 = vpack.c.bf16 %v1180, %v1180
        %v1245 = vpack.c.bf16 %v1181, %v1181
        %v1246 = vpack.c.bf16 %v1182, %v1182
        %v1247 = vpack.c.bf16 %v1183, %v1183
        %v1248 = vpack.c.bf16 %v1184, %v1184
        %v1249 = vpack.c.bf16 %v1185, %v1185
        %v1250 = vpack.c.bf16 %v1186, %v1186
        %v1251 = vpack.c.bf16 %v1187, %v1187
        %v1252 = vpack.c.bf16 %v1188, %v1188
        %v1253 = vpack.c.bf16 %v1189, %v1189
        %v1254 = vpack.c.bf16 %v1190, %v1190
        %v1255 = vpack.c.bf16 %v1191, %v1191
        %v1256 = vpack.c.bf16 %v1192, %v1192
        %v1257 = vpack.c.bf16 %v1193, %v1193
        %v1258 = vpack.c.bf16 %v1194, %v1194
        %v1259 = vpack.c.bf16 %v1195, %v1195
        %v1260 = vpack.c.bf16 %v1196, %v1196
        %v1261 = vpack.c.bf16 %v1197, %v1197
        %v1262 = vpack.c.bf16 %v1198, %v1198
        %v1263 = vpack.c.bf16 %v1199, %v1199
        %v1264 = vpack.c.bf16 %v1200, %v1200
        %v1265 = vpack.c.bf16 %v1201, %v1201
        %v1266 = vpack.c.bf16 %v1202, %v1202
        %v1267 = vpack.c.bf16 %v1203, %v1203
        %v1268 = vpack.c.bf16 %v1204, %v1204
        %v1269 = vpack.c.bf16 %v1205, %v1205
        %v1270 = vpack.c.bf16 %v1206, %v1206
        %v1271 = vpack.c.bf16 %v1207, %v1207
        %v1272 = vpack.c.bf16 %v1208, %v1208
        %v1273 = vpack.c.bf16 %v1209, %v1209
        %v1274 = vpack.c.bf16 %v1210, %v1210
        %1275 = vst [vmem:[%s252] sm:$0xf] %v1211
        %1276 = vst [vmem:[%s252 + $0x4] sm:$0xf] %v1212
        %1277 = vst [vmem:[%s252 + $0x8] sm:$0xf] %v1213
        %1278 = vst [vmem:[%s252 + $0xc] sm:$0xf] %v1214
        %1279 = vst [vmem:[%s252 + $0x10] sm:$0xf] %v1215
        %1280 = vst [vmem:[%s252 + $0x14] sm:$0xf] %v1216
        %1281 = vst [vmem:[%s252 + $0x18] sm:$0xf] %v1217
        %1282 = vst [vmem:[%s252 + $0x1c] sm:$0xf] %v1218
        %1283 = vst [vmem:[%s252 + $0x20] sm:$0xf] %v1219
        %1284 = vst [vmem:[%s252 + $0x24] sm:$0xf] %v1220
        %1285 = vst [vmem:[%s252 + $0x28] sm:$0xf] %v1221
        %1286 = vst [vmem:[%s252 + $0x2c] sm:$0xf] %v1222
        %1287 = vst [vmem:[%s252 + $0x30] sm:$0xf] %v1223
        %1288 = vst [vmem:[%s252 + $0x34] sm:$0xf] %v1224
        %1289 = vst [vmem:[%s252 + $0x38] sm:$0xf] %v1225
        %1290 = vst [vmem:[%s252 + $0x3c] sm:$0xf] %v1226
        %1291 = vst [vmem:[%s252 + $0x40] sm:$0xf] %v1227
        %1292 = vst [vmem:[%s252 + $0x44] sm:$0xf] %v1228
        %1293 = vst [vmem:[%s252 + $0x48] sm:$0xf] %v1229
        %1294 = vst [vmem:[%s252 + $0x4c] sm:$0xf] %v1230
        %1295 = vst [vmem:[%s252 + $0x50] sm:$0xf] %v1231
        %1296 = vst [vmem:[%s252 + $0x54] sm:$0xf] %v1232
        %1297 = vst [vmem:[%s252 + $0x58] sm:$0xf] %v1233
        %1298 = vst [vmem:[%s252 + $0x5c] sm:$0xf] %v1234
        %1299 = vst [vmem:[%s252 + $0x60] sm:$0xf] %v1235
        %1300 = vst [vmem:[%s252 + $0x64] sm:$0xf] %v1236
        %1301 = vst [vmem:[%s252 + $0x68] sm:$0xf] %v1237
        %1302 = vst [vmem:[%s252 + $0x6c] sm:$0xf] %v1238
        %1303 = vst [vmem:[%s252 + $0x70] sm:$0xf] %v1239
        %1304 = vst [vmem:[%s252 + $0x74] sm:$0xf] %v1240
        %1305 = vst [vmem:[%s252 + $0x78] sm:$0xf] %v1241
        %1306 = vst [vmem:[%s252 + $0x7c] sm:$0xf] %v1242
        %1307 = vst [vmem:[%s252 + $0x80] sm:$0xf] %v1243
        %1308 = vst [vmem:[%s252 + $0x84] sm:$0xf] %v1244
        %1309 = vst [vmem:[%s252 + $0x88] sm:$0xf] %v1245
        %1310 = vst [vmem:[%s252 + $0x8c] sm:$0xf] %v1246
        %1311 = vst [vmem:[%s252 + $0x90] sm:$0xf] %v1247
        %1312 = vst [vmem:[%s252 + $0x94] sm:$0xf] %v1248
        %1313 = vst [vmem:[%s252 + $0x98] sm:$0xf] %v1249
        %1314 = vst [vmem:[%s252 + $0x9c] sm:$0xf] %v1250
        %1315 = vst [vmem:[%s252 + $0xa0] sm:$0xf] %v1251
        %1316 = vst [vmem:[%s252 + $0xa4] sm:$0xf] %v1252
        %1317 = vst [vmem:[%s252 + $0xa8] sm:$0xf] %v1253
        %1318 = vst [vmem:[%s252 + $0xac] sm:$0xf] %v1254
        %1319 = vst [vmem:[%s252 + $0xb0] sm:$0xf] %v1255
        %1320 = vst [vmem:[%s252 + $0xb4] sm:$0xf] %v1256
        %1321 = vst [vmem:[%s252 + $0xb8] sm:$0xf] %v1257
        %1322 = vst [vmem:[%s252 + $0xbc] sm:$0xf] %v1258
        %1323 = vst [vmem:[%s252 + $0xc0] sm:$0xf] %v1259
        %1324 = vst [vmem:[%s252 + $0xc4] sm:$0xf] %v1260
        %1325 = vst [vmem:[%s252 + $0xc8] sm:$0xf] %v1261
        %1326 = vst [vmem:[%s252 + $0xcc] sm:$0xf] %v1262
        %1327 = vst [vmem:[%s252 + $0xd0] sm:$0xf] %v1263
        %1328 = vst [vmem:[%s252 + $0xd4] sm:$0xf] %v1264
        %1329 = vst [vmem:[%s252 + $0xd8] sm:$0xf] %v1265
        %1330 = vst [vmem:[%s252 + $0xdc] sm:$0xf] %v1266
        %1331 = vst [vmem:[%s252 + $0xe0] sm:$0xf] %v1267
        %1332 = vst [vmem:[%s252 + $0xe4] sm:$0xf] %v1268
        %1333 = vst [vmem:[%s252 + $0xe8] sm:$0xf] %v1269
        %1334 = vst [vmem:[%s252 + $0xec] sm:$0xf] %v1270
        %1335 = vst [vmem:[%s252 + $0xf0] sm:$0xf] %v1271
        %1336 = vst [vmem:[%s252 + $0xf4] sm:$0xf] %v1272
        %1337 = vst [vmem:[%s252 + $0xf8] sm:$0xf] %v1273
        %1338 = vst [vmem:[%s252 + $0xfc] sm:$0xf] %v1274
        %s1339 = sand.u32 %s129, 1
        %s1340 = sand.u32 %s129, 1
        %s1341 = smul.addr %s1340, 256
        %s1342 = scalar_lea.vmem [#allocation2], %s1341
        // Predicated region
        $region33: #{_lambda_.12} parent=31 // pred_check
          %p1343 = pneg %p139
        $region34: #{_lambda_.12} parent=31 // pred_check_branch
          %1345 = sbr.rel (%p1343) target = $region36
        $region35: #{_lambda_.12} parent=31 // pred_region
          %s1346 = smul.u32 64, %s20
          %s1347 = ssub.s32 157, %s1346
          %p1348 = scmp.lt.s32.totalorder %s1347, 64
          %s1349 = scalar_select %p1348, %s1347, 64
          %s1350 = smul.u32 4, %s1349
          %p1351 = scmp.ne.s32.totalorder 0, %s1350
          %s1352 = sadd.s32 %s21, %s1346
          %s1353 = smul.addr %s19, 157
          %s1354 = sadd.s32 %s1352, %s1353
          %s1355 = smul.addr %s1354, 4
          %s1356 = scalar_lea.vmem %s3, %s1355
          // Predicated region
          $region37: #{_lambda_.12} parent=35 // pred_check
            %p1357 = pneg %p1351
          $region38: #{_lambda_.12} parent=35 // pred_check_branch
            %1359 = sbr.rel (%p1357) target = $region40
          $region39: #{_lambda_.12} parent=35 // pred_region
            // Predicated region
            $region41: #{_lambda_.12} parent=39 // pred_check
              _
            $region42: #{_lambda_.12} parent=39 // pred_check_branch
              %1361 = sbr.rel target = $region44
            $region43: #{_lambda_.12} parent=39 // pred_region
              // Predicated region
              $region63: #{_lambda_.12} parent=43 // pred_check
                _
              $region64: #{_lambda_.12} parent=43 // pred_check_branch
                %1473 = sbr.rel (0) target = $region66
              $region65: #{_lambda_.12} parent=43 // pred_region
                %s1475 = ssub.s32 16, 1
                %s1476 = sshrl.u32 %s1349, 5
                // While loop
                $region67: #{_lambda_.12} parent=65 // loop_pre_header
                  _
                $region68: #{_lambda_.12} parent=65 // loop_header
                  %s1478 = sphi 0, %s1480
                  %p1479 = scmp.ge.s32.totalorder %s1478, %s1476
                  %s1483 = sphi 0, %s1552
                  %s1484 = sphi %s1342, %s1555
                  %s1485 = sphi %s1356, %s1556
                $region69: #{_lambda_.12} parent=65 // loop_header_branch
                  %1482 = sbr.rel (%p1479) target = $region73
                $region70: #{_lambda_.12} parent=65 // loop_body
                  %v1486 = vld [vmem:[%s1484] sm:%s1475]
                  %1487 = vst [vmem:[%s1485] sm:%s1475] %v1486
                  %v1488 = vld [vmem:[%s1484 + $0x4] sm:%s1475]
                  %1489 = vst [vmem:[%s1485 + $0x4] sm:%s1475] %v1488
                  %v1490 = vld [vmem:[%s1484 + $0x8] sm:%s1475]
                  %1491 = vst [vmem:[%s1485 + $0x8] sm:%s1475] %v1490
                  %v1492 = vld [vmem:[%s1484 + $0xc] sm:%s1475]
                  %1493 = vst [vmem:[%s1485 + $0xc] sm:%s1475] %v1492
                  %v1494 = vld [vmem:[%s1484 + $0x10] sm:%s1475]
                  %1495 = vst [vmem:[%s1485 + $0x10] sm:%s1475] %v1494
                  %v1496 = vld [vmem:[%s1484 + $0x14] sm:%s1475]
                  %1497 = vst [vmem:[%s1485 + $0x14] sm:%s1475] %v1496
                  %v1498 = vld [vmem:[%s1484 + $0x18] sm:%s1475]
                  %1499 = vst [vmem:[%s1485 + $0x18] sm:%s1475] %v1498
                  %v1500 = vld [vmem:[%s1484 + $0x1c] sm:%s1475]
                  %1501 = vst [vmem:[%s1485 + $0x1c] sm:%s1475] %v1500
                  %v1502 = vld [vmem:[%s1484 + $0x20] sm:%s1475]
                  %1503 = vst [vmem:[%s1485 + $0x20] sm:%s1475] %v1502
                  %v1504 = vld [vmem:[%s1484 + $0x24] sm:%s1475]
                  %1505 = vst [vmem:[%s1485 + $0x24] sm:%s1475] %v1504
                  %v1506 = vld [vmem:[%s1484 + $0x28] sm:%s1475]
                  %1507 = vst [vmem:[%s1485 + $0x28] sm:%s1475] %v1506
                  %v1508 = vld [vmem:[%s1484 + $0x2c] sm:%s1475]
                  %1509 = vst [vmem:[%s1485 + $0x2c] sm:%s1475] %v1508
                  %v1510 = vld [vmem:[%s1484 + $0x30] sm:%s1475]
                  %1511 = vst [vmem:[%s1485 + $0x30] sm:%s1475] %v1510
                  %v1512 = vld [vmem:[%s1484 + $0x34] sm:%s1475]
                  %1513 = vst [vmem:[%s1485 + $0x34] sm:%s1475] %v1512
                  %v1514 = vld [vmem:[%s1484 + $0x38] sm:%s1475]
                  %1515 = vst [vmem:[%s1485 + $0x38] sm:%s1475] %v1514
                  %v1516 = vld [vmem:[%s1484 + $0x3c] sm:%s1475]
                  %1517 = vst [vmem:[%s1485 + $0x3c] sm:%s1475] %v1516
                  %v1518 = vld [vmem:[%s1484 + $0x40] sm:%s1475]
                  %1519 = vst [vmem:[%s1485 + $0x40] sm:%s1475] %v1518
                  %v1520 = vld [vmem:[%s1484 + $0x44] sm:%s1475]
                  %1521 = vst [vmem:[%s1485 + $0x44] sm:%s1475] %v1520
                  %v1522 = vld [vmem:[%s1484 + $0x48] sm:%s1475]
                  %1523 = vst [vmem:[%s1485 + $0x48] sm:%s1475] %v1522
                  %v1524 = vld [vmem:[%s1484 + $0x4c] sm:%s1475]
                  %1525 = vst [vmem:[%s1485 + $0x4c] sm:%s1475] %v1524
                  %v1526 = vld [vmem:[%s1484 + $0x50] sm:%s1475]
                  %1527 = vst [vmem:[%s1485 + $0x50] sm:%s1475] %v1526
                  %v1528 = vld [vmem:[%s1484 + $0x54] sm:%s1475]
                  %1529 = vst [vmem:[%s1485 + $0x54] sm:%s1475] %v1528
                  %v1530 = vld [vmem:[%s1484 + $0x58] sm:%s1475]
                  %1531 = vst [vmem:[%s1485 + $0x58] sm:%s1475] %v1530
                  %v1532 = vld [vmem:[%s1484 + $0x5c] sm:%s1475]
                  %1533 = vst [vmem:[%s1485 + $0x5c] sm:%s1475] %v1532
                  %v1534 = vld [vmem:[%s1484 + $0x60] sm:%s1475]
                  %1535 = vst [vmem:[%s1485 + $0x60] sm:%s1475] %v1534
                  %v1536 = vld [vmem:[%s1484 + $0x64] sm:%s1475]
                  %1537 = vst [vmem:[%s1485 + $0x64] sm:%s1475] %v1536
                  %v1538 = vld [vmem:[%s1484 + $0x68] sm:%s1475]
                  %1539 = vst [vmem:[%s1485 + $0x68] sm:%s1475] %v1538
                  %v1540 = vld [vmem:[%s1484 + $0x6c] sm:%s1475]
                  %1541 = vst [vmem:[%s1485 + $0x6c] sm:%s1475] %v1540
                  %v1542 = vld [vmem:[%s1484 + $0x70] sm:%s1475]
                  %1543 = vst [vmem:[%s1485 + $0x70] sm:%s1475] %v1542
                  %v1544 = vld [vmem:[%s1484 + $0x74] sm:%s1475]
                  %1545 = vst [vmem:[%s1485 + $0x74] sm:%s1475] %v1544
                  %v1546 = vld [vmem:[%s1484 + $0x78] sm:%s1475]
                  %1547 = vst [vmem:[%s1485 + $0x78] sm:%s1475] %v1546
                  %v1548 = vld [vmem:[%s1484 + $0x7c] sm:%s1475]
                  %1549 = vst [vmem:[%s1485 + $0x7c] sm:%s1475] %v1548
                  %s1550 = sadd.s32 1, %s1483
                  %p1551 = scmp.ge.s32.totalorder %s1550, %s1476
                  %s1552 = scalar_select %p1551, 0, %s1550
                  %s1553 = smul.u32 %s1552, 128
                  %s1554 = smul.u32 %s1552, 128
                  %s1555 = scalar_lea.vmem %s1342, %s1553 [#allocation2]
                  %s1556 = scalar_lea.vmem %s1356, %s1554
                $region71: #{_lambda_.12} parent=65 // loop_footer
                  %s1480 = sadd.s32 %s1478, 1
                $region72: #{_lambda_.12} parent=65 // loop_footer_branch
                  %1477 = sbr.rel target = $region68
                $region73: #{_lambda_.12} parent=65 // loop_exit
                  _
                %s1557 = sshrl.u32 %s1349, 5
                %s1558 = sand.u32 %s1349, 31
                %s1559 = smul.u32 %s1557, 32
                %s1560 = smul.u32 4, %s1559
                %s1561 = scalar_lea.vmem %s1342, %s1560 [#allocation2]
                %s1562 = smul.u32 4, %s1559
                %s1563 = scalar_lea.vmem %s1356, %s1562
                // While loop
                $region74: #{_lambda_.12} parent=65 // loop_pre_header
                  _
                $region75: #{_lambda_.12} parent=65 // loop_header
                  %s1565 = sphi 0, %s1567
                  %p1566 = scmp.ge.s32.totalorder %s1565, %s1558
                  %s1570 = sphi 0, %s1577
                  %s1571 = sphi %s1561, %s1580
                  %s1572 = sphi %s1563, %s1581
                $region76: #{_lambda_.12} parent=65 // loop_header_branch
                  %1569 = sbr.rel (%p1566) target = $region80
                $region77: #{_lambda_.12} parent=65 // loop_body
                  %v1573 = vld [vmem:[%s1571] sm:%s1475]
                  %1574 = vst [vmem:[%s1572] sm:%s1475] %v1573
                  %s1575 = sadd.s32 1, %s1570
                  %p1576 = scmp.ge.s32.totalorder %s1575, %s1558
                  %s1577 = scalar_select %p1576, 0, %s1575
                  %s1578 = smul.u32 %s1577, 4
                  %s1579 = smul.u32 %s1577, 4
                  %s1580 = scalar_lea.vmem %s1561, %s1578 [#allocation2]
                  %s1581 = scalar_lea.vmem %s1563, %s1579
                $region78: #{_lambda_.12} parent=65 // loop_footer
                  %s1567 = sadd.s32 %s1565, 1
                $region79: #{_lambda_.12} parent=65 // loop_footer_branch
                  %1564 = sbr.rel target = $region75
                $region80: #{_lambda_.12} parent=65 // loop_exit
                  _
              $region66: #{_lambda_.12} parent=43 // pred_fallthru
                _
            $region44: #{_lambda_.12} parent=39 // pred_fallthru
              _
            // Predicated region
            $region45: #{_lambda_.12} parent=39 // pred_check
              _
            $region46: #{_lambda_.12} parent=39 // pred_check_branch
              %1363 = sbr.rel (0) target = $region48
            $region47: #{_lambda_.12} parent=39 // pred_region
              %s1365 = ssub.s32 16, 1
              %s1366 = sshrl.u32 %s1349, 5
              // While loop
              $region49: #{_lambda_.12} parent=47 // loop_pre_header
                _
              $region50: #{_lambda_.12} parent=47 // loop_header
                %s1368 = sphi 0, %s1370
                %p1369 = scmp.ge.s32.totalorder %s1368, %s1366
                %s1373 = sphi 0, %s1442
                %s1374 = sphi %s1342, %s1445
                %s1375 = sphi %s1356, %s1446
              $region51: #{_lambda_.12} parent=47 // loop_header_branch
                %1372 = sbr.rel (%p1369) target = $region55
              $region52: #{_lambda_.12} parent=47 // loop_body
                %v1376 = vld [vmem:[%s1374] sm:%s1365]
                %1377 = vst [vmem:[%s1375] sm:%s1365] %v1376
                %v1378 = vld [vmem:[%s1374 + $0x4] sm:%s1365]
                %1379 = vst [vmem:[%s1375 + $0x4] sm:%s1365] %v1378
                %v1380 = vld [vmem:[%s1374 + $0x8] sm:%s1365]
                %1381 = vst [vmem:[%s1375 + $0x8] sm:%s1365] %v1380
                %v1382 = vld [vmem:[%s1374 + $0xc] sm:%s1365]
                %1383 = vst [vmem:[%s1375 + $0xc] sm:%s1365] %v1382
                %v1384 = vld [vmem:[%s1374 + $0x10] sm:%s1365]
                %1385 = vst [vmem:[%s1375 + $0x10] sm:%s1365] %v1384
                %v1386 = vld [vmem:[%s1374 + $0x14] sm:%s1365]
                %1387 = vst [vmem:[%s1375 + $0x14] sm:%s1365] %v1386
                %v1388 = vld [vmem:[%s1374 + $0x18] sm:%s1365]
                %1389 = vst [vmem:[%s1375 + $0x18] sm:%s1365] %v1388
                %v1390 = vld [vmem:[%s1374 + $0x1c] sm:%s1365]
                %1391 = vst [vmem:[%s1375 + $0x1c] sm:%s1365] %v1390
                %v1392 = vld [vmem:[%s1374 + $0x20] sm:%s1365]
                %1393 = vst [vmem:[%s1375 + $0x20] sm:%s1365] %v1392
                %v1394 = vld [vmem:[%s1374 + $0x24] sm:%s1365]
                %1395 = vst [vmem:[%s1375 + $0x24] sm:%s1365] %v1394
                %v1396 = vld [vmem:[%s1374 + $0x28] sm:%s1365]
                %1397 = vst [vmem:[%s1375 + $0x28] sm:%s1365] %v1396
                %v1398 = vld [vmem:[%s1374 + $0x2c] sm:%s1365]
                %1399 = vst [vmem:[%s1375 + $0x2c] sm:%s1365] %v1398
                %v1400 = vld [vmem:[%s1374 + $0x30] sm:%s1365]
                %1401 = vst [vmem:[%s1375 + $0x30] sm:%s1365] %v1400
                %v1402 = vld [vmem:[%s1374 + $0x34] sm:%s1365]
                %1403 = vst [vmem:[%s1375 + $0x34] sm:%s1365] %v1402
                %v1404 = vld [vmem:[%s1374 + $0x38] sm:%s1365]
                %1405 = vst [vmem:[%s1375 + $0x38] sm:%s1365] %v1404
                %v1406 = vld [vmem:[%s1374 + $0x3c] sm:%s1365]
                %1407 = vst [vmem:[%s1375 + $0x3c] sm:%s1365] %v1406
                %v1408 = vld [vmem:[%s1374 + $0x40] sm:%s1365]
                %1409 = vst [vmem:[%s1375 + $0x40] sm:%s1365] %v1408
                %v1410 = vld [vmem:[%s1374 + $0x44] sm:%s1365]
                %1411 = vst [vmem:[%s1375 + $0x44] sm:%s1365] %v1410
                %v1412 = vld [vmem:[%s1374 + $0x48] sm:%s1365]
                %1413 = vst [vmem:[%s1375 + $0x48] sm:%s1365] %v1412
                %v1414 = vld [vmem:[%s1374 + $0x4c] sm:%s1365]
                %1415 = vst [vmem:[%s1375 + $0x4c] sm:%s1365] %v1414
                %v1416 = vld [vmem:[%s1374 + $0x50] sm:%s1365]
                %1417 = vst [vmem:[%s1375 + $0x50] sm:%s1365] %v1416
                %v1418 = vld [vmem:[%s1374 + $0x54] sm:%s1365]
                %1419 = vst [vmem:[%s1375 + $0x54] sm:%s1365] %v1418
                %v1420 = vld [vmem:[%s1374 + $0x58] sm:%s1365]
                %1421 = vst [vmem:[%s1375 + $0x58] sm:%s1365] %v1420
                %v1422 = vld [vmem:[%s1374 + $0x5c] sm:%s1365]
                %1423 = vst [vmem:[%s1375 + $0x5c] sm:%s1365] %v1422
                %v1424 = vld [vmem:[%s1374 + $0x60] sm:%s1365]
                %1425 = vst [vmem:[%s1375 + $0x60] sm:%s1365] %v1424
                %v1426 = vld [vmem:[%s1374 + $0x64] sm:%s1365]
                %1427 = vst [vmem:[%s1375 + $0x64] sm:%s1365] %v1426
                %v1428 = vld [vmem:[%s1374 + $0x68] sm:%s1365]
                %1429 = vst [vmem:[%s1375 + $0x68] sm:%s1365] %v1428
                %v1430 = vld [vmem:[%s1374 + $0x6c] sm:%s1365]
                %1431 = vst [vmem:[%s1375 + $0x6c] sm:%s1365] %v1430
                %v1432 = vld [vmem:[%s1374 + $0x70] sm:%s1365]
                %1433 = vst [vmem:[%s1375 + $0x70] sm:%s1365] %v1432
                %v1434 = vld [vmem:[%s1374 + $0x74] sm:%s1365]
                %1435 = vst [vmem:[%s1375 + $0x74] sm:%s1365] %v1434
                %v1436 = vld [vmem:[%s1374 + $0x78] sm:%s1365]
                %1437 = vst [vmem:[%s1375 + $0x78] sm:%s1365] %v1436
                %v1438 = vld [vmem:[%s1374 + $0x7c] sm:%s1365]
                %1439 = vst [vmem:[%s1375 + $0x7c] sm:%s1365] %v1438
                %s1440 = sadd.s32 1, %s1373
                %p1441 = scmp.ge.s32.totalorder %s1440, %s1366
                %s1442 = scalar_select %p1441, 0, %s1440
                %s1443 = smul.u32 %s1442, 128
                %s1444 = smul.u32 %s1442, 128
                %s1445 = scalar_lea.vmem %s1342, %s1443 [#allocation2]
                %s1446 = scalar_lea.vmem %s1356, %s1444
              $region53: #{_lambda_.12} parent=47 // loop_footer
                %s1370 = sadd.s32 %s1368, 1
              $region54: #{_lambda_.12} parent=47 // loop_footer_branch
                %1367 = sbr.rel target = $region50
              $region55: #{_lambda_.12} parent=47 // loop_exit
                _
              %s1447 = sshrl.u32 %s1349, 5
              %s1448 = sand.u32 %s1349, 31
              %s1449 = smul.u32 %s1447, 32
              %s1450 = smul.u32 4, %s1449
              %s1451 = scalar_lea.vmem %s1342, %s1450 [#allocation2]
              %s1452 = smul.u32 4, %s1449
              %s1453 = scalar_lea.vmem %s1356, %s1452
              // While loop
              $region56: #{_lambda_.12} parent=47 // loop_pre_header
                _
              $region57: #{_lambda_.12} parent=47 // loop_header
                %s1455 = sphi 0, %s1457
                %p1456 = scmp.ge.s32.totalorder %s1455, %s1448
                %s1460 = sphi 0, %s1467
                %s1461 = sphi %s1451, %s1470
                %s1462 = sphi %s1453, %s1471
              $region58: #{_lambda_.12} parent=47 // loop_header_branch
                %1459 = sbr.rel (%p1456) target = $region62
              $region59: #{_lambda_.12} parent=47 // loop_body
                %v1463 = vld [vmem:[%s1461] sm:%s1365]
                %1464 = vst [vmem:[%s1462] sm:%s1365] %v1463
                %s1465 = sadd.s32 1, %s1460
                %p1466 = scmp.ge.s32.totalorder %s1465, %s1448
                %s1467 = scalar_select %p1466, 0, %s1465
                %s1468 = smul.u32 %s1467, 4
                %s1469 = smul.u32 %s1467, 4
                %s1470 = scalar_lea.vmem %s1451, %s1468 [#allocation2]
                %s1471 = scalar_lea.vmem %s1453, %s1469
              $region60: #{_lambda_.12} parent=47 // loop_footer
                %s1457 = sadd.s32 %s1455, 1
              $region61: #{_lambda_.12} parent=47 // loop_footer_branch
                %1454 = sbr.rel target = $region57
              $region62: #{_lambda_.12} parent=47 // loop_exit
                _
            $region48: #{_lambda_.12} parent=39 // pred_fallthru
              _
          $region40: #{_lambda_.12} parent=35 // pred_fallthru
            _
          %1582 = vnop
        $region36: #{_lambda_.12} parent=31 // pred_fallthru
          _
      $region32: #{_lambda_.12} parent=5 // pred_fallthru
        _
      %p1583 = scmp.le.s32.totalorder 2, %s9
      // Predicated region
      $region81: #{_lambda_.12} parent=5 // pred_check
        %p1584 = pneg %p1583
      $region82: #{_lambda_.12} parent=5 // pred_check_branch
        %1586 = sbr.rel (%p1584) target = $region84
      $region83: #{_lambda_.12} parent=5 // pred_region
        %s1587 = ssub.s32 %s9, 2
        // Predicated region
        $region85: #{_lambda_.12} parent=83 // pred_check
          %p1588 = pneg %p145
        $region86: #{_lambda_.12} parent=83 // pred_check_branch
          %1590 = sbr.rel (%p1588) target = $region88
        $region87: #{_lambda_.12} parent=83 // pred_region
          %s1591 = sand.u32 %s130, 1
          %s1592 = sand.u32 %s130, 1
          %s1593 = smul.addr %s1592, 256
          %s1594 = scalar_lea.vmem [#allocation2], %s1593
        $region88: #{_lambda_.12} parent=83 // pred_fallthru
          _
      $region84: #{_lambda_.12} parent=5 // pred_fallthru
        _
    $region6: #{_lambda_.12} parent=1 // loop_footer
      %s13 = sadd.s32 1, %s9
    $region7: #{_lambda_.12} parent=1 // loop_footer_branch
      %8 = sbr.rel target = $region3
    $region8: #{_lambda_.12} parent=1 // loop_exit
      _

// kernel: _lambda_.13
$region0: #{_lambda_.13}
  #allocation0 [shape = 'u32[]', space=smem, size = 0x4, offset = 0x4, fixed_abs, tag = 'smem constant byte address 0x4 - core index']
  #allocation1 [shape = 'u32[72,128]{1,0:T(1,128)}', space=vmem, size = 0x9000, scoped, tag = 'internal scratch']
  %s0 = inlined_call_operand.vmem [shape: bf16[1,200,256], index: 0, kind: input, shape index: {}]
  %s1 = inlined_call_operand.vmem [shape: bf16[1,256,128], index: 1, kind: input, shape index: {}]
  %s2 = inlined_call_operand.vmem [shape: f32[1,1,128], index: 2, kind: input, shape index: {}]
  %s3 = inlined_call_operand.vmem [shape: bf16[1,200,128], index: 3, kind: output, shape index: {}]
  %s4 = sld [smem:[#allocation0]]
  $region22: #{_lambda_.13} parent=0
    _
  %s6 = ssub.s32 1, %s4
  %s7 = scalar_select 0, %s6, %s4
  // Predicated region
  $region2: #{_lambda_.13} parent=0 // pred_check
    _
  $region3: #{_lambda_.13} parent=0 // pred_check_branch
    %9 = sbr.rel (0) target = $region5
  $region4: #{_lambda_.13} parent=0 // pred_region
    _
  $region5: #{_lambda_.13} parent=0 // pred_fallthru
    _
  // Predicated region
  $region6: #{_lambda_.13} parent=0 // pred_check
    _
  $region7: #{_lambda_.13} parent=0 // pred_check_branch
    %11 = sbr.rel (0) target = $region9
  $region8: #{_lambda_.13} parent=0 // pred_region
    _
  $region9: #{_lambda_.13} parent=0 // pred_fallthru
    _
  // Predicated region
  $region10: #{_lambda_.13} parent=0 // pred_check
    _
  $region11: #{_lambda_.13} parent=0 // pred_check_branch
    %13 = sbr.rel (0) target = $region13
  $region12: #{_lambda_.13} parent=0 // pred_region
    _
  $region13: #{_lambda_.13} parent=0 // pred_fallthru
    _
  %v14 = vld [vmem:[%s0] sm:$0xff]
  %v15 = vld [vmem:[%s0 + $0x8] sm:$0xff]
  %v16 = vld [vmem:[%s0 + $0x10] sm:$0xff]
  %v17 = vld [vmem:[%s0 + $0x18] sm:$0xff]
  %v18 = vld [vmem:[%s0 + $0x20] sm:$0xff]
  %v19 = vld [vmem:[%s0 + $0x28] sm:$0xff]
  %v20 = vld [vmem:[%s0 + $0x30] sm:$0xff]
  %v21 = vld [vmem:[%s0 + $0x38] sm:$0xff]
  %v22 = vld [vmem:[%s0 + $0x40] sm:$0xff]
  %v23 = vld [vmem:[%s0 + $0x48] sm:$0xff]
  %v24 = vld [vmem:[%s0 + $0x50] sm:$0xff]
  %v25 = vld [vmem:[%s0 + $0x58] sm:$0xff]
  %v26 = vld [vmem:[%s0 + $0x60] sm:$0xff]
  %v27 = vld [vmem:[%s0 + $0x68] sm:$0xff]
  %v28 = vld [vmem:[%s0 + $0x70] sm:$0xff]
  %v29 = vld [vmem:[%s0 + $0x78] sm:$0xff]
  %v30 = vld [vmem:[%s0 + $0x80] sm:$0xff]
  %v31 = vld [vmem:[%s0 + $0x88] sm:$0xff]
  %v32 = vld [vmem:[%s0 + $0x90] sm:$0xff]
  %v33 = vld [vmem:[%s0 + $0x98] sm:$0xff]
  %v34 = vld [vmem:[%s0 + $0xa0] sm:$0xff]
  %v35 = vld [vmem:[%s0 + $0xa8] sm:$0xff]
  %v36 = vld [vmem:[%s0 + $0xb0] sm:$0xff]
  %v37 = vld [vmem:[%s0 + $0xb8] sm:$0xff]
  %v38 = vld [vmem:[%s0 + $0xc0] sm:$0xff]
  %v39 = vld [vmem:[%s1] sm:$0xf]
  %v40 = vld [vmem:[%s1 + $0x4] sm:$0xf]
  %v41 = vld [vmem:[%s1 + $0x8] sm:$0xf]
  %v42 = vld [vmem:[%s1 + $0xc] sm:$0xf]
  %v43 = vld [vmem:[%s1 + $0x10] sm:$0xf]
  %v44 = vld [vmem:[%s1 + $0x14] sm:$0xf]
  %v45 = vld [vmem:[%s1 + $0x18] sm:$0xf]
  %v46 = vld [vmem:[%s1 + $0x1c] sm:$0xf]
  %v47 = vld [vmem:[%s1 + $0x20] sm:$0xf]
  %v48 = vld [vmem:[%s1 + $0x24] sm:$0xf]
  %v49 = vld [vmem:[%s1 + $0x28] sm:$0xf]
  %v50 = vld [vmem:[%s1 + $0x2c] sm:$0xf]
  %v51 = vld [vmem:[%s1 + $0x30] sm:$0xf]
  %v52 = vld [vmem:[%s1 + $0x34] sm:$0xf]
  %v53 = vld [vmem:[%s1 + $0x38] sm:$0xf]
  %v54 = vld [vmem:[%s1 + $0x3c] sm:$0xf]
  %v55 = vld [vmem:[%s1 + $0x40] sm:$0xf]
  %v56 = vld [vmem:[%s1 + $0x44] sm:$0xf]
  %v57 = vld [vmem:[%s1 + $0x48] sm:$0xf]
  %v58 = vld [vmem:[%s1 + $0x4c] sm:$0xf]
  %v59 = vld [vmem:[%s1 + $0x50] sm:$0xf]
  %v60 = vld [vmem:[%s1 + $0x54] sm:$0xf]
  %v61 = vld [vmem:[%s1 + $0x58] sm:$0xf]
  %v62 = vld [vmem:[%s1 + $0x5c] sm:$0xf]
  %v63 = vld [vmem:[%s1 + $0x60] sm:$0xf]
  %v64 = vld [vmem:[%s1 + $0x64] sm:$0xf]
  %v65 = vld [vmem:[%s1 + $0x68] sm:$0xf]
  %v66 = vld [vmem:[%s1 + $0x6c] sm:$0xf]
  %v67 = vld [vmem:[%s1 + $0x70] sm:$0xf]
  %v68 = vld [vmem:[%s1 + $0x74] sm:$0xf]
  %v69 = vld [vmem:[%s1 + $0x78] sm:$0xf]
  %v70 = vld [vmem:[%s1 + $0x7c] sm:$0xf]
  %v71 = vld [vmem:[%s2] sm:$0x1]
  %v73 = vperm.slane %v71, 0
  %v100 = vunpack.c.l.b16 %v14
  %v101 = vunpack.c.h.b16 %v14
  %v102 = vunpack.c.l.b16 %v15
  %v103 = vunpack.c.h.b16 %v15
  %v104 = vunpack.c.l.b16 %v16
  %v105 = vunpack.c.h.b16 %v16
  %v106 = vunpack.c.l.b16 %v17
  %v107 = vunpack.c.h.b16 %v17
  %v108 = vunpack.c.l.b16 %v18
  %v109 = vunpack.c.h.b16 %v18
  %v110 = vunpack.c.l.b16 %v19
  %v111 = vunpack.c.h.b16 %v19
  %v112 = vunpack.c.l.b16 %v20
  %v113 = vunpack.c.h.b16 %v20
  %v114 = vunpack.c.l.b16 %v21
  %v115 = vunpack.c.h.b16 %v21
  %v116 = vunpack.c.l.b16 %v22
  %v117 = vunpack.c.h.b16 %v22
  %v118 = vunpack.c.l.b16 %v23
  %v119 = vunpack.c.h.b16 %v23
  %v120 = vunpack.c.l.b16 %v24
  %v121 = vunpack.c.h.b16 %v24
  %v122 = vunpack.c.l.b16 %v25
  %v123 = vunpack.c.h.b16 %v25
  %v124 = vunpack.c.l.b16 %v26
  %v125 = vunpack.c.h.b16 %v26
  %v126 = vunpack.c.l.b16 %v27
  %v127 = vunpack.c.h.b16 %v27
  %v128 = vunpack.c.l.b16 %v28
  %v129 = vunpack.c.h.b16 %v28
  %v130 = vunpack.c.l.b16 %v29
  %v131 = vunpack.c.h.b16 %v29
  %v132 = vunpack.c.l.b16 %v30
  %v133 = vunpack.c.h.b16 %v30
  %v134 = vunpack.c.l.b16 %v31
  %v135 = vunpack.c.h.b16 %v31
  %v136 = vunpack.c.l.b16 %v32
  %v137 = vunpack.c.h.b16 %v32
  %v138 = vunpack.c.l.b16 %v33
  %v139 = vunpack.c.h.b16 %v33
  %v140 = vunpack.c.l.b16 %v34
  %v141 = vunpack.c.h.b16 %v34
  %v142 = vunpack.c.l.b16 %v35
  %v143 = vunpack.c.h.b16 %v35
  %v144 = vunpack.c.l.b16 %v36
  %v145 = vunpack.c.h.b16 %v36
  %v146 = vunpack.c.l.b16 %v37
  %v147 = vunpack.c.h.b16 %v37
  %v148 = vunpack.c.l.b16 %v38
  %v149 = vunpack.c.h.b16 %v38
  %v150 = vpack.c.b16 %v102, %v100
  %v151 = vpack.c.b16 %v103, %v101
  %v152 = vpack.c.b16 %v106, %v104
  %v153 = vpack.c.b16 %v107, %v105
  %v154 = vpack.c.b16 %v110, %v108
  %v155 = vpack.c.b16 %v111, %v109
  %v156 = vpack.c.b16 %v114, %v112
  %v157 = vpack.c.b16 %v115, %v113
  %v158 = vpack.c.b16 %v118, %v116
  %v159 = vpack.c.b16 %v119, %v117
  %v160 = vpack.c.b16 %v122, %v120
  %v161 = vpack.c.b16 %v123, %v121
  %v162 = vpack.c.b16 %v126, %v124
  %v163 = vpack.c.b16 %v127, %v125
  %v164 = vpack.c.b16 %v130, %v128
  %v165 = vpack.c.b16 %v131, %v129
  %v166 = vpack.c.b16 %v134, %v132
  %v167 = vpack.c.b16 %v135, %v133
  %v168 = vpack.c.b16 %v138, %v136
  %v169 = vpack.c.b16 %v139, %v137
  %v170 = vpack.c.b16 %v142, %v140
  %v171 = vpack.c.b16 %v143, %v141
  %v172 = vpack.c.b16 %v146, %v144
  %v173 = vpack.c.b16 %v147, %v145
  %v174 = vpack.c.b16 %v148, %v148
  %v175 = vpack.c.b16 %v149, %v149
  %v234 = vunpack.c.l.b16 %v39
  %v235 = vunpack.c.l.b16 %v40
  %v236 = vunpack.c.l.b16 %v41
  %v237 = vunpack.c.l.b16 %v42
  %v238 = vunpack.c.l.b16 %v43
  %v239 = vunpack.c.l.b16 %v44
  %v240 = vunpack.c.l.b16 %v45
  %v241 = vunpack.c.l.b16 %v46
  %v242 = vunpack.c.l.b16 %v47
  %v243 = vunpack.c.l.b16 %v48
  %v244 = vunpack.c.l.b16 %v49
  %v245 = vunpack.c.l.b16 %v50
  %v246 = vunpack.c.l.b16 %v51
  %v247 = vunpack.c.l.b16 %v52
  %v248 = vunpack.c.l.b16 %v53
  %v249 = vunpack.c.l.b16 %v54
  %v250 = vunpack.c.l.b16 %v55
  %v251 = vunpack.c.l.b16 %v56
  %v252 = vunpack.c.l.b16 %v57
  %v253 = vunpack.c.l.b16 %v58
  %v254 = vunpack.c.l.b16 %v59
  %v255 = vunpack.c.l.b16 %v60
  %v256 = vunpack.c.l.b16 %v61
  %v257 = vunpack.c.l.b16 %v62
  %v258 = vunpack.c.l.b16 %v63
  %v259 = vunpack.c.l.b16 %v64
  %v260 = vunpack.c.l.b16 %v65
  %v261 = vunpack.c.l.b16 %v66
  %v262 = vunpack.c.l.b16 %v67
  %v263 = vunpack.c.l.b16 %v68
  %v264 = vunpack.c.l.b16 %v69
  %v265 = vunpack.c.l.b16 %v70
  %v266 = vpack.c.b16 %v235, %v234
  %v267 = vpack.c.b16 %v237, %v236
  %v268 = vpack.c.b16 %v239, %v238
  %v269 = vpack.c.b16 %v241, %v240
  %v270 = vpack.c.b16 %v243, %v242
  %v271 = vpack.c.b16 %v245, %v244
  %v272 = vpack.c.b16 %v247, %v246
  %v273 = vpack.c.b16 %v249, %v248
  %v274 = vpack.c.b16 %v251, %v250
  %v275 = vpack.c.b16 %v253, %v252
  %v276 = vpack.c.b16 %v255, %v254
  %v277 = vpack.c.b16 %v257, %v256
  %v278 = vpack.c.b16 %v259, %v258
  %v279 = vpack.c.b16 %v261, %v260
  %v280 = vpack.c.b16 %v263, %v262
  %v281 = vpack.c.b16 %v265, %v264
  %298 = vmatpush.bf16.msra.mxu0 %v273
  %299 = vmatpush.bf16.msra.mxu0 %v272
  %300 = vmatpush.bf16.msra.mxu0 %v271
  %301 = vmatpush.bf16.msra.mxu0 %v270
  %302 = vmatpush.bf16.msra.mxu0 %v269
  %303 = vmatpush.bf16.msra.mxu0 %v268
  %304 = vmatpush.bf16.msra.mxu0 %v267
  %305 = vmatpush.bf16.msra.mxu0 %v266
  %306 = vmatmul.bf16.gmra.mxu0 %v150
  %v307 = vpop.f32.mrf.mxu0
  %v308 = vadd.f32 %v73, %v307
  %v309 = vpop.f32.mrf.mxu0
  %v310 = vadd.f32 %v73, %v309
  %311 = vmatmul.bf16.gmra.mxu0 %v152
  %v312 = vpop.f32.mrf.mxu0
  %v313 = vadd.f32 %v73, %v312
  %v314 = vpop.f32.mrf.mxu0
  %v315 = vadd.f32 %v73, %v314
  %316 = vmatmul.bf16.gmra.mxu0 %v154
  %v317 = vpop.f32.mrf.mxu0
  %v318 = vadd.f32 %v73, %v317
  %v319 = vpop.f32.mrf.mxu0
  %v320 = vadd.f32 %v73, %v319
  %321 = vmatmul.bf16.gmra.mxu0 %v156
  %v322 = vpop.f32.mrf.mxu0
  %v323 = vadd.f32 %v73, %v322
  %v324 = vpop.f32.mrf.mxu0
  %v325 = vadd.f32 %v73, %v324
  %326 = vmatmul.bf16.gmra.mxu0 %v158
  %v327 = vpop.f32.mrf.mxu0
  %v328 = vadd.f32 %v73, %v327
  %v329 = vpop.f32.mrf.mxu0
  %v330 = vadd.f32 %v73, %v329
  %331 = vmatmul.bf16.gmra.mxu0 %v160
  %v332 = vpop.f32.mrf.mxu0
  %v333 = vadd.f32 %v73, %v332
  %v334 = vpop.f32.mrf.mxu0
  %v335 = vadd.f32 %v73, %v334
  %336 = vmatmul.bf16.gmra.mxu0 %v162
  %v337 = vpop.f32.mrf.mxu0
  %v338 = vadd.f32 %v73, %v337
  %v339 = vpop.f32.mrf.mxu0
  %v340 = vadd.f32 %v73, %v339
  %341 = vmatmul.bf16.gmra.mxu0 %v164
  %v342 = vpop.f32.mrf.mxu0
  %v343 = vadd.f32 %v73, %v342
  %v344 = vpop.f32.mrf.mxu0
  %v345 = vadd.f32 %v73, %v344
  %346 = vmatmul.bf16.gmra.mxu0 %v166
  %v347 = vpop.f32.mrf.mxu0
  %v348 = vadd.f32 %v73, %v347
  %v349 = vpop.f32.mrf.mxu0
  %v350 = vadd.f32 %v73, %v349
  %351 = vmatmul.bf16.gmra.mxu0 %v168
  %v352 = vpop.f32.mrf.mxu0
  %v353 = vadd.f32 %v73, %v352
  %v354 = vpop.f32.mrf.mxu0
  %v355 = vadd.f32 %v73, %v354
  %356 = vmatmul.bf16.gmra.mxu0 %v170
  %v357 = vpop.f32.mrf.mxu0
  %v358 = vadd.f32 %v73, %v357
  %v359 = vpop.f32.mrf.mxu0
  %v360 = vadd.f32 %v73, %v359
  %361 = vmatmul.bf16.gmra.mxu0 %v172
  %v362 = vpop.f32.mrf.mxu0
  %v363 = vadd.f32 %v73, %v362
  %v364 = vpop.f32.mrf.mxu0
  %v365 = vadd.f32 %v73, %v364
  %366 = vmatmul.bf16.gmra.mxu0 %v174
  %v367 = vpop.f32.mrf.mxu0
  %v368 = vadd.f32 %v73, %v367
  %v369 = vpop.f32.mrf.mxu0
  %370 = vdwg.mxu0
  %371 = vmatpush.bf16.msra.mxu0 %v281
  %372 = vmatpush.bf16.msra.mxu0 %v280
  %373 = vmatpush.bf16.msra.mxu0 %v279
  %374 = vmatpush.bf16.msra.mxu0 %v278
  %375 = vmatpush.bf16.msra.mxu0 %v277
  %376 = vmatpush.bf16.msra.mxu0 %v276
  %377 = vmatpush.bf16.msra.mxu0 %v275
  %378 = vmatpush.bf16.msra.mxu0 %v274
  %379 = vmatmul.bf16.gmra.mxu0 %v151
  %v380 = vpop.f32.mrf.mxu0
  %v381 = vadd.f32 %v308, %v380
  %v382 = vpop.f32.mrf.mxu0
  %v383 = vadd.f32 %v310, %v382
  %384 = vmatmul.bf16.gmra.mxu0 %v153
  %v385 = vpop.f32.mrf.mxu0
  %v386 = vadd.f32 %v313, %v385
  %v387 = vpop.f32.mrf.mxu0
  %v388 = vadd.f32 %v315, %v387
  %389 = vmatmul.bf16.gmra.mxu0 %v155
  %v390 = vpop.f32.mrf.mxu0
  %v391 = vadd.f32 %v318, %v390
  %v392 = vpop.f32.mrf.mxu0
  %v393 = vadd.f32 %v320, %v392
  %394 = vmatmul.bf16.gmra.mxu0 %v157
  %v395 = vpop.f32.mrf.mxu0
  %v396 = vadd.f32 %v323, %v395
  %v397 = vpop.f32.mrf.mxu0
  %v398 = vadd.f32 %v325, %v397
  %399 = vmatmul.bf16.gmra.mxu0 %v159
  %v400 = vpop.f32.mrf.mxu0
  %v401 = vadd.f32 %v328, %v400
  %v402 = vpop.f32.mrf.mxu0
  %v403 = vadd.f32 %v330, %v402
  %404 = vmatmul.bf16.gmra.mxu0 %v161
  %v405 = vpop.f32.mrf.mxu0
  %v406 = vadd.f32 %v333, %v405
  %v407 = vpop.f32.mrf.mxu0
  %v408 = vadd.f32 %v335, %v407
  %409 = vmatmul.bf16.gmra.mxu0 %v163
  %v410 = vpop.f32.mrf.mxu0
  %v411 = vadd.f32 %v338, %v410
  %v412 = vpop.f32.mrf.mxu0
  %v413 = vadd.f32 %v340, %v412
  %414 = vmatmul.bf16.gmra.mxu0 %v165
  %v415 = vpop.f32.mrf.mxu0
  %v416 = vadd.f32 %v343, %v415
  %v417 = vpop.f32.mrf.mxu0
  %v418 = vadd.f32 %v345, %v417
  %419 = vmatmul.bf16.gmra.mxu0 %v167
  %v420 = vpop.f32.mrf.mxu0
  %v421 = vadd.f32 %v348, %v420
  %v422 = vpop.f32.mrf.mxu0
  %v423 = vadd.f32 %v350, %v422
  %424 = vmatmul.bf16.gmra.mxu0 %v169
  %v425 = vpop.f32.mrf.mxu0
  %v426 = vadd.f32 %v353, %v425
  %v427 = vpop.f32.mrf.mxu0
  %v428 = vadd.f32 %v355, %v427
  %429 = vmatmul.bf16.gmra.mxu0 %v171
  %v430 = vpop.f32.mrf.mxu0
  %v431 = vadd.f32 %v358, %v430
  %v432 = vpop.f32.mrf.mxu0
  %v433 = vadd.f32 %v360, %v432
  %434 = vmatmul.bf16.gmra.mxu0 %v173
  %v435 = vpop.f32.mrf.mxu0
  %v436 = vadd.f32 %v363, %v435
  %v437 = vpop.f32.mrf.mxu0
  %v438 = vadd.f32 %v365, %v437
  %439 = vmatmul.bf16.gmra.mxu0 %v175
  %v440 = vpop.f32.mrf.mxu0
  %v441 = vadd.f32 %v368, %v440
  %v442 = vpop.f32.mrf.mxu0
  %443 = vdwg.mxu0
  %v444 = vmax.f32 %v381, 0.0
  %v445 = vmax.f32 %v383, 0.0
  %v446 = vmax.f32 %v386, 0.0
  %v447 = vmax.f32 %v388, 0.0
  %v448 = vmax.f32 %v391, 0.0
  %v449 = vmax.f32 %v393, 0.0
  %v450 = vmax.f32 %v396, 0.0
  %v451 = vmax.f32 %v398, 0.0
  %v452 = vmax.f32 %v401, 0.0
  %v453 = vmax.f32 %v403, 0.0
  %v454 = vmax.f32 %v406, 0.0
  %v455 = vmax.f32 %v408, 0.0
  %v456 = vmax.f32 %v411, 0.0
  %v457 = vmax.f32 %v413, 0.0
  %v458 = vmax.f32 %v416, 0.0
  %v459 = vmax.f32 %v418, 0.0
  %v460 = vmax.f32 %v421, 0.0
  %v461 = vmax.f32 %v423, 0.0
  %v462 = vmax.f32 %v426, 0.0
  %v463 = vmax.f32 %v428, 0.0
  %v464 = vmax.f32 %v431, 0.0
  %v465 = vmax.f32 %v433, 0.0
  %v466 = vmax.f32 %v436, 0.0
  %v467 = vmax.f32 %v438, 0.0
  %v468 = vmax.f32 %v441, 0.0
  %v469 = vpack.c.bf16 %v444, %v444
  %v470 = vpack.c.bf16 %v445, %v445
  %v471 = vpack.c.bf16 %v446, %v446
  %v472 = vpack.c.bf16 %v447, %v447
  %v473 = vpack.c.bf16 %v448, %v448
  %v474 = vpack.c.bf16 %v449, %v449
  %v475 = vpack.c.bf16 %v450, %v450
  %v476 = vpack.c.bf16 %v451, %v451
  %v477 = vpack.c.bf16 %v452, %v452
  %v478 = vpack.c.bf16 %v453, %v453
  %v479 = vpack.c.bf16 %v454, %v454
  %v480 = vpack.c.bf16 %v455, %v455
  %v481 = vpack.c.bf16 %v456, %v456
  %v482 = vpack.c.bf16 %v457, %v457
  %v483 = vpack.c.bf16 %v458, %v458
  %v484 = vpack.c.bf16 %v459, %v459
  %v485 = vpack.c.bf16 %v460, %v460
  %v486 = vpack.c.bf16 %v461, %v461
  %v487 = vpack.c.bf16 %v462, %v462
  %v488 = vpack.c.bf16 %v463, %v463
  %v489 = vpack.c.bf16 %v464, %v464
  %v490 = vpack.c.bf16 %v465, %v465
  %v491 = vpack.c.bf16 %v466, %v466
  %v492 = vpack.c.bf16 %v467, %v467
  %v493 = vpack.c.bf16 %v468, %v468
  %494 = vst [vmem:[%s3] sm:$0xf] %v469
  %495 = vst [vmem:[%s3 + $0x4] sm:$0xf] %v470
  %496 = vst [vmem:[%s3 + $0x8] sm:$0xf] %v471
  %497 = vst [vmem:[%s3 + $0xc] sm:$0xf] %v472
  %498 = vst [vmem:[%s3 + $0x10] sm:$0xf] %v473
  %499 = vst [vmem:[%s3 + $0x14] sm:$0xf] %v474
  %500 = vst [vmem:[%s3 + $0x18] sm:$0xf] %v475
  %501 = vst [vmem:[%s3 + $0x1c] sm:$0xf] %v476
  %502 = vst [vmem:[%s3 + $0x20] sm:$0xf] %v477
  %503 = vst [vmem:[%s3 + $0x24] sm:$0xf] %v478
  %504 = vst [vmem:[%s3 + $0x28] sm:$0xf] %v479
  %505 = vst [vmem:[%s3 + $0x2c] sm:$0xf] %v480
  %506 = vst [vmem:[%s3 + $0x30] sm:$0xf] %v481
  %507 = vst [vmem:[%s3 + $0x34] sm:$0xf] %v482
  %508 = vst [vmem:[%s3 + $0x38] sm:$0xf] %v483
  %509 = vst [vmem:[%s3 + $0x3c] sm:$0xf] %v484
  %510 = vst [vmem:[%s3 + $0x40] sm:$0xf] %v485
  %511 = vst [vmem:[%s3 + $0x44] sm:$0xf] %v486
  %512 = vst [vmem:[%s3 + $0x48] sm:$0xf] %v487
  %513 = vst [vmem:[%s3 + $0x4c] sm:$0xf] %v488
  %514 = vst [vmem:[%s3 + $0x50] sm:$0xf] %v489
  %515 = vst [vmem:[%s3 + $0x54] sm:$0xf] %v490
  %516 = vst [vmem:[%s3 + $0x58] sm:$0xf] %v491
  %517 = vst [vmem:[%s3 + $0x5c] sm:$0xf] %v492
  %518 = vst [vmem:[%s3 + $0x60] sm:$0xf] %v493
  // Predicated region
  $region14: #{_lambda_.13} parent=0 // pred_check
    _
  $region15: #{_lambda_.13} parent=0 // pred_check_branch
    %520 = sbr.rel (0) target = $region17
  $region16: #{_lambda_.13} parent=0 // pred_region
    _
  $region17: #{_lambda_.13} parent=0 // pred_fallthru
    _
  // Predicated region
  $region18: #{_lambda_.13} parent=0 // pred_check
    _
  $region19: #{_lambda_.13} parent=0 // pred_check_branch
    %522 = sbr.rel (0) target = $region21
  $region20: #{_lambda_.13} parent=0 // pred_region
    _
  $region21: #{_lambda_.13} parent=0 // pred_fallthru
    _

// kernel: _lambda_.14
$region0: #{_lambda_.14}
  #allocation0 [shape = 'u32[]', space=smem, size = 0x4, offset = 0x4, fixed_abs, tag = 'smem constant byte address 0x4 - core index']
  #allocation1 [shape = 'u32[72,128]{1,0:T(1,128)}', space=vmem, size = 0x9000, scoped, tag = 'internal scratch']
  %s0 = inlined_call_operand.vmem [shape: bf16[3,128,256], index: 0, kind: input, shape index: {}]
  %s1 = inlined_call_operand.vmem [shape: bf16[3,256,128], index: 1, kind: input, shape index: {}]
  %s2 = inlined_call_operand.vmem [shape: f32[3,1,128], index: 2, kind: input, shape index: {}]
  %s3 = inlined_call_operand.vmem [shape: bf16[3,128,128], index: 3, kind: output, shape index: {}]
  %s4 = sld [smem:[#allocation0]]
  $region45: #{_lambda_.14} parent=0
    _
  %s6 = ssub.s32 1, %s4
  %s7 = scalar_select 0, %s6, %s4
  loop: start=0, step=1, limit=5
  $region2: #{_lambda_.14} parent=0 // loop_pre_header
    _
  $region3: #{_lambda_.14} parent=0 // loop_header
    %s9 = sphi 0, %s13
    %p10 = scmp.ge.s32.totalorder %s9, 5
    %s16 = sphi 0, %s35
    %s17 = sphi 0, %s31
    %s18 = sphi 0, %s27
    %s19 = sphi 0, %s16
    %s20 = sphi 0, %s17
    %s21 = sphi 0, %s18
    %s22 = sphi 0, %s19
    %s23 = sphi 0, %s20
    %s24 = sphi 0, %s21
    %s40 = sphi 0, %s42
    %s43 = sphi 0, %s40
    %s44 = sphi 0, %s43
    %s60 = sphi 0, %s44
    %s68 = sphi 0, %s70
    %s71 = sphi 0, %s68
    %s72 = sphi 0, %s71
    %s88 = sphi 0, %s72
    %s96 = sphi 0, %s98
    %s99 = sphi 0, %s96
    %s100 = sphi 0, %s99
    %s116 = sphi 0, %s100
    %s126 = sphi 0, %s128
    %s129 = sphi 0, %s126
    %s130 = sphi 0, %s129
    %s146 = sphi 0, %s130
  $region4: #{_lambda_.14} parent=0 // loop_header_branch
    %12 = sbr.rel (%p10) target = $region8
  $region5: #{_lambda_.14} parent=0 // loop_body
    %s14 = ssub.s32 %s9, 1
    %s15 = ssub.s32 %s9, 2
    %s25 = sadd.s32 1, %s18
    %p26 = scmp.ge.s32.totalorder %s25, 1
    %s27 = scalar_select %p26, 0, %s25
    %s28 = sadd.s32 1, %s17
    %s29 = scalar_select %p26, %s28, %s17
    %p30 = scmp.ge.s32.totalorder %s29, 1
    %s31 = scalar_select %p30, 0, %s29
    %s32 = sadd.s32 1, %s16
    %s33 = scalar_select %p30, %s32, %s16
    %p34 = scmp.ge.s32.totalorder %s33, 3
    %s35 = scalar_select %p34, 0, %s33
    %s36 = ssub.s32 %s16, %s35
    %s37 = ssub.s32 %s17, %s31
    %s38 = sor.u32 %s36, %s37
    %p39 = scmp.eq.s32.totalorder %s38, 0
    %s41 = sadd.s32 %s40, 1
    %s42 = scalar_select %p39, %s40, %s41
    %p45 = pneg %p39
    %p46 = scmp.eq.s32.totalorder %s9, 2
    %p47 = por %p45, %p46
    %p48 = scmp.ne.s32.totalorder %s40, %s43
    %p49 = scmp.eq.s32.totalorder %s9, 0
    %p50 = por %p48, %p49
    %p51 = scmp.ne.s32.totalorder %s40, %s43
    %p52 = scmp.eq.s32.totalorder %s14, 2
    %p53 = por %p51, %p52
    %p54 = scmp.ne.s32.totalorder %s43, %s44
    %p55 = scmp.eq.s32.totalorder %s14, 0
    %p56 = por %p54, %p55
    %p57 = scmp.ne.s32.totalorder %s43, %s44
    %p58 = scmp.eq.s32.totalorder %s15, 2
    %p59 = por %p57, %p58
    %p61 = scmp.ne.s32.totalorder %s44, %s60
    %p62 = scmp.eq.s32.totalorder %s15, 0
    %p63 = por %p61, %p62
    %s64 = ssub.s32 %s16, %s35
    %s65 = ssub.s32 %s18, %s27
    %s66 = sor.u32 %s64, %s65
    %p67 = scmp.eq.s32.totalorder %s66, 0
    %s69 = sadd.s32 %s68, 1
    %s70 = scalar_select %p67, %s68, %s69
    %p73 = pneg %p67
    %p74 = scmp.eq.s32.totalorder %s9, 2
    %p75 = por %p73, %p74
    %p76 = scmp.ne.s32.totalorder %s68, %s71
    %p77 = scmp.eq.s32.totalorder %s9, 0
    %p78 = por %p76, %p77
    %p79 = scmp.ne.s32.totalorder %s68, %s71
    %p80 = scmp.eq.s32.totalorder %s14, 2
    %p81 = por %p79, %p80
    %p82 = scmp.ne.s32.totalorder %s71, %s72
    %p83 = scmp.eq.s32.totalorder %s14, 0
    %p84 = por %p82, %p83
    %p85 = scmp.ne.s32.totalorder %s71, %s72
    %p86 = scmp.eq.s32.totalorder %s15, 2
    %p87 = por %p85, %p86
    %p89 = scmp.ne.s32.totalorder %s72, %s88
    %p90 = scmp.eq.s32.totalorder %s15, 0
    %p91 = por %p89, %p90
    %s92 = ssub.s32 %s16, %s35
    %s93 = ssub.s32 %s18, %s27
    %s94 = sor.u32 %s92, %s93
    %p95 = scmp.eq.s32.totalorder %s94, 0
    %s97 = sadd.s32 %s96, 1
    %s98 = scalar_select %p95, %s96, %s97
    %p101 = pneg %p95
    %p102 = scmp.eq.s32.totalorder %s9, 2
    %p103 = por %p101, %p102
    %p104 = scmp.ne.s32.totalorder %s96, %s99
    %p105 = scmp.eq.s32.totalorder %s9, 0
    %p106 = por %p104, %p105
    %p107 = scmp.ne.s32.totalorder %s96, %s99
    %p108 = scmp.eq.s32.totalorder %s14, 2
    %p109 = por %p107, %p108
    %p110 = scmp.ne.s32.totalorder %s99, %s100
    %p111 = scmp.eq.s32.totalorder %s14, 0
    %p112 = por %p110, %p111
    %p113 = scmp.ne.s32.totalorder %s99, %s100
    %p114 = scmp.eq.s32.totalorder %s15, 2
    %p115 = por %p113, %p114
    %p117 = scmp.ne.s32.totalorder %s100, %s116
    %p118 = scmp.eq.s32.totalorder %s15, 0
    %p119 = por %p117, %p118
    %s120 = ssub.s32 %s16, %s35
    %s121 = ssub.s32 %s17, %s31
    %s122 = sor.u32 %s120, %s121
    %s123 = ssub.s32 %s18, %s27
    %s124 = sor.u32 %s122, %s123
    %p125 = scmp.eq.s32.totalorder %s124, 0
    %s127 = sadd.s32 %s126, 1
    %s128 = scalar_select %p125, %s126, %s127
    %p131 = pneg %p125
    %p132 = scmp.eq.s32.totalorder %s9, 2
    %p133 = por %p131, %p132
    %p134 = scmp.ne.s32.totalorder %s126, %s129
    %p135 = scmp.eq.s32.totalorder %s9, 0
    %p136 = por %p134, %p135
    %p137 = scmp.ne.s32.totalorder %s126, %s129
    %p138 = scmp.eq.s32.totalorder %s14, 2
    %p139 = por %p137, %p138
    %p140 = scmp.ne.s32.totalorder %s129, %s130
    %p141 = scmp.eq.s32.totalorder %s14, 0
    %p142 = por %p140, %p141
    %p143 = scmp.ne.s32.totalorder %s129, %s130
    %p144 = scmp.eq.s32.totalorder %s15, 2
    %p145 = por %p143, %p144
    %p147 = scmp.ne.s32.totalorder %s130, %s146
    %p148 = scmp.eq.s32.totalorder %s15, 0
    %p149 = por %p147, %p148
    %p150 = scmp.le.s32.totalorder 1, %s9
    %p151 = scmp.lt.s32.totalorder %s9, 4
    %p152 = pnand %p150, %p151
    %p153 = pneg %p152
    // Predicated region
    $region9: #{_lambda_.14} parent=5 // pred_check
      _
    $region10: #{_lambda_.14} parent=5 // pred_check_branch
      %155 = sbr.rel (%p152) target = $region12
    $region11: #{_lambda_.14} parent=5 // pred_region
      %s156 = ssub.s32 %s9, 1
    $region12: #{_lambda_.14} parent=5 // pred_fallthru
      _
    %p157 = scmp.lt.s32.totalorder %s9, 3
    // Predicated region
    $region13: #{_lambda_.14} parent=5 // pred_check
      %p158 = pneg %p157
    $region14: #{_lambda_.14} parent=5 // pred_check_branch
      %160 = sbr.rel (%p158) target = $region16
    $region15: #{_lambda_.14} parent=5 // pred_region
      // Predicated region
      $region17: #{_lambda_.14} parent=15 // pred_check
        %p161 = pneg %p50
      $region18: #{_lambda_.14} parent=15 // pred_check_branch
        %163 = sbr.rel (%p161) target = $region20
      $region19: #{_lambda_.14} parent=15 // pred_region
        %s164 = smul.u32 16, %s17
        %p165 = scmp.lt.s32.totalorder %s16, 2
        %s166 = scalar_select %p165, %s16, 2
        %p167 = scmp.lt.s32.totalorder %s164, 15
        %s168 = scalar_select %p167, %s164, 15
        %s169 = smul.addr %s168, 2
        %s170 = smul.addr %s166, 32
        %s171 = sadd.s32 %s169, %s170
        %s172 = smul.addr %s171, 4
        %s173 = scalar_lea.vmem %s0, %s172
        %s174 = smul.u32 16, %s17
      $region20: #{_lambda_.14} parent=15 // pred_fallthru
        _
      // Predicated region
      $region21: #{_lambda_.14} parent=15 // pred_check
        %p175 = pneg %p78
      $region22: #{_lambda_.14} parent=15 // pred_check_branch
        %177 = sbr.rel (%p175) target = $region24
      $region23: #{_lambda_.14} parent=15 // pred_region
        %p178 = scmp.lt.s32.totalorder %s16, 2
        %s179 = scalar_select %p178, %s16, 2
        %p180 = scmp.lt.s32.totalorder %s18, 0
        %s181 = scalar_select %p180, %s18, 0
        %s182 = smul.addr %s179, 32
        %s183 = sadd.s32 %s181, %s182
        %s184 = smul.addr %s183, 4
        %s185 = scalar_lea.vmem %s1, %s184
      $region24: #{_lambda_.14} parent=15 // pred_fallthru
        _
      // Predicated region
      $region25: #{_lambda_.14} parent=15 // pred_check
        %p186 = pneg %p106
      $region26: #{_lambda_.14} parent=15 // pred_check_branch
        %188 = sbr.rel (%p186) target = $region28
      $region27: #{_lambda_.14} parent=15 // pred_region
        %p189 = scmp.lt.s32.totalorder %s16, 2
        %s190 = scalar_select %p189, %s16, 2
        %p191 = scmp.lt.s32.totalorder %s18, 0
        %s192 = scalar_select %p191, %s18, 0
        %s193 = sadd.s32 %s192, %s190
        %s194 = scalar_lea.vmem %s2, %s193
      $region28: #{_lambda_.14} parent=15 // pred_fallthru
        _
    $region16: #{_lambda_.14} parent=5 // pred_fallthru
      _
    %p195 = scmp.le.s32.totalorder 1, %s9
    %p196 = scmp.lt.s32.totalorder %s9, 4
    %p197 = pnand %p195, %p196
    %p198 = pneg %p197
    // Predicated region
    $region29: #{_lambda_.14} parent=5 // pred_check
      _
    $region30: #{_lambda_.14} parent=5 // pred_check_branch
      %200 = sbr.rel (%p197) target = $region32
    $region31: #{_lambda_.14} parent=5 // pred_region
      %s201 = ssub.s32 %s9, 1
      %s202 = smul.u32 16, %s20
      %p203 = scmp.lt.s32.totalorder %s19, 2
      %s204 = scalar_select %p203, %s19, 2
      %p205 = scmp.lt.s32.totalorder %s202, 15
      %s206 = scalar_select %p205, %s202, 15
      %s207 = smul.addr %s206, 2
      %s208 = smul.addr %s204, 32
      %s209 = sadd.s32 %s207, %s208
      %s210 = smul.addr %s209, 4
      %s211 = scalar_lea.vmem %s0, %s210
      %p212 = pneg %p56
      %p213 = pneg %p53
      %p214 = scmp.lt.s32.totalorder %s19, 2
      %s215 = scalar_select %p214, %s19, 2
      %p216 = scmp.lt.s32.totalorder %s21, 0
      %s217 = scalar_select %p216, %s21, 0
      %s218 = smul.addr %s215, 32
      %s219 = sadd.s32 %s217, %s218
      %s220 = smul.addr %s219, 4
      %s221 = scalar_lea.vmem %s1, %s220
      %p222 = pneg %p84
      %p223 = pneg %p81
      %p224 = scmp.lt.s32.totalorder %s19, 2
      %s225 = scalar_select %p224, %s19, 2
      %p226 = scmp.lt.s32.totalorder %s21, 0
      %s227 = scalar_select %p226, %s21, 0
      %s228 = sadd.s32 %s227, %s225
      %s229 = scalar_lea.vmem %s2, %s228
      %p230 = pneg %p112
      %p231 = pneg %p109
      %p232 = pneg %p142
      %p233 = pneg %p139
      %s234 = smul.u32 16, %s20
      %p235 = scmp.lt.s32.totalorder %s19, 2
      %s236 = scalar_select %p235, %s19, 2
      %p237 = scmp.lt.s32.totalorder %s234, 15
      %s238 = scalar_select %p237, %s234, 15
      %p239 = scmp.lt.s32.totalorder %s21, 0
      %s240 = scalar_select %p239, %s21, 0
      %s241 = sadd.s32 %s240, %s238
      %s242 = smul.addr %s236, 16
      %s243 = sadd.s32 %s241, %s242
      %s244 = smul.addr %s243, 4
      %s245 = scalar_lea.vmem %s3, %s244
      %s246 = smul.u32 16, %s20
      %p247 = scmp.lt.s32.totalorder %s19, 2
      %s248 = scalar_select %p247, %s19, 2
      %p249 = scmp.lt.s32.totalorder %s246, 15
      %s250 = scalar_select %p249, %s246, 15
      %s251 = smul.addr %s250, 2
      %s252 = smul.addr %s248, 32
      %s253 = sadd.s32 %s251, %s252
      %s254 = smul.addr %s253, 4
      %s255 = scalar_lea.vmem %s0, %s254
      %s256 = smul.u32 16, %s20
      %p257 = scmp.lt.s32.totalorder %s19, 2
      %s258 = scalar_select %p257, %s19, 2
      %p259 = scmp.lt.s32.totalorder %s21, 0
      %s260 = scalar_select %p259, %s21, 0
      %s261 = smul.addr %s258, 32
      %s262 = sadd.s32 %s260, %s261
      %s263 = smul.addr %s262, 4
      %s264 = scalar_lea.vmem %s1, %s263
      %p265 = scmp.lt.s32.totalorder %s19, 2
      %s266 = scalar_select %p265, %s19, 2
      %p267 = scmp.lt.s32.totalorder %s21, 0
      %s268 = scalar_select %p267, %s21, 0
      %s269 = sadd.s32 %s268, %s266
      %s270 = scalar_lea.vmem %s2, %s269
      %s271 = smul.u32 16, %s20
      %p272 = scmp.lt.s32.totalorder %s19, 2
      %s273 = scalar_select %p272, %s19, 2
      %p274 = scmp.lt.s32.totalorder %s271, 15
      %s275 = scalar_select %p274, %s271, 15
      %p276 = scmp.lt.s32.totalorder %s21, 0
      %s277 = scalar_select %p276, %s21, 0
      %s278 = sadd.s32 %s277, %s275
      %s279 = smul.addr %s273, 16
      %s280 = sadd.s32 %s278, %s279
      %s281 = smul.addr %s280, 4
      %s282 = scalar_lea.vmem %s3, %s281
      %s283 = smul.u32 16, %s20
      %v284 = vld [vmem:[%s255] sm:$0xff]
      %v285 = vld [vmem:[%s255 + $0x8] sm:$0xff]
      %v286 = vld [vmem:[%s255 + $0x10] sm:$0xff]
      %v287 = vld [vmem:[%s255 + $0x18] sm:$0xff]
      %v288 = vld [vmem:[%s255 + $0x20] sm:$0xff]
      %v289 = vld [vmem:[%s255 + $0x28] sm:$0xff]
      %v290 = vld [vmem:[%s255 + $0x30] sm:$0xff]
      %v291 = vld [vmem:[%s255 + $0x38] sm:$0xff]
      %v292 = vld [vmem:[%s255 + $0x40] sm:$0xff]
      %v293 = vld [vmem:[%s255 + $0x48] sm:$0xff]
      %v294 = vld [vmem:[%s255 + $0x50] sm:$0xff]
      %v295 = vld [vmem:[%s255 + $0x58] sm:$0xff]
      %v296 = vld [vmem:[%s255 + $0x60] sm:$0xff]
      %v297 = vld [vmem:[%s255 + $0x68] sm:$0xff]
      %v298 = vld [vmem:[%s255 + $0x70] sm:$0xff]
      %v299 = vld [vmem:[%s255 + $0x78] sm:$0xff]
      %v300 = vld [vmem:[%s264] sm:$0xf]
      %v301 = vld [vmem:[%s264 + $0x4] sm:$0xf]
      %v302 = vld [vmem:[%s264 + $0x8] sm:$0xf]
      %v303 = vld [vmem:[%s264 + $0xc] sm:$0xf]
      %v304 = vld [vmem:[%s264 + $0x10] sm:$0xf]
      %v305 = vld [vmem:[%s264 + $0x14] sm:$0xf]
      %v306 = vld [vmem:[%s264 + $0x18] sm:$0xf]
      %v307 = vld [vmem:[%s264 + $0x1c] sm:$0xf]
      %v308 = vld [vmem:[%s264 + $0x20] sm:$0xf]
      %v309 = vld [vmem:[%s264 + $0x24] sm:$0xf]
      %v310 = vld [vmem:[%s264 + $0x28] sm:$0xf]
      %v311 = vld [vmem:[%s264 + $0x2c] sm:$0xf]
      %v312 = vld [vmem:[%s264 + $0x30] sm:$0xf]
      %v313 = vld [vmem:[%s264 + $0x34] sm:$0xf]
      %v314 = vld [vmem:[%s264 + $0x38] sm:$0xf]
      %v315 = vld [vmem:[%s264 + $0x3c] sm:$0xf]
      %v316 = vld [vmem:[%s264 + $0x40] sm:$0xf]
      %v317 = vld [vmem:[%s264 + $0x44] sm:$0xf]
      %v318 = vld [vmem:[%s264 + $0x48] sm:$0xf]
      %v319 = vld [vmem:[%s264 + $0x4c] sm:$0xf]
      %v320 = vld [vmem:[%s264 + $0x50] sm:$0xf]
      %v321 = vld [vmem:[%s264 + $0x54] sm:$0xf]
      %v322 = vld [vmem:[%s264 + $0x58] sm:$0xf]
      %v323 = vld [vmem:[%s264 + $0x5c] sm:$0xf]
      %v324 = vld [vmem:[%s264 + $0x60] sm:$0xf]
      %v325 = vld [vmem:[%s264 + $0x64] sm:$0xf]
      %v326 = vld [vmem:[%s264 + $0x68] sm:$0xf]
      %v327 = vld [vmem:[%s264 + $0x6c] sm:$0xf]
      %v328 = vld [vmem:[%s264 + $0x70] sm:$0xf]
      %v329 = vld [vmem:[%s264 + $0x74] sm:$0xf]
      %v330 = vld [vmem:[%s264 + $0x78] sm:$0xf]
      %v331 = vld [vmem:[%s264 + $0x7c] sm:$0xf]
      %v332 = vld [vmem:[%s270] sm:$0x1]
      %v334 = vperm.slane %v332, 0
      %v352 = vunpack.c.l.b16 %v284
      %v353 = vunpack.c.h.b16 %v284
      %v354 = vunpack.c.l.b16 %v285
      %v355 = vunpack.c.h.b16 %v285
      %v356 = vunpack.c.l.b16 %v286
      %v357 = vunpack.c.h.b16 %v286
      %v358 = vunpack.c.l.b16 %v287
      %v359 = vunpack.c.h.b16 %v287
      %v360 = vunpack.c.l.b16 %v288
      %v361 = vunpack.c.h.b16 %v288
      %v362 = vunpack.c.l.b16 %v289
      %v363 = vunpack.c.h.b16 %v289
      %v364 = vunpack.c.l.b16 %v290
      %v365 = vunpack.c.h.b16 %v290
      %v366 = vunpack.c.l.b16 %v291
      %v367 = vunpack.c.h.b16 %v291
      %v368 = vunpack.c.l.b16 %v292
      %v369 = vunpack.c.h.b16 %v292
      %v370 = vunpack.c.l.b16 %v293
      %v371 = vunpack.c.h.b16 %v293
      %v372 = vunpack.c.l.b16 %v294
      %v373 = vunpack.c.h.b16 %v294
      %v374 = vunpack.c.l.b16 %v295
      %v375 = vunpack.c.h.b16 %v295
      %v376 = vunpack.c.l.b16 %v296
      %v377 = vunpack.c.h.b16 %v296
      %v378 = vunpack.c.l.b16 %v297
      %v379 = vunpack.c.h.b16 %v297
      %v380 = vunpack.c.l.b16 %v298
      %v381 = vunpack.c.h.b16 %v298
      %v382 = vunpack.c.l.b16 %v299
      %v383 = vunpack.c.h.b16 %v299
      %v384 = vpack.c.b16 %v354, %v352
      %v385 = vpack.c.b16 %v355, %v353
      %v386 = vpack.c.b16 %v358, %v356
      %v387 = vpack.c.b16 %v359, %v357
      %v388 = vpack.c.b16 %v362, %v360
      %v389 = vpack.c.b16 %v363, %v361
      %v390 = vpack.c.b16 %v366, %v364
      %v391 = vpack.c.b16 %v367, %v365
      %v392 = vpack.c.b16 %v370, %v368
      %v393 = vpack.c.b16 %v371, %v369
      %v394 = vpack.c.b16 %v374, %v372
      %v395 = vpack.c.b16 %v375, %v373
      %v396 = vpack.c.b16 %v378, %v376
      %v397 = vpack.c.b16 %v379, %v377
      %v398 = vpack.c.b16 %v382, %v380
      %v399 = vpack.c.b16 %v383, %v381
      %v448 = vunpack.c.l.b16 %v300
      %v449 = vunpack.c.l.b16 %v301
      %v450 = vunpack.c.l.b16 %v302
      %v451 = vunpack.c.l.b16 %v303
      %v452 = vunpack.c.l.b16 %v304
      %v453 = vunpack.c.l.b16 %v305
      %v454 = vunpack.c.l.b16 %v306
      %v455 = vunpack.c.l.b16 %v307
      %v456 = vunpack.c.l.b16 %v308
      %v457 = vunpack.c.l.b16 %v309
      %v458 = vunpack.c.l.b16 %v310
      %v459 = vunpack.c.l.b16 %v311
      %v460 = vunpack.c.l.b16 %v312
      %v461 = vunpack.c.l.b16 %v313
      %v462 = vunpack.c.l.b16 %v314
      %v463 = vunpack.c.l.b16 %v315
      %v464 = vunpack.c.l.b16 %v316
      %v465 = vunpack.c.l.b16 %v317
      %v466 = vunpack.c.l.b16 %v318
      %v467 = vunpack.c.l.b16 %v319
      %v468 = vunpack.c.l.b16 %v320
      %v469 = vunpack.c.l.b16 %v321
      %v470 = vunpack.c.l.b16 %v322
      %v471 = vunpack.c.l.b16 %v323
      %v472 = vunpack.c.l.b16 %v324
      %v473 = vunpack.c.l.b16 %v325
      %v474 = vunpack.c.l.b16 %v326
      %v475 = vunpack.c.l.b16 %v327
      %v476 = vunpack.c.l.b16 %v328
      %v477 = vunpack.c.l.b16 %v329
      %v478 = vunpack.c.l.b16 %v330
      %v479 = vunpack.c.l.b16 %v331
      %v480 = vpack.c.b16 %v449, %v448
      %v481 = vpack.c.b16 %v451, %v450
      %v482 = vpack.c.b16 %v453, %v452
      %v483 = vpack.c.b16 %v455, %v454
      %v484 = vpack.c.b16 %v457, %v456
      %v485 = vpack.c.b16 %v459, %v458
      %v486 = vpack.c.b16 %v461, %v460
      %v487 = vpack.c.b16 %v463, %v462
      %v488 = vpack.c.b16 %v465, %v464
      %v489 = vpack.c.b16 %v467, %v466
      %v490 = vpack.c.b16 %v469, %v468
      %v491 = vpack.c.b16 %v471, %v470
      %v492 = vpack.c.b16 %v473, %v472
      %v493 = vpack.c.b16 %v475, %v474
      %v494 = vpack.c.b16 %v477, %v476
      %v495 = vpack.c.b16 %v479, %v478
      %512 = vmatpush.bf16.msra.mxu0 %v487
      %513 = vmatpush.bf16.msra.mxu0 %v486
      %514 = vmatpush.bf16.msra.mxu0 %v485
      %515 = vmatpush.bf16.msra.mxu0 %v484
      %516 = vmatpush.bf16.msra.mxu0 %v483
      %517 = vmatpush.bf16.msra.mxu0 %v482
      %518 = vmatpush.bf16.msra.mxu0 %v481
      %519 = vmatpush.bf16.msra.mxu0 %v480
      %520 = vmatmul.bf16.gmra.mxu0 %v384
      %v521 = vpop.f32.mrf.mxu0
      %v522 = vadd.f32 %v334, %v521
      %v523 = vpop.f32.mrf.mxu0
      %v524 = vadd.f32 %v334, %v523
      %525 = vmatmul.bf16.gmra.mxu0 %v386
      %v526 = vpop.f32.mrf.mxu0
      %v527 = vadd.f32 %v334, %v526
      %v528 = vpop.f32.mrf.mxu0
      %v529 = vadd.f32 %v334, %v528
      %530 = vmatmul.bf16.gmra.mxu0 %v388
      %v531 = vpop.f32.mrf.mxu0
      %v532 = vadd.f32 %v334, %v531
      %v533 = vpop.f32.mrf.mxu0
      %v534 = vadd.f32 %v334, %v533
      %535 = vmatmul.bf16.gmra.mxu0 %v390
      %v536 = vpop.f32.mrf.mxu0
      %v537 = vadd.f32 %v334, %v536
      %v538 = vpop.f32.mrf.mxu0
      %v539 = vadd.f32 %v334, %v538
      %540 = vmatmul.bf16.gmra.mxu0 %v392
      %v541 = vpop.f32.mrf.mxu0
      %v542 = vadd.f32 %v334, %v541
      %v543 = vpop.f32.mrf.mxu0
      %v544 = vadd.f32 %v334, %v543
      %545 = vmatmul.bf16.gmra.mxu0 %v394
      %v546 = vpop.f32.mrf.mxu0
      %v547 = vadd.f32 %v334, %v546
      %v548 = vpop.f32.mrf.mxu0
      %v549 = vadd.f32 %v334, %v548
      %550 = vmatmul.bf16.gmra.mxu0 %v396
      %v551 = vpop.f32.mrf.mxu0
      %v552 = vadd.f32 %v334, %v551
      %v553 = vpop.f32.mrf.mxu0
      %v554 = vadd.f32 %v334, %v553
      %555 = vmatmul.bf16.gmra.mxu0 %v398
      %v556 = vpop.f32.mrf.mxu0
      %v557 = vadd.f32 %v334, %v556
      %v558 = vpop.f32.mrf.mxu0
      %v559 = vadd.f32 %v334, %v558
      %560 = vdwg.mxu0
      %561 = vmatpush.bf16.msra.mxu0 %v495
      %562 = vmatpush.bf16.msra.mxu0 %v494
      %563 = vmatpush.bf16.msra.mxu0 %v493
      %564 = vmatpush.bf16.msra.mxu0 %v492
      %565 = vmatpush.bf16.msra.mxu0 %v491
      %566 = vmatpush.bf16.msra.mxu0 %v490
      %567 = vmatpush.bf16.msra.mxu0 %v489
      %568 = vmatpush.bf16.msra.mxu0 %v488
      %569 = vmatmul.bf16.gmra.mxu0 %v385
      %v570 = vpop.f32.mrf.mxu0
      %v571 = vadd.f32 %v522, %v570
      %v572 = vpop.f32.mrf.mxu0
      %v573 = vadd.f32 %v524, %v572
      %574 = vmatmul.bf16.gmra.mxu0 %v387
      %v575 = vpop.f32.mrf.mxu0
      %v576 = vadd.f32 %v527, %v575
      %v577 = vpop.f32.mrf.mxu0
      %v578 = vadd.f32 %v529, %v577
      %579 = vmatmul.bf16.gmra.mxu0 %v389
      %v580 = vpop.f32.mrf.mxu0
      %v581 = vadd.f32 %v532, %v580
      %v582 = vpop.f32.mrf.mxu0
      %v583 = vadd.f32 %v534, %v582
      %584 = vmatmul.bf16.gmra.mxu0 %v391
      %v585 = vpop.f32.mrf.mxu0
      %v586 = vadd.f32 %v537, %v585
      %v587 = vpop.f32.mrf.mxu0
      %v588 = vadd.f32 %v539, %v587
      %589 = vmatmul.bf16.gmra.mxu0 %v393
      %v590 = vpop.f32.mrf.mxu0
      %v591 = vadd.f32 %v542, %v590
      %v592 = vpop.f32.mrf.mxu0
      %v593 = vadd.f32 %v544, %v592
      %594 = vmatmul.bf16.gmra.mxu0 %v395
      %v595 = vpop.f32.mrf.mxu0
      %v596 = vadd.f32 %v547, %v595
      %v597 = vpop.f32.mrf.mxu0
      %v598 = vadd.f32 %v549, %v597
      %599 = vmatmul.bf16.gmra.mxu0 %v397
      %v600 = vpop.f32.mrf.mxu0
      %v601 = vadd.f32 %v552, %v600
      %v602 = vpop.f32.mrf.mxu0
      %v603 = vadd.f32 %v554, %v602
      %604 = vmatmul.bf16.gmra.mxu0 %v399
      %v605 = vpop.f32.mrf.mxu0
      %v606 = vadd.f32 %v557, %v605
      %v607 = vpop.f32.mrf.mxu0
      %v608 = vadd.f32 %v559, %v607
      %609 = vdwg.mxu0
      %v610 = vmax.f32 %v571, 0.0
      %v611 = vmax.f32 %v573, 0.0
      %v612 = vmax.f32 %v576, 0.0
      %v613 = vmax.f32 %v578, 0.0
      %v614 = vmax.f32 %v581, 0.0
      %v615 = vmax.f32 %v583, 0.0
      %v616 = vmax.f32 %v586, 0.0
      %v617 = vmax.f32 %v588, 0.0
      %v618 = vmax.f32 %v591, 0.0
      %v619 = vmax.f32 %v593, 0.0
      %v620 = vmax.f32 %v596, 0.0
      %v621 = vmax.f32 %v598, 0.0
      %v622 = vmax.f32 %v601, 0.0
      %v623 = vmax.f32 %v603, 0.0
      %v624 = vmax.f32 %v606, 0.0
      %v625 = vmax.f32 %v608, 0.0
      %v626 = vpack.c.bf16 %v610, %v610
      %v627 = vpack.c.bf16 %v611, %v611
      %v628 = vpack.c.bf16 %v612, %v612
      %v629 = vpack.c.bf16 %v613, %v613
      %v630 = vpack.c.bf16 %v614, %v614
      %v631 = vpack.c.bf16 %v615, %v615
      %v632 = vpack.c.bf16 %v616, %v616
      %v633 = vpack.c.bf16 %v617, %v617
      %v634 = vpack.c.bf16 %v618, %v618
      %v635 = vpack.c.bf16 %v619, %v619
      %v636 = vpack.c.bf16 %v620, %v620
      %v637 = vpack.c.bf16 %v621, %v621
      %v638 = vpack.c.bf16 %v622, %v622
      %v639 = vpack.c.bf16 %v623, %v623
      %v640 = vpack.c.bf16 %v624, %v624
      %v641 = vpack.c.bf16 %v625, %v625
      %642 = vst [vmem:[%s282] sm:$0xf] %v626
      %643 = vst [vmem:[%s282 + $0x4] sm:$0xf] %v627
      %644 = vst [vmem:[%s282 + $0x8] sm:$0xf] %v628
      %645 = vst [vmem:[%s282 + $0xc] sm:$0xf] %v629
      %646 = vst [vmem:[%s282 + $0x10] sm:$0xf] %v630
      %647 = vst [vmem:[%s282 + $0x14] sm:$0xf] %v631
      %648 = vst [vmem:[%s282 + $0x18] sm:$0xf] %v632
      %649 = vst [vmem:[%s282 + $0x1c] sm:$0xf] %v633
      %650 = vst [vmem:[%s282 + $0x20] sm:$0xf] %v634
      %651 = vst [vmem:[%s282 + $0x24] sm:$0xf] %v635
      %652 = vst [vmem:[%s282 + $0x28] sm:$0xf] %v636
      %653 = vst [vmem:[%s282 + $0x2c] sm:$0xf] %v637
      %654 = vst [vmem:[%s282 + $0x30] sm:$0xf] %v638
      %655 = vst [vmem:[%s282 + $0x34] sm:$0xf] %v639
      %656 = vst [vmem:[%s282 + $0x38] sm:$0xf] %v640
      %657 = vst [vmem:[%s282 + $0x3c] sm:$0xf] %v641
      %s658 = smul.u32 16, %s20
      %p659 = scmp.lt.s32.totalorder %s19, 2
      %s660 = scalar_select %p659, %s19, 2
      %p661 = scmp.lt.s32.totalorder %s658, 15
      %s662 = scalar_select %p661, %s658, 15
      %p663 = scmp.lt.s32.totalorder %s21, 0
      %s664 = scalar_select %p663, %s21, 0
      %s665 = sadd.s32 %s664, %s662
      %s666 = smul.addr %s660, 16
      %s667 = sadd.s32 %s665, %s666
      %s668 = smul.addr %s667, 4
      %s669 = scalar_lea.vmem %s3, %s668
      // Predicated region
      $region33: #{_lambda_.14} parent=31 // pred_check
        %p670 = pneg %p139
      $region34: #{_lambda_.14} parent=31 // pred_check_branch
        %672 = sbr.rel (%p670) target = $region36
      $region35: #{_lambda_.14} parent=31 // pred_region
        %s673 = smul.u32 16, %s20
      $region36: #{_lambda_.14} parent=31 // pred_fallthru
        _
    $region32: #{_lambda_.14} parent=5 // pred_fallthru
      _
    %p674 = scmp.le.s32.totalorder 2, %s9
    // Predicated region
    $region37: #{_lambda_.14} parent=5 // pred_check
      %p675 = pneg %p674
    $region38: #{_lambda_.14} parent=5 // pred_check_branch
      %677 = sbr.rel (%p675) target = $region40
    $region39: #{_lambda_.14} parent=5 // pred_region
      %s678 = ssub.s32 %s9, 2
      // Predicated region
      $region41: #{_lambda_.14} parent=39 // pred_check
        %p679 = pneg %p145
      $region42: #{_lambda_.14} parent=39 // pred_check_branch
        %681 = sbr.rel (%p679) target = $region44
      $region43: #{_lambda_.14} parent=39 // pred_region
        %s682 = smul.u32 16, %s23
        %p683 = scmp.lt.s32.totalorder %s22, 2
        %s684 = scalar_select %p683, %s22, 2
        %p685 = scmp.lt.s32.totalorder %s682, 15
        %s686 = scalar_select %p685, %s682, 15
        %p687 = scmp.lt.s32.totalorder %s24, 0
        %s688 = scalar_select %p687, %s24, 0
        %s689 = sadd.s32 %s688, %s686
        %s690 = smul.addr %s684, 16
        %s691 = sadd.s32 %s689, %s690
        %s692 = smul.addr %s691, 4
        %s693 = scalar_lea.vmem %s3, %s692
      $region44: #{_lambda_.14} parent=39 // pred_fallthru
        _
    $region40: #{_lambda_.14} parent=5 // pred_fallthru
      _
  $region6: #{_lambda_.14} parent=0 // loop_footer
    %s13 = sadd.s32 1, %s9
  $region7: #{_lambda_.14} parent=0 // loop_footer_branch
    %8 = sbr.rel target = $region3
  $region8: #{_lambda_.14} parent=0 // loop_exit
    _

// kernel: _lambda_.15
$region0: #{_lambda_.15}
  #allocation0 [shape = 'u32[]', space=smem, size = 0x4, offset = 0x4, fixed_abs, tag = 'smem constant byte address 0x4 - core index']
  #allocation1 [shape = 'u32[72,128]{1,0:T(1,128)}', space=vmem, size = 0x9000, scoped, tag = 'internal scratch']
  %s0 = inlined_call_operand.vmem [shape: bf16[3,8,384], index: 0, kind: input, shape index: {}]
  %s1 = inlined_call_operand.vmem [shape: bf16[3,384,128], index: 1, kind: input, shape index: {}]
  %s2 = inlined_call_operand.vmem [shape: f32[3,1,128], index: 2, kind: input, shape index: {}]
  %s3 = inlined_call_operand.vmem [shape: bf16[3,8,128], index: 3, kind: output, shape index: {}]
  %s4 = sld [smem:[#allocation0]]
  $region45: #{_lambda_.15} parent=0
    _
  %s6 = ssub.s32 1, %s4
  %s7 = scalar_select 0, %s6, %s4
  loop: start=0, step=1, limit=5
  $region2: #{_lambda_.15} parent=0 // loop_pre_header
    _
  $region3: #{_lambda_.15} parent=0 // loop_header
    %s9 = sphi 0, %s13
    %p10 = scmp.ge.s32.totalorder %s9, 5
    %s16 = sphi 0, %s35
    %s17 = sphi 0, %s31
    %s18 = sphi 0, %s27
    %s19 = sphi 0, %s16
    %s20 = sphi 0, %s17
    %s21 = sphi 0, %s18
    %s22 = sphi 0, %s19
    %s23 = sphi 0, %s20
    %s24 = sphi 0, %s21
    %s40 = sphi 0, %s42
    %s43 = sphi 0, %s40
    %s44 = sphi 0, %s43
    %s60 = sphi 0, %s44
    %s68 = sphi 0, %s70
    %s71 = sphi 0, %s68
    %s72 = sphi 0, %s71
    %s88 = sphi 0, %s72
    %s96 = sphi 0, %s98
    %s99 = sphi 0, %s96
    %s100 = sphi 0, %s99
    %s116 = sphi 0, %s100
    %s126 = sphi 0, %s128
    %s129 = sphi 0, %s126
    %s130 = sphi 0, %s129
    %s146 = sphi 0, %s130
  $region4: #{_lambda_.15} parent=0 // loop_header_branch
    %12 = sbr.rel (%p10) target = $region8
  $region5: #{_lambda_.15} parent=0 // loop_body
    %s14 = ssub.s32 %s9, 1
    %s15 = ssub.s32 %s9, 2
    %s25 = sadd.s32 1, %s18
    %p26 = scmp.ge.s32.totalorder %s25, 1
    %s27 = scalar_select %p26, 0, %s25
    %s28 = sadd.s32 1, %s17
    %s29 = scalar_select %p26, %s28, %s17
    %p30 = scmp.ge.s32.totalorder %s29, 1
    %s31 = scalar_select %p30, 0, %s29
    %s32 = sadd.s32 1, %s16
    %s33 = scalar_select %p30, %s32, %s16
    %p34 = scmp.ge.s32.totalorder %s33, 3
    %s35 = scalar_select %p34, 0, %s33
    %s36 = ssub.s32 %s16, %s35
    %s37 = ssub.s32 %s17, %s31
    %s38 = sor.u32 %s36, %s37
    %p39 = scmp.eq.s32.totalorder %s38, 0
    %s41 = sadd.s32 %s40, 1
    %s42 = scalar_select %p39, %s40, %s41
    %p45 = pneg %p39
    %p46 = scmp.eq.s32.totalorder %s9, 2
    %p47 = por %p45, %p46
    %p48 = scmp.ne.s32.totalorder %s40, %s43
    %p49 = scmp.eq.s32.totalorder %s9, 0
    %p50 = por %p48, %p49
    %p51 = scmp.ne.s32.totalorder %s40, %s43
    %p52 = scmp.eq.s32.totalorder %s14, 2
    %p53 = por %p51, %p52
    %p54 = scmp.ne.s32.totalorder %s43, %s44
    %p55 = scmp.eq.s32.totalorder %s14, 0
    %p56 = por %p54, %p55
    %p57 = scmp.ne.s32.totalorder %s43, %s44
    %p58 = scmp.eq.s32.totalorder %s15, 2
    %p59 = por %p57, %p58
    %p61 = scmp.ne.s32.totalorder %s44, %s60
    %p62 = scmp.eq.s32.totalorder %s15, 0
    %p63 = por %p61, %p62
    %s64 = ssub.s32 %s16, %s35
    %s65 = ssub.s32 %s18, %s27
    %s66 = sor.u32 %s64, %s65
    %p67 = scmp.eq.s32.totalorder %s66, 0
    %s69 = sadd.s32 %s68, 1
    %s70 = scalar_select %p67, %s68, %s69
    %p73 = pneg %p67
    %p74 = scmp.eq.s32.totalorder %s9, 2
    %p75 = por %p73, %p74
    %p76 = scmp.ne.s32.totalorder %s68, %s71
    %p77 = scmp.eq.s32.totalorder %s9, 0
    %p78 = por %p76, %p77
    %p79 = scmp.ne.s32.totalorder %s68, %s71
    %p80 = scmp.eq.s32.totalorder %s14, 2
    %p81 = por %p79, %p80
    %p82 = scmp.ne.s32.totalorder %s71, %s72
    %p83 = scmp.eq.s32.totalorder %s14, 0
    %p84 = por %p82, %p83
    %p85 = scmp.ne.s32.totalorder %s71, %s72
    %p86 = scmp.eq.s32.totalorder %s15, 2
    %p87 = por %p85, %p86
    %p89 = scmp.ne.s32.totalorder %s72, %s88
    %p90 = scmp.eq.s32.totalorder %s15, 0
    %p91 = por %p89, %p90
    %s92 = ssub.s32 %s16, %s35
    %s93 = ssub.s32 %s18, %s27
    %s94 = sor.u32 %s92, %s93
    %p95 = scmp.eq.s32.totalorder %s94, 0
    %s97 = sadd.s32 %s96, 1
    %s98 = scalar_select %p95, %s96, %s97
    %p101 = pneg %p95
    %p102 = scmp.eq.s32.totalorder %s9, 2
    %p103 = por %p101, %p102
    %p104 = scmp.ne.s32.totalorder %s96, %s99
    %p105 = scmp.eq.s32.totalorder %s9, 0
    %p106 = por %p104, %p105
    %p107 = scmp.ne.s32.totalorder %s96, %s99
    %p108 = scmp.eq.s32.totalorder %s14, 2
    %p109 = por %p107, %p108
    %p110 = scmp.ne.s32.totalorder %s99, %s100
    %p111 = scmp.eq.s32.totalorder %s14, 0
    %p112 = por %p110, %p111
    %p113 = scmp.ne.s32.totalorder %s99, %s100
    %p114 = scmp.eq.s32.totalorder %s15, 2
    %p115 = por %p113, %p114
    %p117 = scmp.ne.s32.totalorder %s100, %s116
    %p118 = scmp.eq.s32.totalorder %s15, 0
    %p119 = por %p117, %p118
    %s120 = ssub.s32 %s16, %s35
    %s121 = ssub.s32 %s17, %s31
    %s122 = sor.u32 %s120, %s121
    %s123 = ssub.s32 %s18, %s27
    %s124 = sor.u32 %s122, %s123
    %p125 = scmp.eq.s32.totalorder %s124, 0
    %s127 = sadd.s32 %s126, 1
    %s128 = scalar_select %p125, %s126, %s127
    %p131 = pneg %p125
    %p132 = scmp.eq.s32.totalorder %s9, 2
    %p133 = por %p131, %p132
    %p134 = scmp.ne.s32.totalorder %s126, %s129
    %p135 = scmp.eq.s32.totalorder %s9, 0
    %p136 = por %p134, %p135
    %p137 = scmp.ne.s32.totalorder %s126, %s129
    %p138 = scmp.eq.s32.totalorder %s14, 2
    %p139 = por %p137, %p138
    %p140 = scmp.ne.s32.totalorder %s129, %s130
    %p141 = scmp.eq.s32.totalorder %s14, 0
    %p142 = por %p140, %p141
    %p143 = scmp.ne.s32.totalorder %s129, %s130
    %p144 = scmp.eq.s32.totalorder %s15, 2
    %p145 = por %p143, %p144
    %p147 = scmp.ne.s32.totalorder %s130, %s146
    %p148 = scmp.eq.s32.totalorder %s15, 0
    %p149 = por %p147, %p148
    %p150 = scmp.le.s32.totalorder 1, %s9
    %p151 = scmp.lt.s32.totalorder %s9, 4
    %p152 = pnand %p150, %p151
    %p153 = pneg %p152
    // Predicated region
    $region9: #{_lambda_.15} parent=5 // pred_check
      _
    $region10: #{_lambda_.15} parent=5 // pred_check_branch
      %155 = sbr.rel (%p152) target = $region12
    $region11: #{_lambda_.15} parent=5 // pred_region
      %s156 = ssub.s32 %s9, 1
    $region12: #{_lambda_.15} parent=5 // pred_fallthru
      _
    %p157 = scmp.lt.s32.totalorder %s9, 3
    // Predicated region
    $region13: #{_lambda_.15} parent=5 // pred_check
      %p158 = pneg %p157
    $region14: #{_lambda_.15} parent=5 // pred_check_branch
      %160 = sbr.rel (%p158) target = $region16
    $region15: #{_lambda_.15} parent=5 // pred_region
      // Predicated region
      $region17: #{_lambda_.15} parent=15 // pred_check
        %p161 = pneg %p50
      $region18: #{_lambda_.15} parent=15 // pred_check_branch
        %163 = sbr.rel (%p161) target = $region20
      $region19: #{_lambda_.15} parent=15 // pred_region
        %p164 = scmp.lt.s32.totalorder %s16, 2
        %s165 = scalar_select %p164, %s16, 2
        %p166 = scmp.lt.s32.totalorder %s17, 0
        %s167 = scalar_select %p166, %s17, 0
        %s168 = smul.addr %s167, 3
        %s169 = smul.addr %s165, 3
        %s170 = sadd.s32 %s168, %s169
        %s171 = smul.addr %s170, 4
        %s172 = scalar_lea.vmem %s0, %s171
      $region20: #{_lambda_.15} parent=15 // pred_fallthru
        _
      // Predicated region
      $region21: #{_lambda_.15} parent=15 // pred_check
        %p173 = pneg %p78
      $region22: #{_lambda_.15} parent=15 // pred_check_branch
        %175 = sbr.rel (%p173) target = $region24
      $region23: #{_lambda_.15} parent=15 // pred_region
        %p176 = scmp.lt.s32.totalorder %s16, 2
        %s177 = scalar_select %p176, %s16, 2
        %p178 = scmp.lt.s32.totalorder %s18, 0
        %s179 = scalar_select %p178, %s18, 0
        %s180 = smul.addr %s177, 48
        %s181 = sadd.s32 %s179, %s180
        %s182 = smul.addr %s181, 4
        %s183 = scalar_lea.vmem %s1, %s182
      $region24: #{_lambda_.15} parent=15 // pred_fallthru
        _
      // Predicated region
      $region25: #{_lambda_.15} parent=15 // pred_check
        %p184 = pneg %p106
      $region26: #{_lambda_.15} parent=15 // pred_check_branch
        %186 = sbr.rel (%p184) target = $region28
      $region27: #{_lambda_.15} parent=15 // pred_region
        %p187 = scmp.lt.s32.totalorder %s16, 2
        %s188 = scalar_select %p187, %s16, 2
        %p189 = scmp.lt.s32.totalorder %s18, 0
        %s190 = scalar_select %p189, %s18, 0
        %s191 = sadd.s32 %s190, %s188
        %s192 = scalar_lea.vmem %s2, %s191
      $region28: #{_lambda_.15} parent=15 // pred_fallthru
        _
    $region16: #{_lambda_.15} parent=5 // pred_fallthru
      _
    %p193 = scmp.le.s32.totalorder 1, %s9
    %p194 = scmp.lt.s32.totalorder %s9, 4
    %p195 = pnand %p193, %p194
    %p196 = pneg %p195
    // Predicated region
    $region29: #{_lambda_.15} parent=5 // pred_check
      _
    $region30: #{_lambda_.15} parent=5 // pred_check_branch
      %198 = sbr.rel (%p195) target = $region32
    $region31: #{_lambda_.15} parent=5 // pred_region
      %s199 = ssub.s32 %s9, 1
      %p200 = scmp.lt.s32.totalorder %s19, 2
      %s201 = scalar_select %p200, %s19, 2
      %p202 = scmp.lt.s32.totalorder %s20, 0
      %s203 = scalar_select %p202, %s20, 0
      %s204 = smul.addr %s203, 3
      %s205 = smul.addr %s201, 3
      %s206 = sadd.s32 %s204, %s205
      %s207 = smul.addr %s206, 4
      %s208 = scalar_lea.vmem %s0, %s207
      %p209 = pneg %p56
      %p210 = pneg %p53
      %p211 = scmp.lt.s32.totalorder %s19, 2
      %s212 = scalar_select %p211, %s19, 2
      %p213 = scmp.lt.s32.totalorder %s21, 0
      %s214 = scalar_select %p213, %s21, 0
      %s215 = smul.addr %s212, 48
      %s216 = sadd.s32 %s214, %s215
      %s217 = smul.addr %s216, 4
      %s218 = scalar_lea.vmem %s1, %s217
      %p219 = pneg %p84
      %p220 = pneg %p81
      %p221 = scmp.lt.s32.totalorder %s19, 2
      %s222 = scalar_select %p221, %s19, 2
      %p223 = scmp.lt.s32.totalorder %s21, 0
      %s224 = scalar_select %p223, %s21, 0
      %s225 = sadd.s32 %s224, %s222
      %s226 = scalar_lea.vmem %s2, %s225
      %p227 = pneg %p112
      %p228 = pneg %p109
      %p229 = pneg %p142
      %p230 = pneg %p139
      %p231 = scmp.lt.s32.totalorder %s19, 2
      %s232 = scalar_select %p231, %s19, 2
      %p233 = scmp.lt.s32.totalorder %s20, 0
      %s234 = scalar_select %p233, %s20, 0
      %p235 = scmp.lt.s32.totalorder %s21, 0
      %s236 = scalar_select %p235, %s21, 0
      %s237 = sadd.s32 %s236, %s234
      %s238 = sadd.s32 %s237, %s232
      %s239 = smul.addr %s238, 4
      %s240 = scalar_lea.vmem %s3, %s239
      %p241 = scmp.lt.s32.totalorder %s19, 2
      %s242 = scalar_select %p241, %s19, 2
      %p243 = scmp.lt.s32.totalorder %s20, 0
      %s244 = scalar_select %p243, %s20, 0
      %s245 = smul.addr %s244, 3
      %s246 = smul.addr %s242, 3
      %s247 = sadd.s32 %s245, %s246
      %s248 = smul.addr %s247, 4
      %s249 = scalar_lea.vmem %s0, %s248
      %p250 = scmp.lt.s32.totalorder %s19, 2
      %s251 = scalar_select %p250, %s19, 2
      %p252 = scmp.lt.s32.totalorder %s21, 0
      %s253 = scalar_select %p252, %s21, 0
      %s254 = smul.addr %s251, 48
      %s255 = sadd.s32 %s253, %s254
      %s256 = smul.addr %s255, 4
      %s257 = scalar_lea.vmem %s1, %s256
      %p258 = scmp.lt.s32.totalorder %s19, 2
      %s259 = scalar_select %p258, %s19, 2
      %p260 = scmp.lt.s32.totalorder %s21, 0
      %s261 = scalar_select %p260, %s21, 0
      %s262 = sadd.s32 %s261, %s259
      %s263 = scalar_lea.vmem %s2, %s262
      %p264 = scmp.lt.s32.totalorder %s19, 2
      %s265 = scalar_select %p264, %s19, 2
      %p266 = scmp.lt.s32.totalorder %s20, 0
      %s267 = scalar_select %p266, %s20, 0
      %p268 = scmp.lt.s32.totalorder %s21, 0
      %s269 = scalar_select %p268, %s21, 0
      %s270 = sadd.s32 %s269, %s267
      %s271 = sadd.s32 %s270, %s265
      %s272 = smul.addr %s271, 4
      %s273 = scalar_lea.vmem %s3, %s272
      %v274 = vld [vmem:[%s249] sm:$0xff]
      %v275 = vld [vmem:[%s249 + $0x8] sm:$0xf]
      %v276 = vld [vmem:[%s257] sm:$0xf]
      %v277 = vld [vmem:[%s257 + $0x4] sm:$0xf]
      %v278 = vld [vmem:[%s257 + $0x8] sm:$0xf]
      %v279 = vld [vmem:[%s257 + $0xc] sm:$0xf]
      %v280 = vld [vmem:[%s257 + $0x10] sm:$0xf]
      %v281 = vld [vmem:[%s257 + $0x14] sm:$0xf]
      %v282 = vld [vmem:[%s257 + $0x18] sm:$0xf]
      %v283 = vld [vmem:[%s257 + $0x1c] sm:$0xf]
      %v284 = vld [vmem:[%s257 + $0x20] sm:$0xf]
      %v285 = vld [vmem:[%s257 + $0x24] sm:$0xf]
      %v286 = vld [vmem:[%s257 + $0x28] sm:$0xf]
      %v287 = vld [vmem:[%s257 + $0x2c] sm:$0xf]
      %v288 = vld [vmem:[%s257 + $0x30] sm:$0xf]
      %v289 = vld [vmem:[%s257 + $0x34] sm:$0xf]
      %v290 = vld [vmem:[%s257 + $0x38] sm:$0xf]
      %v291 = vld [vmem:[%s257 + $0x3c] sm:$0xf]
      %v292 = vld [vmem:[%s257 + $0x40] sm:$0xf]
      %v293 = vld [vmem:[%s257 + $0x44] sm:$0xf]
      %v294 = vld [vmem:[%s257 + $0x48] sm:$0xf]
      %v295 = vld [vmem:[%s257 + $0x4c] sm:$0xf]
      %v296 = vld [vmem:[%s257 + $0x50] sm:$0xf]
      %v297 = vld [vmem:[%s257 + $0x54] sm:$0xf]
      %v298 = vld [vmem:[%s257 + $0x58] sm:$0xf]
      %v299 = vld [vmem:[%s257 + $0x5c] sm:$0xf]
      %v300 = vld [vmem:[%s257 + $0x60] sm:$0xf]
      %v301 = vld [vmem:[%s257 + $0x64] sm:$0xf]
      %v302 = vld [vmem:[%s257 + $0x68] sm:$0xf]
      %v303 = vld [vmem:[%s257 + $0x6c] sm:$0xf]
      %v304 = vld [vmem:[%s257 + $0x70] sm:$0xf]
      %v305 = vld [vmem:[%s257 + $0x74] sm:$0xf]
      %v306 = vld [vmem:[%s257 + $0x78] sm:$0xf]
      %v307 = vld [vmem:[%s257 + $0x7c] sm:$0xf]
      %v308 = vld [vmem:[%s257 + $0x80] sm:$0xf]
      %v309 = vld [vmem:[%s257 + $0x84] sm:$0xf]
      %v310 = vld [vmem:[%s257 + $0x88] sm:$0xf]
      %v311 = vld [vmem:[%s257 + $0x8c] sm:$0xf]
      %v312 = vld [vmem:[%s257 + $0x90] sm:$0xf]
      %v313 = vld [vmem:[%s257 + $0x94] sm:$0xf]
      %v314 = vld [vmem:[%s257 + $0x98] sm:$0xf]
      %v315 = vld [vmem:[%s257 + $0x9c] sm:$0xf]
      %v316 = vld [vmem:[%s257 + $0xa0] sm:$0xf]
      %v317 = vld [vmem:[%s257 + $0xa4] sm:$0xf]
      %v318 = vld [vmem:[%s257 + $0xa8] sm:$0xf]
      %v319 = vld [vmem:[%s257 + $0xac] sm:$0xf]
      %v320 = vld [vmem:[%s257 + $0xb0] sm:$0xf]
      %v321 = vld [vmem:[%s257 + $0xb4] sm:$0xf]
      %v322 = vld [vmem:[%s257 + $0xb8] sm:$0xf]
      %v323 = vld [vmem:[%s257 + $0xbc] sm:$0xf]
      %v324 = vld [vmem:[%s263] sm:$0x1]
      %v326 = vperm.slane %v324, 0
      %v330 = vunpack.c.l.b16 %v274
      %v331 = vunpack.c.h.b16 %v274
      %v332 = vunpack.c.l.b16 %v275
      %v333 = vpack.c.b16 %v330, %v330
      %v334 = vpack.c.b16 %v331, %v331
      %v335 = vpack.c.b16 %v332, %v332
      %v387 = vunpack.c.l.b16 %v276
      %v388 = vunpack.c.l.b16 %v277
      %v389 = vunpack.c.l.b16 %v278
      %v390 = vunpack.c.l.b16 %v279
      %v391 = vunpack.c.l.b16 %v280
      %v392 = vunpack.c.l.b16 %v281
      %v393 = vunpack.c.l.b16 %v282
      %v394 = vunpack.c.l.b16 %v283
      %v395 = vunpack.c.l.b16 %v284
      %v396 = vunpack.c.l.b16 %v285
      %v397 = vunpack.c.l.b16 %v286
      %v398 = vunpack.c.l.b16 %v287
      %v399 = vunpack.c.l.b16 %v288
      %v400 = vunpack.c.l.b16 %v289
      %v401 = vunpack.c.l.b16 %v290
      %v402 = vunpack.c.l.b16 %v291
      %v403 = vunpack.c.l.b16 %v292
      %v404 = vunpack.c.l.b16 %v293
      %v405 = vunpack.c.l.b16 %v294
      %v406 = vunpack.c.l.b16 %v295
      %v407 = vunpack.c.l.b16 %v296
      %v408 = vunpack.c.l.b16 %v297
      %v409 = vunpack.c.l.b16 %v298
      %v410 = vunpack.c.l.b16 %v299
      %v411 = vunpack.c.l.b16 %v300
      %v412 = vunpack.c.l.b16 %v301
      %v413 = vunpack.c.l.b16 %v302
      %v414 = vunpack.c.l.b16 %v303
      %v415 = vunpack.c.l.b16 %v304
      %v416 = vunpack.c.l.b16 %v305
      %v417 = vunpack.c.l.b16 %v306
      %v418 = vunpack.c.l.b16 %v307
      %v419 = vunpack.c.l.b16 %v308
      %v420 = vunpack.c.l.b16 %v309
      %v421 = vunpack.c.l.b16 %v310
      %v422 = vunpack.c.l.b16 %v311
      %v423 = vunpack.c.l.b16 %v312
      %v424 = vunpack.c.l.b16 %v313
      %v425 = vunpack.c.l.b16 %v314
      %v426 = vunpack.c.l.b16 %v315
      %v427 = vunpack.c.l.b16 %v316
      %v428 = vunpack.c.l.b16 %v317
      %v429 = vunpack.c.l.b16 %v318
      %v430 = vunpack.c.l.b16 %v319
      %v431 = vunpack.c.l.b16 %v320
      %v432 = vunpack.c.l.b16 %v321
      %v433 = vunpack.c.l.b16 %v322
      %v434 = vunpack.c.l.b16 %v323
      %v435 = vpack.c.b16 %v388, %v387
      %v436 = vpack.c.b16 %v390, %v389
      %v437 = vpack.c.b16 %v392, %v391
      %v438 = vpack.c.b16 %v394, %v393
      %v439 = vpack.c.b16 %v396, %v395
      %v440 = vpack.c.b16 %v398, %v397
      %v441 = vpack.c.b16 %v400, %v399
      %v442 = vpack.c.b16 %v402, %v401
      %v443 = vpack.c.b16 %v404, %v403
      %v444 = vpack.c.b16 %v406, %v405
      %v445 = vpack.c.b16 %v408, %v407
      %v446 = vpack.c.b16 %v410, %v409
      %v447 = vpack.c.b16 %v412, %v411
      %v448 = vpack.c.b16 %v414, %v413
      %v449 = vpack.c.b16 %v416, %v415
      %v450 = vpack.c.b16 %v418, %v417
      %v451 = vpack.c.b16 %v420, %v419
      %v452 = vpack.c.b16 %v422, %v421
      %v453 = vpack.c.b16 %v424, %v423
      %v454 = vpack.c.b16 %v426, %v425
      %v455 = vpack.c.b16 %v428, %v427
      %v456 = vpack.c.b16 %v430, %v429
      %v457 = vpack.c.b16 %v432, %v431
      %v458 = vpack.c.b16 %v434, %v433
      %483 = vmatpush.bf16.msra.mxu0 %v442
      %484 = vmatpush.bf16.msra.mxu0 %v441
      %485 = vmatpush.bf16.msra.mxu0 %v440
      %486 = vmatpush.bf16.msra.mxu0 %v439
      %487 = vmatpush.bf16.msra.mxu0 %v438
      %488 = vmatpush.bf16.msra.mxu0 %v437
      %489 = vmatpush.bf16.msra.mxu0 %v436
      %490 = vmatpush.bf16.msra.mxu0 %v435
      %491 = vmatmul.bf16.gmra.mxu0 %v333
      %v492 = vpop.f32.mrf.mxu0
      %v493 = vadd.f32 %v326, %v492
      %v494 = vpop.f32.mrf.mxu0
      %495 = vdwg.mxu0
      %496 = vmatpush.bf16.msra.mxu0 %v450
      %497 = vmatpush.bf16.msra.mxu0 %v449
      %498 = vmatpush.bf16.msra.mxu0 %v448
      %499 = vmatpush.bf16.msra.mxu0 %v447
      %500 = vmatpush.bf16.msra.mxu0 %v446
      %501 = vmatpush.bf16.msra.mxu0 %v445
      %502 = vmatpush.bf16.msra.mxu0 %v444
      %503 = vmatpush.bf16.msra.mxu0 %v443
      %504 = vmatmul.bf16.gmra.mxu0 %v334
      %v505 = vpop.f32.mrf.mxu0
      %v506 = vadd.f32 %v493, %v505
      %v507 = vpop.f32.mrf.mxu0
      %508 = vdwg.mxu0
      %509 = vmatpush.bf16.msra.mxu0 %v458
      %510 = vmatpush.bf16.msra.mxu0 %v457
      %511 = vmatpush.bf16.msra.mxu0 %v456
      %512 = vmatpush.bf16.msra.mxu0 %v455
      %513 = vmatpush.bf16.msra.mxu0 %v454
      %514 = vmatpush.bf16.msra.mxu0 %v453
      %515 = vmatpush.bf16.msra.mxu0 %v452
      %516 = vmatpush.bf16.msra.mxu0 %v451
      %517 = vmatmul.bf16.gmra.mxu0 %v335
      %v518 = vpop.f32.mrf.mxu0
      %v519 = vadd.f32 %v506, %v518
      %v520 = vpop.f32.mrf.mxu0
      %521 = vdwg.mxu0
      %v522 = vmax.f32 %v519, 0.0
      %v523 = vpack.c.bf16 %v522, %v522
      %524 = vst [vmem:[%s273] sm:$0xf] %v523
      %p525 = scmp.lt.s32.totalorder %s19, 2
      %s526 = scalar_select %p525, %s19, 2
      %p527 = scmp.lt.s32.totalorder %s20, 0
      %s528 = scalar_select %p527, %s20, 0
      %p529 = scmp.lt.s32.totalorder %s21, 0
      %s530 = scalar_select %p529, %s21, 0
      %s531 = sadd.s32 %s530, %s528
      %s532 = sadd.s32 %s531, %s526
      %s533 = smul.addr %s532, 4
      %s534 = scalar_lea.vmem %s3, %s533
      // Predicated region
      $region33: #{_lambda_.15} parent=31 // pred_check
        %p535 = pneg %p139
      $region34: #{_lambda_.15} parent=31 // pred_check_branch
        %537 = sbr.rel (%p535) target = $region36
      $region35: #{_lambda_.15} parent=31 // pred_region
        _
      $region36: #{_lambda_.15} parent=31 // pred_fallthru
        _
    $region32: #{_lambda_.15} parent=5 // pred_fallthru
      _
    %p538 = scmp.le.s32.totalorder 2, %s9
    // Predicated region
    $region37: #{_lambda_.15} parent=5 // pred_check
      %p539 = pneg %p538
    $region38: #{_lambda_.15} parent=5 // pred_check_branch
      %541 = sbr.rel (%p539) target = $region40
    $region39: #{_lambda_.15} parent=5 // pred_region
      %s542 = ssub.s32 %s9, 2
      // Predicated region
      $region41: #{_lambda_.15} parent=39 // pred_check
        %p543 = pneg %p145
      $region42: #{_lambda_.15} parent=39 // pred_check_branch
        %545 = sbr.rel (%p543) target = $region44
      $region43: #{_lambda_.15} parent=39 // pred_region
        %p546 = scmp.lt.s32.totalorder %s22, 2
        %s547 = scalar_select %p546, %s22, 2
        %p548 = scmp.lt.s32.totalorder %s23, 0
        %s549 = scalar_select %p548, %s23, 0
        %p550 = scmp.lt.s32.totalorder %s24, 0
        %s551 = scalar_select %p550, %s24, 0
        %s552 = sadd.s32 %s551, %s549
        %s553 = sadd.s32 %s552, %s547
        %s554 = smul.addr %s553, 4
        %s555 = scalar_lea.vmem %s3, %s554
      $region44: #{_lambda_.15} parent=39 // pred_fallthru
        _
    $region40: #{_lambda_.15} parent=5 // pred_fallthru
      _
  $region6: #{_lambda_.15} parent=0 // loop_footer
    %s13 = sadd.s32 1, %s9
  $region7: #{_lambda_.15} parent=0 // loop_footer_branch
    %8 = sbr.rel target = $region3
  $region8: #{_lambda_.15} parent=0 // loop_exit
    _

// kernel: _lambda_.17
$region0: #{_lambda_.17}
  #allocation0 [shape = 'u32[]', space=smem, size = 0x4, offset = 0x4, fixed_abs, tag = 'smem constant byte address 0x4 - core index']
  #allocation1 [shape = 'u32[72,128]{1,0:T(1,128)}', space=vmem, size = 0x9000, scoped, tag = 'internal scratch']
  %s0 = inlined_call_operand.vmem [shape: bf16[3,2,128], index: 0, kind: input, shape index: {}]
  %s1 = inlined_call_operand.vmem [shape: bf16[3,128,128], index: 1, kind: input, shape index: {}]
  %s2 = inlined_call_operand.vmem [shape: f32[3,1,128], index: 2, kind: input, shape index: {}]
  %s3 = inlined_call_operand.vmem [shape: f32[3,2,128], index: 3, kind: output, shape index: {}]
  %s4 = sld [smem:[#allocation0]]
  $region75: #{_lambda_.17} parent=0
    _
  %s6 = ssub.s32 1, %s4
  %s7 = scalar_select 0, %s6, %s4
  $region1: #{_lambda_.17} parent=0
    #allocation2 [shape = 'u8[8192]{0}', space=vmem, size = 0x2000, scoped, tag = 'output window, operand 0']
    loop: start=0, step=1, limit=5
    $region2: #{_lambda_.17} parent=1 // loop_pre_header
      _
    $region3: #{_lambda_.17} parent=1 // loop_header
      %s9 = sphi 0, %s13
      %p10 = scmp.ge.s32.totalorder %s9, 5
      %s16 = sphi 0, %s35
      %s17 = sphi 0, %s31
      %s18 = sphi 0, %s27
      %s19 = sphi 0, %s16
      %s20 = sphi 0, %s17
      %s21 = sphi 0, %s18
      %s22 = sphi 0, %s19
      %s23 = sphi 0, %s20
      %s24 = sphi 0, %s21
      %s40 = sphi 0, %s42
      %s43 = sphi 0, %s40
      %s44 = sphi 0, %s43
      %s60 = sphi 0, %s44
      %s68 = sphi 0, %s70
      %s71 = sphi 0, %s68
      %s72 = sphi 0, %s71
      %s88 = sphi 0, %s72
      %s96 = sphi 0, %s98
      %s99 = sphi 0, %s96
      %s100 = sphi 0, %s99
      %s116 = sphi 0, %s100
      %s126 = sphi 0, %s128
      %s129 = sphi 0, %s126
      %s130 = sphi 0, %s129
      %s146 = sphi 0, %s130
    $region4: #{_lambda_.17} parent=1 // loop_header_branch
      %12 = sbr.rel (%p10) target = $region8
    $region5: #{_lambda_.17} parent=1 // loop_body
      %s14 = ssub.s32 %s9, 1
      %s15 = ssub.s32 %s9, 2
      %s25 = sadd.s32 1, %s18
      %p26 = scmp.ge.s32.totalorder %s25, 1
      %s27 = scalar_select %p26, 0, %s25
      %s28 = sadd.s32 1, %s17
      %s29 = scalar_select %p26, %s28, %s17
      %p30 = scmp.ge.s32.totalorder %s29, 1
      %s31 = scalar_select %p30, 0, %s29
      %s32 = sadd.s32 1, %s16
      %s33 = scalar_select %p30, %s32, %s16
      %p34 = scmp.ge.s32.totalorder %s33, 3
      %s35 = scalar_select %p34, 0, %s33
      %s36 = ssub.s32 %s16, %s35
      %s37 = ssub.s32 %s17, %s31
      %s38 = sor.u32 %s36, %s37
      %p39 = scmp.eq.s32.totalorder %s38, 0
      %s41 = sadd.s32 %s40, 1
      %s42 = scalar_select %p39, %s40, %s41
      %p45 = pneg %p39
      %p46 = scmp.eq.s32.totalorder %s9, 2
      %p47 = por %p45, %p46
      %p48 = scmp.ne.s32.totalorder %s40, %s43
      %p49 = scmp.eq.s32.totalorder %s9, 0
      %p50 = por %p48, %p49
      %p51 = scmp.ne.s32.totalorder %s40, %s43
      %p52 = scmp.eq.s32.totalorder %s14, 2
      %p53 = por %p51, %p52
      %p54 = scmp.ne.s32.totalorder %s43, %s44
      %p55 = scmp.eq.s32.totalorder %s14, 0
      %p56 = por %p54, %p55
      %p57 = scmp.ne.s32.totalorder %s43, %s44
      %p58 = scmp.eq.s32.totalorder %s15, 2
      %p59 = por %p57, %p58
      %p61 = scmp.ne.s32.totalorder %s44, %s60
      %p62 = scmp.eq.s32.totalorder %s15, 0
      %p63 = por %p61, %p62
      %s64 = ssub.s32 %s16, %s35
      %s65 = ssub.s32 %s18, %s27
      %s66 = sor.u32 %s64, %s65
      %p67 = scmp.eq.s32.totalorder %s66, 0
      %s69 = sadd.s32 %s68, 1
      %s70 = scalar_select %p67, %s68, %s69
      %p73 = pneg %p67
      %p74 = scmp.eq.s32.totalorder %s9, 2
      %p75 = por %p73, %p74
      %p76 = scmp.ne.s32.totalorder %s68, %s71
      %p77 = scmp.eq.s32.totalorder %s9, 0
      %p78 = por %p76, %p77
      %p79 = scmp.ne.s32.totalorder %s68, %s71
      %p80 = scmp.eq.s32.totalorder %s14, 2
      %p81 = por %p79, %p80
      %p82 = scmp.ne.s32.totalorder %s71, %s72
      %p83 = scmp.eq.s32.totalorder %s14, 0
      %p84 = por %p82, %p83
      %p85 = scmp.ne.s32.totalorder %s71, %s72
      %p86 = scmp.eq.s32.totalorder %s15, 2
      %p87 = por %p85, %p86
      %p89 = scmp.ne.s32.totalorder %s72, %s88
      %p90 = scmp.eq.s32.totalorder %s15, 0
      %p91 = por %p89, %p90
      %s92 = ssub.s32 %s16, %s35
      %s93 = ssub.s32 %s18, %s27
      %s94 = sor.u32 %s92, %s93
      %p95 = scmp.eq.s32.totalorder %s94, 0
      %s97 = sadd.s32 %s96, 1
      %s98 = scalar_select %p95, %s96, %s97
      %p101 = pneg %p95
      %p102 = scmp.eq.s32.totalorder %s9, 2
      %p103 = por %p101, %p102
      %p104 = scmp.ne.s32.totalorder %s96, %s99
      %p105 = scmp.eq.s32.totalorder %s9, 0
      %p106 = por %p104, %p105
      %p107 = scmp.ne.s32.totalorder %s96, %s99
      %p108 = scmp.eq.s32.totalorder %s14, 2
      %p109 = por %p107, %p108
      %p110 = scmp.ne.s32.totalorder %s99, %s100
      %p111 = scmp.eq.s32.totalorder %s14, 0
      %p112 = por %p110, %p111
      %p113 = scmp.ne.s32.totalorder %s99, %s100
      %p114 = scmp.eq.s32.totalorder %s15, 2
      %p115 = por %p113, %p114
      %p117 = scmp.ne.s32.totalorder %s100, %s116
      %p118 = scmp.eq.s32.totalorder %s15, 0
      %p119 = por %p117, %p118
      %s120 = ssub.s32 %s16, %s35
      %s121 = ssub.s32 %s17, %s31
      %s122 = sor.u32 %s120, %s121
      %s123 = ssub.s32 %s18, %s27
      %s124 = sor.u32 %s122, %s123
      %p125 = scmp.eq.s32.totalorder %s124, 0
      %s127 = sadd.s32 %s126, 1
      %s128 = scalar_select %p125, %s126, %s127
      %p131 = pneg %p125
      %p132 = scmp.eq.s32.totalorder %s9, 2
      %p133 = por %p131, %p132
      %p134 = scmp.ne.s32.totalorder %s126, %s129
      %p135 = scmp.eq.s32.totalorder %s9, 0
      %p136 = por %p134, %p135
      %p137 = scmp.ne.s32.totalorder %s126, %s129
      %p138 = scmp.eq.s32.totalorder %s14, 2
      %p139 = por %p137, %p138
      %p140 = scmp.ne.s32.totalorder %s129, %s130
      %p141 = scmp.eq.s32.totalorder %s14, 0
      %p142 = por %p140, %p141
      %p143 = scmp.ne.s32.totalorder %s129, %s130
      %p144 = scmp.eq.s32.totalorder %s15, 2
      %p145 = por %p143, %p144
      %p147 = scmp.ne.s32.totalorder %s130, %s146
      %p148 = scmp.eq.s32.totalorder %s15, 0
      %p149 = por %p147, %p148
      %p150 = scmp.le.s32.totalorder 1, %s9
      %p151 = scmp.lt.s32.totalorder %s9, 4
      %p152 = pnand %p150, %p151
      %p153 = pneg %p152
      // Predicated region
      $region9: #{_lambda_.17} parent=5 // pred_check
        _
      $region10: #{_lambda_.17} parent=5 // pred_check_branch
        %155 = sbr.rel (%p152) target = $region12
      $region11: #{_lambda_.17} parent=5 // pred_region
        %s156 = ssub.s32 %s9, 1
      $region12: #{_lambda_.17} parent=5 // pred_fallthru
        _
      %p157 = scmp.lt.s32.totalorder %s9, 3
      // Predicated region
      $region13: #{_lambda_.17} parent=5 // pred_check
        %p158 = pneg %p157
      $region14: #{_lambda_.17} parent=5 // pred_check_branch
        %160 = sbr.rel (%p158) target = $region16
      $region15: #{_lambda_.17} parent=5 // pred_region
        // Predicated region
        $region17: #{_lambda_.17} parent=15 // pred_check
          %p161 = pneg %p50
        $region18: #{_lambda_.17} parent=15 // pred_check_branch
          %163 = sbr.rel (%p161) target = $region20
        $region19: #{_lambda_.17} parent=15 // pred_region
          %s164 = smul.u32 4, %s17
          %s165 = ssub.s32 1, %s164
          %p166 = scmp.lt.s32.totalorder %s16, 2
          %s167 = scalar_select %p166, %s16, 2
          %p168 = scmp.lt.s32.totalorder %s164, 0
          %s169 = scalar_select %p168, %s164, 0
          %s170 = sadd.s32 %s169, %s167
          %s171 = scalar_lea.vmem %s0, %s170
          %s172 = smul.u32 4, %s17
          %s173 = ssub.s32 1, %s172
        $region20: #{_lambda_.17} parent=15 // pred_fallthru
          _
        // Predicated region
        $region21: #{_lambda_.17} parent=15 // pred_check
          %p174 = pneg %p78
        $region22: #{_lambda_.17} parent=15 // pred_check_branch
          %176 = sbr.rel (%p174) target = $region24
        $region23: #{_lambda_.17} parent=15 // pred_region
          %p177 = scmp.lt.s32.totalorder %s16, 2
          %s178 = scalar_select %p177, %s16, 2
          %p179 = scmp.lt.s32.totalorder %s18, 0
          %s180 = scalar_select %p179, %s18, 0
          %s181 = smul.addr %s178, 16
          %s182 = sadd.s32 %s180, %s181
          %s183 = smul.addr %s182, 4
          %s184 = scalar_lea.vmem %s1, %s183
        $region24: #{_lambda_.17} parent=15 // pred_fallthru
          _
        // Predicated region
        $region25: #{_lambda_.17} parent=15 // pred_check
          %p185 = pneg %p106
        $region26: #{_lambda_.17} parent=15 // pred_check_branch
          %187 = sbr.rel (%p185) target = $region28
        $region27: #{_lambda_.17} parent=15 // pred_region
          %p188 = scmp.lt.s32.totalorder %s16, 2
          %s189 = scalar_select %p188, %s16, 2
          %p190 = scmp.lt.s32.totalorder %s18, 0
          %s191 = scalar_select %p190, %s18, 0
          %s192 = sadd.s32 %s191, %s189
          %s193 = scalar_lea.vmem %s2, %s192
        $region28: #{_lambda_.17} parent=15 // pred_fallthru
          _
      $region16: #{_lambda_.17} parent=5 // pred_fallthru
        _
      %p194 = scmp.le.s32.totalorder 1, %s9
      %p195 = scmp.lt.s32.totalorder %s9, 4
      %p196 = pnand %p194, %p195
      %p197 = pneg %p196
      // Predicated region
      $region29: #{_lambda_.17} parent=5 // pred_check
        _
      $region30: #{_lambda_.17} parent=5 // pred_check_branch
        %199 = sbr.rel (%p196) target = $region32
      $region31: #{_lambda_.17} parent=5 // pred_region
        %s200 = ssub.s32 %s9, 1
        %s201 = smul.u32 4, %s20
        %s202 = ssub.s32 1, %s201
        %p203 = scmp.lt.s32.totalorder %s19, 2
        %s204 = scalar_select %p203, %s19, 2
        %p205 = scmp.lt.s32.totalorder %s201, 0
        %s206 = scalar_select %p205, %s201, 0
        %s207 = sadd.s32 %s206, %s204
        %s208 = scalar_lea.vmem %s0, %s207
        %p209 = pneg %p56
        %p210 = pneg %p53
        %p211 = scmp.lt.s32.totalorder %s19, 2
        %s212 = scalar_select %p211, %s19, 2
        %p213 = scmp.lt.s32.totalorder %s21, 0
        %s214 = scalar_select %p213, %s21, 0
        %s215 = smul.addr %s212, 16
        %s216 = sadd.s32 %s214, %s215
        %s217 = smul.addr %s216, 4
        %s218 = scalar_lea.vmem %s1, %s217
        %p219 = pneg %p84
        %p220 = pneg %p81
        %p221 = scmp.lt.s32.totalorder %s19, 2
        %s222 = scalar_select %p221, %s19, 2
        %p223 = scmp.lt.s32.totalorder %s21, 0
        %s224 = scalar_select %p223, %s21, 0
        %s225 = sadd.s32 %s224, %s222
        %s226 = scalar_lea.vmem %s2, %s225
        %p227 = pneg %p112
        %p228 = pneg %p109
        %p229 = pneg %p142
        %p230 = pneg %p139
        %s231 = sand.u32 %s129, 1
        %s232 = sand.u32 %s129, 1
        %s233 = smul.addr %s232, 8
        %s234 = scalar_lea.vmem [#allocation2], %s233
        %s235 = smul.u32 4, %s20
        %s236 = ssub.s32 1, %s235
        %p237 = scmp.lt.s32.totalorder %s19, 2
        %s238 = scalar_select %p237, %s19, 2
        %p239 = scmp.lt.s32.totalorder %s235, 0
        %s240 = scalar_select %p239, %s235, 0
        %s241 = sadd.s32 %s240, %s238
        %s242 = scalar_lea.vmem %s0, %s241
        %s243 = smul.u32 4, %s20
        %s244 = ssub.s32 1, %s243
        %p245 = scmp.lt.s32.totalorder %s19, 2
        %s246 = scalar_select %p245, %s19, 2
        %p247 = scmp.lt.s32.totalorder %s21, 0
        %s248 = scalar_select %p247, %s21, 0
        %s249 = smul.addr %s246, 16
        %s250 = sadd.s32 %s248, %s249
        %s251 = smul.addr %s250, 4
        %s252 = scalar_lea.vmem %s1, %s251
        %p253 = scmp.lt.s32.totalorder %s19, 2
        %s254 = scalar_select %p253, %s19, 2
        %p255 = scmp.lt.s32.totalorder %s21, 0
        %s256 = scalar_select %p255, %s21, 0
        %s257 = sadd.s32 %s256, %s254
        %s258 = scalar_lea.vmem %s2, %s257
        %s259 = smul.u32 4, %s20
        %s260 = ssub.s32 1, %s259
        %s261 = smul.u32 2, %s260
        %v262 = vld [vmem:[%s242] sm:$0x1]
        %v263 = vld [vmem:[%s242 + $0x1] sm:$0x1]
        %v264 = vld [vmem:[%s242 + $0x2] sm:$0x1]
        %v265 = vld [vmem:[%s242 + $0x3] sm:$0x1]
        %v266 = vld [vmem:[%s252] sm:$0xf]
        %v267 = vld [vmem:[%s252 + $0x4] sm:$0xf]
        %v268 = vld [vmem:[%s252 + $0x8] sm:$0xf]
        %v269 = vld [vmem:[%s252 + $0xc] sm:$0xf]
        %v270 = vld [vmem:[%s252 + $0x10] sm:$0xf]
        %v271 = vld [vmem:[%s252 + $0x14] sm:$0xf]
        %v272 = vld [vmem:[%s252 + $0x18] sm:$0xf]
        %v273 = vld [vmem:[%s252 + $0x1c] sm:$0xf]
        %v274 = vld [vmem:[%s252 + $0x20] sm:$0xf]
        %v275 = vld [vmem:[%s252 + $0x24] sm:$0xf]
        %v276 = vld [vmem:[%s252 + $0x28] sm:$0xf]
        %v277 = vld [vmem:[%s252 + $0x2c] sm:$0xf]
        %v278 = vld [vmem:[%s252 + $0x30] sm:$0xf]
        %v279 = vld [vmem:[%s252 + $0x34] sm:$0xf]
        %v280 = vld [vmem:[%s252 + $0x38] sm:$0xf]
        %v281 = vld [vmem:[%s252 + $0x3c] sm:$0xf]
        %v282 = vld [vmem:[%s258] sm:$0x1]
        %v284 = vperm.slane %v282, 0
        %287 = vst [vmem:[#allocation1] ss:$9 sm:$0xff] %v262
        %s289 = scalar_lea.vmem [#allocation1], 1
        %290 = vst [vmem:[%s289] ss:$9 sm:$0xff] %v263
        %s292 = scalar_lea.vmem [#allocation1], 2
        %293 = vst [vmem:[%s292] ss:$9 sm:$0xff] %v264
        %s295 = scalar_lea.vmem [#allocation1], 3
        %296 = vst [vmem:[%s295] ss:$9 sm:$0xff] %v265
        %v297 = vld [vmem:[#allocation1] sm:$0xff]
        %v315 = vunpack.c.l.b16 %v266
        %v316 = vunpack.c.l.b16 %v267
        %v317 = vunpack.c.l.b16 %v268
        %v318 = vunpack.c.l.b16 %v269
        %v319 = vunpack.c.l.b16 %v270
        %v320 = vunpack.c.l.b16 %v271
        %v321 = vunpack.c.l.b16 %v272
        %v322 = vunpack.c.l.b16 %v273
        %v323 = vunpack.c.l.b16 %v274
        %v324 = vunpack.c.l.b16 %v275
        %v325 = vunpack.c.l.b16 %v276
        %v326 = vunpack.c.l.b16 %v277
        %v327 = vunpack.c.l.b16 %v278
        %v328 = vunpack.c.l.b16 %v279
        %v329 = vunpack.c.l.b16 %v280
        %v330 = vunpack.c.l.b16 %v281
        %v331 = vpack.c.b16 %v316, %v315
        %v332 = vpack.c.b16 %v318, %v317
        %v333 = vpack.c.b16 %v320, %v319
        %v334 = vpack.c.b16 %v322, %v321
        %v335 = vpack.c.b16 %v324, %v323
        %v336 = vpack.c.b16 %v326, %v325
        %v337 = vpack.c.b16 %v328, %v327
        %v338 = vpack.c.b16 %v330, %v329
        %347 = vmatpush.bf16.msra.mxu0 %v338
        %348 = vmatpush.bf16.msra.mxu0 %v337
        %349 = vmatpush.bf16.msra.mxu0 %v336
        %350 = vmatpush.bf16.msra.mxu0 %v335
        %351 = vmatpush.bf16.msra.mxu0 %v334
        %352 = vmatpush.bf16.msra.mxu0 %v333
        %353 = vmatpush.bf16.msra.mxu0 %v332
        %354 = vmatpush.bf16.msra.mxu0 %v331
        %355 = vmatmul.bf16.gmra.mxu0 %v297
        %v356 = vpop.f32.mrf.mxu0
        %v357 = vadd.f32 %v284, %v356
        %v358 = vpop.f32.mrf.mxu0
        %359 = vdwg.mxu0
        %360 = vst [vmem:[%s234] sm:$0xff] %v357
        %s361 = sand.u32 %s129, 1
        %s362 = sand.u32 %s129, 1
        %s363 = smul.addr %s362, 8
        %s364 = scalar_lea.vmem [#allocation2], %s363
        // Predicated region
        $region33: #{_lambda_.17} parent=31 // pred_check
          %p365 = pneg %p139
        $region34: #{_lambda_.17} parent=31 // pred_check_branch
          %367 = sbr.rel (%p365) target = $region36
        $region35: #{_lambda_.17} parent=31 // pred_region
          %s368 = smul.u32 4, %s20
          %s369 = ssub.s32 1, %s368
          %s370 = smul.u32 2, %s369
          %p371 = scmp.ne.s32.totalorder 0, %s370
          %s372 = sadd.s32 %s21, %s368
          %s373 = sadd.s32 %s372, %s19
          %s374 = smul.addr %s373, 2
          %s375 = scalar_lea.vmem %s3, %s374
          // Predicated region
          $region37: #{_lambda_.17} parent=35 // pred_check
            %p376 = pneg %p371
          $region38: #{_lambda_.17} parent=35 // pred_check_branch
            %378 = sbr.rel (%p376) target = $region40
          $region39: #{_lambda_.17} parent=35 // pred_region
            // Predicated region
            $region41: #{_lambda_.17} parent=39 // pred_check
              _
            $region42: #{_lambda_.17} parent=39 // pred_check_branch
              %380 = sbr.rel target = $region44
            $region43: #{_lambda_.17} parent=39 // pred_region
              // Predicated region
              $region56: #{_lambda_.17} parent=43 // pred_check
                _
              $region57: #{_lambda_.17} parent=43 // pred_check_branch
                %404 = sbr.rel (0) target = $region59
              $region58: #{_lambda_.17} parent=43 // pred_region
                %s406 = ssub.s32 4, 1
                // While loop
                $region60: #{_lambda_.17} parent=58 // loop_pre_header
                  _
                $region61: #{_lambda_.17} parent=58 // loop_header
                  %s408 = sphi 0, %s410
                  %p409 = scmp.ge.s32.totalorder %s408, %s369
                  %s413 = sphi 0, %s420
                  %s414 = sphi %s364, %s423
                  %s415 = sphi %s375, %s424
                $region62: #{_lambda_.17} parent=58 // loop_header_branch
                  %412 = sbr.rel (%p409) target = $region66
                $region63: #{_lambda_.17} parent=58 // loop_body
                  %v416 = vld [vmem:[%s414] sm:%s406]
                  %417 = vst [vmem:[%s415] sm:%s406] %v416
                  %s418 = sadd.s32 1, %s413
                  %p419 = scmp.ge.s32.totalorder %s418, %s369
                  %s420 = scalar_select %p419, 0, %s418
                  %s421 = smul.u32 %s420, 2
                  %s422 = smul.u32 %s420, 2
                  %s423 = scalar_lea.vmem %s364, %s421 [#allocation2]
                  %s424 = scalar_lea.vmem %s375, %s422
                $region64: #{_lambda_.17} parent=58 // loop_footer
                  %s410 = sadd.s32 %s408, 1
                $region65: #{_lambda_.17} parent=58 // loop_footer_branch
                  %407 = sbr.rel target = $region61
                $region66: #{_lambda_.17} parent=58 // loop_exit
                  _
              $region59: #{_lambda_.17} parent=43 // pred_fallthru
                _
            $region44: #{_lambda_.17} parent=39 // pred_fallthru
              _
            // Predicated region
            $region45: #{_lambda_.17} parent=39 // pred_check
              _
            $region46: #{_lambda_.17} parent=39 // pred_check_branch
              %382 = sbr.rel (0) target = $region48
            $region47: #{_lambda_.17} parent=39 // pred_region
              %s384 = ssub.s32 4, 1
              // While loop
              $region49: #{_lambda_.17} parent=47 // loop_pre_header
                _
              $region50: #{_lambda_.17} parent=47 // loop_header
                %s386 = sphi 0, %s388
                %p387 = scmp.ge.s32.totalorder %s386, %s369
                %s391 = sphi 0, %s398
                %s392 = sphi %s364, %s401
                %s393 = sphi %s375, %s402
              $region51: #{_lambda_.17} parent=47 // loop_header_branch
                %390 = sbr.rel (%p387) target = $region55
              $region52: #{_lambda_.17} parent=47 // loop_body
                %v394 = vld [vmem:[%s392] sm:%s384]
                %395 = vst [vmem:[%s393] sm:%s384] %v394
                %s396 = sadd.s32 1, %s391
                %p397 = scmp.ge.s32.totalorder %s396, %s369
                %s398 = scalar_select %p397, 0, %s396
                %s399 = smul.u32 %s398, 2
                %s400 = smul.u32 %s398, 2
                %s401 = scalar_lea.vmem %s364, %s399 [#allocation2]
                %s402 = scalar_lea.vmem %s375, %s400
              $region53: #{_lambda_.17} parent=47 // loop_footer
                %s388 = sadd.s32 %s386, 1
              $region54: #{_lambda_.17} parent=47 // loop_footer_branch
                %385 = sbr.rel target = $region50
              $region55: #{_lambda_.17} parent=47 // loop_exit
                _
            $region48: #{_lambda_.17} parent=39 // pred_fallthru
              _
          $region40: #{_lambda_.17} parent=35 // pred_fallthru
            _
          %425 = vnop
        $region36: #{_lambda_.17} parent=31 // pred_fallthru
          _
      $region32: #{_lambda_.17} parent=5 // pred_fallthru
        _
      %p426 = scmp.le.s32.totalorder 2, %s9
      // Predicated region
      $region67: #{_lambda_.17} parent=5 // pred_check
        %p427 = pneg %p426
      $region68: #{_lambda_.17} parent=5 // pred_check_branch
        %429 = sbr.rel (%p427) target = $region70
      $region69: #{_lambda_.17} parent=5 // pred_region
        %s430 = ssub.s32 %s9, 2
        // Predicated region
        $region71: #{_lambda_.17} parent=69 // pred_check
          %p431 = pneg %p145
        $region72: #{_lambda_.17} parent=69 // pred_check_branch
          %433 = sbr.rel (%p431) target = $region74
        $region73: #{_lambda_.17} parent=69 // pred_region
          %s434 = sand.u32 %s130, 1
          %s435 = sand.u32 %s130, 1
          %s436 = smul.addr %s435, 8
          %s437 = scalar_lea.vmem [#allocation2], %s436
        $region74: #{_lambda_.17} parent=69 // pred_fallthru
          _
      $region70: #{_lambda_.17} parent=5 // pred_fallthru
        _
    $region6: #{_lambda_.17} parent=1 // loop_footer
      %s13 = sadd.s32 1, %s9
    $region7: #{_lambda_.17} parent=1 // loop_footer_branch
      %8 = sbr.rel target = $region3
    $region8: #{_lambda_.17} parent=1 // loop_exit
      _

</llo_original>
